<compile_context>
chip_gen: v6e
topology: v6e:2x2x1
jax: 0.10.0
libtpu: 0.0.40
codegen_flags: <defaults>
</compile_context>

<pallas_src>
import functools

import numpy as np
import jax
import jax.numpy as jnp
from jax.experimental import pallas as pl
from jax.experimental.pallas import tpu as pltpu

_LANE = 128
_EPS = 1e-5
_VMEM_LIMIT = 64 * 1024 * 1024


def _round_up(x, m):
    return ((x + m - 1) // m) * m


# ----------------------------- Pallas kernels ------------------------------

def _conv_fused_kernel(*refs, n_phases, taps, lout, epilogue):
    """Fused Conv1d + bias (+InstanceNorm1d) (+ReLU | +residual) kernel.

    refs: x_phase_0 .. x_phase_{P-1}, w, b, [residual], out
      x_phase_p : (1, Lp_p, Cin_pad)  f32
      w         : (K, Cin_pad, CT)    bf16   (CT = 128 output-channel tile)
      b         : (1, CT)             f32
      residual  : (1, lout, CT)       f32    (only for epilogue == "norm_add")
      out       : (1, lout, CT)       f32
    taps: static tuple of (phase_idx, tap_offset, weight_idx).
    """
    x_refs = refs[:n_phases]
    w_ref = refs[n_phases]
    b_ref = refs[n_phases + 1]
    o_ref = refs[-1]
    r_ref = refs[-2] if epilogue == "norm_add" else None

    ct = o_ref.shape[-1]

    # Hoist f32->bf16 cast: each phase is cast once, not once per tap.
    used_phases = sorted({p for (p, _, _) in taps})
    xb = {p: x_refs[p][0, :, :].astype(jnp.bfloat16) for p in used_phases}

    # Accumulator starts from the broadcast bias (saves one full-tile add).
    acc = jnp.broadcast_to(b_ref[...], (lout, ct))
    for (p, t, k) in taps:                       # static unrolled tap loop
        acc = acc + jnp.dot(xb[p][t:t + lout, :], w_ref[k],
                            preferred_element_type=jnp.float32)

    if epilogue == "none":
        o_ref[0, :, :] = acc
        return

    # InstanceNorm1d (affine=False, biased var): single pass sum / sum-sq.
    inv_l = 1.0 / lout
    mu = jnp.sum(acc, axis=0, keepdims=True) * inv_l
    ex2 = jnp.sum(acc * acc, axis=0, keepdims=True) * inv_l
    var = jnp.maximum(ex2 - mu * mu, 0.0)
    y = (acc - mu) * jax.lax.rsqrt(var + _EPS)
    if epilogue == "norm_relu":
        o_ref[0, :, :] = jnp.maximum(y, 0.0)
    else:  # "norm_add": residual tail of a ResidualBlock (x + block(x))
        o_ref[0, :, :] = r_ref[0, :, :] + y


def _convT_fused_kernel(x_ref, w_ref, b_ref, o0_ref, o1_ref, *,
                        lhalf, taps0, taps1):
    """Fused ConvTranspose1d (k=5, s=2, p=2, op=1) + bias + InstanceNorm + ReLU.

    Polyphase: even / odd output positions are two tap-sums over the same
    zero-padded input; instance-norm statistics are taken over BOTH phases
    (i.e. over the full output length 2*lhalf).
    """
    ct = o0_ref.shape[-1]
    xb = x_ref[0, :, :].astype(jnp.bfloat16)      # cast once, shared by phases

    def tap_sum(taps):
        acc = jnp.broadcast_to(b_ref[...], (lhalf, ct))
        for (t, k) in taps:
            acc = acc + jnp.dot(xb[t:t + lhalf, :], w_ref[k],
                                preferred_element_type=jnp.float32)
        return acc

    a0 = tap_sum(taps0)    # even output positions
    a1 = tap_sum(taps1)    # odd output positions

    inv_l = 1.0 / (2 * lhalf)
    mu = (jnp.sum(a0, axis=0, keepdims=True)
          + jnp.sum(a1, axis=0, keepdims=True)) * inv_l
    ex2 = (jnp.sum(a0 * a0, axis=0, keepdims=True)
           + jnp.sum(a1 * a1, axis=0, keepdims=True)) * inv_l
    var = jnp.maximum(ex2 - mu * mu, 0.0)
    scale = jax.lax.rsqrt(var + _EPS)
    o0_ref[0, :, :] = jnp.maximum((a0 - mu) * scale, 0.0)
    o1_ref[0, :, :] = jnp.maximum((a1 - mu) * scale, 0.0)


# ------------------------------ layer wrappers ------------------------------

def conv1d_fused(x, w_packed, b_packed, *, stride, padding, epilogue,
                 residual=None):
    """PyTorch-semantics Conv1d fused with bias + InstanceNorm(+ReLU/+residual).

    x        : (N, L, Cin_pad) f32, channels already zero-padded to 128*k.
    w_packed : (K, Cin_pad, Cout_pad) bf16, w_packed[k, ci, co] = torch_w[co, ci, k].
    b_packed : (1, Cout_pad) f32.
    """
    N, L, cin_pad = x.shape
    K, _, cout_pad = w_packed.shape
    lout = (L + 2 * padding - K) // stride + 1

    xp = jnp.pad(x, ((0, 0), (padding, padding), (0, 0)))
    if stride == 1:
        phases = [xp]
        taps = tuple((0, k, k) for k in range(K))
    else:
        # Polyphase split of the padded input (cheap strided slice, no K-fold
        # im2col expansion): x_pad[s*m + r] == phase_r[m].
        taps = tuple((k % stride, k // stride, k) for k in range(K))
        phases = []
        for r in range(stride):
            need = lout + max(k // stride for k in range(K) if k % stride == r)
            ph = xp[:, r::stride, :]
            if ph.shape[1] < need:
                ph = jnp.pad(ph, ((0, 0), (0, need - ph.shape[1]), (0, 0)))
            phases.append(ph)

    ct = _LANE
    grid = (N, cout_pad // ct)
    in_specs = [pl.BlockSpec((1, ph.shape[1], cin_pad), lambda n, j: (n, 0, 0))
                for ph in phases]
    in_specs += [pl.BlockSpec((K, cin_pad, ct), lambda n, j: (0, 0, j)),
                 pl.BlockSpec((1, ct), lambda n, j: (0, j))]
    args = list(phases) + [w_packed, b_packed]
    if epilogue == "norm_add":
        in_specs.append(pl.BlockSpec((1, lout, ct), lambda n, j: (n, 0, j)))
        args.append(residual)

    kernel = functools.partial(_conv_fused_kernel, n_phases=len(phases),
                               taps=taps, lout=lout, epilogue=epilogue)
    # TODO(synk): for very long sequences additionally tile the length axis
    # (online / two-pass norm) so the (1, Lout, 128) block stays within VMEM.
    return pl.pallas_call(
        kernel,
        out_shape=jax.ShapeDtypeStruct((N, lout, cout_pad), jnp.float32),
        grid=grid,
        in_specs=in_specs,
        out_specs=pl.BlockSpec((1, lout, ct), lambda n, j: (n, 0, j)),
        compiler_params=pltpu.CompilerParams(
            dimension_semantics=("parallel", "parallel"),
            vmem_limit_bytes=_VMEM_LIMIT),
    )(*args)


def conv_transpose1d_fused(x, w_packed, b_packed):
    """ConvTranspose1d(k=5, s=2, p=2, output_padding=1) + InstanceNorm + ReLU.

    x        : (N, L, Cin_pad) f32.
    w_packed : (5, Cin_pad, Cout_pad) bf16, w_packed[k, ci, co] = torch_w[ci, co, k].
    Returns (N, 2*L, Cout_pad) f32.
    """
    N, L, cin_pad = x.shape
    K, _, cout_pad = w_packed.shape
    lout = 2 * L                      # (L-1)*2 - 2*2 + 5 + 1
    lhalf = L

    xp = jnp.pad(x, ((0, 0), (1, 1), (0, 0)))     # x[-1] and x[L] become 0
    # y[2q]   = x[q+1] W0 + x[q] W2 + x[q-1] W4   ->  xp taps (2,0),(1,2),(0,4)
    # y[2q+1] = x[q+1] W1 + x[q] W3               ->  xp taps (2,1),(1,3)
    taps0 = ((2, 0), (1, 2), (0, 4))
    taps1 = ((2, 1), (1, 3))

    ct = _LANE
    kernel = functools.partial(_convT_fused_kernel, lhalf=lhalf,
                               taps0=taps0, taps1=taps1)
    even, odd = pl.pallas_call(
        kernel,
        out_shape=(jax.ShapeDtypeStruct((N, lhalf, cout_pad), jnp.float32),
                   jax.ShapeDtypeStruct((N, lhalf, cout_pad), jnp.float32)),
        grid=(N, cout_pad // ct),
        in_specs=[pl.BlockSpec((1, L + 2, cin_pad), lambda n, j: (n, 0, 0)),
                  pl.BlockSpec((K, cin_pad, ct), lambda n, j: (0, 0, j)),
                  pl.BlockSpec((1, ct), lambda n, j: (0, j))],
        out_specs=(pl.BlockSpec((1, lhalf, ct), lambda n, j: (n, 0, j)),
                   pl.BlockSpec((1, lhalf, ct), lambda n, j: (n, 0, j))),
        compiler_params=pltpu.CompilerParams(
            dimension_semantics=("parallel", "parallel"),
            vmem_limit_bytes=_VMEM_LIMIT),
    )(xp, w_packed, b_packed)
    # Interleave output phases: y[:, 2q + r, :] = phase_r[:, q, :]
    # TODO(synk): writing the interleaved result directly from the kernel would
    # need a sublane-interleaved store; XLA stack+reshape is cheap vs the MXU
    # work of these layers, so we keep it on the host-graph side.
    return jnp.stack([even, odd], axis=2).reshape(N, lout, cout_pad)


# ------------------------- parameters (torch layout) ------------------------

def init_generator_params(key, input_dim, hidden_dim, num_res):
    def conv_init(k, cin, cout, ksz):
        k1, k2 = jax.random.split(k)
        bound = float(1.0 / np.sqrt(cin * ksz))
        w = jax.random.uniform(k1, (cout, cin, ksz), jnp.float32, -bound, bound)
        b = jax.random.uniform(k2, (cout,), jnp.float32, -bound, bound)
        return w, b

    def convT_init(k, cin, cout, ksz):
        k1, k2 = jax.random.split(k)
        bound = float(1.0 / np.sqrt(cout * ksz))
        w = jax.random.uniform(k1, (cin, cout, ksz), jnp.float32, -bound, bound)
        b = jax.random.uniform(k2, (cout,), jnp.float32, -bound, bound)
        return w, b

    keys = iter(jax.random.split(key, 64))
    params = {}
    h = hidden_dim
    params["conv0"] = conv_init(next(keys), input_dim, h, 15)
    for i in range(2):
        params[f"down{i}"] = conv_init(next(keys), h, 2 * h, 5)
        h *= 2
    for i in range(num_res):
        params[f"res{i}_c1"] = conv_init(next(keys), h, h, 3)
        params[f"res{i}_c2"] = conv_init(next(keys), h, h, 3)
    for i in range(2):
        params[f"up{i}"] = convT_init(next(keys), h, h // 2, 5)
        h //= 2
    params["final"] = conv_init(next(keys), h, input_dim, 15)
    return params


def _pack_conv(w_oik, b, cin_pad, cout_pad):
    cout, cin, _ = w_oik.shape
    w = jnp.transpose(w_oik, (2, 1, 0))                    # (K, Cin, Cout)
    w = jnp.pad(w, ((0, 0), (0, cin_pad - cin), (0, cout_pad - cout)))
    bp = jnp.pad(b, (0, cout_pad - cout)).reshape(1, cout_pad)
    return w.astype(jnp.bfloat16), bp.astype(jnp.float32)


def _pack_convT(w_iok, b, cin_pad, cout_pad):
    cin, cout, _ = w_iok.shape
    w = jnp.transpose(w_iok, (2, 0, 1))                    # (K, Cin, Cout)
    w = jnp.pad(w, ((0, 0), (0, cin_pad - cin), (0, cout_pad - cout)))
    bp = jnp.pad(b, (0, cout_pad - cout)).reshape(1, cout_pad)
    return w.astype(jnp.bfloat16), bp.astype(jnp.float32)


def pack_generator_params(params, input_dim, hidden_dim, num_res):
    cp = lambda c: _round_up(c, _LANE)
    packed = {}
    h = hidden_dim
    packed["conv0"] = _pack_conv(*params["conv0"], cp(input_dim), cp(h))
    for i in range(2):
        packed[f"down{i}"] = _pack_conv(*params[f"down{i}"], cp(h), cp(2 * h))
        h *= 2
    for i in range(num_res):
        packed[f"res{i}_c1"] = _pack_conv(*params[f"res{i}_c1"], cp(h), cp(h))
        packed[f"res{i}_c2"] = _pack_conv(*params[f"res{i}_c2"], cp(h), cp(h))
    for i in range(2):
        packed[f"up{i}"] = _pack_convT(*params[f"up{i}"], cp(h), cp(h // 2))
        h //= 2
    packed["final"] = _pack_conv(*params["final"], cp(h), cp(input_dim))
    return packed


# ----------------------------- Generator forward ----------------------------

def generator_forward(packed, x_ncl, *, input_dim, num_res):
    N, cin, L = x_ncl.shape
    cin_pad = _round_up(cin, _LANE)
    # NCL (torch) -> NLC, channels zero-padded up to a multiple of 128 lanes.
    x = jnp.transpose(x_ncl, (0, 2, 1)).astype(jnp.float32)
    x = jnp.pad(x, ((0, 0), (0, 0), (0, cin_pad - cin)))

    w, b = packed["conv0"]
    x = conv1d_fused(x, w, b, stride=1, padding=7, epilogue="norm_relu")

    for i in range(2):                                    # downsample
        w, b = packed[f"down{i}"]
        x = conv1d_fused(x, w, b, stride=2, padding=2, epilogue="norm_relu")

    for i in range(num_res):                              # residual blocks
        w1, b1 = packed[f"res{i}_c1"]
        w2, b2 = packed[f"res{i}_c2"]
        h = conv1d_fused(x, w1, b1, stride=1, padding=1, epilogue="norm_relu")
        x = conv1d_fused(h, w2, b2, stride=1, padding=1,
                         epilogue="norm_add", residual=x)

    for i in range(2):                                    # upsample
        w, b = packed[f"up{i}"]
        x = conv_transpose1d_fused(x, w, b)

    w, b = packed["final"]
    x = conv1d_fused(x, w, b, stride=1, padding=7, epilogue="none")

    x = x[:, :, :input_dim]                               # drop channel padding
    return jnp.transpose(x, (0, 2, 1))                    # back to NCL


# ---------------------------------- main ------------------------------------

if __name__ == "__main__":
    key = jax.random.PRNGKey(0)
    pkey, xkey = jax.random.split(key)

    # Small shapes consistent with Generator(input_dim, hidden_dim, n_res)
    input_dim, hidden_dim, num_res = 8, 16, 2
    N, L = 2, 16                                          # L divisible by 4

    params = init_generator_params(pkey, input_dim, hidden_dim, num_res)
    packed = pack_generator_params(params, input_dim, hidden_dim, num_res)
    x = jax.random.normal(xkey, (N, input_dim, L), jnp.float32)

    fwd = jax.jit(functools.partial(generator_forward,
                                    input_dim=input_dim, num_res=num_res))
    y = fwd(packed, x)
    jax.block_until_ready(y)

    assert y.shape == (N, input_dim, L), y.shape
    assert y.dtype == jnp.float32
    print("KERNEL_OK")
</pallas_src>

<mosaic_0001>
module attributes {stable_mosaic.version = 11 : i64} {
  func.func @_conv_fused_kernel(%arg0: i32, %arg1: i32, %arg2: memref<1x30x128xf32, #tpu.memory_space<vmem>>, %arg3: memref<15x128x128xbf16, #tpu.memory_space<vmem>>, %arg4: memref<1x128xf32, #tpu.memory_space<vmem>>, %arg5: memref<1x16x128xf32, #tpu.memory_space<vmem>>) attributes {dimension_semantics = [#tpu.dimension_semantics<parallel>, #tpu.dimension_semantics<parallel>], iteration_bounds = array<i64: 2, 1>, scalar_prefetch = 0 : i64, scratch_operands = 0 : i64, tpu.core_type = #tpu.core_type<tc>, window_params = [{transform_indices = @transform_0, window_bounds = array<i64: 1, 30, 128>}, {transform_indices = @transform_1, window_bounds = array<i64: 15, 128, 128>}, {transform_indices = @transform_2, window_bounds = array<i64: 1, 128>}, {transform_indices = @transform_3, window_bounds = array<i64: 1, 16, 128>}]} {
    %c0 = arith.constant 0 : index
    %c0_0 = arith.constant 0 : index
    %c0_1 = arith.constant 0 : index
    %0 = vector.load %arg2[%c0, %c0_0, %c0_1] : memref<1x30x128xf32, #tpu.memory_space<vmem>>, vector<1x30x128xf32>
    %1 = vector.shape_cast %0 : vector<1x30x128xf32> to vector<30x128xf32>
    %2 = arith.truncf %1 : vector<30x128xf32> to vector<30x128xbf16>
    %c0_2 = arith.constant 0 : index
    %c0_3 = arith.constant 0 : index
    %3 = vector.load %arg4[%c0_2, %c0_3] : memref<1x128xf32, #tpu.memory_space<vmem>>, vector<1x128xf32>
    %4 = vector.shape_cast %3 : vector<1x128xf32> to vector<1x128xf32>
    %5 = vector.broadcast %4 : vector<1x128xf32> to vector<16x128xf32>
    %6 = vector.extract_strided_slice %2 {offsets = [0, 0], sizes = [16, 128], strides = [1, 1]} : vector<30x128xbf16> to vector<16x128xbf16>
    %c0_4 = arith.constant 0 : index
    %c0_5 = arith.constant 0 : index
    %c0_6 = arith.constant 0 : index
    %7 = vector.load %arg3[%c0_4, %c0_5, %c0_6] : memref<15x128x128xbf16, #tpu.memory_space<vmem>>, vector<1x128x128xbf16>
    %8 = vector.shape_cast %7 : vector<1x128x128xbf16> to vector<128x128xbf16>
    %cst = arith.constant dense<0.000000e+00> : vector<16x128xf32>
    %9 = tpu.matmul %6, %8, %cst {dimension_numbers = #tpu.dot_dimension_numbers<[1], [0], [0], [1], [0, 0, 1, 1], [], []>} : vector<16x128xbf16>, vector<128x128xbf16>, vector<16x128xf32> -> vector<16x128xf32>
    %10 = arith.addf %5, %9 : vector<16x128xf32>
    %11 = vector.extract_strided_slice %2 {offsets = [1, 0], sizes = [16, 128], strides = [1, 1]} : vector<30x128xbf16> to vector<16x128xbf16>
    %c1 = arith.constant 1 : index
    %c0_7 = arith.constant 0 : index
    %c0_8 = arith.constant 0 : index
    %12 = vector.load %arg3[%c1, %c0_7, %c0_8] : memref<15x128x128xbf16, #tpu.memory_space<vmem>>, vector<1x128x128xbf16>
    %13 = vector.shape_cast %12 : vector<1x128x128xbf16> to vector<128x128xbf16>
    %cst_9 = arith.constant dense<0.000000e+00> : vector<16x128xf32>
    %14 = tpu.matmul %11, %13, %cst_9 {dimension_numbers = #tpu.dot_dimension_numbers<[1], [0], [0], [1], [0, 0, 1, 1], [], []>} : vector<16x128xbf16>, vector<128x128xbf16>, vector<16x128xf32> -> vector<16x128xf32>
    %15 = arith.addf %10, %14 : vector<16x128xf32>
    %16 = vector.extract_strided_slice %2 {offsets = [2, 0], sizes = [16, 128], strides = [1, 1]} : vector<30x128xbf16> to vector<16x128xbf16>
    %c2 = arith.constant 2 : index
    %c0_10 = arith.constant 0 : index
    %c0_11 = arith.constant 0 : index
    %17 = vector.load %arg3[%c2, %c0_10, %c0_11] : memref<15x128x128xbf16, #tpu.memory_space<vmem>>, vector<1x128x128xbf16>
    %18 = vector.shape_cast %17 : vector<1x128x128xbf16> to vector<128x128xbf16>
    %cst_12 = arith.constant dense<0.000000e+00> : vector<16x128xf32>
    %19 = tpu.matmul %16, %18, %cst_12 {dimension_numbers = #tpu.dot_dimension_numbers<[1], [0], [0], [1], [0, 0, 1, 1], [], []>} : vector<16x128xbf16>, vector<128x128xbf16>, vector<16x128xf32> -> vector<16x128xf32>
    %20 = arith.addf %15, %19 : vector<16x128xf32>
    %21 = vector.extract_strided_slice %2 {offsets = [3, 0], sizes = [16, 128], strides = [1, 1]} : vector<30x128xbf16> to vector<16x128xbf16>
    %c3 = arith.constant 3 : index
    %c0_13 = arith.constant 0 : index
    %c0_14 = arith.constant 0 : index
    %22 = vector.load %arg3[%c3, %c0_13, %c0_14] : memref<15x128x128xbf16, #tpu.memory_space<vmem>>, vector<1x128x128xbf16>
    %23 = vector.shape_cast %22 : vector<1x128x128xbf16> to vector<128x128xbf16>
    %cst_15 = arith.constant dense<0.000000e+00> : vector<16x128xf32>
    %24 = tpu.matmul %21, %23, %cst_15 {dimension_numbers = #tpu.dot_dimension_numbers<[1], [0], [0], [1], [0, 0, 1, 1], [], []>} : vector<16x128xbf16>, vector<128x128xbf16>, vector<16x128xf32> -> vector<16x128xf32>
    %25 = arith.addf %20, %24 : vector<16x128xf32>
    %26 = vector.extract_strided_slice %2 {offsets = [4, 0], sizes = [16, 128], strides = [1, 1]} : vector<30x128xbf16> to vector<16x128xbf16>
    %c4 = arith.constant 4 : index
    %c0_16 = arith.constant 0 : index
    %c0_17 = arith.constant 0 : index
    %27 = vector.load %arg3[%c4, %c0_16, %c0_17] : memref<15x128x128xbf16, #tpu.memory_space<vmem>>, vector<1x128x128xbf16>
    %28 = vector.shape_cast %27 : vector<1x128x128xbf16> to vector<128x128xbf16>
    %cst_18 = arith.constant dense<0.000000e+00> : vector<16x128xf32>
    %29 = tpu.matmul %26, %28, %cst_18 {dimension_numbers = #tpu.dot_dimension_numbers<[1], [0], [0], [1], [0, 0, 1, 1], [], []>} : vector<16x128xbf16>, vector<128x128xbf16>, vector<16x128xf32> -> vector<16x128xf32>
    %30 = arith.addf %25, %29 : vector<16x128xf32>
    %31 = vector.extract_strided_slice %2 {offsets = [5, 0], sizes = [16, 128], strides = [1, 1]} : vector<30x128xbf16> to vector<16x128xbf16>
    %c5 = arith.constant 5 : index
    %c0_19 = arith.constant 0 : index
    %c0_20 = arith.constant 0 : index
    %32 = vector.load %arg3[%c5, %c0_19, %c0_20] : memref<15x128x128xbf16, #tpu.memory_space<vmem>>, vector<1x128x128xbf16>
    %33 = vector.shape_cast %32 : vector<1x128x128xbf16> to vector<128x128xbf16>
    %cst_21 = arith.constant dense<0.000000e+00> : vector<16x128xf32>
    %34 = tpu.matmul %31, %33, %cst_21 {dimension_numbers = #tpu.dot_dimension_numbers<[1], [0], [0], [1], [0, 0, 1, 1], [], []>} : vector<16x128xbf16>, vector<128x128xbf16>, vector<16x128xf32> -> vector<16x128xf32>
    %35 = arith.addf %30, %34 : vector<16x128xf32>
    %36 = vector.extract_strided_slice %2 {offsets = [6, 0], sizes = [16, 128], strides = [1, 1]} : vector<30x128xbf16> to vector<16x128xbf16>
    %c6 = arith.constant 6 : index
    %c0_22 = arith.constant 0 : index
    %c0_23 = arith.constant 0 : index
    %37 = vector.load %arg3[%c6, %c0_22, %c0_23] : memref<15x128x128xbf16, #tpu.memory_space<vmem>>, vector<1x128x128xbf16>
    %38 = vector.shape_cast %37 : vector<1x128x128xbf16> to vector<128x128xbf16>
    %cst_24 = arith.constant dense<0.000000e+00> : vector<16x128xf32>
    %39 = tpu.matmul %36, %38, %cst_24 {dimension_numbers = #tpu.dot_dimension_numbers<[1], [0], [0], [1], [0, 0, 1, 1], [], []>} : vector<16x128xbf16>, vector<128x128xbf16>, vector<16x128xf32> -> vector<16x128xf32>
    %40 = arith.addf %35, %39 : vector<16x128xf32>
    %41 = vector.extract_strided_slice %2 {offsets = [7, 0], sizes = [16, 128], strides = [1, 1]} : vector<30x128xbf16> to vector<16x128xbf16>
    %c7 = arith.constant 7 : index
    %c0_25 = arith.constant 0 : index
    %c0_26 = arith.constant 0 : index
    %42 = vector.load %arg3[%c7, %c0_25, %c0_26] : memref<15x128x128xbf16, #tpu.memory_space<vmem>>, vector<1x128x128xbf16>
    %43 = vector.shape_cast %42 : vector<1x128x128xbf16> to vector<128x128xbf16>
    %cst_27 = arith.constant dense<0.000000e+00> : vector<16x128xf32>
    %44 = tpu.matmul %41, %43, %cst_27 {dimension_numbers = #tpu.dot_dimension_numbers<[1], [0], [0], [1], [0, 0, 1, 1], [], []>} : vector<16x128xbf16>, vector<128x128xbf16>, vector<16x128xf32> -> vector<16x128xf32>
    %45 = arith.addf %40, %44 : vector<16x128xf32>
    %46 = vector.extract_strided_slice %2 {offsets = [8, 0], sizes = [16, 128], strides = [1, 1]} : vector<30x128xbf16> to vector<16x128xbf16>
    %c8 = arith.constant 8 : index
    %c0_28 = arith.constant 0 : index
    %c0_29 = arith.constant 0 : index
    %47 = vector.load %arg3[%c8, %c0_28, %c0_29] : memref<15x128x128xbf16, #tpu.memory_space<vmem>>, vector<1x128x128xbf16>
    %48 = vector.shape_cast %47 : vector<1x128x128xbf16> to vector<128x128xbf16>
    %cst_30 = arith.constant dense<0.000000e+00> : vector<16x128xf32>
    %49 = tpu.matmul %46, %48, %cst_30 {dimension_numbers = #tpu.dot_dimension_numbers<[1], [0], [0], [1], [0, 0, 1, 1], [], []>} : vector<16x128xbf16>, vector<128x128xbf16>, vector<16x128xf32> -> vector<16x128xf32>
    %50 = arith.addf %45, %49 : vector<16x128xf32>
    %51 = vector.extract_strided_slice %2 {offsets = [9, 0], sizes = [16, 128], strides = [1, 1]} : vector<30x128xbf16> to vector<16x128xbf16>
    %c9 = arith.constant 9 : index
    %c0_31 = arith.constant 0 : index
    %c0_32 = arith.constant 0 : index
    %52 = vector.load %arg3[%c9, %c0_31, %c0_32] : memref<15x128x128xbf16, #tpu.memory_space<vmem>>, vector<1x128x128xbf16>
    %53 = vector.shape_cast %52 : vector<1x128x128xbf16> to vector<128x128xbf16>
    %cst_33 = arith.constant dense<0.000000e+00> : vector<16x128xf32>
    %54 = tpu.matmul %51, %53, %cst_33 {dimension_numbers = #tpu.dot_dimension_numbers<[1], [0], [0], [1], [0, 0, 1, 1], [], []>} : vector<16x128xbf16>, vector<128x128xbf16>, vector<16x128xf32> -> vector<16x128xf32>
    %55 = arith.addf %50, %54 : vector<16x128xf32>
    %56 = vector.extract_strided_slice %2 {offsets = [10, 0], sizes = [16, 128], strides = [1, 1]} : vector<30x128xbf16> to vector<16x128xbf16>
    %c10 = arith.constant 10 : index
    %c0_34 = arith.constant 0 : index
    %c0_35 = arith.constant 0 : index
    %57 = vector.load %arg3[%c10, %c0_34, %c0_35] : memref<15x128x128xbf16, #tpu.memory_space<vmem>>, vector<1x128x128xbf16>
    %58 = vector.shape_cast %57 : vector<1x128x128xbf16> to vector<128x128xbf16>
    %cst_36 = arith.constant dense<0.000000e+00> : vector<16x128xf32>
    %59 = tpu.matmul %56, %58, %cst_36 {dimension_numbers = #tpu.dot_dimension_numbers<[1], [0], [0], [1], [0, 0, 1, 1], [], []>} : vector<16x128xbf16>, vector<128x128xbf16>, vector<16x128xf32> -> vector<16x128xf32>
    %60 = arith.addf %55, %59 : vector<16x128xf32>
    %61 = vector.extract_strided_slice %2 {offsets = [11, 0], sizes = [16, 128], strides = [1, 1]} : vector<30x128xbf16> to vector<16x128xbf16>
    %c11 = arith.constant 11 : index
    %c0_37 = arith.constant 0 : index
    %c0_38 = arith.constant 0 : index
    %62 = vector.load %arg3[%c11, %c0_37, %c0_38] : memref<15x128x128xbf16, #tpu.memory_space<vmem>>, vector<1x128x128xbf16>
    %63 = vector.shape_cast %62 : vector<1x128x128xbf16> to vector<128x128xbf16>
    %cst_39 = arith.constant dense<0.000000e+00> : vector<16x128xf32>
    %64 = tpu.matmul %61, %63, %cst_39 {dimension_numbers = #tpu.dot_dimension_numbers<[1], [0], [0], [1], [0, 0, 1, 1], [], []>} : vector<16x128xbf16>, vector<128x128xbf16>, vector<16x128xf32> -> vector<16x128xf32>
    %65 = arith.addf %60, %64 : vector<16x128xf32>
    %66 = vector.extract_strided_slice %2 {offsets = [12, 0], sizes = [16, 128], strides = [1, 1]} : vector<30x128xbf16> to vector<16x128xbf16>
    %c12 = arith.constant 12 : index
    %c0_40 = arith.constant 0 : index
    %c0_41 = arith.constant 0 : index
    %67 = vector.load %arg3[%c12, %c0_40, %c0_41] : memref<15x128x128xbf16, #tpu.memory_space<vmem>>, vector<1x128x128xbf16>
    %68 = vector.shape_cast %67 : vector<1x128x128xbf16> to vector<128x128xbf16>
    %cst_42 = arith.constant dense<0.000000e+00> : vector<16x128xf32>
    %69 = tpu.matmul %66, %68, %cst_42 {dimension_numbers = #tpu.dot_dimension_numbers<[1], [0], [0], [1], [0, 0, 1, 1], [], []>} : vector<16x128xbf16>, vector<128x128xbf16>, vector<16x128xf32> -> vector<16x128xf32>
    %70 = arith.addf %65, %69 : vector<16x128xf32>
    %71 = vector.extract_strided_slice %2 {offsets = [13, 0], sizes = [16, 128], strides = [1, 1]} : vector<30x128xbf16> to vector<16x128xbf16>
    %c13 = arith.constant 13 : index
    %c0_43 = arith.constant 0 : index
    %c0_44 = arith.constant 0 : index
    %72 = vector.load %arg3[%c13, %c0_43, %c0_44] : memref<15x128x128xbf16, #tpu.memory_space<vmem>>, vector<1x128x128xbf16>
    %73 = vector.shape_cast %72 : vector<1x128x128xbf16> to vector<128x128xbf16>
    %cst_45 = arith.constant dense<0.000000e+00> : vector<16x128xf32>
    %74 = tpu.matmul %71, %73, %cst_45 {dimension_numbers = #tpu.dot_dimension_numbers<[1], [0], [0], [1], [0, 0, 1, 1], [], []>} : vector<16x128xbf16>, vector<128x128xbf16>, vector<16x128xf32> -> vector<16x128xf32>
    %75 = arith.addf %70, %74 : vector<16x128xf32>
    %76 = vector.extract_strided_slice %2 {offsets = [14, 0], sizes = [16, 128], strides = [1, 1]} : vector<30x128xbf16> to vector<16x128xbf16>
    %c14 = arith.constant 14 : index
    %c0_46 = arith.constant 0 : index
    %c0_47 = arith.constant 0 : index
    %77 = vector.load %arg3[%c14, %c0_46, %c0_47] : memref<15x128x128xbf16, #tpu.memory_space<vmem>>, vector<1x128x128xbf16>
    %78 = vector.shape_cast %77 : vector<1x128x128xbf16> to vector<128x128xbf16>
    %cst_48 = arith.constant dense<0.000000e+00> : vector<16x128xf32>
    %79 = tpu.matmul %76, %78, %cst_48 {dimension_numbers = #tpu.dot_dimension_numbers<[1], [0], [0], [1], [0, 0, 1, 1], [], []>} : vector<16x128xbf16>, vector<128x128xbf16>, vector<16x128xf32> -> vector<16x128xf32>
    %80 = arith.addf %75, %79 : vector<16x128xf32>
    %cst_49 = arith.constant dense<0.000000e+00> : vector<128xf32>
    %81 = vector.multi_reduction <add>, %80, %cst_49 [0] : vector<16x128xf32> to vector<128xf32>
    %82 = vector.shape_cast %81 : vector<128xf32> to vector<1x128xf32>
    %cst_50 = arith.constant 6.250000e-02 : f32
    %83 = vector.broadcast %cst_50 : f32 to vector<1x128xf32>
    %84 = arith.mulf %82, %83 : vector<1x128xf32>
    %85 = arith.mulf %80, %80 : vector<16x128xf32>
    %cst_51 = arith.constant dense<0.000000e+00> : vector<128xf32>
    %86 = vector.multi_reduction <add>, %85, %cst_51 [0] : vector<16x128xf32> to vector<128xf32>
    %87 = vector.shape_cast %86 : vector<128xf32> to vector<1x128xf32>
    %cst_52 = arith.constant 6.250000e-02 : f32
    %88 = vector.broadcast %cst_52 : f32 to vector<1x128xf32>
    %89 = arith.mulf %87, %88 : vector<1x128xf32>
    %90 = arith.mulf %84, %84 : vector<1x128xf32>
    %91 = arith.subf %89, %90 : vector<1x128xf32>
    %cst_53 = arith.constant 0.000000e+00 : f32
    %92 = vector.broadcast %cst_53 : f32 to vector<1x128xf32>
    %93 = arith.maximumf %91, %92 : vector<1x128xf32>
    %94 = vector.broadcast %84 : vector<1x128xf32> to vector<16x128xf32>
    %95 = arith.subf %80, %94 : vector<16x128xf32>
    %cst_54 = arith.constant 9.99999974E-6 : f32
    %96 = vector.broadcast %cst_54 : f32 to vector<1x128xf32>
    %97 = arith.addf %93, %96 : vector<1x128xf32>
    %98 = math.rsqrt %97 : vector<1x128xf32>
    %99 = vector.broadcast %98 : vector<1x128xf32> to vector<16x128xf32>
    %100 = arith.mulf %95, %99 : vector<16x128xf32>
    %cst_55 = arith.constant 0.000000e+00 : f32
    %101 = vector.broadcast %cst_55 : f32 to vector<16x128xf32>
    %102 = arith.maximumf %100, %101 : vector<16x128xf32>
    %c0_56 = arith.constant 0 : index
    %c0_57 = arith.constant 0 : index
    %c0_58 = arith.constant 0 : index
    %103 = vector.load %arg5[%c0_56, %c0_57, %c0_58] : memref<1x16x128xf32, #tpu.memory_space<vmem>>, vector<1x16x128xf32>
    %104 = vector.shape_cast %103 : vector<1x16x128xf32> to vector<16x128xf32>
    %105 = vector.shape_cast %102 : vector<16x128xf32> to vector<1x16x128xf32>
    tpu.vector_store %arg5[%c0_56, %c0_57, %c0_58], %105 {strides = array<i32>} : memref<1x16x128xf32, #tpu.memory_space<vmem>>, vector<1x16x128xf32>,
    return
  }
  func.func @transform_0(%arg0: i32, %arg1: i32) -> (i32, i32, i32) {
    %c0_i32 = arith.constant 0 : i32
    %c0_i32_0 = arith.constant 0 : i32
    %c0_i32_1 = arith.constant 0 : i32
    return %arg0, %c0_i32, %c0_i32_0 : i32, i32, i32
  }
  func.func @transform_1(%arg0: i32, %arg1: i32) -> (i32, i32, i32) {
    %c0_i32 = arith.constant 0 : i32
    %c0_i32_0 = arith.constant 0 : i32
    %c0_i32_1 = arith.constant 0 : i32
    return %c0_i32, %c0_i32_0, %arg1 : i32, i32, i32
  }
  func.func @transform_2(%arg0: i32, %arg1: i32) -> (i32, i32) {
    %c0_i32 = arith.constant 0 : i32
    %c0_i32_0 = arith.constant 0 : i32
    return %c0_i32, %arg1 : i32, i32
  }
  func.func @transform_3(%arg0: i32, %arg1: i32) -> (i32, i32, i32) {
    %c0_i32 = arith.constant 0 : i32
    %c0_i32_0 = arith.constant 0 : i32
    return %arg0, %c0_i32, %arg1 : i32, i32, i32
  }
}

module attributes {stable_mosaic.version = 11 : i64} {
  func.func @_conv_fused_kernel(%arg0: i32, %arg1: i32, %arg2: memref<1x10x128xf32, #tpu.memory_space<vmem>>, %arg3: memref<1x10x128xf32, #tpu.memory_space<vmem>>, %arg4: memref<5x128x128xbf16, #tpu.memory_space<vmem>>, %arg5: memref<1x128xf32, #tpu.memory_space<vmem>>, %arg6: memref<1x8x128xf32, #tpu.memory_space<vmem>>) attributes {dimension_semantics = [#tpu.dimension_semantics<parallel>, #tpu.dimension_semantics<parallel>], iteration_bounds = array<i64: 2, 1>, scalar_prefetch = 0 : i64, scratch_operands = 0 : i64, tpu.core_type = #tpu.core_type<tc>, window_params = [{transform_indices = @transform_0, window_bounds = array<i64: 1, 10, 128>}, {transform_indices = @transform_1, window_bounds = array<i64: 1, 10, 128>}, {transform_indices = @transform_2, window_bounds = array<i64: 5, 128, 128>}, {transform_indices = @transform_3, window_bounds = array<i64: 1, 128>}, {transform_indices = @transform_4, window_bounds = array<i64: 1, 8, 128>}]} {
    %c0 = arith.constant 0 : index
    %c0_0 = arith.constant 0 : index
    %c0_1 = arith.constant 0 : index
    %0 = vector.load %arg2[%c0, %c0_0, %c0_1] : memref<1x10x128xf32, #tpu.memory_space<vmem>>, vector<1x10x128xf32>
    %1 = vector.shape_cast %0 : vector<1x10x128xf32> to vector<10x128xf32>
    %2 = arith.truncf %1 : vector<10x128xf32> to vector<10x128xbf16>
    %c0_2 = arith.constant 0 : index
    %c0_3 = arith.constant 0 : index
    %c0_4 = arith.constant 0 : index
    %3 = vector.load %arg3[%c0_2, %c0_3, %c0_4] : memref<1x10x128xf32, #tpu.memory_space<vmem>>, vector<1x10x128xf32>
    %4 = vector.shape_cast %3 : vector<1x10x128xf32> to vector<10x128xf32>
    %5 = arith.truncf %4 : vector<10x128xf32> to vector<10x128xbf16>
    %c0_5 = arith.constant 0 : index
    %c0_6 = arith.constant 0 : index
    %6 = vector.load %arg5[%c0_5, %c0_6] : memref<1x128xf32, #tpu.memory_space<vmem>>, vector<1x128xf32>
    %7 = vector.shape_cast %6 : vector<1x128xf32> to vector<1x128xf32>
    %8 = vector.broadcast %7 : vector<1x128xf32> to vector<8x128xf32>
    %9 = vector.extract_strided_slice %2 {offsets = [0, 0], sizes = [8, 128], strides = [1, 1]} : vector<10x128xbf16> to vector<8x128xbf16>
    %c0_7 = arith.constant 0 : index
    %c0_8 = arith.constant 0 : index
    %c0_9 = arith.constant 0 : index
    %10 = vector.load %arg4[%c0_7, %c0_8, %c0_9] : memref<5x128x128xbf16, #tpu.memory_space<vmem>>, vector<1x128x128xbf16>
    %11 = vector.shape_cast %10 : vector<1x128x128xbf16> to vector<128x128xbf16>
    %cst = arith.constant dense<0.000000e+00> : vector<8x128xf32>
    %12 = tpu.matmul %9, %11, %cst {dimension_numbers = #tpu.dot_dimension_numbers<[1], [0], [0], [1], [0, 0, 1, 1], [], []>} : vector<8x128xbf16>, vector<128x128xbf16>, vector<8x128xf32> -> vector<8x128xf32>
    %13 = arith.addf %8, %12 : vector<8x128xf32>
    %14 = vector.extract_strided_slice %5 {offsets = [0, 0], sizes = [8, 128], strides = [1, 1]} : vector<10x128xbf16> to vector<8x128xbf16>
    %c1 = arith.constant 1 : index
    %c0_10 = arith.constant 0 : index
    %c0_11 = arith.constant 0 : index
    %15 = vector.load %arg4[%c1, %c0_10, %c0_11] : memref<5x128x128xbf16, #tpu.memory_space<vmem>>, vector<1x128x128xbf16>
    %16 = vector.shape_cast %15 : vector<1x128x128xbf16> to vector<128x128xbf16>
    %cst_12 = arith.constant dense<0.000000e+00> : vector<8x128xf32>
    %17 = tpu.matmul %14, %16, %cst_12 {dimension_numbers = #tpu.dot_dimension_numbers<[1], [0], [0], [1], [0, 0, 1, 1], [], []>} : vector<8x128xbf16>, vector<128x128xbf16>, vector<8x128xf32> -> vector<8x128xf32>
    %18 = arith.addf %13, %17 : vector<8x128xf32>
    %19 = vector.extract_strided_slice %2 {offsets = [1, 0], sizes = [8, 128], strides = [1, 1]} : vector<10x128xbf16> to vector<8x128xbf16>
    %c2 = arith.constant 2 : index
    %c0_13 = arith.constant 0 : index
    %c0_14 = arith.constant 0 : index
    %20 = vector.load %arg4[%c2, %c0_13, %c0_14] : memref<5x128x128xbf16, #tpu.memory_space<vmem>>, vector<1x128x128xbf16>
    %21 = vector.shape_cast %20 : vector<1x128x128xbf16> to vector<128x128xbf16>
    %cst_15 = arith.constant dense<0.000000e+00> : vector<8x128xf32>
    %22 = tpu.matmul %19, %21, %cst_15 {dimension_numbers = #tpu.dot_dimension_numbers<[1], [0], [0], [1], [0, 0, 1, 1], [], []>} : vector<8x128xbf16>, vector<128x128xbf16>, vector<8x128xf32> -> vector<8x128xf32>
    %23 = arith.addf %18, %22 : vector<8x128xf32>
    %24 = vector.extract_strided_slice %5 {offsets = [1, 0], sizes = [8, 128], strides = [1, 1]} : vector<10x128xbf16> to vector<8x128xbf16>
    %c3 = arith.constant 3 : index
    %c0_16 = arith.constant 0 : index
    %c0_17 = arith.constant 0 : index
    %25 = vector.load %arg4[%c3, %c0_16, %c0_17] : memref<5x128x128xbf16, #tpu.memory_space<vmem>>, vector<1x128x128xbf16>
    %26 = vector.shape_cast %25 : vector<1x128x128xbf16> to vector<128x128xbf16>
    %cst_18 = arith.constant dense<0.000000e+00> : vector<8x128xf32>
    %27 = tpu.matmul %24, %26, %cst_18 {dimension_numbers = #tpu.dot_dimension_numbers<[1], [0], [0], [1], [0, 0, 1, 1], [], []>} : vector<8x128xbf16>, vector<128x128xbf16>, vector<8x128xf32> -> vector<8x128xf32>
    %28 = arith.addf %23, %27 : vector<8x128xf32>
    %29 = vector.extract_strided_slice %2 {offsets = [2, 0], sizes = [8, 128], strides = [1, 1]} : vector<10x128xbf16> to vector<8x128xbf16>
    %c4 = arith.constant 4 : index
    %c0_19 = arith.constant 0 : index
    %c0_20 = arith.constant 0 : index
    %30 = vector.load %arg4[%c4, %c0_19, %c0_20] : memref<5x128x128xbf16, #tpu.memory_space<vmem>>, vector<1x128x128xbf16>
    %31 = vector.shape_cast %30 : vector<1x128x128xbf16> to vector<128x128xbf16>
    %cst_21 = arith.constant dense<0.000000e+00> : vector<8x128xf32>
    %32 = tpu.matmul %29, %31, %cst_21 {dimension_numbers = #tpu.dot_dimension_numbers<[1], [0], [0], [1], [0, 0, 1, 1], [], []>} : vector<8x128xbf16>, vector<128x128xbf16>, vector<8x128xf32> -> vector<8x128xf32>
    %33 = arith.addf %28, %32 : vector<8x128xf32>
    %cst_22 = arith.constant dense<0.000000e+00> : vector<128xf32>
    %34 = vector.multi_reduction <add>, %33, %cst_22 [0] : vector<8x128xf32> to vector<128xf32>
    %35 = vector.shape_cast %34 : vector<128xf32> to vector<1x128xf32>
    %cst_23 = arith.constant 1.250000e-01 : f32
    %36 = vector.broadcast %cst_23 : f32 to vector<1x128xf32>
    %37 = arith.mulf %35, %36 : vector<1x128xf32>
    %38 = arith.mulf %33, %33 : vector<8x128xf32>
    %cst_24 = arith.constant dense<0.000000e+00> : vector<128xf32>
    %39 = vector.multi_reduction <add>, %38, %cst_24 [0] : vector<8x128xf32> to vector<128xf32>
    %40 = vector.shape_cast %39 : vector<128xf32> to vector<1x128xf32>
    %cst_25 = arith.constant 1.250000e-01 : f32
    %41 = vector.broadcast %cst_25 : f32 to vector<1x128xf32>
    %42 = arith.mulf %40, %41 : vector<1x128xf32>
    %43 = arith.mulf %37, %37 : vector<1x128xf32>
    %44 = arith.subf %42, %43 : vector<1x128xf32>
    %cst_26 = arith.constant 0.000000e+00 : f32
    %45 = vector.broadcast %cst_26 : f32 to vector<1x128xf32>
    %46 = arith.maximumf %44, %45 : vector<1x128xf32>
    %47 = vector.broadcast %37 : vector<1x128xf32> to vector<8x128xf32>
    %48 = arith.subf %33, %47 : vector<8x128xf32>
    %cst_27 = arith.constant 9.99999974E-6 : f32
    %49 = vector.broadcast %cst_27 : f32 to vector<1x128xf32>
    %50 = arith.addf %46, %49 : vector<1x128xf32>
    %51 = math.rsqrt %50 : vector<1x128xf32>
    %52 = vector.broadcast %51 : vector<1x128xf32> to vector<8x128xf32>
    %53 = arith.mulf %48, %52 : vector<8x128xf32>
    %cst_28 = arith.constant 0.000000e+00 : f32
    %54 = vector.broadcast %cst_28 : f32 to vector<8x128xf32>
    %55 = arith.maximumf %53, %54 : vector<8x128xf32>
    %c0_29 = arith.constant 0 : index
    %c0_30 = arith.constant 0 : index
    %c0_31 = arith.constant 0 : index
    %56 = vector.load %arg6[%c0_29, %c0_30, %c0_31] : memref<1x8x128xf32, #tpu.memory_space<vmem>>, vector<1x8x128xf32>
    %57 = vector.shape_cast %56 : vector<1x8x128xf32> to vector<8x128xf32>
    %58 = vector.shape_cast %55 : vector<8x128xf32> to vector<1x8x128xf32>
    tpu.vector_store %arg6[%c0_29, %c0_30, %c0_31], %58 {strides = array<i32>} : memref<1x8x128xf32, #tpu.memory_space<vmem>>, vector<1x8x128xf32>,
    return
  }
  func.func @transform_0(%arg0: i32, %arg1: i32) -> (i32, i32, i32) {
    %c0_i32 = arith.constant 0 : i32
    %c0_i32_0 = arith.constant 0 : i32
    %c0_i32_1 = arith.constant 0 : i32
    return %arg0, %c0_i32, %c0_i32_0 : i32, i32, i32
  }
  func.func @transform_1(%arg0: i32, %arg1: i32) -> (i32, i32, i32) {
    %c0_i32 = arith.constant 0 : i32
    %c0_i32_0 = arith.constant 0 : i32
    %c0_i32_1 = arith.constant 0 : i32
    return %arg0, %c0_i32, %c0_i32_0 : i32, i32, i32
  }
  func.func @transform_2(%arg0: i32, %arg1: i32) -> (i32, i32, i32) {
    %c0_i32 = arith.constant 0 : i32
    %c0_i32_0 = arith.constant 0 : i32
    %c0_i32_1 = arith.constant 0 : i32
    return %c0_i32, %c0_i32_0, %arg1 : i32, i32, i32
  }
  func.func @transform_3(%arg0: i32, %arg1: i32) -> (i32, i32) {
    %c0_i32 = arith.constant 0 : i32
    %c0_i32_0 = arith.constant 0 : i32
    return %c0_i32, %arg1 : i32, i32
  }
  func.func @transform_4(%arg0: i32, %arg1: i32) -> (i32, i32, i32) {
    %c0_i32 = arith.constant 0 : i32
    %c0_i32_0 = arith.constant 0 : i32
    return %arg0, %c0_i32, %arg1 : i32, i32, i32
  }
}

module attributes {stable_mosaic.version = 11 : i64} {
  func.func @_conv_fused_kernel(%arg0: i32, %arg1: i32, %arg2: memref<1x6x128xf32, #tpu.memory_space<vmem>>, %arg3: memref<1x6x128xf32, #tpu.memory_space<vmem>>, %arg4: memref<5x128x128xbf16, #tpu.memory_space<vmem>>, %arg5: memref<1x128xf32, #tpu.memory_space<vmem>>, %arg6: memref<1x4x128xf32, #tpu.memory_space<vmem>>) attributes {dimension_semantics = [#tpu.dimension_semantics<parallel>, #tpu.dimension_semantics<parallel>], iteration_bounds = array<i64: 2, 1>, scalar_prefetch = 0 : i64, scratch_operands = 0 : i64, tpu.core_type = #tpu.core_type<tc>, window_params = [{transform_indices = @transform_0, window_bounds = array<i64: 1, 6, 128>}, {transform_indices = @transform_1, window_bounds = array<i64: 1, 6, 128>}, {transform_indices = @transform_2, window_bounds = array<i64: 5, 128, 128>}, {transform_indices = @transform_3, window_bounds = array<i64: 1, 128>}, {transform_indices = @transform_4, window_bounds = array<i64: 1, 4, 128>}]} {
    %c0 = arith.constant 0 : index
    %c0_0 = arith.constant 0 : index
    %c0_1 = arith.constant 0 : index
    %0 = vector.load %arg2[%c0, %c0_0, %c0_1] : memref<1x6x128xf32, #tpu.memory_space<vmem>>, vector<1x6x128xf32>
    %1 = vector.shape_cast %0 : vector<1x6x128xf32> to vector<6x128xf32>
    %2 = arith.truncf %1 : vector<6x128xf32> to vector<6x128xbf16>
    %c0_2 = arith.constant 0 : index
    %c0_3 = arith.constant 0 : index
    %c0_4 = arith.constant 0 : index
    %3 = vector.load %arg3[%c0_2, %c0_3, %c0_4] : memref<1x6x128xf32, #tpu.memory_space<vmem>>, vector<1x6x128xf32>
    %4 = vector.shape_cast %3 : vector<1x6x128xf32> to vector<6x128xf32>
    %5 = arith.truncf %4 : vector<6x128xf32> to vector<6x128xbf16>
    %c0_5 = arith.constant 0 : index
    %c0_6 = arith.constant 0 : index
    %6 = vector.load %arg5[%c0_5, %c0_6] : memref<1x128xf32, #tpu.memory_space<vmem>>, vector<1x128xf32>
    %7 = vector.shape_cast %6 : vector<1x128xf32> to vector<1x128xf32>
    %8 = vector.broadcast %7 : vector<1x128xf32> to vector<4x128xf32>
    %9 = vector.extract_strided_slice %2 {offsets = [0, 0], sizes = [4, 128], strides = [1, 1]} : vector<6x128xbf16> to vector<4x128xbf16>
    %c0_7 = arith.constant 0 : index
    %c0_8 = arith.constant 0 : index
    %c0_9 = arith.constant 0 : index
    %10 = vector.load %arg4[%c0_7, %c0_8, %c0_9] : memref<5x128x128xbf16, #tpu.memory_space<vmem>>, vector<1x128x128xbf16>
    %11 = vector.shape_cast %10 : vector<1x128x128xbf16> to vector<128x128xbf16>
    %cst = arith.constant dense<0.000000e+00> : vector<4x128xf32>
    %12 = tpu.matmul %9, %11, %cst {dimension_numbers = #tpu.dot_dimension_numbers<[1], [0], [0], [1], [0, 0, 1, 1], [], []>} : vector<4x128xbf16>, vector<128x128xbf16>, vector<4x128xf32> -> vector<4x128xf32>
    %13 = arith.addf %8, %12 : vector<4x128xf32>
    %14 = vector.extract_strided_slice %5 {offsets = [0, 0], sizes = [4, 128], strides = [1, 1]} : vector<6x128xbf16> to vector<4x128xbf16>
    %c1 = arith.constant 1 : index
    %c0_10 = arith.constant 0 : index
    %c0_11 = arith.constant 0 : index
    %15 = vector.load %arg4[%c1, %c0_10, %c0_11] : memref<5x128x128xbf16, #tpu.memory_space<vmem>>, vector<1x128x128xbf16>
    %16 = vector.shape_cast %15 : vector<1x128x128xbf16> to vector<128x128xbf16>
    %cst_12 = arith.constant dense<0.000000e+00> : vector<4x128xf32>
    %17 = tpu.matmul %14, %16, %cst_12 {dimension_numbers = #tpu.dot_dimension_numbers<[1], [0], [0], [1], [0, 0, 1, 1], [], []>} : vector<4x128xbf16>, vector<128x128xbf16>, vector<4x128xf32> -> vector<4x128xf32>
    %18 = arith.addf %13, %17 : vector<4x128xf32>
    %19 = vector.extract_strided_slice %2 {offsets = [1, 0], sizes = [4, 128], strides = [1, 1]} : vector<6x128xbf16> to vector<4x128xbf16>
    %c2 = arith.constant 2 : index
    %c0_13 = arith.constant 0 : index
    %c0_14 = arith.constant 0 : index
    %20 = vector.load %arg4[%c2, %c0_13, %c0_14] : memref<5x128x128xbf16, #tpu.memory_space<vmem>>, vector<1x128x128xbf16>
    %21 = vector.shape_cast %20 : vector<1x128x128xbf16> to vector<128x128xbf16>
    %cst_15 = arith.constant dense<0.000000e+00> : vector<4x128xf32>
    %22 = tpu.matmul %19, %21, %cst_15 {dimension_numbers = #tpu.dot_dimension_numbers<[1], [0], [0], [1], [0, 0, 1, 1], [], []>} : vector<4x128xbf16>, vector<128x128xbf16>, vector<4x128xf32> -> vector<4x128xf32>
    %23 = arith.addf %18, %22 : vector<4x128xf32>
    %24 = vector.extract_strided_slice %5 {offsets = [1, 0], sizes = [4, 128], strides = [1, 1]} : vector<6x128xbf16> to vector<4x128xbf16>
    %c3 = arith.constant 3 : index
    %c0_16 = arith.constant 0 : index
    %c0_17 = arith.constant 0 : index
    %25 = vector.load %arg4[%c3, %c0_16, %c0_17] : memref<5x128x128xbf16, #tpu.memory_space<vmem>>, vector<1x128x128xbf16>
    %26 = vector.shape_cast %25 : vector<1x128x128xbf16> to vector<128x128xbf16>
    %cst_18 = arith.constant dense<0.000000e+00> : vector<4x128xf32>
    %27 = tpu.matmul %24, %26, %cst_18 {dimension_numbers = #tpu.dot_dimension_numbers<[1], [0], [0], [1], [0, 0, 1, 1], [], []>} : vector<4x128xbf16>, vector<128x128xbf16>, vector<4x128xf32> -> vector<4x128xf32>
    %28 = arith.addf %23, %27 : vector<4x128xf32>
    %29 = vector.extract_strided_slice %2 {offsets = [2, 0], sizes = [4, 128], strides = [1, 1]} : vector<6x128xbf16> to vector<4x128xbf16>
    %c4 = arith.constant 4 : index
    %c0_19 = arith.constant 0 : index
    %c0_20 = arith.constant 0 : index
    %30 = vector.load %arg4[%c4, %c0_19, %c0_20] : memref<5x128x128xbf16, #tpu.memory_space<vmem>>, vector<1x128x128xbf16>
    %31 = vector.shape_cast %30 : vector<1x128x128xbf16> to vector<128x128xbf16>
    %cst_21 = arith.constant dense<0.000000e+00> : vector<4x128xf32>
    %32 = tpu.matmul %29, %31, %cst_21 {dimension_numbers = #tpu.dot_dimension_numbers<[1], [0], [0], [1], [0, 0, 1, 1], [], []>} : vector<4x128xbf16>, vector<128x128xbf16>, vector<4x128xf32> -> vector<4x128xf32>
    %33 = arith.addf %28, %32 : vector<4x128xf32>
    %cst_22 = arith.constant dense<0.000000e+00> : vector<128xf32>
    %34 = vector.multi_reduction <add>, %33, %cst_22 [0] : vector<4x128xf32> to vector<128xf32>
    %35 = vector.shape_cast %34 : vector<128xf32> to vector<1x128xf32>
    %cst_23 = arith.constant 2.500000e-01 : f32
    %36 = vector.broadcast %cst_23 : f32 to vector<1x128xf32>
    %37 = arith.mulf %35, %36 : vector<1x128xf32>
    %38 = arith.mulf %33, %33 : vector<4x128xf32>
    %cst_24 = arith.constant dense<0.000000e+00> : vector<128xf32>
    %39 = vector.multi_reduction <add>, %38, %cst_24 [0] : vector<4x128xf32> to vector<128xf32>
    %40 = vector.shape_cast %39 : vector<128xf32> to vector<1x128xf32>
    %cst_25 = arith.constant 2.500000e-01 : f32
    %41 = vector.broadcast %cst_25 : f32 to vector<1x128xf32>
    %42 = arith.mulf %40, %41 : vector<1x128xf32>
    %43 = arith.mulf %37, %37 : vector<1x128xf32>
    %44 = arith.subf %42, %43 : vector<1x128xf32>
    %cst_26 = arith.constant 0.000000e+00 : f32
    %45 = vector.broadcast %cst_26 : f32 to vector<1x128xf32>
    %46 = arith.maximumf %44, %45 : vector<1x128xf32>
    %47 = vector.broadcast %37 : vector<1x128xf32> to vector<4x128xf32>
    %48 = arith.subf %33, %47 : vector<4x128xf32>
    %cst_27 = arith.constant 9.99999974E-6 : f32
    %49 = vector.broadcast %cst_27 : f32 to vector<1x128xf32>
    %50 = arith.addf %46, %49 : vector<1x128xf32>
    %51 = math.rsqrt %50 : vector<1x128xf32>
    %52 = vector.broadcast %51 : vector<1x128xf32> to vector<4x128xf32>
    %53 = arith.mulf %48, %52 : vector<4x128xf32>
    %cst_28 = arith.constant 0.000000e+00 : f32
    %54 = vector.broadcast %cst_28 : f32 to vector<4x128xf32>
    %55 = arith.maximumf %53, %54 : vector<4x128xf32>
    %c0_29 = arith.constant 0 : index
    %c0_30 = arith.constant 0 : index
    %c0_31 = arith.constant 0 : index
    %56 = vector.load %arg6[%c0_29, %c0_30, %c0_31] : memref<1x4x128xf32, #tpu.memory_space<vmem>>, vector<1x4x128xf32>
    %57 = vector.shape_cast %56 : vector<1x4x128xf32> to vector<4x128xf32>
    %58 = vector.shape_cast %55 : vector<4x128xf32> to vector<1x4x128xf32>
    tpu.vector_store %arg6[%c0_29, %c0_30, %c0_31], %58 {strides = array<i32>} : memref<1x4x128xf32, #tpu.memory_space<vmem>>, vector<1x4x128xf32>,
    return
  }
  func.func @transform_0(%arg0: i32, %arg1: i32) -> (i32, i32, i32) {
    %c0_i32 = arith.constant 0 : i32
    %c0_i32_0 = arith.constant 0 : i32
    %c0_i32_1 = arith.constant 0 : i32
    return %arg0, %c0_i32, %c0_i32_0 : i32, i32, i32
  }
  func.func @transform_1(%arg0: i32, %arg1: i32) -> (i32, i32, i32) {
    %c0_i32 = arith.constant 0 : i32
    %c0_i32_0 = arith.constant 0 : i32
    %c0_i32_1 = arith.constant 0 : i32
    return %arg0, %c0_i32, %c0_i32_0 : i32, i32, i32
  }
  func.func @transform_2(%arg0: i32, %arg1: i32) -> (i32, i32, i32) {
    %c0_i32 = arith.constant 0 : i32
    %c0_i32_0 = arith.constant 0 : i32
    %c0_i32_1 = arith.constant 0 : i32
    return %c0_i32, %c0_i32_0, %arg1 : i32, i32, i32
  }
  func.func @transform_3(%arg0: i32, %arg1: i32) -> (i32, i32) {
    %c0_i32 = arith.constant 0 : i32
    %c0_i32_0 = arith.constant 0 : i32
    return %c0_i32, %arg1 : i32, i32
  }
  func.func @transform_4(%arg0: i32, %arg1: i32) -> (i32, i32, i32) {
    %c0_i32 = arith.constant 0 : i32
    %c0_i32_0 = arith.constant 0 : i32
    return %arg0, %c0_i32, %arg1 : i32, i32, i32
  }
}

module attributes {stable_mosaic.version = 11 : i64} {
  func.func @_conv_fused_kernel(%arg0: i32, %arg1: i32, %arg2: memref<1x6x128xf32, #tpu.memory_space<vmem>>, %arg3: memref<3x128x128xbf16, #tpu.memory_space<vmem>>, %arg4: memref<1x128xf32, #tpu.memory_space<vmem>>, %arg5: memref<1x4x128xf32, #tpu.memory_space<vmem>>) attributes {dimension_semantics = [#tpu.dimension_semantics<parallel>, #tpu.dimension_semantics<parallel>], iteration_bounds = array<i64: 2, 1>, scalar_prefetch = 0 : i64, scratch_operands = 0 : i64, tpu.core_type = #tpu.core_type<tc>, window_params = [{transform_indices = @transform_0, window_bounds = array<i64: 1, 6, 128>}, {transform_indices = @transform_1, window_bounds = array<i64: 3, 128, 128>}, {transform_indices = @transform_2, window_bounds = array<i64: 1, 128>}, {transform_indices = @transform_3, window_bounds = array<i64: 1, 4, 128>}]} {
    %c0 = arith.constant 0 : index
    %c0_0 = arith.constant 0 : index
    %c0_1 = arith.constant 0 : index
    %0 = vector.load %arg2[%c0, %c0_0, %c0_1] : memref<1x6x128xf32, #tpu.memory_space<vmem>>, vector<1x6x128xf32>
    %1 = vector.shape_cast %0 : vector<1x6x128xf32> to vector<6x128xf32>
    %2 = arith.truncf %1 : vector<6x128xf32> to vector<6x128xbf16>
    %c0_2 = arith.constant 0 : index
    %c0_3 = arith.constant 0 : index
    %3 = vector.load %arg4[%c0_2, %c0_3] : memref<1x128xf32, #tpu.memory_space<vmem>>, vector<1x128xf32>
    %4 = vector.shape_cast %3 : vector<1x128xf32> to vector<1x128xf32>
    %5 = vector.broadcast %4 : vector<1x128xf32> to vector<4x128xf32>
    %6 = vector.extract_strided_slice %2 {offsets = [0, 0], sizes = [4, 128], strides = [1, 1]} : vector<6x128xbf16> to vector<4x128xbf16>
    %c0_4 = arith.constant 0 : index
    %c0_5 = arith.constant 0 : index
    %c0_6 = arith.constant 0 : index
    %7 = vector.load %arg3[%c0_4, %c0_5, %c0_6] : memref<3x128x128xbf16, #tpu.memory_space<vmem>>, vector<1x128x128xbf16>
    %8 = vector.shape_cast %7 : vector<1x128x128xbf16> to vector<128x128xbf16>
    %cst = arith.constant dense<0.000000e+00> : vector<4x128xf32>
    %9 = tpu.matmul %6, %8, %cst {dimension_numbers = #tpu.dot_dimension_numbers<[1], [0], [0], [1], [0, 0, 1, 1], [], []>} : vector<4x128xbf16>, vector<128x128xbf16>, vector<4x128xf32> -> vector<4x128xf32>
    %10 = arith.addf %5, %9 : vector<4x128xf32>
    %11 = vector.extract_strided_slice %2 {offsets = [1, 0], sizes = [4, 128], strides = [1, 1]} : vector<6x128xbf16> to vector<4x128xbf16>
    %c1 = arith.constant 1 : index
    %c0_7 = arith.constant 0 : index
    %c0_8 = arith.constant 0 : index
    %12 = vector.load %arg3[%c1, %c0_7, %c0_8] : memref<3x128x128xbf16, #tpu.memory_space<vmem>>, vector<1x128x128xbf16>
    %13 = vector.shape_cast %12 : vector<1x128x128xbf16> to vector<128x128xbf16>
    %cst_9 = arith.constant dense<0.000000e+00> : vector<4x128xf32>
    %14 = tpu.matmul %11, %13, %cst_9 {dimension_numbers = #tpu.dot_dimension_numbers<[1], [0], [0], [1], [0, 0, 1, 1], [], []>} : vector<4x128xbf16>, vector<128x128xbf16>, vector<4x128xf32> -> vector<4x128xf32>
    %15 = arith.addf %10, %14 : vector<4x128xf32>
    %16 = vector.extract_strided_slice %2 {offsets = [2, 0], sizes = [4, 128], strides = [1, 1]} : vector<6x128xbf16> to vector<4x128xbf16>
    %c2 = arith.constant 2 : index
    %c0_10 = arith.constant 0 : index
    %c0_11 = arith.constant 0 : index
    %17 = vector.load %arg3[%c2, %c0_10, %c0_11] : memref<3x128x128xbf16, #tpu.memory_space<vmem>>, vector<1x128x128xbf16>
    %18 = vector.shape_cast %17 : vector<1x128x128xbf16> to vector<128x128xbf16>
    %cst_12 = arith.constant dense<0.000000e+00> : vector<4x128xf32>
    %19 = tpu.matmul %16, %18, %cst_12 {dimension_numbers = #tpu.dot_dimension_numbers<[1], [0], [0], [1], [0, 0, 1, 1], [], []>} : vector<4x128xbf16>, vector<128x128xbf16>, vector<4x128xf32> -> vector<4x128xf32>
    %20 = arith.addf %15, %19 : vector<4x128xf32>
    %cst_13 = arith.constant dense<0.000000e+00> : vector<128xf32>
    %21 = vector.multi_reduction <add>, %20, %cst_13 [0] : vector<4x128xf32> to vector<128xf32>
    %22 = vector.shape_cast %21 : vector<128xf32> to vector<1x128xf32>
    %cst_14 = arith.constant 2.500000e-01 : f32
    %23 = vector.broadcast %cst_14 : f32 to vector<1x128xf32>
    %24 = arith.mulf %22, %23 : vector<1x128xf32>
    %25 = arith.mulf %20, %20 : vector<4x128xf32>
    %cst_15 = arith.constant dense<0.000000e+00> : vector<128xf32>
    %26 = vector.multi_reduction <add>, %25, %cst_15 [0] : vector<4x128xf32> to vector<128xf32>
    %27 = vector.shape_cast %26 : vector<128xf32> to vector<1x128xf32>
    %cst_16 = arith.constant 2.500000e-01 : f32
    %28 = vector.broadcast %cst_16 : f32 to vector<1x128xf32>
    %29 = arith.mulf %27, %28 : vector<1x128xf32>
    %30 = arith.mulf %24, %24 : vector<1x128xf32>
    %31 = arith.subf %29, %30 : vector<1x128xf32>
    %cst_17 = arith.constant 0.000000e+00 : f32
    %32 = vector.broadcast %cst_17 : f32 to vector<1x128xf32>
    %33 = arith.maximumf %31, %32 : vector<1x128xf32>
    %34 = vector.broadcast %24 : vector<1x128xf32> to vector<4x128xf32>
    %35 = arith.subf %20, %34 : vector<4x128xf32>
    %cst_18 = arith.constant 9.99999974E-6 : f32
    %36 = vector.broadcast %cst_18 : f32 to vector<1x128xf32>
    %37 = arith.addf %33, %36 : vector<1x128xf32>
    %38 = math.rsqrt %37 : vector<1x128xf32>
    %39 = vector.broadcast %38 : vector<1x128xf32> to vector<4x128xf32>
    %40 = arith.mulf %35, %39 : vector<4x128xf32>
    %cst_19 = arith.constant 0.000000e+00 : f32
    %41 = vector.broadcast %cst_19 : f32 to vector<4x128xf32>
    %42 = arith.maximumf %40, %41 : vector<4x128xf32>
    %c0_20 = arith.constant 0 : index
    %c0_21 = arith.constant 0 : index
    %c0_22 = arith.constant 0 : index
    %43 = vector.load %arg5[%c0_20, %c0_21, %c0_22] : memref<1x4x128xf32, #tpu.memory_space<vmem>>, vector<1x4x128xf32>
    %44 = vector.shape_cast %43 : vector<1x4x128xf32> to vector<4x128xf32>
    %45 = vector.shape_cast %42 : vector<4x128xf32> to vector<1x4x128xf32>
    tpu.vector_store %arg5[%c0_20, %c0_21, %c0_22], %45 {strides = array<i32>} : memref<1x4x128xf32, #tpu.memory_space<vmem>>, vector<1x4x128xf32>,
    return
  }
  func.func @transform_0(%arg0: i32, %arg1: i32) -> (i32, i32, i32) {
    %c0_i32 = arith.constant 0 : i32
    %c0_i32_0 = arith.constant 0 : i32
    %c0_i32_1 = arith.constant 0 : i32
    return %arg0, %c0_i32, %c0_i32_0 : i32, i32, i32
  }
  func.func @transform_1(%arg0: i32, %arg1: i32) -> (i32, i32, i32) {
    %c0_i32 = arith.constant 0 : i32
    %c0_i32_0 = arith.constant 0 : i32
    %c0_i32_1 = arith.constant 0 : i32
    return %c0_i32, %c0_i32_0, %arg1 : i32, i32, i32
  }
  func.func @transform_2(%arg0: i32, %arg1: i32) -> (i32, i32) {
    %c0_i32 = arith.constant 0 : i32
    %c0_i32_0 = arith.constant 0 : i32
    return %c0_i32, %arg1 : i32, i32
  }
  func.func @transform_3(%arg0: i32, %arg1: i32) -> (i32, i32, i32) {
    %c0_i32 = arith.constant 0 : i32
    %c0_i32_0 = arith.constant 0 : i32
    return %arg0, %c0_i32, %arg1 : i32, i32, i32
  }
}

module attributes {stable_mosaic.version = 11 : i64} {
  func.func @_conv_fused_kernel(%arg0: i32, %arg1: i32, %arg2: memref<1x6x128xf32, #tpu.memory_space<vmem>>, %arg3: memref<3x128x128xbf16, #tpu.memory_space<vmem>>, %arg4: memref<1x128xf32, #tpu.memory_space<vmem>>, %arg5: memref<1x4x128xf32, #tpu.memory_space<vmem>>, %arg6: memref<1x4x128xf32, #tpu.memory_space<vmem>>) attributes {dimension_semantics = [#tpu.dimension_semantics<parallel>, #tpu.dimension_semantics<parallel>], iteration_bounds = array<i64: 2, 1>, scalar_prefetch = 0 : i64, scratch_operands = 0 : i64, tpu.core_type = #tpu.core_type<tc>, window_params = [{transform_indices = @transform_0, window_bounds = array<i64: 1, 6, 128>}, {transform_indices = @transform_1, window_bounds = array<i64: 3, 128, 128>}, {transform_indices = @transform_2, window_bounds = array<i64: 1, 128>}, {transform_indices = @transform_3, window_bounds = array<i64: 1, 4, 128>}, {transform_indices = @transform_4, window_bounds = array<i64: 1, 4, 128>}]} {
    %c0 = arith.constant 0 : index
    %c0_0 = arith.constant 0 : index
    %c0_1 = arith.constant 0 : index
    %0 = vector.load %arg2[%c0, %c0_0, %c0_1] : memref<1x6x128xf32, #tpu.memory_space<vmem>>, vector<1x6x128xf32>
    %1 = vector.shape_cast %0 : vector<1x6x128xf32> to vector<6x128xf32>
    %2 = arith.truncf %1 : vector<6x128xf32> to vector<6x128xbf16>
    %c0_2 = arith.constant 0 : index
    %c0_3 = arith.constant 0 : index
    %3 = vector.load %arg4[%c0_2, %c0_3] : memref<1x128xf32, #tpu.memory_space<vmem>>, vector<1x128xf32>
    %4 = vector.shape_cast %3 : vector<1x128xf32> to vector<1x128xf32>
    %5 = vector.broadcast %4 : vector<1x128xf32> to vector<4x128xf32>
    %6 = vector.extract_strided_slice %2 {offsets = [0, 0], sizes = [4, 128], strides = [1, 1]} : vector<6x128xbf16> to vector<4x128xbf16>
    %c0_4 = arith.constant 0 : index
    %c0_5 = arith.constant 0 : index
    %c0_6 = arith.constant 0 : index
    %7 = vector.load %arg3[%c0_4, %c0_5, %c0_6] : memref<3x128x128xbf16, #tpu.memory_space<vmem>>, vector<1x128x128xbf16>
    %8 = vector.shape_cast %7 : vector<1x128x128xbf16> to vector<128x128xbf16>
    %cst = arith.constant dense<0.000000e+00> : vector<4x128xf32>
    %9 = tpu.matmul %6, %8, %cst {dimension_numbers = #tpu.dot_dimension_numbers<[1], [0], [0], [1], [0, 0, 1, 1], [], []>} : vector<4x128xbf16>, vector<128x128xbf16>, vector<4x128xf32> -> vector<4x128xf32>
    %10 = arith.addf %5, %9 : vector<4x128xf32>
    %11 = vector.extract_strided_slice %2 {offsets = [1, 0], sizes = [4, 128], strides = [1, 1]} : vector<6x128xbf16> to vector<4x128xbf16>
    %c1 = arith.constant 1 : index
    %c0_7 = arith.constant 0 : index
    %c0_8 = arith.constant 0 : index
    %12 = vector.load %arg3[%c1, %c0_7, %c0_8] : memref<3x128x128xbf16, #tpu.memory_space<vmem>>, vector<1x128x128xbf16>
    %13 = vector.shape_cast %12 : vector<1x128x128xbf16> to vector<128x128xbf16>
    %cst_9 = arith.constant dense<0.000000e+00> : vector<4x128xf32>
    %14 = tpu.matmul %11, %13, %cst_9 {dimension_numbers = #tpu.dot_dimension_numbers<[1], [0], [0], [1], [0, 0, 1, 1], [], []>} : vector<4x128xbf16>, vector<128x128xbf16>, vector<4x128xf32> -> vector<4x128xf32>
    %15 = arith.addf %10, %14 : vector<4x128xf32>
    %16 = vector.extract_strided_slice %2 {offsets = [2, 0], sizes = [4, 128], strides = [1, 1]} : vector<6x128xbf16> to vector<4x128xbf16>
    %c2 = arith.constant 2 : index
    %c0_10 = arith.constant 0 : index
    %c0_11 = arith.constant 0 : index
    %17 = vector.load %arg3[%c2, %c0_10, %c0_11] : memref<3x128x128xbf16, #tpu.memory_space<vmem>>, vector<1x128x128xbf16>
    %18 = vector.shape_cast %17 : vector<1x128x128xbf16> to vector<128x128xbf16>
    %cst_12 = arith.constant dense<0.000000e+00> : vector<4x128xf32>
    %19 = tpu.matmul %16, %18, %cst_12 {dimension_numbers = #tpu.dot_dimension_numbers<[1], [0], [0], [1], [0, 0, 1, 1], [], []>} : vector<4x128xbf16>, vector<128x128xbf16>, vector<4x128xf32> -> vector<4x128xf32>
    %20 = arith.addf %15, %19 : vector<4x128xf32>
    %cst_13 = arith.constant dense<0.000000e+00> : vector<128xf32>
    %21 = vector.multi_reduction <add>, %20, %cst_13 [0] : vector<4x128xf32> to vector<128xf32>
    %22 = vector.shape_cast %21 : vector<128xf32> to vector<1x128xf32>
    %cst_14 = arith.constant 2.500000e-01 : f32
    %23 = vector.broadcast %cst_14 : f32 to vector<1x128xf32>
    %24 = arith.mulf %22, %23 : vector<1x128xf32>
    %25 = arith.mulf %20, %20 : vector<4x128xf32>
    %cst_15 = arith.constant dense<0.000000e+00> : vector<128xf32>
    %26 = vector.multi_reduction <add>, %25, %cst_15 [0] : vector<4x128xf32> to vector<128xf32>
    %27 = vector.shape_cast %26 : vector<128xf32> to vector<1x128xf32>
    %cst_16 = arith.constant 2.500000e-01 : f32
    %28 = vector.broadcast %cst_16 : f32 to vector<1x128xf32>
    %29 = arith.mulf %27, %28 : vector<1x128xf32>
    %30 = arith.mulf %24, %24 : vector<1x128xf32>
    %31 = arith.subf %29, %30 : vector<1x128xf32>
    %cst_17 = arith.constant 0.000000e+00 : f32
    %32 = vector.broadcast %cst_17 : f32 to vector<1x128xf32>
    %33 = arith.maximumf %31, %32 : vector<1x128xf32>
    %34 = vector.broadcast %24 : vector<1x128xf32> to vector<4x128xf32>
    %35 = arith.subf %20, %34 : vector<4x128xf32>
    %cst_18 = arith.constant 9.99999974E-6 : f32
    %36 = vector.broadcast %cst_18 : f32 to vector<1x128xf32>
    %37 = arith.addf %33, %36 : vector<1x128xf32>
    %38 = math.rsqrt %37 : vector<1x128xf32>
    %39 = vector.broadcast %38 : vector<1x128xf32> to vector<4x128xf32>
    %40 = arith.mulf %35, %39 : vector<4x128xf32>
    %c0_19 = arith.constant 0 : index
    %c0_20 = arith.constant 0 : index
    %c0_21 = arith.constant 0 : index
    %41 = vector.load %arg5[%c0_19, %c0_20, %c0_21] : memref<1x4x128xf32, #tpu.memory_space<vmem>>, vector<1x4x128xf32>
    %42 = vector.shape_cast %41 : vector<1x4x128xf32> to vector<4x128xf32>
    %43 = arith.addf %42, %40 : vector<4x128xf32>
    %c0_22 = arith.constant 0 : index
    %c0_23 = arith.constant 0 : index
    %c0_24 = arith.constant 0 : index
    %44 = vector.load %arg6[%c0_22, %c0_23, %c0_24] : memref<1x4x128xf32, #tpu.memory_space<vmem>>, vector<1x4x128xf32>
    %45 = vector.shape_cast %44 : vector<1x4x128xf32> to vector<4x128xf32>
    %46 = vector.shape_cast %43 : vector<4x128xf32> to vector<1x4x128xf32>
    tpu.vector_store %arg6[%c0_22, %c0_23, %c0_24], %46 {strides = array<i32>} : memref<1x4x128xf32, #tpu.memory_space<vmem>>, vector<1x4x128xf32>,
    return
  }
  func.func @transform_0(%arg0: i32, %arg1: i32) -> (i32, i32, i32) {
    %c0_i32 = arith.constant 0 : i32
    %c0_i32_0 = arith.constant 0 : i32
    %c0_i32_1 = arith.constant 0 : i32
    return %arg0, %c0_i32, %c0_i32_0 : i32, i32, i32
  }
  func.func @transform_1(%arg0: i32, %arg1: i32) -> (i32, i32, i32) {
    %c0_i32 = arith.constant 0 : i32
    %c0_i32_0 = arith.constant 0 : i32
    %c0_i32_1 = arith.constant 0 : i32
    return %c0_i32, %c0_i32_0, %arg1 : i32, i32, i32
  }
  func.func @transform_2(%arg0: i32, %arg1: i32) -> (i32, i32) {
    %c0_i32 = arith.constant 0 : i32
    %c0_i32_0 = arith.constant 0 : i32
    return %c0_i32, %arg1 : i32, i32
  }
  func.func @transform_3(%arg0: i32, %arg1: i32) -> (i32, i32, i32) {
    %c0_i32 = arith.constant 0 : i32
    %c0_i32_0 = arith.constant 0 : i32
    return %arg0, %c0_i32, %arg1 : i32, i32, i32
  }
  func.func @transform_4(%arg0: i32, %arg1: i32) -> (i32, i32, i32) {
    %c0_i32 = arith.constant 0 : i32
    %c0_i32_0 = arith.constant 0 : i32
    return %arg0, %c0_i32, %arg1 : i32, i32, i32
  }
}

module attributes {stable_mosaic.version = 11 : i64} {
  func.func @_convT_fused_kernel(%arg0: i32, %arg1: i32, %arg2: memref<1x6x128xf32, #tpu.memory_space<vmem>>, %arg3: memref<5x128x128xbf16, #tpu.memory_space<vmem>>, %arg4: memref<1x128xf32, #tpu.memory_space<vmem>>, %arg5: memref<1x4x128xf32, #tpu.memory_space<vmem>>, %arg6: memref<1x4x128xf32, #tpu.memory_space<vmem>>) attributes {dimension_semantics = [#tpu.dimension_semantics<parallel>, #tpu.dimension_semantics<parallel>], iteration_bounds = array<i64: 2, 1>, scalar_prefetch = 0 : i64, scratch_operands = 0 : i64, tpu.core_type = #tpu.core_type<tc>, window_params = [{transform_indices = @transform_0, window_bounds = array<i64: 1, 6, 128>}, {transform_indices = @transform_1, window_bounds = array<i64: 5, 128, 128>}, {transform_indices = @transform_2, window_bounds = array<i64: 1, 128>}, {transform_indices = @transform_3, window_bounds = array<i64: 1, 4, 128>}, {transform_indices = @transform_4, window_bounds = array<i64: 1, 4, 128>}]} {
    %c0 = arith.constant 0 : index
    %c0_0 = arith.constant 0 : index
    %c0_1 = arith.constant 0 : index
    %0 = vector.load %arg2[%c0, %c0_0, %c0_1] : memref<1x6x128xf32, #tpu.memory_space<vmem>>, vector<1x6x128xf32>
    %1 = vector.shape_cast %0 : vector<1x6x128xf32> to vector<6x128xf32>
    %2 = arith.truncf %1 : vector<6x128xf32> to vector<6x128xbf16>
    %c0_2 = arith.constant 0 : index
    %c0_3 = arith.constant 0 : index
    %3 = vector.load %arg4[%c0_2, %c0_3] : memref<1x128xf32, #tpu.memory_space<vmem>>, vector<1x128xf32>
    %4 = vector.shape_cast %3 : vector<1x128xf32> to vector<1x128xf32>
    %5 = vector.broadcast %4 : vector<1x128xf32> to vector<4x128xf32>
    %6 = vector.extract_strided_slice %2 {offsets = [2, 0], sizes = [4, 128], strides = [1, 1]} : vector<6x128xbf16> to vector<4x128xbf16>
    %c0_4 = arith.constant 0 : index
    %c0_5 = arith.constant 0 : index
    %c0_6 = arith.constant 0 : index
    %7 = vector.load %arg3[%c0_4, %c0_5, %c0_6] : memref<5x128x128xbf16, #tpu.memory_space<vmem>>, vector<1x128x128xbf16>
    %8 = vector.shape_cast %7 : vector<1x128x128xbf16> to vector<128x128xbf16>
    %cst = arith.constant dense<0.000000e+00> : vector<4x128xf32>
    %9 = tpu.matmul %6, %8, %cst {dimension_numbers = #tpu.dot_dimension_numbers<[1], [0], [0], [1], [0, 0, 1, 1], [], []>} : vector<4x128xbf16>, vector<128x128xbf16>, vector<4x128xf32> -> vector<4x128xf32>
    %10 = arith.addf %5, %9 : vector<4x128xf32>
    %11 = vector.extract_strided_slice %2 {offsets = [1, 0], sizes = [4, 128], strides = [1, 1]} : vector<6x128xbf16> to vector<4x128xbf16>
    %c2 = arith.constant 2 : index
    %c0_7 = arith.constant 0 : index
    %c0_8 = arith.constant 0 : index
    %12 = vector.load %arg3[%c2, %c0_7, %c0_8] : memref<5x128x128xbf16, #tpu.memory_space<vmem>>, vector<1x128x128xbf16>
    %13 = vector.shape_cast %12 : vector<1x128x128xbf16> to vector<128x128xbf16>
    %cst_9 = arith.constant dense<0.000000e+00> : vector<4x128xf32>
    %14 = tpu.matmul %11, %13, %cst_9 {dimension_numbers = #tpu.dot_dimension_numbers<[1], [0], [0], [1], [0, 0, 1, 1], [], []>} : vector<4x128xbf16>, vector<128x128xbf16>, vector<4x128xf32> -> vector<4x128xf32>
    %15 = arith.addf %10, %14 : vector<4x128xf32>
    %16 = vector.extract_strided_slice %2 {offsets = [0, 0], sizes = [4, 128], strides = [1, 1]} : vector<6x128xbf16> to vector<4x128xbf16>
    %c4 = arith.constant 4 : index
    %c0_10 = arith.constant 0 : index
    %c0_11 = arith.constant 0 : index
    %17 = vector.load %arg3[%c4, %c0_10, %c0_11] : memref<5x128x128xbf16, #tpu.memory_space<vmem>>, vector<1x128x128xbf16>
    %18 = vector.shape_cast %17 : vector<1x128x128xbf16> to vector<128x128xbf16>
    %cst_12 = arith.constant dense<0.000000e+00> : vector<4x128xf32>
    %19 = tpu.matmul %16, %18, %cst_12 {dimension_numbers = #tpu.dot_dimension_numbers<[1], [0], [0], [1], [0, 0, 1, 1], [], []>} : vector<4x128xbf16>, vector<128x128xbf16>, vector<4x128xf32> -> vector<4x128xf32>
    %20 = arith.addf %15, %19 : vector<4x128xf32>
    %c0_13 = arith.constant 0 : index
    %c0_14 = arith.constant 0 : index
    %21 = vector.load %arg4[%c0_13, %c0_14] : memref<1x128xf32, #tpu.memory_space<vmem>>, vector<1x128xf32>
    %22 = vector.shape_cast %21 : vector<1x128xf32> to vector<1x128xf32>
    %23 = vector.broadcast %22 : vector<1x128xf32> to vector<4x128xf32>
    %24 = vector.extract_strided_slice %2 {offsets = [2, 0], sizes = [4, 128], strides = [1, 1]} : vector<6x128xbf16> to vector<4x128xbf16>
    %c1 = arith.constant 1 : index
    %c0_15 = arith.constant 0 : index
    %c0_16 = arith.constant 0 : index
    %25 = vector.load %arg3[%c1, %c0_15, %c0_16] : memref<5x128x128xbf16, #tpu.memory_space<vmem>>, vector<1x128x128xbf16>
    %26 = vector.shape_cast %25 : vector<1x128x128xbf16> to vector<128x128xbf16>
    %cst_17 = arith.constant dense<0.000000e+00> : vector<4x128xf32>
    %27 = tpu.matmul %24, %26, %cst_17 {dimension_numbers = #tpu.dot_dimension_numbers<[1], [0], [0], [1], [0, 0, 1, 1], [], []>} : vector<4x128xbf16>, vector<128x128xbf16>, vector<4x128xf32> -> vector<4x128xf32>
    %28 = arith.addf %23, %27 : vector<4x128xf32>
    %29 = vector.extract_strided_slice %2 {offsets = [1, 0], sizes = [4, 128], strides = [1, 1]} : vector<6x128xbf16> to vector<4x128xbf16>
    %c3 = arith.constant 3 : index
    %c0_18 = arith.constant 0 : index
    %c0_19 = arith.constant 0 : index
    %30 = vector.load %arg3[%c3, %c0_18, %c0_19] : memref<5x128x128xbf16, #tpu.memory_space<vmem>>, vector<1x128x128xbf16>
    %31 = vector.shape_cast %30 : vector<1x128x128xbf16> to vector<128x128xbf16>
    %cst_20 = arith.constant dense<0.000000e+00> : vector<4x128xf32>
    %32 = tpu.matmul %29, %31, %cst_20 {dimension_numbers = #tpu.dot_dimension_numbers<[1], [0], [0], [1], [0, 0, 1, 1], [], []>} : vector<4x128xbf16>, vector<128x128xbf16>, vector<4x128xf32> -> vector<4x128xf32>
    %33 = arith.addf %28, %32 : vector<4x128xf32>
    %cst_21 = arith.constant dense<0.000000e+00> : vector<128xf32>
    %34 = vector.multi_reduction <add>, %20, %cst_21 [0] : vector<4x128xf32> to vector<128xf32>
    %35 = vector.shape_cast %34 : vector<128xf32> to vector<1x128xf32>
    %cst_22 = arith.constant dense<0.000000e+00> : vector<128xf32>
    %36 = vector.multi_reduction <add>, %33, %cst_22 [0] : vector<4x128xf32> to vector<128xf32>
    %37 = vector.shape_cast %36 : vector<128xf32> to vector<1x128xf32>
    %38 = arith.addf %35, %37 : vector<1x128xf32>
    %cst_23 = arith.constant 1.250000e-01 : f32
    %39 = vector.broadcast %cst_23 : f32 to vector<1x128xf32>
    %40 = arith.mulf %38, %39 : vector<1x128xf32>
    %41 = arith.mulf %20, %20 : vector<4x128xf32>
    %cst_24 = arith.constant dense<0.000000e+00> : vector<128xf32>
    %42 = vector.multi_reduction <add>, %41, %cst_24 [0] : vector<4x128xf32> to vector<128xf32>
    %43 = vector.shape_cast %42 : vector<128xf32> to vector<1x128xf32>
    %44 = arith.mulf %33, %33 : vector<4x128xf32>
    %cst_25 = arith.constant dense<0.000000e+00> : vector<128xf32>
    %45 = vector.multi_reduction <add>, %44, %cst_25 [0] : vector<4x128xf32> to vector<128xf32>
    %46 = vector.shape_cast %45 : vector<128xf32> to vector<1x128xf32>
    %47 = arith.addf %43, %46 : vector<1x128xf32>
    %cst_26 = arith.constant 1.250000e-01 : f32
    %48 = vector.broadcast %cst_26 : f32 to vector<1x128xf32>
    %49 = arith.mulf %47, %48 : vector<1x128xf32>
    %50 = arith.mulf %40, %40 : vector<1x128xf32>
    %51 = arith.subf %49, %50 : vector<1x128xf32>
    %cst_27 = arith.constant 0.000000e+00 : f32
    %52 = vector.broadcast %cst_27 : f32 to vector<1x128xf32>
    %53 = arith.maximumf %51, %52 : vector<1x128xf32>
    %cst_28 = arith.constant 9.99999974E-6 : f32
    %54 = vector.broadcast %cst_28 : f32 to vector<1x128xf32>
    %55 = arith.addf %53, %54 : vector<1x128xf32>
    %56 = math.rsqrt %55 : vector<1x128xf32>
    %57 = vector.broadcast %40 : vector<1x128xf32> to vector<4x128xf32>
    %58 = arith.subf %20, %57 : vector<4x128xf32>
    %59 = vector.broadcast %56 : vector<1x128xf32> to vector<4x128xf32>
    %60 = arith.mulf %58, %59 : vector<4x128xf32>
    %cst_29 = arith.constant 0.000000e+00 : f32
    %61 = vector.broadcast %cst_29 : f32 to vector<4x128xf32>
    %62 = arith.maximumf %60, %61 : vector<4x128xf32>
    %c0_30 = arith.constant 0 : index
    %c0_31 = arith.constant 0 : index
    %c0_32 = arith.constant 0 : index
    %63 = vector.load %arg5[%c0_30, %c0_31, %c0_32] : memref<1x4x128xf32, #tpu.memory_space<vmem>>, vector<1x4x128xf32>
    %64 = vector.shape_cast %63 : vector<1x4x128xf32> to vector<4x128xf32>
    %65 = vector.shape_cast %62 : vector<4x128xf32> to vector<1x4x128xf32>
    tpu.vector_store %arg5[%c0_30, %c0_31, %c0_32], %65 {strides = array<i32>} : memref<1x4x128xf32, #tpu.memory_space<vmem>>, vector<1x4x128xf32>,
    %66 = vector.broadcast %40 : vector<1x128xf32> to vector<4x128xf32>
    %67 = arith.subf %33, %66 : vector<4x128xf32>
    %68 = vector.broadcast %56 : vector<1x128xf32> to vector<4x128xf32>
    %69 = arith.mulf %67, %68 : vector<4x128xf32>
    %cst_33 = arith.constant 0.000000e+00 : f32
    %70 = vector.broadcast %cst_33 : f32 to vector<4x128xf32>
    %71 = arith.maximumf %69, %70 : vector<4x128xf32>
    %c0_34 = arith.constant 0 : index
    %c0_35 = arith.constant 0 : index
    %c0_36 = arith.constant 0 : index
    %72 = vector.load %arg6[%c0_34, %c0_35, %c0_36] : memref<1x4x128xf32, #tpu.memory_space<vmem>>, vector<1x4x128xf32>
    %73 = vector.shape_cast %72 : vector<1x4x128xf32> to vector<4x128xf32>
    %74 = vector.shape_cast %71 : vector<4x128xf32> to vector<1x4x128xf32>
    tpu.vector_store %arg6[%c0_34, %c0_35, %c0_36], %74 {strides = array<i32>} : memref<1x4x128xf32, #tpu.memory_space<vmem>>, vector<1x4x128xf32>,
    return
  }
  func.func @transform_0(%arg0: i32, %arg1: i32) -> (i32, i32, i32) {
    %c0_i32 = arith.constant 0 : i32
    %c0_i32_0 = arith.constant 0 : i32
    %c0_i32_1 = arith.constant 0 : i32
    return %arg0, %c0_i32, %c0_i32_0 : i32, i32, i32
  }
  func.func @transform_1(%arg0: i32, %arg1: i32) -> (i32, i32, i32) {
    %c0_i32 = arith.constant 0 : i32
    %c0_i32_0 = arith.constant 0 : i32
    %c0_i32_1 = arith.constant 0 : i32
    return %c0_i32, %c0_i32_0, %arg1 : i32, i32, i32
  }
  func.func @transform_2(%arg0: i32, %arg1: i32) -> (i32, i32) {
    %c0_i32 = arith.constant 0 : i32
    %c0_i32_0 = arith.constant 0 : i32
    return %c0_i32, %arg1 : i32, i32
  }
  func.func @transform_3(%arg0: i32, %arg1: i32) -> (i32, i32, i32) {
    %c0_i32 = arith.constant 0 : i32
    %c0_i32_0 = arith.constant 0 : i32
    return %arg0, %c0_i32, %arg1 : i32, i32, i32
  }
  func.func @transform_4(%arg0: i32, %arg1: i32) -> (i32, i32, i32) {
    %c0_i32 = arith.constant 0 : i32
    %c0_i32_0 = arith.constant 0 : i32
    return %arg0, %c0_i32, %arg1 : i32, i32, i32
  }
}

module attributes {stable_mosaic.version = 11 : i64} {
  func.func @_convT_fused_kernel(%arg0: i32, %arg1: i32, %arg2: memref<1x10x128xf32, #tpu.memory_space<vmem>>, %arg3: memref<5x128x128xbf16, #tpu.memory_space<vmem>>, %arg4: memref<1x128xf32, #tpu.memory_space<vmem>>, %arg5: memref<1x8x128xf32, #tpu.memory_space<vmem>>, %arg6: memref<1x8x128xf32, #tpu.memory_space<vmem>>) attributes {dimension_semantics = [#tpu.dimension_semantics<parallel>, #tpu.dimension_semantics<parallel>], iteration_bounds = array<i64: 2, 1>, scalar_prefetch = 0 : i64, scratch_operands = 0 : i64, tpu.core_type = #tpu.core_type<tc>, window_params = [{transform_indices = @transform_0, window_bounds = array<i64: 1, 10, 128>}, {transform_indices = @transform_1, window_bounds = array<i64: 5, 128, 128>}, {transform_indices = @transform_2, window_bounds = array<i64: 1, 128>}, {transform_indices = @transform_3, window_bounds = array<i64: 1, 8, 128>}, {transform_indices = @transform_4, window_bounds = array<i64: 1, 8, 128>}]} {
    %c0 = arith.constant 0 : index
    %c0_0 = arith.constant 0 : index
    %c0_1 = arith.constant 0 : index
    %0 = vector.load %arg2[%c0, %c0_0, %c0_1] : memref<1x10x128xf32, #tpu.memory_space<vmem>>, vector<1x10x128xf32>
    %1 = vector.shape_cast %0 : vector<1x10x128xf32> to vector<10x128xf32>
    %2 = arith.truncf %1 : vector<10x128xf32> to vector<10x128xbf16>
    %c0_2 = arith.constant 0 : index
    %c0_3 = arith.constant 0 : index
    %3 = vector.load %arg4[%c0_2, %c0_3] : memref<1x128xf32, #tpu.memory_space<vmem>>, vector<1x128xf32>
    %4 = vector.shape_cast %3 : vector<1x128xf32> to vector<1x128xf32>
    %5 = vector.broadcast %4 : vector<1x128xf32> to vector<8x128xf32>
    %6 = vector.extract_strided_slice %2 {offsets = [2, 0], sizes = [8, 128], strides = [1, 1]} : vector<10x128xbf16> to vector<8x128xbf16>
    %c0_4 = arith.constant 0 : index
    %c0_5 = arith.constant 0 : index
    %c0_6 = arith.constant 0 : index
    %7 = vector.load %arg3[%c0_4, %c0_5, %c0_6] : memref<5x128x128xbf16, #tpu.memory_space<vmem>>, vector<1x128x128xbf16>
    %8 = vector.shape_cast %7 : vector<1x128x128xbf16> to vector<128x128xbf16>
    %cst = arith.constant dense<0.000000e+00> : vector<8x128xf32>
    %9 = tpu.matmul %6, %8, %cst {dimension_numbers = #tpu.dot_dimension_numbers<[1], [0], [0], [1], [0, 0, 1, 1], [], []>} : vector<8x128xbf16>, vector<128x128xbf16>, vector<8x128xf32> -> vector<8x128xf32>
    %10 = arith.addf %5, %9 : vector<8x128xf32>
    %11 = vector.extract_strided_slice %2 {offsets = [1, 0], sizes = [8, 128], strides = [1, 1]} : vector<10x128xbf16> to vector<8x128xbf16>
    %c2 = arith.constant 2 : index
    %c0_7 = arith.constant 0 : index
    %c0_8 = arith.constant 0 : index
    %12 = vector.load %arg3[%c2, %c0_7, %c0_8] : memref<5x128x128xbf16, #tpu.memory_space<vmem>>, vector<1x128x128xbf16>
    %13 = vector.shape_cast %12 : vector<1x128x128xbf16> to vector<128x128xbf16>
    %cst_9 = arith.constant dense<0.000000e+00> : vector<8x128xf32>
    %14 = tpu.matmul %11, %13, %cst_9 {dimension_numbers = #tpu.dot_dimension_numbers<[1], [0], [0], [1], [0, 0, 1, 1], [], []>} : vector<8x128xbf16>, vector<128x128xbf16>, vector<8x128xf32> -> vector<8x128xf32>
    %15 = arith.addf %10, %14 : vector<8x128xf32>
    %16 = vector.extract_strided_slice %2 {offsets = [0, 0], sizes = [8, 128], strides = [1, 1]} : vector<10x128xbf16> to vector<8x128xbf16>
    %c4 = arith.constant 4 : index
    %c0_10 = arith.constant 0 : index
    %c0_11 = arith.constant 0 : index
    %17 = vector.load %arg3[%c4, %c0_10, %c0_11] : memref<5x128x128xbf16, #tpu.memory_space<vmem>>, vector<1x128x128xbf16>
    %18 = vector.shape_cast %17 : vector<1x128x128xbf16> to vector<128x128xbf16>
    %cst_12 = arith.constant dense<0.000000e+00> : vector<8x128xf32>
    %19 = tpu.matmul %16, %18, %cst_12 {dimension_numbers = #tpu.dot_dimension_numbers<[1], [0], [0], [1], [0, 0, 1, 1], [], []>} : vector<8x128xbf16>, vector<128x128xbf16>, vector<8x128xf32> -> vector<8x128xf32>
    %20 = arith.addf %15, %19 : vector<8x128xf32>
    %c0_13 = arith.constant 0 : index
    %c0_14 = arith.constant 0 : index
    %21 = vector.load %arg4[%c0_13, %c0_14] : memref<1x128xf32, #tpu.memory_space<vmem>>, vector<1x128xf32>
    %22 = vector.shape_cast %21 : vector<1x128xf32> to vector<1x128xf32>
    %23 = vector.broadcast %22 : vector<1x128xf32> to vector<8x128xf32>
    %24 = vector.extract_strided_slice %2 {offsets = [2, 0], sizes = [8, 128], strides = [1, 1]} : vector<10x128xbf16> to vector<8x128xbf16>
    %c1 = arith.constant 1 : index
    %c0_15 = arith.constant 0 : index
    %c0_16 = arith.constant 0 : index
    %25 = vector.load %arg3[%c1, %c0_15, %c0_16] : memref<5x128x128xbf16, #tpu.memory_space<vmem>>, vector<1x128x128xbf16>
    %26 = vector.shape_cast %25 : vector<1x128x128xbf16> to vector<128x128xbf16>
    %cst_17 = arith.constant dense<0.000000e+00> : vector<8x128xf32>
    %27 = tpu.matmul %24, %26, %cst_17 {dimension_numbers = #tpu.dot_dimension_numbers<[1], [0], [0], [1], [0, 0, 1, 1], [], []>} : vector<8x128xbf16>, vector<128x128xbf16>, vector<8x128xf32> -> vector<8x128xf32>
    %28 = arith.addf %23, %27 : vector<8x128xf32>
    %29 = vector.extract_strided_slice %2 {offsets = [1, 0], sizes = [8, 128], strides = [1, 1]} : vector<10x128xbf16> to vector<8x128xbf16>
    %c3 = arith.constant 3 : index
    %c0_18 = arith.constant 0 : index
    %c0_19 = arith.constant 0 : index
    %30 = vector.load %arg3[%c3, %c0_18, %c0_19] : memref<5x128x128xbf16, #tpu.memory_space<vmem>>, vector<1x128x128xbf16>
    %31 = vector.shape_cast %30 : vector<1x128x128xbf16> to vector<128x128xbf16>
    %cst_20 = arith.constant dense<0.000000e+00> : vector<8x128xf32>
    %32 = tpu.matmul %29, %31, %cst_20 {dimension_numbers = #tpu.dot_dimension_numbers<[1], [0], [0], [1], [0, 0, 1, 1], [], []>} : vector<8x128xbf16>, vector<128x128xbf16>, vector<8x128xf32> -> vector<8x128xf32>
    %33 = arith.addf %28, %32 : vector<8x128xf32>
    %cst_21 = arith.constant dense<0.000000e+00> : vector<128xf32>
    %34 = vector.multi_reduction <add>, %20, %cst_21 [0] : vector<8x128xf32> to vector<128xf32>
    %35 = vector.shape_cast %34 : vector<128xf32> to vector<1x128xf32>
    %cst_22 = arith.constant dense<0.000000e+00> : vector<128xf32>
    %36 = vector.multi_reduction <add>, %33, %cst_22 [0] : vector<8x128xf32> to vector<128xf32>
    %37 = vector.shape_cast %36 : vector<128xf32> to vector<1x128xf32>
    %38 = arith.addf %35, %37 : vector<1x128xf32>
    %cst_23 = arith.constant 6.250000e-02 : f32
    %39 = vector.broadcast %cst_23 : f32 to vector<1x128xf32>
    %40 = arith.mulf %38, %39 : vector<1x128xf32>
    %41 = arith.mulf %20, %20 : vector<8x128xf32>
    %cst_24 = arith.constant dense<0.000000e+00> : vector<128xf32>
    %42 = vector.multi_reduction <add>, %41, %cst_24 [0] : vector<8x128xf32> to vector<128xf32>
    %43 = vector.shape_cast %42 : vector<128xf32> to vector<1x128xf32>
    %44 = arith.mulf %33, %33 : vector<8x128xf32>
    %cst_25 = arith.constant dense<0.000000e+00> : vector<128xf32>
    %45 = vector.multi_reduction <add>, %44, %cst_25 [0] : vector<8x128xf32> to vector<128xf32>
    %46 = vector.shape_cast %45 : vector<128xf32> to vector<1x128xf32>
    %47 = arith.addf %43, %46 : vector<1x128xf32>
    %cst_26 = arith.constant 6.250000e-02 : f32
    %48 = vector.broadcast %cst_26 : f32 to vector<1x128xf32>
    %49 = arith.mulf %47, %48 : vector<1x128xf32>
    %50 = arith.mulf %40, %40 : vector<1x128xf32>
    %51 = arith.subf %49, %50 : vector<1x128xf32>
    %cst_27 = arith.constant 0.000000e+00 : f32
    %52 = vector.broadcast %cst_27 : f32 to vector<1x128xf32>
    %53 = arith.maximumf %51, %52 : vector<1x128xf32>
    %cst_28 = arith.constant 9.99999974E-6 : f32
    %54 = vector.broadcast %cst_28 : f32 to vector<1x128xf32>
    %55 = arith.addf %53, %54 : vector<1x128xf32>
    %56 = math.rsqrt %55 : vector<1x128xf32>
    %57 = vector.broadcast %40 : vector<1x128xf32> to vector<8x128xf32>
    %58 = arith.subf %20, %57 : vector<8x128xf32>
    %59 = vector.broadcast %56 : vector<1x128xf32> to vector<8x128xf32>
    %60 = arith.mulf %58, %59 : vector<8x128xf32>
    %cst_29 = arith.constant 0.000000e+00 : f32
    %61 = vector.broadcast %cst_29 : f32 to vector<8x128xf32>
    %62 = arith.maximumf %60, %61 : vector<8x128xf32>
    %c0_30 = arith.constant 0 : index
    %c0_31 = arith.constant 0 : index
    %c0_32 = arith.constant 0 : index
    %63 = vector.load %arg5[%c0_30, %c0_31, %c0_32] : memref<1x8x128xf32, #tpu.memory_space<vmem>>, vector<1x8x128xf32>
    %64 = vector.shape_cast %63 : vector<1x8x128xf32> to vector<8x128xf32>
    %65 = vector.shape_cast %62 : vector<8x128xf32> to vector<1x8x128xf32>
    tpu.vector_store %arg5[%c0_30, %c0_31, %c0_32], %65 {strides = array<i32>} : memref<1x8x128xf32, #tpu.memory_space<vmem>>, vector<1x8x128xf32>,
    %66 = vector.broadcast %40 : vector<1x128xf32> to vector<8x128xf32>
    %67 = arith.subf %33, %66 : vector<8x128xf32>
    %68 = vector.broadcast %56 : vector<1x128xf32> to vector<8x128xf32>
    %69 = arith.mulf %67, %68 : vector<8x128xf32>
    %cst_33 = arith.constant 0.000000e+00 : f32
    %70 = vector.broadcast %cst_33 : f32 to vector<8x128xf32>
    %71 = arith.maximumf %69, %70 : vector<8x128xf32>
    %c0_34 = arith.constant 0 : index
    %c0_35 = arith.constant 0 : index
    %c0_36 = arith.constant 0 : index
    %72 = vector.load %arg6[%c0_34, %c0_35, %c0_36] : memref<1x8x128xf32, #tpu.memory_space<vmem>>, vector<1x8x128xf32>
    %73 = vector.shape_cast %72 : vector<1x8x128xf32> to vector<8x128xf32>
    %74 = vector.shape_cast %71 : vector<8x128xf32> to vector<1x8x128xf32>
    tpu.vector_store %arg6[%c0_34, %c0_35, %c0_36], %74 {strides = array<i32>} : memref<1x8x128xf32, #tpu.memory_space<vmem>>, vector<1x8x128xf32>,
    return
  }
  func.func @transform_0(%arg0: i32, %arg1: i32) -> (i32, i32, i32) {
    %c0_i32 = arith.constant 0 : i32
    %c0_i32_0 = arith.constant 0 : i32
    %c0_i32_1 = arith.constant 0 : i32
    return %arg0, %c0_i32, %c0_i32_0 : i32, i32, i32
  }
  func.func @transform_1(%arg0: i32, %arg1: i32) -> (i32, i32, i32) {
    %c0_i32 = arith.constant 0 : i32
    %c0_i32_0 = arith.constant 0 : i32
    %c0_i32_1 = arith.constant 0 : i32
    return %c0_i32, %c0_i32_0, %arg1 : i32, i32, i32
  }
  func.func @transform_2(%arg0: i32, %arg1: i32) -> (i32, i32) {
    %c0_i32 = arith.constant 0 : i32
    %c0_i32_0 = arith.constant 0 : i32
    return %c0_i32, %arg1 : i32, i32
  }
  func.func @transform_3(%arg0: i32, %arg1: i32) -> (i32, i32, i32) {
    %c0_i32 = arith.constant 0 : i32
    %c0_i32_0 = arith.constant 0 : i32
    return %arg0, %c0_i32, %arg1 : i32, i32, i32
  }
  func.func @transform_4(%arg0: i32, %arg1: i32) -> (i32, i32, i32) {
    %c0_i32 = arith.constant 0 : i32
    %c0_i32_0 = arith.constant 0 : i32
    return %arg0, %c0_i32, %arg1 : i32, i32, i32
  }
}

module attributes {stable_mosaic.version = 11 : i64} {
  func.func @_conv_fused_kernel(%arg0: i32, %arg1: i32, %arg2: memref<1x30x128xf32, #tpu.memory_space<vmem>>, %arg3: memref<15x128x128xbf16, #tpu.memory_space<vmem>>, %arg4: memref<1x128xf32, #tpu.memory_space<vmem>>, %arg5: memref<1x16x128xf32, #tpu.memory_space<vmem>>) attributes {dimension_semantics = [#tpu.dimension_semantics<parallel>, #tpu.dimension_semantics<parallel>], iteration_bounds = array<i64: 2, 1>, scalar_prefetch = 0 : i64, scratch_operands = 0 : i64, tpu.core_type = #tpu.core_type<tc>, window_params = [{transform_indices = @transform_0, window_bounds = array<i64: 1, 30, 128>}, {transform_indices = @transform_1, window_bounds = array<i64: 15, 128, 128>}, {transform_indices = @transform_2, window_bounds = array<i64: 1, 128>}, {transform_indices = @transform_3, window_bounds = array<i64: 1, 16, 128>}]} {
    %c0 = arith.constant 0 : index
    %c0_0 = arith.constant 0 : index
    %c0_1 = arith.constant 0 : index
    %0 = vector.load %arg2[%c0, %c0_0, %c0_1] : memref<1x30x128xf32, #tpu.memory_space<vmem>>, vector<1x30x128xf32>
    %1 = vector.shape_cast %0 : vector<1x30x128xf32> to vector<30x128xf32>
    %2 = arith.truncf %1 : vector<30x128xf32> to vector<30x128xbf16>
    %c0_2 = arith.constant 0 : index
    %c0_3 = arith.constant 0 : index
    %3 = vector.load %arg4[%c0_2, %c0_3] : memref<1x128xf32, #tpu.memory_space<vmem>>, vector<1x128xf32>
    %4 = vector.shape_cast %3 : vector<1x128xf32> to vector<1x128xf32>
    %5 = vector.broadcast %4 : vector<1x128xf32> to vector<16x128xf32>
    %6 = vector.extract_strided_slice %2 {offsets = [0, 0], sizes = [16, 128], strides = [1, 1]} : vector<30x128xbf16> to vector<16x128xbf16>
    %c0_4 = arith.constant 0 : index
    %c0_5 = arith.constant 0 : index
    %c0_6 = arith.constant 0 : index
    %7 = vector.load %arg3[%c0_4, %c0_5, %c0_6] : memref<15x128x128xbf16, #tpu.memory_space<vmem>>, vector<1x128x128xbf16>
    %8 = vector.shape_cast %7 : vector<1x128x128xbf16> to vector<128x128xbf16>
    %cst = arith.constant dense<0.000000e+00> : vector<16x128xf32>
    %9 = tpu.matmul %6, %8, %cst {dimension_numbers = #tpu.dot_dimension_numbers<[1], [0], [0], [1], [0, 0, 1, 1], [], []>} : vector<16x128xbf16>, vector<128x128xbf16>, vector<16x128xf32> -> vector<16x128xf32>
    %10 = arith.addf %5, %9 : vector<16x128xf32>
    %11 = vector.extract_strided_slice %2 {offsets = [1, 0], sizes = [16, 128], strides = [1, 1]} : vector<30x128xbf16> to vector<16x128xbf16>
    %c1 = arith.constant 1 : index
    %c0_7 = arith.constant 0 : index
    %c0_8 = arith.constant 0 : index
    %12 = vector.load %arg3[%c1, %c0_7, %c0_8] : memref<15x128x128xbf16, #tpu.memory_space<vmem>>, vector<1x128x128xbf16>
    %13 = vector.shape_cast %12 : vector<1x128x128xbf16> to vector<128x128xbf16>
    %cst_9 = arith.constant dense<0.000000e+00> : vector<16x128xf32>
    %14 = tpu.matmul %11, %13, %cst_9 {dimension_numbers = #tpu.dot_dimension_numbers<[1], [0], [0], [1], [0, 0, 1, 1], [], []>} : vector<16x128xbf16>, vector<128x128xbf16>, vector<16x128xf32> -> vector<16x128xf32>
    %15 = arith.addf %10, %14 : vector<16x128xf32>
    %16 = vector.extract_strided_slice %2 {offsets = [2, 0], sizes = [16, 128], strides = [1, 1]} : vector<30x128xbf16> to vector<16x128xbf16>
    %c2 = arith.constant 2 : index
    %c0_10 = arith.constant 0 : index
    %c0_11 = arith.constant 0 : index
    %17 = vector.load %arg3[%c2, %c0_10, %c0_11] : memref<15x128x128xbf16, #tpu.memory_space<vmem>>, vector<1x128x128xbf16>
    %18 = vector.shape_cast %17 : vector<1x128x128xbf16> to vector<128x128xbf16>
    %cst_12 = arith.constant dense<0.000000e+00> : vector<16x128xf32>
    %19 = tpu.matmul %16, %18, %cst_12 {dimension_numbers = #tpu.dot_dimension_numbers<[1], [0], [0], [1], [0, 0, 1, 1], [], []>} : vector<16x128xbf16>, vector<128x128xbf16>, vector<16x128xf32> -> vector<16x128xf32>
    %20 = arith.addf %15, %19 : vector<16x128xf32>
    %21 = vector.extract_strided_slice %2 {offsets = [3, 0], sizes = [16, 128], strides = [1, 1]} : vector<30x128xbf16> to vector<16x128xbf16>
    %c3 = arith.constant 3 : index
    %c0_13 = arith.constant 0 : index
    %c0_14 = arith.constant 0 : index
    %22 = vector.load %arg3[%c3, %c0_13, %c0_14] : memref<15x128x128xbf16, #tpu.memory_space<vmem>>, vector<1x128x128xbf16>
    %23 = vector.shape_cast %22 : vector<1x128x128xbf16> to vector<128x128xbf16>
    %cst_15 = arith.constant dense<0.000000e+00> : vector<16x128xf32>
    %24 = tpu.matmul %21, %23, %cst_15 {dimension_numbers = #tpu.dot_dimension_numbers<[1], [0], [0], [1], [0, 0, 1, 1], [], []>} : vector<16x128xbf16>, vector<128x128xbf16>, vector<16x128xf32> -> vector<16x128xf32>
    %25 = arith.addf %20, %24 : vector<16x128xf32>
    %26 = vector.extract_strided_slice %2 {offsets = [4, 0], sizes = [16, 128], strides = [1, 1]} : vector<30x128xbf16> to vector<16x128xbf16>
    %c4 = arith.constant 4 : index
    %c0_16 = arith.constant 0 : index
    %c0_17 = arith.constant 0 : index
    %27 = vector.load %arg3[%c4, %c0_16, %c0_17] : memref<15x128x128xbf16, #tpu.memory_space<vmem>>, vector<1x128x128xbf16>
    %28 = vector.shape_cast %27 : vector<1x128x128xbf16> to vector<128x128xbf16>
    %cst_18 = arith.constant dense<0.000000e+00> : vector<16x128xf32>
    %29 = tpu.matmul %26, %28, %cst_18 {dimension_numbers = #tpu.dot_dimension_numbers<[1], [0], [0], [1], [0, 0, 1, 1], [], []>} : vector<16x128xbf16>, vector<128x128xbf16>, vector<16x128xf32> -> vector<16x128xf32>
    %30 = arith.addf %25, %29 : vector<16x128xf32>
    %31 = vector.extract_strided_slice %2 {offsets = [5, 0], sizes = [16, 128], strides = [1, 1]} : vector<30x128xbf16> to vector<16x128xbf16>
    %c5 = arith.constant 5 : index
    %c0_19 = arith.constant 0 : index
    %c0_20 = arith.constant 0 : index
    %32 = vector.load %arg3[%c5, %c0_19, %c0_20] : memref<15x128x128xbf16, #tpu.memory_space<vmem>>, vector<1x128x128xbf16>
    %33 = vector.shape_cast %32 : vector<1x128x128xbf16> to vector<128x128xbf16>
    %cst_21 = arith.constant dense<0.000000e+00> : vector<16x128xf32>
    %34 = tpu.matmul %31, %33, %cst_21 {dimension_numbers = #tpu.dot_dimension_numbers<[1], [0], [0], [1], [0, 0, 1, 1], [], []>} : vector<16x128xbf16>, vector<128x128xbf16>, vector<16x128xf32> -> vector<16x128xf32>
    %35 = arith.addf %30, %34 : vector<16x128xf32>
    %36 = vector.extract_strided_slice %2 {offsets = [6, 0], sizes = [16, 128], strides = [1, 1]} : vector<30x128xbf16> to vector<16x128xbf16>
    %c6 = arith.constant 6 : index
    %c0_22 = arith.constant 0 : index
    %c0_23 = arith.constant 0 : index
    %37 = vector.load %arg3[%c6, %c0_22, %c0_23] : memref<15x128x128xbf16, #tpu.memory_space<vmem>>, vector<1x128x128xbf16>
    %38 = vector.shape_cast %37 : vector<1x128x128xbf16> to vector<128x128xbf16>
    %cst_24 = arith.constant dense<0.000000e+00> : vector<16x128xf32>
    %39 = tpu.matmul %36, %38, %cst_24 {dimension_numbers = #tpu.dot_dimension_numbers<[1], [0], [0], [1], [0, 0, 1, 1], [], []>} : vector<16x128xbf16>, vector<128x128xbf16>, vector<16x128xf32> -> vector<16x128xf32>
    %40 = arith.addf %35, %39 : vector<16x128xf32>
    %41 = vector.extract_strided_slice %2 {offsets = [7, 0], sizes = [16, 128], strides = [1, 1]} : vector<30x128xbf16> to vector<16x128xbf16>
    %c7 = arith.constant 7 : index
    %c0_25 = arith.constant 0 : index
    %c0_26 = arith.constant 0 : index
    %42 = vector.load %arg3[%c7, %c0_25, %c0_26] : memref<15x128x128xbf16, #tpu.memory_space<vmem>>, vector<1x128x128xbf16>
    %43 = vector.shape_cast %42 : vector<1x128x128xbf16> to vector<128x128xbf16>
    %cst_27 = arith.constant dense<0.000000e+00> : vector<16x128xf32>
    %44 = tpu.matmul %41, %43, %cst_27 {dimension_numbers = #tpu.dot_dimension_numbers<[1], [0], [0], [1], [0, 0, 1, 1], [], []>} : vector<16x128xbf16>, vector<128x128xbf16>, vector<16x128xf32> -> vector<16x128xf32>
    %45 = arith.addf %40, %44 : vector<16x128xf32>
    %46 = vector.extract_strided_slice %2 {offsets = [8, 0], sizes = [16, 128], strides = [1, 1]} : vector<30x128xbf16> to vector<16x128xbf16>
    %c8 = arith.constant 8 : index
    %c0_28 = arith.constant 0 : index
    %c0_29 = arith.constant 0 : index
    %47 = vector.load %arg3[%c8, %c0_28, %c0_29] : memref<15x128x128xbf16, #tpu.memory_space<vmem>>, vector<1x128x128xbf16>
    %48 = vector.shape_cast %47 : vector<1x128x128xbf16> to vector<128x128xbf16>
    %cst_30 = arith.constant dense<0.000000e+00> : vector<16x128xf32>
    %49 = tpu.matmul %46, %48, %cst_30 {dimension_numbers = #tpu.dot_dimension_numbers<[1], [0], [0], [1], [0, 0, 1, 1], [], []>} : vector<16x128xbf16>, vector<128x128xbf16>, vector<16x128xf32> -> vector<16x128xf32>
    %50 = arith.addf %45, %49 : vector<16x128xf32>
    %51 = vector.extract_strided_slice %2 {offsets = [9, 0], sizes = [16, 128], strides = [1, 1]} : vector<30x128xbf16> to vector<16x128xbf16>
    %c9 = arith.constant 9 : index
    %c0_31 = arith.constant 0 : index
    %c0_32 = arith.constant 0 : index
    %52 = vector.load %arg3[%c9, %c0_31, %c0_32] : memref<15x128x128xbf16, #tpu.memory_space<vmem>>, vector<1x128x128xbf16>
    %53 = vector.shape_cast %52 : vector<1x128x128xbf16> to vector<128x128xbf16>
    %cst_33 = arith.constant dense<0.000000e+00> : vector<16x128xf32>
    %54 = tpu.matmul %51, %53, %cst_33 {dimension_numbers = #tpu.dot_dimension_numbers<[1], [0], [0], [1], [0, 0, 1, 1], [], []>} : vector<16x128xbf16>, vector<128x128xbf16>, vector<16x128xf32> -> vector<16x128xf32>
    %55 = arith.addf %50, %54 : vector<16x128xf32>
    %56 = vector.extract_strided_slice %2 {offsets = [10, 0], sizes = [16, 128], strides = [1, 1]} : vector<30x128xbf16> to vector<16x128xbf16>
    %c10 = arith.constant 10 : index
    %c0_34 = arith.constant 0 : index
    %c0_35 = arith.constant 0 : index
    %57 = vector.load %arg3[%c10, %c0_34, %c0_35] : memref<15x128x128xbf16, #tpu.memory_space<vmem>>, vector<1x128x128xbf16>
    %58 = vector.shape_cast %57 : vector<1x128x128xbf16> to vector<128x128xbf16>
    %cst_36 = arith.constant dense<0.000000e+00> : vector<16x128xf32>
    %59 = tpu.matmul %56, %58, %cst_36 {dimension_numbers = #tpu.dot_dimension_numbers<[1], [0], [0], [1], [0, 0, 1, 1], [], []>} : vector<16x128xbf16>, vector<128x128xbf16>, vector<16x128xf32> -> vector<16x128xf32>
    %60 = arith.addf %55, %59 : vector<16x128xf32>
    %61 = vector.extract_strided_slice %2 {offsets = [11, 0], sizes = [16, 128], strides = [1, 1]} : vector<30x128xbf16> to vector<16x128xbf16>
    %c11 = arith.constant 11 : index
    %c0_37 = arith.constant 0 : index
    %c0_38 = arith.constant 0 : index
    %62 = vector.load %arg3[%c11, %c0_37, %c0_38] : memref<15x128x128xbf16, #tpu.memory_space<vmem>>, vector<1x128x128xbf16>
    %63 = vector.shape_cast %62 : vector<1x128x128xbf16> to vector<128x128xbf16>
    %cst_39 = arith.constant dense<0.000000e+00> : vector<16x128xf32>
    %64 = tpu.matmul %61, %63, %cst_39 {dimension_numbers = #tpu.dot_dimension_numbers<[1], [0], [0], [1], [0, 0, 1, 1], [], []>} : vector<16x128xbf16>, vector<128x128xbf16>, vector<16x128xf32> -> vector<16x128xf32>
    %65 = arith.addf %60, %64 : vector<16x128xf32>
    %66 = vector.extract_strided_slice %2 {offsets = [12, 0], sizes = [16, 128], strides = [1, 1]} : vector<30x128xbf16> to vector<16x128xbf16>
    %c12 = arith.constant 12 : index
    %c0_40 = arith.constant 0 : index
    %c0_41 = arith.constant 0 : index
    %67 = vector.load %arg3[%c12, %c0_40, %c0_41] : memref<15x128x128xbf16, #tpu.memory_space<vmem>>, vector<1x128x128xbf16>
    %68 = vector.shape_cast %67 : vector<1x128x128xbf16> to vector<128x128xbf16>
    %cst_42 = arith.constant dense<0.000000e+00> : vector<16x128xf32>
    %69 = tpu.matmul %66, %68, %cst_42 {dimension_numbers = #tpu.dot_dimension_numbers<[1], [0], [0], [1], [0, 0, 1, 1], [], []>} : vector<16x128xbf16>, vector<128x128xbf16>, vector<16x128xf32> -> vector<16x128xf32>
    %70 = arith.addf %65, %69 : vector<16x128xf32>
    %71 = vector.extract_strided_slice %2 {offsets = [13, 0], sizes = [16, 128], strides = [1, 1]} : vector<30x128xbf16> to vector<16x128xbf16>
    %c13 = arith.constant 13 : index
    %c0_43 = arith.constant 0 : index
    %c0_44 = arith.constant 0 : index
    %72 = vector.load %arg3[%c13, %c0_43, %c0_44] : memref<15x128x128xbf16, #tpu.memory_space<vmem>>, vector<1x128x128xbf16>
    %73 = vector.shape_cast %72 : vector<1x128x128xbf16> to vector<128x128xbf16>
    %cst_45 = arith.constant dense<0.000000e+00> : vector<16x128xf32>
    %74 = tpu.matmul %71, %73, %cst_45 {dimension_numbers = #tpu.dot_dimension_numbers<[1], [0], [0], [1], [0, 0, 1, 1], [], []>} : vector<16x128xbf16>, vector<128x128xbf16>, vector<16x128xf32> -> vector<16x128xf32>
    %75 = arith.addf %70, %74 : vector<16x128xf32>
    %76 = vector.extract_strided_slice %2 {offsets = [14, 0], sizes = [16, 128], strides = [1, 1]} : vector<30x128xbf16> to vector<16x128xbf16>
    %c14 = arith.constant 14 : index
    %c0_46 = arith.constant 0 : index
    %c0_47 = arith.constant 0 : index
    %77 = vector.load %arg3[%c14, %c0_46, %c0_47] : memref<15x128x128xbf16, #tpu.memory_space<vmem>>, vector<1x128x128xbf16>
    %78 = vector.shape_cast %77 : vector<1x128x128xbf16> to vector<128x128xbf16>
    %cst_48 = arith.constant dense<0.000000e+00> : vector<16x128xf32>
    %79 = tpu.matmul %76, %78, %cst_48 {dimension_numbers = #tpu.dot_dimension_numbers<[1], [0], [0], [1], [0, 0, 1, 1], [], []>} : vector<16x128xbf16>, vector<128x128xbf16>, vector<16x128xf32> -> vector<16x128xf32>
    %80 = arith.addf %75, %79 : vector<16x128xf32>
    %c0_49 = arith.constant 0 : index
    %c0_50 = arith.constant 0 : index
    %c0_51 = arith.constant 0 : index
    %81 = vector.load %arg5[%c0_49, %c0_50, %c0_51] : memref<1x16x128xf32, #tpu.memory_space<vmem>>, vector<1x16x128xf32>
    %82 = vector.shape_cast %81 : vector<1x16x128xf32> to vector<16x128xf32>
    %83 = vector.shape_cast %80 : vector<16x128xf32> to vector<1x16x128xf32>
    tpu.vector_store %arg5[%c0_49, %c0_50, %c0_51], %83 {strides = array<i32>} : memref<1x16x128xf32, #tpu.memory_space<vmem>>, vector<1x16x128xf32>,
    return
  }
  func.func @transform_0(%arg0: i32, %arg1: i32) -> (i32, i32, i32) {
    %c0_i32 = arith.constant 0 : i32
    %c0_i32_0 = arith.constant 0 : i32
    %c0_i32_1 = arith.constant 0 : i32
    return %arg0, %c0_i32, %c0_i32_0 : i32, i32, i32
  }
  func.func @transform_1(%arg0: i32, %arg1: i32) -> (i32, i32, i32) {
    %c0_i32 = arith.constant 0 : i32
    %c0_i32_0 = arith.constant 0 : i32
    %c0_i32_1 = arith.constant 0 : i32
    return %c0_i32, %c0_i32_0, %arg1 : i32, i32, i32
  }
  func.func @transform_2(%arg0: i32, %arg1: i32) -> (i32, i32) {
    %c0_i32 = arith.constant 0 : i32
    %c0_i32_0 = arith.constant 0 : i32
    return %c0_i32, %arg1 : i32, i32
  }
  func.func @transform_3(%arg0: i32, %arg1: i32) -> (i32, i32, i32) {
    %c0_i32 = arith.constant 0 : i32
    %c0_i32_0 = arith.constant 0 : i32
    return %arg0, %c0_i32, %arg1 : i32, i32, i32
  }
}

</mosaic_0001>

<llo_original>
// kernel: generator_forward.11
$region0: #{generator_forward.11}
  #allocation0 [shape = 'u32[]', space=smem, size = 0x4, offset = 0x4, fixed_abs, tag = 'smem constant byte address 0x4 - core index']
  #allocation1 [shape = 'u32[144,128]{1,0:T(1,128)}', space=vmem, size = 0x12000, scoped, tag = 'internal scratch']
  %s0 = inlined_call_operand.vmem [shape: f32[2,10,128], index: 0, kind: input, shape index: {}]
  %s1 = inlined_call_operand.vmem [shape: f32[2,10,128], index: 1, kind: input, shape index: {}]
  %s2 = inlined_call_operand.vmem [shape: bf16[5,128,128], index: 2, kind: input, shape index: {}]
  %s3 = inlined_call_operand.vmem [shape: f32[1,128], index: 3, kind: input, shape index: {}]
  %s4 = inlined_call_operand.vmem [shape: f32[2,8,128], index: 4, kind: output, shape index: {}]
  %s5 = sld [smem:[#allocation0]]
  $region49: #{generator_forward.11} parent=0
    _
  %s7 = ssub.s32 1, %s5
  %s8 = scalar_select 0, %s7, %s5
  loop: start=0, step=1, limit=4
  $region2: #{generator_forward.11} parent=0 // loop_pre_header
    _
  $region3: #{generator_forward.11} parent=0 // loop_header
    %s10 = sphi 0, %s14
    %p11 = scmp.ge.s32.totalorder %s10, 4
    %s17 = sphi 0, %s29
    %s18 = sphi 0, %s25
    %s19 = sphi 0, %s17
    %s20 = sphi 0, %s18
    %s21 = sphi 0, %s19
    %s22 = sphi 0, %s20
    %s32 = sphi 0, %s34
    %s35 = sphi 0, %s32
    %s36 = sphi 0, %s35
    %s52 = sphi 0, %s36
    %s58 = sphi 0, %s60
    %s61 = sphi 0, %s58
    %s62 = sphi 0, %s61
    %s78 = sphi 0, %s62
    %s84 = sphi 0, %s86
    %s87 = sphi 0, %s84
    %s88 = sphi 0, %s87
    %s104 = sphi 0, %s88
    %s110 = sphi 0, %s112
    %s113 = sphi 0, %s110
    %s114 = sphi 0, %s113
    %s130 = sphi 0, %s114
    %s138 = sphi 0, %s140
    %s141 = sphi 0, %s138
    %s142 = sphi 0, %s141
    %s158 = sphi 0, %s142
  $region4: #{generator_forward.11} parent=0 // loop_header_branch
    %13 = sbr.rel (%p11) target = $region8
  $region5: #{generator_forward.11} parent=0 // loop_body
    %s15 = ssub.s32 %s10, 1
    %s16 = ssub.s32 %s10, 2
    %s23 = sadd.s32 1, %s18
    %p24 = scmp.ge.s32.totalorder %s23, 1
    %s25 = scalar_select %p24, 0, %s23
    %s26 = sadd.s32 1, %s17
    %s27 = scalar_select %p24, %s26, %s17
    %p28 = scmp.ge.s32.totalorder %s27, 2
    %s29 = scalar_select %p28, 0, %s27
    %s30 = ssub.s32 %s17, %s29
    %p31 = scmp.eq.s32.totalorder %s30, 0
    %s33 = sadd.s32 %s32, 1
    %s34 = scalar_select %p31, %s32, %s33
    %p37 = pneg %p31
    %p38 = scmp.eq.s32.totalorder %s10, 1
    %p39 = por %p37, %p38
    %p40 = scmp.ne.s32.totalorder %s32, %s35
    %p41 = scmp.eq.s32.totalorder %s10, 0
    %p42 = por %p40, %p41
    %p43 = scmp.ne.s32.totalorder %s32, %s35
    %p44 = scmp.eq.s32.totalorder %s15, 1
    %p45 = por %p43, %p44
    %p46 = scmp.ne.s32.totalorder %s35, %s36
    %p47 = scmp.eq.s32.totalorder %s15, 0
    %p48 = por %p46, %p47
    %p49 = scmp.ne.s32.totalorder %s35, %s36
    %p50 = scmp.eq.s32.totalorder %s16, 1
    %p51 = por %p49, %p50
    %p53 = scmp.ne.s32.totalorder %s36, %s52
    %p54 = scmp.eq.s32.totalorder %s16, 0
    %p55 = por %p53, %p54
    %s56 = ssub.s32 %s17, %s29
    %p57 = scmp.eq.s32.totalorder %s56, 0
    %s59 = sadd.s32 %s58, 1
    %s60 = scalar_select %p57, %s58, %s59
    %p63 = pneg %p57
    %p64 = scmp.eq.s32.totalorder %s10, 1
    %p65 = por %p63, %p64
    %p66 = scmp.ne.s32.totalorder %s58, %s61
    %p67 = scmp.eq.s32.totalorder %s10, 0
    %p68 = por %p66, %p67
    %p69 = scmp.ne.s32.totalorder %s58, %s61
    %p70 = scmp.eq.s32.totalorder %s15, 1
    %p71 = por %p69, %p70
    %p72 = scmp.ne.s32.totalorder %s61, %s62
    %p73 = scmp.eq.s32.totalorder %s15, 0
    %p74 = por %p72, %p73
    %p75 = scmp.ne.s32.totalorder %s61, %s62
    %p76 = scmp.eq.s32.totalorder %s16, 1
    %p77 = por %p75, %p76
    %p79 = scmp.ne.s32.totalorder %s62, %s78
    %p80 = scmp.eq.s32.totalorder %s16, 0
    %p81 = por %p79, %p80
    %s82 = ssub.s32 %s18, %s25
    %p83 = scmp.eq.s32.totalorder %s82, 0
    %s85 = sadd.s32 %s84, 1
    %s86 = scalar_select %p83, %s84, %s85
    %p89 = pneg %p83
    %p90 = scmp.eq.s32.totalorder %s10, 1
    %p91 = por %p89, %p90
    %p92 = scmp.ne.s32.totalorder %s84, %s87
    %p93 = scmp.eq.s32.totalorder %s10, 0
    %p94 = por %p92, %p93
    %p95 = scmp.ne.s32.totalorder %s84, %s87
    %p96 = scmp.eq.s32.totalorder %s15, 1
    %p97 = por %p95, %p96
    %p98 = scmp.ne.s32.totalorder %s87, %s88
    %p99 = scmp.eq.s32.totalorder %s15, 0
    %p100 = por %p98, %p99
    %p101 = scmp.ne.s32.totalorder %s87, %s88
    %p102 = scmp.eq.s32.totalorder %s16, 1
    %p103 = por %p101, %p102
    %p105 = scmp.ne.s32.totalorder %s88, %s104
    %p106 = scmp.eq.s32.totalorder %s16, 0
    %p107 = por %p105, %p106
    %s108 = ssub.s32 %s18, %s25
    %p109 = scmp.eq.s32.totalorder %s108, 0
    %s111 = sadd.s32 %s110, 1
    %s112 = scalar_select %p109, %s110, %s111
    %p115 = pneg %p109
    %p116 = scmp.eq.s32.totalorder %s10, 1
    %p117 = por %p115, %p116
    %p118 = scmp.ne.s32.totalorder %s110, %s113
    %p119 = scmp.eq.s32.totalorder %s10, 0
    %p120 = por %p118, %p119
    %p121 = scmp.ne.s32.totalorder %s110, %s113
    %p122 = scmp.eq.s32.totalorder %s15, 1
    %p123 = por %p121, %p122
    %p124 = scmp.ne.s32.totalorder %s113, %s114
    %p125 = scmp.eq.s32.totalorder %s15, 0
    %p126 = por %p124, %p125
    %p127 = scmp.ne.s32.totalorder %s113, %s114
    %p128 = scmp.eq.s32.totalorder %s16, 1
    %p129 = por %p127, %p128
    %p131 = scmp.ne.s32.totalorder %s114, %s130
    %p132 = scmp.eq.s32.totalorder %s16, 0
    %p133 = por %p131, %p132
    %s134 = ssub.s32 %s17, %s29
    %s135 = ssub.s32 %s18, %s25
    %s136 = sor.u32 %s134, %s135
    %p137 = scmp.eq.s32.totalorder %s136, 0
    %s139 = sadd.s32 %s138, 1
    %s140 = scalar_select %p137, %s138, %s139
    %p143 = pneg %p137
    %p144 = scmp.eq.s32.totalorder %s10, 1
    %p145 = por %p143, %p144
    %p146 = scmp.ne.s32.totalorder %s138, %s141
    %p147 = scmp.eq.s32.totalorder %s10, 0
    %p148 = por %p146, %p147
    %p149 = scmp.ne.s32.totalorder %s138, %s141
    %p150 = scmp.eq.s32.totalorder %s15, 1
    %p151 = por %p149, %p150
    %p152 = scmp.ne.s32.totalorder %s141, %s142
    %p153 = scmp.eq.s32.totalorder %s15, 0
    %p154 = por %p152, %p153
    %p155 = scmp.ne.s32.totalorder %s141, %s142
    %p156 = scmp.eq.s32.totalorder %s16, 1
    %p157 = por %p155, %p156
    %p159 = scmp.ne.s32.totalorder %s142, %s158
    %p160 = scmp.eq.s32.totalorder %s16, 0
    %p161 = por %p159, %p160
    %p162 = scmp.le.s32.totalorder 1, %s10
    %p163 = scmp.lt.s32.totalorder %s10, 3
    %p164 = pnand %p162, %p163
    %p165 = pneg %p164
    // Predicated region
    $region9: #{generator_forward.11} parent=5 // pred_check
      _
    $region10: #{generator_forward.11} parent=5 // pred_check_branch
      %167 = sbr.rel (%p164) target = $region12
    $region11: #{generator_forward.11} parent=5 // pred_region
      %s168 = ssub.s32 %s10, 1
      // Predicated region
      $region13: #{generator_forward.11} parent=11 // pred_check
        %p169 = pneg %p100
      $region14: #{generator_forward.11} parent=11 // pred_check_branch
        %171 = sbr.rel (%p169) target = $region16
      $region15: #{generator_forward.11} parent=11 // pred_region
        %p172 = scmp.lt.s32.totalorder %s20, 0
        %s173 = scalar_select %p172, %s20, 0
        %s174 = smul.addr %s173, 4
        %s175 = scalar_lea.vmem %s2, %s174
      $region16: #{generator_forward.11} parent=11 // pred_fallthru
        _
      // Predicated region
      $region17: #{generator_forward.11} parent=11 // pred_check
        %p176 = pneg %p126
      $region18: #{generator_forward.11} parent=11 // pred_check_branch
        %178 = sbr.rel (%p176) target = $region20
      $region19: #{generator_forward.11} parent=11 // pred_region
        %p179 = scmp.lt.s32.totalorder %s20, 0
        %s180 = scalar_select %p179, %s20, 0
        %s181 = scalar_lea.vmem %s3, %s180
      $region20: #{generator_forward.11} parent=11 // pred_fallthru
        _
    $region12: #{generator_forward.11} parent=5 // pred_fallthru
      _
    %p182 = scmp.lt.s32.totalorder %s10, 2
    // Predicated region
    $region21: #{generator_forward.11} parent=5 // pred_check
      %p183 = pneg %p182
    $region22: #{generator_forward.11} parent=5 // pred_check_branch
      %185 = sbr.rel (%p183) target = $region24
    $region23: #{generator_forward.11} parent=5 // pred_region
      // Predicated region
      $region25: #{generator_forward.11} parent=23 // pred_check
        %p186 = pneg %p42
      $region26: #{generator_forward.11} parent=23 // pred_check_branch
        %188 = sbr.rel (%p186) target = $region28
      $region27: #{generator_forward.11} parent=23 // pred_region
        %p189 = scmp.lt.s32.totalorder %s17, 1
        %s190 = scalar_select %p189, %s17, 1
        %s191 = smul.addr %s190, 2
        %s192 = smul.addr %s191, 8
        %s193 = scalar_lea.vmem %s0, %s192
      $region28: #{generator_forward.11} parent=23 // pred_fallthru
        _
      // Predicated region
      $region29: #{generator_forward.11} parent=23 // pred_check
        %p194 = pneg %p68
      $region30: #{generator_forward.11} parent=23 // pred_check_branch
        %196 = sbr.rel (%p194) target = $region32
      $region31: #{generator_forward.11} parent=23 // pred_region
        %p197 = scmp.lt.s32.totalorder %s17, 1
        %s198 = scalar_select %p197, %s17, 1
        %s199 = smul.addr %s198, 2
        %s200 = smul.addr %s199, 8
        %s201 = scalar_lea.vmem %s1, %s200
      $region32: #{generator_forward.11} parent=23 // pred_fallthru
        _
    $region24: #{generator_forward.11} parent=5 // pred_fallthru
      _
    %p202 = scmp.le.s32.totalorder 1, %s10
    %p203 = scmp.lt.s32.totalorder %s10, 3
    %p204 = pnand %p202, %p203
    %p205 = pneg %p204
    // Predicated region
    $region33: #{generator_forward.11} parent=5 // pred_check
      _
    $region34: #{generator_forward.11} parent=5 // pred_check_branch
      %207 = sbr.rel (%p204) target = $region36
    $region35: #{generator_forward.11} parent=5 // pred_region
      %s208 = ssub.s32 %s10, 1
      %p209 = scmp.lt.s32.totalorder %s19, 1
      %s210 = scalar_select %p209, %s19, 1
      %s211 = smul.addr %s210, 2
      %s212 = smul.addr %s211, 8
      %s213 = scalar_lea.vmem %s0, %s212
      %p214 = pneg %p48
      %p215 = pneg %p45
      %p216 = scmp.lt.s32.totalorder %s19, 1
      %s217 = scalar_select %p216, %s19, 1
      %s218 = smul.addr %s217, 2
      %s219 = smul.addr %s218, 8
      %s220 = scalar_lea.vmem %s1, %s219
      %p221 = pneg %p74
      %p222 = pneg %p71
      %p223 = scmp.lt.s32.totalorder %s20, 0
      %s224 = scalar_select %p223, %s20, 0
      %s225 = smul.addr %s224, 4
      %s226 = scalar_lea.vmem %s2, %s225
      %p227 = pneg %p100
      %p228 = pneg %p97
      %p229 = scmp.lt.s32.totalorder %s20, 0
      %s230 = scalar_select %p229, %s20, 0
      %s231 = scalar_lea.vmem %s3, %s230
      %p232 = pneg %p126
      %p233 = pneg %p123
      %p234 = pneg %p154
      %p235 = pneg %p151
      %p236 = scmp.lt.s32.totalorder %s19, 1
      %s237 = scalar_select %p236, %s19, 1
      %p238 = scmp.lt.s32.totalorder %s20, 0
      %s239 = scalar_select %p238, %s20, 0
      %s240 = sadd.s32 %s239, %s237
      %s241 = smul.addr %s240, 8
      %s242 = scalar_lea.vmem %s4, %s241
      %p243 = scmp.lt.s32.totalorder %s19, 1
      %s244 = scalar_select %p243, %s19, 1
      %s245 = smul.addr %s244, 2
      %s246 = smul.addr %s245, 8
      %s247 = scalar_lea.vmem %s0, %s246
      %p248 = scmp.lt.s32.totalorder %s19, 1
      %s249 = scalar_select %p248, %s19, 1
      %s250 = smul.addr %s249, 2
      %s251 = smul.addr %s250, 8
      %s252 = scalar_lea.vmem %s1, %s251
      %p253 = scmp.lt.s32.totalorder %s20, 0
      %s254 = scalar_select %p253, %s20, 0
      %s255 = smul.addr %s254, 4
      %s256 = scalar_lea.vmem %s2, %s255
      %p257 = scmp.lt.s32.totalorder %s20, 0
      %s258 = scalar_select %p257, %s20, 0
      %s259 = scalar_lea.vmem %s3, %s258
      %p260 = scmp.lt.s32.totalorder %s19, 1
      %s261 = scalar_select %p260, %s19, 1
      %p262 = scmp.lt.s32.totalorder %s20, 0
      %s263 = scalar_select %p262, %s20, 0
      %s264 = sadd.s32 %s263, %s261
      %s265 = smul.addr %s264, 8
      %s266 = scalar_lea.vmem %s4, %s265
      %v268 = vld [vmem:[%s247] sm:$0xff]
      %v269 = vld [vmem:[%s247 + $0x8] sm:$0x3]
      %v270 = vpack.c.bf16 %v269, %v268
      %v271 = vld [vmem:[%s252] sm:$0xff]
      %v272 = vld [vmem:[%s252 + $0x8] sm:$0x3]
      %v273 = vpack.c.bf16 %v272, %v271
      %v274 = vld [vmem:[%s259] sm:$0x1]
      %v276 = vlaneseq
      %v277 = vshrl.u32 %v276, 7
      %v278 = vsub.s32 0, %v277
      %v279 = vrot.slane %v274, %v278
      %v281 = vld [vmem:[%s256] sm:$0xf]
      %v282 = vld [vmem:[%s256 + $0x4] sm:$0xf]
      %v283 = vld [vmem:[%s256 + $0x8] sm:$0xf]
      %v284 = vld [vmem:[%s256 + $0xc] sm:$0xf]
      %v285 = vld [vmem:[%s256 + $0x10] sm:$0xf]
      %v286 = vld [vmem:[%s256 + $0x14] sm:$0xf]
      %v287 = vld [vmem:[%s256 + $0x18] sm:$0xf]
      %v288 = vld [vmem:[%s256 + $0x1c] sm:$0xf]
      %v289 = vld [vmem:[%s256 + $0x20] sm:$0xf]
      %v290 = vld [vmem:[%s256 + $0x24] sm:$0xf]
      %v291 = vld [vmem:[%s256 + $0x28] sm:$0xf]
      %v292 = vld [vmem:[%s256 + $0x2c] sm:$0xf]
      %v293 = vld [vmem:[%s256 + $0x30] sm:$0xf]
      %v294 = vld [vmem:[%s256 + $0x34] sm:$0xf]
      %v295 = vld [vmem:[%s256 + $0x38] sm:$0xf]
      %v296 = vld [vmem:[%s256 + $0x3c] sm:$0xf]
      %v313 = vunpack.c.l.b16 %v281
      %v314 = vunpack.c.l.b16 %v282
      %v315 = vunpack.c.l.b16 %v283
      %v316 = vunpack.c.l.b16 %v284
      %v317 = vunpack.c.l.b16 %v285
      %v318 = vunpack.c.l.b16 %v286
      %v319 = vunpack.c.l.b16 %v287
      %v320 = vunpack.c.l.b16 %v288
      %v321 = vunpack.c.l.b16 %v289
      %v322 = vunpack.c.l.b16 %v290
      %v323 = vunpack.c.l.b16 %v291
      %v324 = vunpack.c.l.b16 %v292
      %v325 = vunpack.c.l.b16 %v293
      %v326 = vunpack.c.l.b16 %v294
      %v327 = vunpack.c.l.b16 %v295
      %v328 = vunpack.c.l.b16 %v296
      %v329 = vpack.c.b16 %v314, %v313
      %v330 = vpack.c.b16 %v316, %v315
      %v331 = vpack.c.b16 %v318, %v317
      %v332 = vpack.c.b16 %v320, %v319
      %v333 = vpack.c.b16 %v322, %v321
      %v334 = vpack.c.b16 %v324, %v323
      %v335 = vpack.c.b16 %v326, %v325
      %v336 = vpack.c.b16 %v328, %v327
      %345 = vmatprep.subr.bf16.mxu0 0
      %346 = vmatpush1.bf16.msra.mxu0 %v336
      %347 = vmatprep.subr.bf16.mxu0 0
      %348 = vmatpush1.bf16.msra.mxu0 %v335
      %349 = vmatprep.subr.bf16.mxu0 0
      %350 = vmatpush1.bf16.msra.mxu0 %v334
      %351 = vmatprep.subr.bf16.mxu0 0
      %352 = vmatpush1.bf16.msra.mxu0 %v333
      %353 = vmatprep.subr.bf16.mxu0 0
      %354 = vmatpush1.bf16.msra.mxu0 %v332
      %355 = vmatprep.subr.bf16.mxu0 0
      %356 = vmatpush1.bf16.msra.mxu0 %v331
      %357 = vmatprep.subr.bf16.mxu0 0
      %358 = vmatpush1.bf16.msra.mxu0 %v330
      %359 = vmatprep.subr.bf16.mxu0 0
      %360 = vmatpush1.bf16.msra.mxu0 %v329
      %361 = vmatprep.subr.bf16.mxu0 0
      %362 = vmatpush2.bf16.msra.mxu0 0
      %363 = vmatprep.subr.bf16.mxu0 0
      %364 = vmatpush2.bf16.msra.mxu0 0
      %365 = vmatprep.subr.bf16.mxu0 0
      %366 = vmatpush2.bf16.msra.mxu0 0
      %367 = vmatprep.subr.bf16.mxu0 0
      %368 = vmatpush2.bf16.msra.mxu0 0
      %369 = vmatprep.subr.bf16.mxu0 0
      %370 = vmatpush2.bf16.msra.mxu0 0
      %371 = vmatprep.subr.bf16.mxu0 0
      %372 = vmatpush2.bf16.msra.mxu0 0
      %373 = vmatprep.subr.bf16.mxu0 0
      %374 = vmatpush2.bf16.msra.mxu0 0
      %375 = vmatprep.subr.bf16.mxu0 0
      %376 = vmatpush2.bf16.msra.mxu0 0
      %377 = vmatprep.mubr.bf16.mxu0 0
      %378 = vmatmul.mubr.bf16.gmra.mxu0 %v270
      %v379 = vpop.f32.mrf.mxu0
      %v380 = vadd.f32 0.0, %v379
      %v381 = vpop.f32.mrf.mxu0
      %v382 = vpop.f32.mrf.mxu0
      %v383 = vpop.f32.mrf.mxu0
      %384 = vdwg.mxu0
      %v385 = vadd.f32 %v279, %v380
      %s386 = scalar_lea.vmem %s256, 64
      %v387 = vld [vmem:[%s386] sm:$0xf]
      %v388 = vld [vmem:[%s386 + $0x4] sm:$0xf]
      %v389 = vld [vmem:[%s386 + $0x8] sm:$0xf]
      %v390 = vld [vmem:[%s386 + $0xc] sm:$0xf]
      %v391 = vld [vmem:[%s386 + $0x10] sm:$0xf]
      %v392 = vld [vmem:[%s386 + $0x14] sm:$0xf]
      %v393 = vld [vmem:[%s386 + $0x18] sm:$0xf]
      %v394 = vld [vmem:[%s386 + $0x1c] sm:$0xf]
      %v395 = vld [vmem:[%s386 + $0x20] sm:$0xf]
      %v396 = vld [vmem:[%s386 + $0x24] sm:$0xf]
      %v397 = vld [vmem:[%s386 + $0x28] sm:$0xf]
      %v398 = vld [vmem:[%s386 + $0x2c] sm:$0xf]
      %v399 = vld [vmem:[%s386 + $0x30] sm:$0xf]
      %v400 = vld [vmem:[%s386 + $0x34] sm:$0xf]
      %v401 = vld [vmem:[%s386 + $0x38] sm:$0xf]
      %v402 = vld [vmem:[%s386 + $0x3c] sm:$0xf]
      %v419 = vunpack.c.l.b16 %v387
      %v420 = vunpack.c.l.b16 %v388
      %v421 = vunpack.c.l.b16 %v389
      %v422 = vunpack.c.l.b16 %v390
      %v423 = vunpack.c.l.b16 %v391
      %v424 = vunpack.c.l.b16 %v392
      %v425 = vunpack.c.l.b16 %v393
      %v426 = vunpack.c.l.b16 %v394
      %v427 = vunpack.c.l.b16 %v395
      %v428 = vunpack.c.l.b16 %v396
      %v429 = vunpack.c.l.b16 %v397
      %v430 = vunpack.c.l.b16 %v398
      %v431 = vunpack.c.l.b16 %v399
      %v432 = vunpack.c.l.b16 %v400
      %v433 = vunpack.c.l.b16 %v401
      %v434 = vunpack.c.l.b16 %v402
      %v435 = vpack.c.b16 %v420, %v419
      %v436 = vpack.c.b16 %v422, %v421
      %v437 = vpack.c.b16 %v424, %v423
      %v438 = vpack.c.b16 %v426, %v425
      %v439 = vpack.c.b16 %v428, %v427
      %v440 = vpack.c.b16 %v430, %v429
      %v441 = vpack.c.b16 %v432, %v431
      %v442 = vpack.c.b16 %v434, %v433
      %451 = vmatprep.subr.bf16.mxu0 0
      %452 = vmatpush1.bf16.msra.mxu0 %v442
      %453 = vmatprep.subr.bf16.mxu0 0
      %454 = vmatpush1.bf16.msra.mxu0 %v441
      %455 = vmatprep.subr.bf16.mxu0 0
      %456 = vmatpush1.bf16.msra.mxu0 %v440
      %457 = vmatprep.subr.bf16.mxu0 0
      %458 = vmatpush1.bf16.msra.mxu0 %v439
      %459 = vmatprep.subr.bf16.mxu0 0
      %460 = vmatpush1.bf16.msra.mxu0 %v438
      %461 = vmatprep.subr.bf16.mxu0 0
      %462 = vmatpush1.bf16.msra.mxu0 %v437
      %463 = vmatprep.subr.bf16.mxu0 0
      %464 = vmatpush1.bf16.msra.mxu0 %v436
      %465 = vmatprep.subr.bf16.mxu0 0
      %466 = vmatpush1.bf16.msra.mxu0 %v435
      %467 = vmatprep.subr.bf16.mxu0 0
      %468 = vmatpush2.bf16.msra.mxu0 0
      %469 = vmatprep.subr.bf16.mxu0 0
      %470 = vmatpush2.bf16.msra.mxu0 0
      %471 = vmatprep.subr.bf16.mxu0 0
      %472 = vmatpush2.bf16.msra.mxu0 0
      %473 = vmatprep.subr.bf16.mxu0 0
      %474 = vmatpush2.bf16.msra.mxu0 0
      %475 = vmatprep.subr.bf16.mxu0 0
      %476 = vmatpush2.bf16.msra.mxu0 0
      %477 = vmatprep.subr.bf16.mxu0 0
      %478 = vmatpush2.bf16.msra.mxu0 0
      %479 = vmatprep.subr.bf16.mxu0 0
      %480 = vmatpush2.bf16.msra.mxu0 0
      %481 = vmatprep.subr.bf16.mxu0 0
      %482 = vmatpush2.bf16.msra.mxu0 0
      %483 = vmatprep.mubr.bf16.mxu0 0
      %484 = vmatmul.mubr.bf16.gmra.mxu0 %v273
      %v485 = vpop.f32.mrf.mxu0
      %v486 = vadd.f32 0.0, %v485
      %v487 = vpop.f32.mrf.mxu0
      %v488 = vpop.f32.mrf.mxu0
      %v489 = vpop.f32.mrf.mxu0
      %490 = vdwg.mxu0
      %v491 = vadd.f32 %v385, %v486
      %s492 = scalar_lea.vmem %s256, 128
      %v493 = vld [vmem:[%s492] sm:$0xf]
      %v494 = vld [vmem:[%s492 + $0x4] sm:$0xf]
      %v495 = vld [vmem:[%s492 + $0x8] sm:$0xf]
      %v496 = vld [vmem:[%s492 + $0xc] sm:$0xf]
      %v497 = vld [vmem:[%s492 + $0x10] sm:$0xf]
      %v498 = vld [vmem:[%s492 + $0x14] sm:$0xf]
      %v499 = vld [vmem:[%s492 + $0x18] sm:$0xf]
      %v500 = vld [vmem:[%s492 + $0x1c] sm:$0xf]
      %v501 = vld [vmem:[%s492 + $0x20] sm:$0xf]
      %v502 = vld [vmem:[%s492 + $0x24] sm:$0xf]
      %v503 = vld [vmem:[%s492 + $0x28] sm:$0xf]
      %v504 = vld [vmem:[%s492 + $0x2c] sm:$0xf]
      %v505 = vld [vmem:[%s492 + $0x30] sm:$0xf]
      %v506 = vld [vmem:[%s492 + $0x34] sm:$0xf]
      %v507 = vld [vmem:[%s492 + $0x38] sm:$0xf]
      %v508 = vld [vmem:[%s492 + $0x3c] sm:$0xf]
      %v510 = vshrl.u32 %v270, 16
      %v512 = vshll.u32 %v270, 16
      %v514 = vrot.slane %v512, 1
      %v515 = vor.u32 %v510, %v514
      %v533 = vunpack.c.l.b16 %v493
      %v534 = vunpack.c.l.b16 %v494
      %v535 = vunpack.c.l.b16 %v495
      %v536 = vunpack.c.l.b16 %v496
      %v537 = vunpack.c.l.b16 %v497
      %v538 = vunpack.c.l.b16 %v498
      %v539 = vunpack.c.l.b16 %v499
      %v540 = vunpack.c.l.b16 %v500
      %v541 = vunpack.c.l.b16 %v501
      %v542 = vunpack.c.l.b16 %v502
      %v543 = vunpack.c.l.b16 %v503
      %v544 = vunpack.c.l.b16 %v504
      %v545 = vunpack.c.l.b16 %v505
      %v546 = vunpack.c.l.b16 %v506
      %v547 = vunpack.c.l.b16 %v507
      %v548 = vunpack.c.l.b16 %v508
      %v549 = vpack.c.b16 %v534, %v533
      %v550 = vpack.c.b16 %v536, %v535
      %v551 = vpack.c.b16 %v538, %v537
      %v552 = vpack.c.b16 %v540, %v539
      %v553 = vpack.c.b16 %v542, %v541
      %v554 = vpack.c.b16 %v544, %v543
      %v555 = vpack.c.b16 %v546, %v545
      %v556 = vpack.c.b16 %v548, %v547
      %565 = vmatprep.subr.bf16.mxu0 0
      %566 = vmatpush1.bf16.msra.mxu0 %v556
      %567 = vmatprep.subr.bf16.mxu0 0
      %568 = vmatpush1.bf16.msra.mxu0 %v555
      %569 = vmatprep.subr.bf16.mxu0 0
      %570 = vmatpush1.bf16.msra.mxu0 %v554
      %571 = vmatprep.subr.bf16.mxu0 0
      %572 = vmatpush1.bf16.msra.mxu0 %v553
      %573 = vmatprep.subr.bf16.mxu0 0
      %574 = vmatpush1.bf16.msra.mxu0 %v552
      %575 = vmatprep.subr.bf16.mxu0 0
      %576 = vmatpush1.bf16.msra.mxu0 %v551
      %577 = vmatprep.subr.bf16.mxu0 0
      %578 = vmatpush1.bf16.msra.mxu0 %v550
      %579 = vmatprep.subr.bf16.mxu0 0
      %580 = vmatpush1.bf16.msra.mxu0 %v549
      %581 = vmatprep.subr.bf16.mxu0 0
      %582 = vmatpush2.bf16.msra.mxu0 0
      %583 = vmatprep.subr.bf16.mxu0 0
      %584 = vmatpush2.bf16.msra.mxu0 0
      %585 = vmatprep.subr.bf16.mxu0 0
      %586 = vmatpush2.bf16.msra.mxu0 0
      %587 = vmatprep.subr.bf16.mxu0 0
      %588 = vmatpush2.bf16.msra.mxu0 0
      %589 = vmatprep.subr.bf16.mxu0 0
      %590 = vmatpush2.bf16.msra.mxu0 0
      %591 = vmatprep.subr.bf16.mxu0 0
      %592 = vmatpush2.bf16.msra.mxu0 0
      %593 = vmatprep.subr.bf16.mxu0 0
      %594 = vmatpush2.bf16.msra.mxu0 0
      %595 = vmatprep.subr.bf16.mxu0 0
      %596 = vmatpush2.bf16.msra.mxu0 0
      %597 = vmatprep.mubr.bf16.mxu0 0
      %598 = vmatmul.mubr.bf16.gmra.mxu0 %v515
      %v599 = vpop.f32.mrf.mxu0
      %v600 = vadd.f32 0.0, %v599
      %v601 = vpop.f32.mrf.mxu0
      %v602 = vpop.f32.mrf.mxu0
      %v603 = vpop.f32.mrf.mxu0
      %604 = vdwg.mxu0
      %v605 = vadd.f32 %v491, %v600
      %s606 = scalar_lea.vmem %s256, 192
      %v607 = vld [vmem:[%s606] sm:$0xf]
      %v608 = vld [vmem:[%s606 + $0x4] sm:$0xf]
      %v609 = vld [vmem:[%s606 + $0x8] sm:$0xf]
      %v610 = vld [vmem:[%s606 + $0xc] sm:$0xf]
      %v611 = vld [vmem:[%s606 + $0x10] sm:$0xf]
      %v612 = vld [vmem:[%s606 + $0x14] sm:$0xf]
      %v613 = vld [vmem:[%s606 + $0x18] sm:$0xf]
      %v614 = vld [vmem:[%s606 + $0x1c] sm:$0xf]
      %v615 = vld [vmem:[%s606 + $0x20] sm:$0xf]
      %v616 = vld [vmem:[%s606 + $0x24] sm:$0xf]
      %v617 = vld [vmem:[%s606 + $0x28] sm:$0xf]
      %v618 = vld [vmem:[%s606 + $0x2c] sm:$0xf]
      %v619 = vld [vmem:[%s606 + $0x30] sm:$0xf]
      %v620 = vld [vmem:[%s606 + $0x34] sm:$0xf]
      %v621 = vld [vmem:[%s606 + $0x38] sm:$0xf]
      %v622 = vld [vmem:[%s606 + $0x3c] sm:$0xf]
      %v624 = vshrl.u32 %v273, 16
      %v626 = vshll.u32 %v273, 16
      %v628 = vrot.slane %v626, 1
      %v629 = vor.u32 %v624, %v628
      %v647 = vunpack.c.l.b16 %v607
      %v648 = vunpack.c.l.b16 %v608
      %v649 = vunpack.c.l.b16 %v609
      %v650 = vunpack.c.l.b16 %v610
      %v651 = vunpack.c.l.b16 %v611
      %v652 = vunpack.c.l.b16 %v612
      %v653 = vunpack.c.l.b16 %v613
      %v654 = vunpack.c.l.b16 %v614
      %v655 = vunpack.c.l.b16 %v615
      %v656 = vunpack.c.l.b16 %v616
      %v657 = vunpack.c.l.b16 %v617
      %v658 = vunpack.c.l.b16 %v618
      %v659 = vunpack.c.l.b16 %v619
      %v660 = vunpack.c.l.b16 %v620
      %v661 = vunpack.c.l.b16 %v621
      %v662 = vunpack.c.l.b16 %v622
      %v663 = vpack.c.b16 %v648, %v647
      %v664 = vpack.c.b16 %v650, %v649
      %v665 = vpack.c.b16 %v652, %v651
      %v666 = vpack.c.b16 %v654, %v653
      %v667 = vpack.c.b16 %v656, %v655
      %v668 = vpack.c.b16 %v658, %v657
      %v669 = vpack.c.b16 %v660, %v659
      %v670 = vpack.c.b16 %v662, %v661
      %679 = vmatprep.subr.bf16.mxu0 0
      %680 = vmatpush1.bf16.msra.mxu0 %v670
      %681 = vmatprep.subr.bf16.mxu0 0
      %682 = vmatpush1.bf16.msra.mxu0 %v669
      %683 = vmatprep.subr.bf16.mxu0 0
      %684 = vmatpush1.bf16.msra.mxu0 %v668
      %685 = vmatprep.subr.bf16.mxu0 0
      %686 = vmatpush1.bf16.msra.mxu0 %v667
      %687 = vmatprep.subr.bf16.mxu0 0
      %688 = vmatpush1.bf16.msra.mxu0 %v666
      %689 = vmatprep.subr.bf16.mxu0 0
      %690 = vmatpush1.bf16.msra.mxu0 %v665
      %691 = vmatprep.subr.bf16.mxu0 0
      %692 = vmatpush1.bf16.msra.mxu0 %v664
      %693 = vmatprep.subr.bf16.mxu0 0
      %694 = vmatpush1.bf16.msra.mxu0 %v663
      %695 = vmatprep.subr.bf16.mxu0 0
      %696 = vmatpush2.bf16.msra.mxu0 0
      %697 = vmatprep.subr.bf16.mxu0 0
      %698 = vmatpush2.bf16.msra.mxu0 0
      %699 = vmatprep.subr.bf16.mxu0 0
      %700 = vmatpush2.bf16.msra.mxu0 0
      %701 = vmatprep.subr.bf16.mxu0 0
      %702 = vmatpush2.bf16.msra.mxu0 0
      %703 = vmatprep.subr.bf16.mxu0 0
      %704 = vmatpush2.bf16.msra.mxu0 0
      %705 = vmatprep.subr.bf16.mxu0 0
      %706 = vmatpush2.bf16.msra.mxu0 0
      %707 = vmatprep.subr.bf16.mxu0 0
      %708 = vmatpush2.bf16.msra.mxu0 0
      %709 = vmatprep.subr.bf16.mxu0 0
      %710 = vmatpush2.bf16.msra.mxu0 0
      %711 = vmatprep.mubr.bf16.mxu0 0
      %712 = vmatmul.mubr.bf16.gmra.mxu0 %v629
      %v713 = vpop.f32.mrf.mxu0
      %v714 = vadd.f32 0.0, %v713
      %v715 = vpop.f32.mrf.mxu0
      %v716 = vpop.f32.mrf.mxu0
      %v717 = vpop.f32.mrf.mxu0
      %718 = vdwg.mxu0
      %v719 = vadd.f32 %v605, %v714
      %s720 = scalar_lea.vmem %s256, 256
      %v721 = vld [vmem:[%s720] sm:$0xf]
      %v722 = vld [vmem:[%s720 + $0x4] sm:$0xf]
      %v723 = vld [vmem:[%s720 + $0x8] sm:$0xf]
      %v724 = vld [vmem:[%s720 + $0xc] sm:$0xf]
      %v725 = vld [vmem:[%s720 + $0x10] sm:$0xf]
      %v726 = vld [vmem:[%s720 + $0x14] sm:$0xf]
      %v727 = vld [vmem:[%s720 + $0x18] sm:$0xf]
      %v728 = vld [vmem:[%s720 + $0x1c] sm:$0xf]
      %v729 = vld [vmem:[%s720 + $0x20] sm:$0xf]
      %v730 = vld [vmem:[%s720 + $0x24] sm:$0xf]
      %v731 = vld [vmem:[%s720 + $0x28] sm:$0xf]
      %v732 = vld [vmem:[%s720 + $0x2c] sm:$0xf]
      %v733 = vld [vmem:[%s720 + $0x30] sm:$0xf]
      %v734 = vld [vmem:[%s720 + $0x34] sm:$0xf]
      %v735 = vld [vmem:[%s720 + $0x38] sm:$0xf]
      %v736 = vld [vmem:[%s720 + $0x3c] sm:$0xf]
      %v738 = vrot.slane %v270, 1
      %v756 = vunpack.c.l.b16 %v721
      %v757 = vunpack.c.l.b16 %v722
      %v758 = vunpack.c.l.b16 %v723
      %v759 = vunpack.c.l.b16 %v724
      %v760 = vunpack.c.l.b16 %v725
      %v761 = vunpack.c.l.b16 %v726
      %v762 = vunpack.c.l.b16 %v727
      %v763 = vunpack.c.l.b16 %v728
      %v764 = vunpack.c.l.b16 %v729
      %v765 = vunpack.c.l.b16 %v730
      %v766 = vunpack.c.l.b16 %v731
      %v767 = vunpack.c.l.b16 %v732
      %v768 = vunpack.c.l.b16 %v733
      %v769 = vunpack.c.l.b16 %v734
      %v770 = vunpack.c.l.b16 %v735
      %v771 = vunpack.c.l.b16 %v736
      %v772 = vpack.c.b16 %v757, %v756
      %v773 = vpack.c.b16 %v759, %v758
      %v774 = vpack.c.b16 %v761, %v760
      %v775 = vpack.c.b16 %v763, %v762
      %v776 = vpack.c.b16 %v765, %v764
      %v777 = vpack.c.b16 %v767, %v766
      %v778 = vpack.c.b16 %v769, %v768
      %v779 = vpack.c.b16 %v771, %v770
      %788 = vmatprep.subr.bf16.mxu0 0
      %789 = vmatpush1.bf16.msra.mxu0 %v779
      %790 = vmatprep.subr.bf16.mxu0 0
      %791 = vmatpush1.bf16.msra.mxu0 %v778
      %792 = vmatprep.subr.bf16.mxu0 0
      %793 = vmatpush1.bf16.msra.mxu0 %v777
      %794 = vmatprep.subr.bf16.mxu0 0
      %795 = vmatpush1.bf16.msra.mxu0 %v776
      %796 = vmatprep.subr.bf16.mxu0 0
      %797 = vmatpush1.bf16.msra.mxu0 %v775
      %798 = vmatprep.subr.bf16.mxu0 0
      %799 = vmatpush1.bf16.msra.mxu0 %v774
      %800 = vmatprep.subr.bf16.mxu0 0
      %801 = vmatpush1.bf16.msra.mxu0 %v773
      %802 = vmatprep.subr.bf16.mxu0 0
      %803 = vmatpush1.bf16.msra.mxu0 %v772
      %804 = vmatprep.subr.bf16.mxu0 0
      %805 = vmatpush2.bf16.msra.mxu0 0
      %806 = vmatprep.subr.bf16.mxu0 0
      %807 = vmatpush2.bf16.msra.mxu0 0
      %808 = vmatprep.subr.bf16.mxu0 0
      %809 = vmatpush2.bf16.msra.mxu0 0
      %810 = vmatprep.subr.bf16.mxu0 0
      %811 = vmatpush2.bf16.msra.mxu0 0
      %812 = vmatprep.subr.bf16.mxu0 0
      %813 = vmatpush2.bf16.msra.mxu0 0
      %814 = vmatprep.subr.bf16.mxu0 0
      %815 = vmatpush2.bf16.msra.mxu0 0
      %816 = vmatprep.subr.bf16.mxu0 0
      %817 = vmatpush2.bf16.msra.mxu0 0
      %818 = vmatprep.subr.bf16.mxu0 0
      %819 = vmatpush2.bf16.msra.mxu0 0
      %820 = vmatprep.mubr.bf16.mxu0 0
      %821 = vmatmul.mubr.bf16.gmra.mxu0 %v738
      %v822 = vpop.f32.mrf.mxu0
      %v823 = vadd.f32 0.0, %v822
      %v824 = vpop.f32.mrf.mxu0
      %v825 = vpop.f32.mrf.mxu0
      %v826 = vpop.f32.mrf.mxu0
      %827 = vdwg.mxu0
      %v828 = vadd.f32 %v719, %v823
      %v829 = vrot.slane %v828, 4
      %v830 = vadd.f32 %v828, %v829
      %v831 = vrot.slane %v830, 2
      %v832 = vadd.f32 %v830, %v831
      %v833 = vrot.slane %v832, 1
      %v834 = vadd.f32 %v832, %v833
      %v835 = vmul.f32 %v834, 0.125
      %v836 = vmul.f32 %v828, %v828
      %v837 = vrot.slane %v836, 4
      %v838 = vadd.f32 %v836, %v837
      %v839 = vrot.slane %v838, 2
      %v840 = vadd.f32 %v838, %v839
      %v841 = vrot.slane %v840, 1
      %v842 = vadd.f32 %v840, %v841
      %v843 = vmul.f32 %v842, 0.125
      %v844 = vmul.f32 %v835, %v835
      %v845 = vsub.f32 %v843, %v844
      %v846 = vmax.f32 %v845, 0.0
      %v847 = vsub.f32 %v828, %v835
      %v848 = vadd.f32 %v846, 1e-05
      %v849 = vrsqrt.pop %v848
      %v850 = vmul.f32 %v847, %v849
      %v851 = vmax.f32 %v850, 0.0
      %852 = vst [vmem:[%s266] sm:$0xff] %v851
      %p853 = scmp.lt.s32.totalorder %s19, 1
      %s854 = scalar_select %p853, %s19, 1
      %p855 = scmp.lt.s32.totalorder %s20, 0
      %s856 = scalar_select %p855, %s20, 0
      %s857 = sadd.s32 %s856, %s854
      %s858 = smul.addr %s857, 8
      %s859 = scalar_lea.vmem %s4, %s858
      // Predicated region
      $region37: #{generator_forward.11} parent=35 // pred_check
        %p860 = pneg %p151
      $region38: #{generator_forward.11} parent=35 // pred_check_branch
        %862 = sbr.rel (%p860) target = $region40
      $region39: #{generator_forward.11} parent=35 // pred_region
        _
      $region40: #{generator_forward.11} parent=35 // pred_fallthru
        _
    $region36: #{generator_forward.11} parent=5 // pred_fallthru
      _
    %p863 = scmp.le.s32.totalorder 2, %s10
    // Predicated region
    $region41: #{generator_forward.11} parent=5 // pred_check
      %p864 = pneg %p863
    $region42: #{generator_forward.11} parent=5 // pred_check_branch
      %866 = sbr.rel (%p864) target = $region44
    $region43: #{generator_forward.11} parent=5 // pred_region
      %s867 = ssub.s32 %s10, 2
      // Predicated region
      $region45: #{generator_forward.11} parent=43 // pred_check
        %p868 = pneg %p157
      $region46: #{generator_forward.11} parent=43 // pred_check_branch
        %870 = sbr.rel (%p868) target = $region48
      $region47: #{generator_forward.11} parent=43 // pred_region
        %p871 = scmp.lt.s32.totalorder %s21, 1
        %s872 = scalar_select %p871, %s21, 1
        %p873 = scmp.lt.s32.totalorder %s22, 0
        %s874 = scalar_select %p873, %s22, 0
        %s875 = sadd.s32 %s874, %s872
        %s876 = smul.addr %s875, 8
        %s877 = scalar_lea.vmem %s4, %s876
      $region48: #{generator_forward.11} parent=43 // pred_fallthru
        _
    $region44: #{generator_forward.11} parent=5 // pred_fallthru
      _
  $region6: #{generator_forward.11} parent=0 // loop_footer
    %s14 = sadd.s32 1, %s10
  $region7: #{generator_forward.11} parent=0 // loop_footer_branch
    %9 = sbr.rel target = $region3
  $region8: #{generator_forward.11} parent=0 // loop_exit
    _

// kernel: generator_forward.12
$region0: #{generator_forward.12}
  #allocation0 [shape = 'u32[]', space=smem, size = 0x4, offset = 0x4, fixed_abs, tag = 'smem constant byte address 0x4 - core index']
  #allocation1 [shape = 'u32[144,128]{1,0:T(1,128)}', space=vmem, size = 0x12000, scoped, tag = 'internal scratch']
  %s0 = inlined_call_operand.vmem [shape: f32[2,6,128], index: 0, kind: input, shape index: {}]
  %s1 = inlined_call_operand.vmem [shape: f32[2,6,128], index: 1, kind: input, shape index: {}]
  %s2 = inlined_call_operand.vmem [shape: bf16[5,128,128], index: 2, kind: input, shape index: {}]
  %s3 = inlined_call_operand.vmem [shape: f32[1,128], index: 3, kind: input, shape index: {}]
  %s4 = inlined_call_operand.vmem [shape: f32[2,4,128], index: 4, kind: output, shape index: {}]
  %s5 = sld [smem:[#allocation0]]
  $region49: #{generator_forward.12} parent=0
    _
  %s7 = ssub.s32 1, %s5
  %s8 = scalar_select 0, %s7, %s5
  loop: start=0, step=1, limit=4
  $region2: #{generator_forward.12} parent=0 // loop_pre_header
    _
  $region3: #{generator_forward.12} parent=0 // loop_header
    %s10 = sphi 0, %s14
    %p11 = scmp.ge.s32.totalorder %s10, 4
    %s17 = sphi 0, %s29
    %s18 = sphi 0, %s25
    %s19 = sphi 0, %s17
    %s20 = sphi 0, %s18
    %s21 = sphi 0, %s19
    %s22 = sphi 0, %s20
    %s32 = sphi 0, %s34
    %s35 = sphi 0, %s32
    %s36 = sphi 0, %s35
    %s52 = sphi 0, %s36
    %s58 = sphi 0, %s60
    %s61 = sphi 0, %s58
    %s62 = sphi 0, %s61
    %s78 = sphi 0, %s62
    %s84 = sphi 0, %s86
    %s87 = sphi 0, %s84
    %s88 = sphi 0, %s87
    %s104 = sphi 0, %s88
    %s110 = sphi 0, %s112
    %s113 = sphi 0, %s110
    %s114 = sphi 0, %s113
    %s130 = sphi 0, %s114
    %s138 = sphi 0, %s140
    %s141 = sphi 0, %s138
    %s142 = sphi 0, %s141
    %s158 = sphi 0, %s142
  $region4: #{generator_forward.12} parent=0 // loop_header_branch
    %13 = sbr.rel (%p11) target = $region8
  $region5: #{generator_forward.12} parent=0 // loop_body
    %s15 = ssub.s32 %s10, 1
    %s16 = ssub.s32 %s10, 2
    %s23 = sadd.s32 1, %s18
    %p24 = scmp.ge.s32.totalorder %s23, 1
    %s25 = scalar_select %p24, 0, %s23
    %s26 = sadd.s32 1, %s17
    %s27 = scalar_select %p24, %s26, %s17
    %p28 = scmp.ge.s32.totalorder %s27, 2
    %s29 = scalar_select %p28, 0, %s27
    %s30 = ssub.s32 %s17, %s29
    %p31 = scmp.eq.s32.totalorder %s30, 0
    %s33 = sadd.s32 %s32, 1
    %s34 = scalar_select %p31, %s32, %s33
    %p37 = pneg %p31
    %p38 = scmp.eq.s32.totalorder %s10, 1
    %p39 = por %p37, %p38
    %p40 = scmp.ne.s32.totalorder %s32, %s35
    %p41 = scmp.eq.s32.totalorder %s10, 0
    %p42 = por %p40, %p41
    %p43 = scmp.ne.s32.totalorder %s32, %s35
    %p44 = scmp.eq.s32.totalorder %s15, 1
    %p45 = por %p43, %p44
    %p46 = scmp.ne.s32.totalorder %s35, %s36
    %p47 = scmp.eq.s32.totalorder %s15, 0
    %p48 = por %p46, %p47
    %p49 = scmp.ne.s32.totalorder %s35, %s36
    %p50 = scmp.eq.s32.totalorder %s16, 1
    %p51 = por %p49, %p50
    %p53 = scmp.ne.s32.totalorder %s36, %s52
    %p54 = scmp.eq.s32.totalorder %s16, 0
    %p55 = por %p53, %p54
    %s56 = ssub.s32 %s17, %s29
    %p57 = scmp.eq.s32.totalorder %s56, 0
    %s59 = sadd.s32 %s58, 1
    %s60 = scalar_select %p57, %s58, %s59
    %p63 = pneg %p57
    %p64 = scmp.eq.s32.totalorder %s10, 1
    %p65 = por %p63, %p64
    %p66 = scmp.ne.s32.totalorder %s58, %s61
    %p67 = scmp.eq.s32.totalorder %s10, 0
    %p68 = por %p66, %p67
    %p69 = scmp.ne.s32.totalorder %s58, %s61
    %p70 = scmp.eq.s32.totalorder %s15, 1
    %p71 = por %p69, %p70
    %p72 = scmp.ne.s32.totalorder %s61, %s62
    %p73 = scmp.eq.s32.totalorder %s15, 0
    %p74 = por %p72, %p73
    %p75 = scmp.ne.s32.totalorder %s61, %s62
    %p76 = scmp.eq.s32.totalorder %s16, 1
    %p77 = por %p75, %p76
    %p79 = scmp.ne.s32.totalorder %s62, %s78
    %p80 = scmp.eq.s32.totalorder %s16, 0
    %p81 = por %p79, %p80
    %s82 = ssub.s32 %s18, %s25
    %p83 = scmp.eq.s32.totalorder %s82, 0
    %s85 = sadd.s32 %s84, 1
    %s86 = scalar_select %p83, %s84, %s85
    %p89 = pneg %p83
    %p90 = scmp.eq.s32.totalorder %s10, 1
    %p91 = por %p89, %p90
    %p92 = scmp.ne.s32.totalorder %s84, %s87
    %p93 = scmp.eq.s32.totalorder %s10, 0
    %p94 = por %p92, %p93
    %p95 = scmp.ne.s32.totalorder %s84, %s87
    %p96 = scmp.eq.s32.totalorder %s15, 1
    %p97 = por %p95, %p96
    %p98 = scmp.ne.s32.totalorder %s87, %s88
    %p99 = scmp.eq.s32.totalorder %s15, 0
    %p100 = por %p98, %p99
    %p101 = scmp.ne.s32.totalorder %s87, %s88
    %p102 = scmp.eq.s32.totalorder %s16, 1
    %p103 = por %p101, %p102
    %p105 = scmp.ne.s32.totalorder %s88, %s104
    %p106 = scmp.eq.s32.totalorder %s16, 0
    %p107 = por %p105, %p106
    %s108 = ssub.s32 %s18, %s25
    %p109 = scmp.eq.s32.totalorder %s108, 0
    %s111 = sadd.s32 %s110, 1
    %s112 = scalar_select %p109, %s110, %s111
    %p115 = pneg %p109
    %p116 = scmp.eq.s32.totalorder %s10, 1
    %p117 = por %p115, %p116
    %p118 = scmp.ne.s32.totalorder %s110, %s113
    %p119 = scmp.eq.s32.totalorder %s10, 0
    %p120 = por %p118, %p119
    %p121 = scmp.ne.s32.totalorder %s110, %s113
    %p122 = scmp.eq.s32.totalorder %s15, 1
    %p123 = por %p121, %p122
    %p124 = scmp.ne.s32.totalorder %s113, %s114
    %p125 = scmp.eq.s32.totalorder %s15, 0
    %p126 = por %p124, %p125
    %p127 = scmp.ne.s32.totalorder %s113, %s114
    %p128 = scmp.eq.s32.totalorder %s16, 1
    %p129 = por %p127, %p128
    %p131 = scmp.ne.s32.totalorder %s114, %s130
    %p132 = scmp.eq.s32.totalorder %s16, 0
    %p133 = por %p131, %p132
    %s134 = ssub.s32 %s17, %s29
    %s135 = ssub.s32 %s18, %s25
    %s136 = sor.u32 %s134, %s135
    %p137 = scmp.eq.s32.totalorder %s136, 0
    %s139 = sadd.s32 %s138, 1
    %s140 = scalar_select %p137, %s138, %s139
    %p143 = pneg %p137
    %p144 = scmp.eq.s32.totalorder %s10, 1
    %p145 = por %p143, %p144
    %p146 = scmp.ne.s32.totalorder %s138, %s141
    %p147 = scmp.eq.s32.totalorder %s10, 0
    %p148 = por %p146, %p147
    %p149 = scmp.ne.s32.totalorder %s138, %s141
    %p150 = scmp.eq.s32.totalorder %s15, 1
    %p151 = por %p149, %p150
    %p152 = scmp.ne.s32.totalorder %s141, %s142
    %p153 = scmp.eq.s32.totalorder %s15, 0
    %p154 = por %p152, %p153
    %p155 = scmp.ne.s32.totalorder %s141, %s142
    %p156 = scmp.eq.s32.totalorder %s16, 1
    %p157 = por %p155, %p156
    %p159 = scmp.ne.s32.totalorder %s142, %s158
    %p160 = scmp.eq.s32.totalorder %s16, 0
    %p161 = por %p159, %p160
    %p162 = scmp.le.s32.totalorder 1, %s10
    %p163 = scmp.lt.s32.totalorder %s10, 3
    %p164 = pnand %p162, %p163
    %p165 = pneg %p164
    // Predicated region
    $region9: #{generator_forward.12} parent=5 // pred_check
      _
    $region10: #{generator_forward.12} parent=5 // pred_check_branch
      %167 = sbr.rel (%p164) target = $region12
    $region11: #{generator_forward.12} parent=5 // pred_region
      %s168 = ssub.s32 %s10, 1
      // Predicated region
      $region13: #{generator_forward.12} parent=11 // pred_check
        %p169 = pneg %p100
      $region14: #{generator_forward.12} parent=11 // pred_check_branch
        %171 = sbr.rel (%p169) target = $region16
      $region15: #{generator_forward.12} parent=11 // pred_region
        %p172 = scmp.lt.s32.totalorder %s20, 0
        %s173 = scalar_select %p172, %s20, 0
        %s174 = smul.addr %s173, 4
        %s175 = scalar_lea.vmem %s2, %s174
      $region16: #{generator_forward.12} parent=11 // pred_fallthru
        _
      // Predicated region
      $region17: #{generator_forward.12} parent=11 // pred_check
        %p176 = pneg %p126
      $region18: #{generator_forward.12} parent=11 // pred_check_branch
        %178 = sbr.rel (%p176) target = $region20
      $region19: #{generator_forward.12} parent=11 // pred_region
        %p179 = scmp.lt.s32.totalorder %s20, 0
        %s180 = scalar_select %p179, %s20, 0
        %s181 = scalar_lea.vmem %s3, %s180
      $region20: #{generator_forward.12} parent=11 // pred_fallthru
        _
    $region12: #{generator_forward.12} parent=5 // pred_fallthru
      _
    %p182 = scmp.lt.s32.totalorder %s10, 2
    // Predicated region
    $region21: #{generator_forward.12} parent=5 // pred_check
      %p183 = pneg %p182
    $region22: #{generator_forward.12} parent=5 // pred_check_branch
      %185 = sbr.rel (%p183) target = $region24
    $region23: #{generator_forward.12} parent=5 // pred_region
      // Predicated region
      $region25: #{generator_forward.12} parent=23 // pred_check
        %p186 = pneg %p42
      $region26: #{generator_forward.12} parent=23 // pred_check_branch
        %188 = sbr.rel (%p186) target = $region28
      $region27: #{generator_forward.12} parent=23 // pred_region
        %p189 = scmp.lt.s32.totalorder %s17, 1
        %s190 = scalar_select %p189, %s17, 1
        %s191 = smul.addr %s190, 8
        %s192 = scalar_lea.vmem %s0, %s191
      $region28: #{generator_forward.12} parent=23 // pred_fallthru
        _
      // Predicated region
      $region29: #{generator_forward.12} parent=23 // pred_check
        %p193 = pneg %p68
      $region30: #{generator_forward.12} parent=23 // pred_check_branch
        %195 = sbr.rel (%p193) target = $region32
      $region31: #{generator_forward.12} parent=23 // pred_region
        %p196 = scmp.lt.s32.totalorder %s17, 1
        %s197 = scalar_select %p196, %s17, 1
        %s198 = smul.addr %s197, 8
        %s199 = scalar_lea.vmem %s1, %s198
      $region32: #{generator_forward.12} parent=23 // pred_fallthru
        _
    $region24: #{generator_forward.12} parent=5 // pred_fallthru
      _
    %p200 = scmp.le.s32.totalorder 1, %s10
    %p201 = scmp.lt.s32.totalorder %s10, 3
    %p202 = pnand %p200, %p201
    %p203 = pneg %p202
    // Predicated region
    $region33: #{generator_forward.12} parent=5 // pred_check
      _
    $region34: #{generator_forward.12} parent=5 // pred_check_branch
      %205 = sbr.rel (%p202) target = $region36
    $region35: #{generator_forward.12} parent=5 // pred_region
      %s206 = ssub.s32 %s10, 1
      %p207 = scmp.lt.s32.totalorder %s19, 1
      %s208 = scalar_select %p207, %s19, 1
      %s209 = smul.addr %s208, 8
      %s210 = scalar_lea.vmem %s0, %s209
      %p211 = pneg %p48
      %p212 = pneg %p45
      %p213 = scmp.lt.s32.totalorder %s19, 1
      %s214 = scalar_select %p213, %s19, 1
      %s215 = smul.addr %s214, 8
      %s216 = scalar_lea.vmem %s1, %s215
      %p217 = pneg %p74
      %p218 = pneg %p71
      %p219 = scmp.lt.s32.totalorder %s20, 0
      %s220 = scalar_select %p219, %s20, 0
      %s221 = smul.addr %s220, 4
      %s222 = scalar_lea.vmem %s2, %s221
      %p223 = pneg %p100
      %p224 = pneg %p97
      %p225 = scmp.lt.s32.totalorder %s20, 0
      %s226 = scalar_select %p225, %s20, 0
      %s227 = scalar_lea.vmem %s3, %s226
      %p228 = pneg %p126
      %p229 = pneg %p123
      %p230 = pneg %p154
      %p231 = pneg %p151
      %p232 = scmp.lt.s32.totalorder %s19, 1
      %s233 = scalar_select %p232, %s19, 1
      %p234 = scmp.lt.s32.totalorder %s20, 0
      %s235 = scalar_select %p234, %s20, 0
      %s236 = sadd.s32 %s235, %s233
      %s237 = smul.addr %s236, 4
      %s238 = scalar_lea.vmem %s4, %s237
      %p239 = scmp.lt.s32.totalorder %s19, 1
      %s240 = scalar_select %p239, %s19, 1
      %s241 = smul.addr %s240, 8
      %s242 = scalar_lea.vmem %s0, %s241
      %p243 = scmp.lt.s32.totalorder %s19, 1
      %s244 = scalar_select %p243, %s19, 1
      %s245 = smul.addr %s244, 8
      %s246 = scalar_lea.vmem %s1, %s245
      %p247 = scmp.lt.s32.totalorder %s20, 0
      %s248 = scalar_select %p247, %s20, 0
      %s249 = smul.addr %s248, 4
      %s250 = scalar_lea.vmem %s2, %s249
      %p251 = scmp.lt.s32.totalorder %s20, 0
      %s252 = scalar_select %p251, %s20, 0
      %s253 = scalar_lea.vmem %s3, %s252
      %p254 = scmp.lt.s32.totalorder %s19, 1
      %s255 = scalar_select %p254, %s19, 1
      %p256 = scmp.lt.s32.totalorder %s20, 0
      %s257 = scalar_select %p256, %s20, 0
      %s258 = sadd.s32 %s257, %s255
      %s259 = smul.addr %s258, 4
      %s260 = scalar_lea.vmem %s4, %s259
      %v262 = vld [vmem:[%s242] sm:$0x3f]
      %v263 = vpack.c.bf16 %v262, %v262
      %v264 = vld [vmem:[%s246] sm:$0x3f]
      %v265 = vpack.c.bf16 %v264, %v264
      %v266 = vld [vmem:[%s253] sm:$0x1]
      %v268 = vlaneseq
      %v269 = vshrl.u32 %v268, 7
      %v270 = vsub.s32 0, %v269
      %v271 = vrot.slane %v266, %v270
      %v273 = vld [vmem:[%s250] sm:$0xf]
      %v274 = vld [vmem:[%s250 + $0x4] sm:$0xf]
      %v275 = vld [vmem:[%s250 + $0x8] sm:$0xf]
      %v276 = vld [vmem:[%s250 + $0xc] sm:$0xf]
      %v277 = vld [vmem:[%s250 + $0x10] sm:$0xf]
      %v278 = vld [vmem:[%s250 + $0x14] sm:$0xf]
      %v279 = vld [vmem:[%s250 + $0x18] sm:$0xf]
      %v280 = vld [vmem:[%s250 + $0x1c] sm:$0xf]
      %v281 = vld [vmem:[%s250 + $0x20] sm:$0xf]
      %v282 = vld [vmem:[%s250 + $0x24] sm:$0xf]
      %v283 = vld [vmem:[%s250 + $0x28] sm:$0xf]
      %v284 = vld [vmem:[%s250 + $0x2c] sm:$0xf]
      %v285 = vld [vmem:[%s250 + $0x30] sm:$0xf]
      %v286 = vld [vmem:[%s250 + $0x34] sm:$0xf]
      %v287 = vld [vmem:[%s250 + $0x38] sm:$0xf]
      %v288 = vld [vmem:[%s250 + $0x3c] sm:$0xf]
      %v305 = vunpack.c.l.b16 %v273
      %v306 = vunpack.c.l.b16 %v274
      %v307 = vunpack.c.l.b16 %v275
      %v308 = vunpack.c.l.b16 %v276
      %v309 = vunpack.c.l.b16 %v277
      %v310 = vunpack.c.l.b16 %v278
      %v311 = vunpack.c.l.b16 %v279
      %v312 = vunpack.c.l.b16 %v280
      %v313 = vunpack.c.l.b16 %v281
      %v314 = vunpack.c.l.b16 %v282
      %v315 = vunpack.c.l.b16 %v283
      %v316 = vunpack.c.l.b16 %v284
      %v317 = vunpack.c.l.b16 %v285
      %v318 = vunpack.c.l.b16 %v286
      %v319 = vunpack.c.l.b16 %v287
      %v320 = vunpack.c.l.b16 %v288
      %v321 = vpack.c.b16 %v306, %v305
      %v322 = vpack.c.b16 %v308, %v307
      %v323 = vpack.c.b16 %v310, %v309
      %v324 = vpack.c.b16 %v312, %v311
      %v325 = vpack.c.b16 %v314, %v313
      %v326 = vpack.c.b16 %v316, %v315
      %v327 = vpack.c.b16 %v318, %v317
      %v328 = vpack.c.b16 %v320, %v319
      %337 = vmatprep.subr.bf16.mxu0 0
      %338 = vmatpush1.bf16.msra.mxu0 %v328
      %339 = vmatprep.subr.bf16.mxu0 0
      %340 = vmatpush1.bf16.msra.mxu0 %v327
      %341 = vmatprep.subr.bf16.mxu0 0
      %342 = vmatpush1.bf16.msra.mxu0 %v326
      %343 = vmatprep.subr.bf16.mxu0 0
      %344 = vmatpush1.bf16.msra.mxu0 %v325
      %345 = vmatprep.subr.bf16.mxu0 0
      %346 = vmatpush1.bf16.msra.mxu0 %v324
      %347 = vmatprep.subr.bf16.mxu0 0
      %348 = vmatpush1.bf16.msra.mxu0 %v323
      %349 = vmatprep.subr.bf16.mxu0 0
      %350 = vmatpush1.bf16.msra.mxu0 %v322
      %351 = vmatprep.subr.bf16.mxu0 0
      %352 = vmatpush1.bf16.msra.mxu0 %v321
      %353 = vmatprep.subr.bf16.mxu0 0
      %354 = vmatpush2.bf16.msra.mxu0 0
      %355 = vmatprep.subr.bf16.mxu0 0
      %356 = vmatpush2.bf16.msra.mxu0 0
      %357 = vmatprep.subr.bf16.mxu0 0
      %358 = vmatpush2.bf16.msra.mxu0 0
      %359 = vmatprep.subr.bf16.mxu0 0
      %360 = vmatpush2.bf16.msra.mxu0 0
      %361 = vmatprep.subr.bf16.mxu0 0
      %362 = vmatpush2.bf16.msra.mxu0 0
      %363 = vmatprep.subr.bf16.mxu0 0
      %364 = vmatpush2.bf16.msra.mxu0 0
      %365 = vmatprep.subr.bf16.mxu0 0
      %366 = vmatpush2.bf16.msra.mxu0 0
      %367 = vmatprep.subr.bf16.mxu0 0
      %368 = vmatpush2.bf16.msra.mxu0 0
      %369 = vmatprep.mubr.bf16.mxu0 0
      %370 = vmatmul.mubr.bf16.gmra.mxu0 %v263
      %v371 = vpop.f32.mrf.mxu0
      %v372 = vadd.f32 0.0, %v371
      %v373 = vpop.f32.mrf.mxu0
      %v374 = vpop.f32.mrf.mxu0
      %v375 = vpop.f32.mrf.mxu0
      %376 = vdwg.mxu0
      %v377 = vadd.f32 %v271, %v372
      %s378 = scalar_lea.vmem %s250, 64
      %v379 = vld [vmem:[%s378] sm:$0xf]
      %v380 = vld [vmem:[%s378 + $0x4] sm:$0xf]
      %v381 = vld [vmem:[%s378 + $0x8] sm:$0xf]
      %v382 = vld [vmem:[%s378 + $0xc] sm:$0xf]
      %v383 = vld [vmem:[%s378 + $0x10] sm:$0xf]
      %v384 = vld [vmem:[%s378 + $0x14] sm:$0xf]
      %v385 = vld [vmem:[%s378 + $0x18] sm:$0xf]
      %v386 = vld [vmem:[%s378 + $0x1c] sm:$0xf]
      %v387 = vld [vmem:[%s378 + $0x20] sm:$0xf]
      %v388 = vld [vmem:[%s378 + $0x24] sm:$0xf]
      %v389 = vld [vmem:[%s378 + $0x28] sm:$0xf]
      %v390 = vld [vmem:[%s378 + $0x2c] sm:$0xf]
      %v391 = vld [vmem:[%s378 + $0x30] sm:$0xf]
      %v392 = vld [vmem:[%s378 + $0x34] sm:$0xf]
      %v393 = vld [vmem:[%s378 + $0x38] sm:$0xf]
      %v394 = vld [vmem:[%s378 + $0x3c] sm:$0xf]
      %v411 = vunpack.c.l.b16 %v379
      %v412 = vunpack.c.l.b16 %v380
      %v413 = vunpack.c.l.b16 %v381
      %v414 = vunpack.c.l.b16 %v382
      %v415 = vunpack.c.l.b16 %v383
      %v416 = vunpack.c.l.b16 %v384
      %v417 = vunpack.c.l.b16 %v385
      %v418 = vunpack.c.l.b16 %v386
      %v419 = vunpack.c.l.b16 %v387
      %v420 = vunpack.c.l.b16 %v388
      %v421 = vunpack.c.l.b16 %v389
      %v422 = vunpack.c.l.b16 %v390
      %v423 = vunpack.c.l.b16 %v391
      %v424 = vunpack.c.l.b16 %v392
      %v425 = vunpack.c.l.b16 %v393
      %v426 = vunpack.c.l.b16 %v394
      %v427 = vpack.c.b16 %v412, %v411
      %v428 = vpack.c.b16 %v414, %v413
      %v429 = vpack.c.b16 %v416, %v415
      %v430 = vpack.c.b16 %v418, %v417
      %v431 = vpack.c.b16 %v420, %v419
      %v432 = vpack.c.b16 %v422, %v421
      %v433 = vpack.c.b16 %v424, %v423
      %v434 = vpack.c.b16 %v426, %v425
      %443 = vmatprep.subr.bf16.mxu0 0
      %444 = vmatpush1.bf16.msra.mxu0 %v434
      %445 = vmatprep.subr.bf16.mxu0 0
      %446 = vmatpush1.bf16.msra.mxu0 %v433
      %447 = vmatprep.subr.bf16.mxu0 0
      %448 = vmatpush1.bf16.msra.mxu0 %v432
      %449 = vmatprep.subr.bf16.mxu0 0
      %450 = vmatpush1.bf16.msra.mxu0 %v431
      %451 = vmatprep.subr.bf16.mxu0 0
      %452 = vmatpush1.bf16.msra.mxu0 %v430
      %453 = vmatprep.subr.bf16.mxu0 0
      %454 = vmatpush1.bf16.msra.mxu0 %v429
      %455 = vmatprep.subr.bf16.mxu0 0
      %456 = vmatpush1.bf16.msra.mxu0 %v428
      %457 = vmatprep.subr.bf16.mxu0 0
      %458 = vmatpush1.bf16.msra.mxu0 %v427
      %459 = vmatprep.subr.bf16.mxu0 0
      %460 = vmatpush2.bf16.msra.mxu0 0
      %461 = vmatprep.subr.bf16.mxu0 0
      %462 = vmatpush2.bf16.msra.mxu0 0
      %463 = vmatprep.subr.bf16.mxu0 0
      %464 = vmatpush2.bf16.msra.mxu0 0
      %465 = vmatprep.subr.bf16.mxu0 0
      %466 = vmatpush2.bf16.msra.mxu0 0
      %467 = vmatprep.subr.bf16.mxu0 0
      %468 = vmatpush2.bf16.msra.mxu0 0
      %469 = vmatprep.subr.bf16.mxu0 0
      %470 = vmatpush2.bf16.msra.mxu0 0
      %471 = vmatprep.subr.bf16.mxu0 0
      %472 = vmatpush2.bf16.msra.mxu0 0
      %473 = vmatprep.subr.bf16.mxu0 0
      %474 = vmatpush2.bf16.msra.mxu0 0
      %475 = vmatprep.mubr.bf16.mxu0 0
      %476 = vmatmul.mubr.bf16.gmra.mxu0 %v265
      %v477 = vpop.f32.mrf.mxu0
      %v478 = vadd.f32 0.0, %v477
      %v479 = vpop.f32.mrf.mxu0
      %v480 = vpop.f32.mrf.mxu0
      %v481 = vpop.f32.mrf.mxu0
      %482 = vdwg.mxu0
      %v483 = vadd.f32 %v377, %v478
      %s484 = scalar_lea.vmem %s250, 128
      %v485 = vld [vmem:[%s484] sm:$0xf]
      %v486 = vld [vmem:[%s484 + $0x4] sm:$0xf]
      %v487 = vld [vmem:[%s484 + $0x8] sm:$0xf]
      %v488 = vld [vmem:[%s484 + $0xc] sm:$0xf]
      %v489 = vld [vmem:[%s484 + $0x10] sm:$0xf]
      %v490 = vld [vmem:[%s484 + $0x14] sm:$0xf]
      %v491 = vld [vmem:[%s484 + $0x18] sm:$0xf]
      %v492 = vld [vmem:[%s484 + $0x1c] sm:$0xf]
      %v493 = vld [vmem:[%s484 + $0x20] sm:$0xf]
      %v494 = vld [vmem:[%s484 + $0x24] sm:$0xf]
      %v495 = vld [vmem:[%s484 + $0x28] sm:$0xf]
      %v496 = vld [vmem:[%s484 + $0x2c] sm:$0xf]
      %v497 = vld [vmem:[%s484 + $0x30] sm:$0xf]
      %v498 = vld [vmem:[%s484 + $0x34] sm:$0xf]
      %v499 = vld [vmem:[%s484 + $0x38] sm:$0xf]
      %v500 = vld [vmem:[%s484 + $0x3c] sm:$0xf]
      %v502 = vshrl.u32 %v263, 16
      %v504 = vshll.u32 %v263, 16
      %v506 = vrot.slane %v504, 1
      %v507 = vor.u32 %v502, %v506
      %v525 = vunpack.c.l.b16 %v485
      %v526 = vunpack.c.l.b16 %v486
      %v527 = vunpack.c.l.b16 %v487
      %v528 = vunpack.c.l.b16 %v488
      %v529 = vunpack.c.l.b16 %v489
      %v530 = vunpack.c.l.b16 %v490
      %v531 = vunpack.c.l.b16 %v491
      %v532 = vunpack.c.l.b16 %v492
      %v533 = vunpack.c.l.b16 %v493
      %v534 = vunpack.c.l.b16 %v494
      %v535 = vunpack.c.l.b16 %v495
      %v536 = vunpack.c.l.b16 %v496
      %v537 = vunpack.c.l.b16 %v497
      %v538 = vunpack.c.l.b16 %v498
      %v539 = vunpack.c.l.b16 %v499
      %v540 = vunpack.c.l.b16 %v500
      %v541 = vpack.c.b16 %v526, %v525
      %v542 = vpack.c.b16 %v528, %v527
      %v543 = vpack.c.b16 %v530, %v529
      %v544 = vpack.c.b16 %v532, %v531
      %v545 = vpack.c.b16 %v534, %v533
      %v546 = vpack.c.b16 %v536, %v535
      %v547 = vpack.c.b16 %v538, %v537
      %v548 = vpack.c.b16 %v540, %v539
      %557 = vmatprep.subr.bf16.mxu0 0
      %558 = vmatpush1.bf16.msra.mxu0 %v548
      %559 = vmatprep.subr.bf16.mxu0 0
      %560 = vmatpush1.bf16.msra.mxu0 %v547
      %561 = vmatprep.subr.bf16.mxu0 0
      %562 = vmatpush1.bf16.msra.mxu0 %v546
      %563 = vmatprep.subr.bf16.mxu0 0
      %564 = vmatpush1.bf16.msra.mxu0 %v545
      %565 = vmatprep.subr.bf16.mxu0 0
      %566 = vmatpush1.bf16.msra.mxu0 %v544
      %567 = vmatprep.subr.bf16.mxu0 0
      %568 = vmatpush1.bf16.msra.mxu0 %v543
      %569 = vmatprep.subr.bf16.mxu0 0
      %570 = vmatpush1.bf16.msra.mxu0 %v542
      %571 = vmatprep.subr.bf16.mxu0 0
      %572 = vmatpush1.bf16.msra.mxu0 %v541
      %573 = vmatprep.subr.bf16.mxu0 0
      %574 = vmatpush2.bf16.msra.mxu0 0
      %575 = vmatprep.subr.bf16.mxu0 0
      %576 = vmatpush2.bf16.msra.mxu0 0
      %577 = vmatprep.subr.bf16.mxu0 0
      %578 = vmatpush2.bf16.msra.mxu0 0
      %579 = vmatprep.subr.bf16.mxu0 0
      %580 = vmatpush2.bf16.msra.mxu0 0
      %581 = vmatprep.subr.bf16.mxu0 0
      %582 = vmatpush2.bf16.msra.mxu0 0
      %583 = vmatprep.subr.bf16.mxu0 0
      %584 = vmatpush2.bf16.msra.mxu0 0
      %585 = vmatprep.subr.bf16.mxu0 0
      %586 = vmatpush2.bf16.msra.mxu0 0
      %587 = vmatprep.subr.bf16.mxu0 0
      %588 = vmatpush2.bf16.msra.mxu0 0
      %589 = vmatprep.mubr.bf16.mxu0 0
      %590 = vmatmul.mubr.bf16.gmra.mxu0 %v507
      %v591 = vpop.f32.mrf.mxu0
      %v592 = vadd.f32 0.0, %v591
      %v593 = vpop.f32.mrf.mxu0
      %v594 = vpop.f32.mrf.mxu0
      %v595 = vpop.f32.mrf.mxu0
      %596 = vdwg.mxu0
      %v597 = vadd.f32 %v483, %v592
      %s598 = scalar_lea.vmem %s250, 192
      %v599 = vld [vmem:[%s598] sm:$0xf]
      %v600 = vld [vmem:[%s598 + $0x4] sm:$0xf]
      %v601 = vld [vmem:[%s598 + $0x8] sm:$0xf]
      %v602 = vld [vmem:[%s598 + $0xc] sm:$0xf]
      %v603 = vld [vmem:[%s598 + $0x10] sm:$0xf]
      %v604 = vld [vmem:[%s598 + $0x14] sm:$0xf]
      %v605 = vld [vmem:[%s598 + $0x18] sm:$0xf]
      %v606 = vld [vmem:[%s598 + $0x1c] sm:$0xf]
      %v607 = vld [vmem:[%s598 + $0x20] sm:$0xf]
      %v608 = vld [vmem:[%s598 + $0x24] sm:$0xf]
      %v609 = vld [vmem:[%s598 + $0x28] sm:$0xf]
      %v610 = vld [vmem:[%s598 + $0x2c] sm:$0xf]
      %v611 = vld [vmem:[%s598 + $0x30] sm:$0xf]
      %v612 = vld [vmem:[%s598 + $0x34] sm:$0xf]
      %v613 = vld [vmem:[%s598 + $0x38] sm:$0xf]
      %v614 = vld [vmem:[%s598 + $0x3c] sm:$0xf]
      %v616 = vshrl.u32 %v265, 16
      %v618 = vshll.u32 %v265, 16
      %v620 = vrot.slane %v618, 1
      %v621 = vor.u32 %v616, %v620
      %v639 = vunpack.c.l.b16 %v599
      %v640 = vunpack.c.l.b16 %v600
      %v641 = vunpack.c.l.b16 %v601
      %v642 = vunpack.c.l.b16 %v602
      %v643 = vunpack.c.l.b16 %v603
      %v644 = vunpack.c.l.b16 %v604
      %v645 = vunpack.c.l.b16 %v605
      %v646 = vunpack.c.l.b16 %v606
      %v647 = vunpack.c.l.b16 %v607
      %v648 = vunpack.c.l.b16 %v608
      %v649 = vunpack.c.l.b16 %v609
      %v650 = vunpack.c.l.b16 %v610
      %v651 = vunpack.c.l.b16 %v611
      %v652 = vunpack.c.l.b16 %v612
      %v653 = vunpack.c.l.b16 %v613
      %v654 = vunpack.c.l.b16 %v614
      %v655 = vpack.c.b16 %v640, %v639
      %v656 = vpack.c.b16 %v642, %v641
      %v657 = vpack.c.b16 %v644, %v643
      %v658 = vpack.c.b16 %v646, %v645
      %v659 = vpack.c.b16 %v648, %v647
      %v660 = vpack.c.b16 %v650, %v649
      %v661 = vpack.c.b16 %v652, %v651
      %v662 = vpack.c.b16 %v654, %v653
      %671 = vmatprep.subr.bf16.mxu0 0
      %672 = vmatpush1.bf16.msra.mxu0 %v662
      %673 = vmatprep.subr.bf16.mxu0 0
      %674 = vmatpush1.bf16.msra.mxu0 %v661
      %675 = vmatprep.subr.bf16.mxu0 0
      %676 = vmatpush1.bf16.msra.mxu0 %v660
      %677 = vmatprep.subr.bf16.mxu0 0
      %678 = vmatpush1.bf16.msra.mxu0 %v659
      %679 = vmatprep.subr.bf16.mxu0 0
      %680 = vmatpush1.bf16.msra.mxu0 %v658
      %681 = vmatprep.subr.bf16.mxu0 0
      %682 = vmatpush1.bf16.msra.mxu0 %v657
      %683 = vmatprep.subr.bf16.mxu0 0
      %684 = vmatpush1.bf16.msra.mxu0 %v656
      %685 = vmatprep.subr.bf16.mxu0 0
      %686 = vmatpush1.bf16.msra.mxu0 %v655
      %687 = vmatprep.subr.bf16.mxu0 0
      %688 = vmatpush2.bf16.msra.mxu0 0
      %689 = vmatprep.subr.bf16.mxu0 0
      %690 = vmatpush2.bf16.msra.mxu0 0
      %691 = vmatprep.subr.bf16.mxu0 0
      %692 = vmatpush2.bf16.msra.mxu0 0
      %693 = vmatprep.subr.bf16.mxu0 0
      %694 = vmatpush2.bf16.msra.mxu0 0
      %695 = vmatprep.subr.bf16.mxu0 0
      %696 = vmatpush2.bf16.msra.mxu0 0
      %697 = vmatprep.subr.bf16.mxu0 0
      %698 = vmatpush2.bf16.msra.mxu0 0
      %699 = vmatprep.subr.bf16.mxu0 0
      %700 = vmatpush2.bf16.msra.mxu0 0
      %701 = vmatprep.subr.bf16.mxu0 0
      %702 = vmatpush2.bf16.msra.mxu0 0
      %703 = vmatprep.mubr.bf16.mxu0 0
      %704 = vmatmul.mubr.bf16.gmra.mxu0 %v621
      %v705 = vpop.f32.mrf.mxu0
      %v706 = vadd.f32 0.0, %v705
      %v707 = vpop.f32.mrf.mxu0
      %v708 = vpop.f32.mrf.mxu0
      %v709 = vpop.f32.mrf.mxu0
      %710 = vdwg.mxu0
      %v711 = vadd.f32 %v597, %v706
      %s712 = scalar_lea.vmem %s250, 256
      %v713 = vld [vmem:[%s712] sm:$0xf]
      %v714 = vld [vmem:[%s712 + $0x4] sm:$0xf]
      %v715 = vld [vmem:[%s712 + $0x8] sm:$0xf]
      %v716 = vld [vmem:[%s712 + $0xc] sm:$0xf]
      %v717 = vld [vmem:[%s712 + $0x10] sm:$0xf]
      %v718 = vld [vmem:[%s712 + $0x14] sm:$0xf]
      %v719 = vld [vmem:[%s712 + $0x18] sm:$0xf]
      %v720 = vld [vmem:[%s712 + $0x1c] sm:$0xf]
      %v721 = vld [vmem:[%s712 + $0x20] sm:$0xf]
      %v722 = vld [vmem:[%s712 + $0x24] sm:$0xf]
      %v723 = vld [vmem:[%s712 + $0x28] sm:$0xf]
      %v724 = vld [vmem:[%s712 + $0x2c] sm:$0xf]
      %v725 = vld [vmem:[%s712 + $0x30] sm:$0xf]
      %v726 = vld [vmem:[%s712 + $0x34] sm:$0xf]
      %v727 = vld [vmem:[%s712 + $0x38] sm:$0xf]
      %v728 = vld [vmem:[%s712 + $0x3c] sm:$0xf]
      %v730 = vrot.slane %v263, 1
      %v748 = vunpack.c.l.b16 %v713
      %v749 = vunpack.c.l.b16 %v714
      %v750 = vunpack.c.l.b16 %v715
      %v751 = vunpack.c.l.b16 %v716
      %v752 = vunpack.c.l.b16 %v717
      %v753 = vunpack.c.l.b16 %v718
      %v754 = vunpack.c.l.b16 %v719
      %v755 = vunpack.c.l.b16 %v720
      %v756 = vunpack.c.l.b16 %v721
      %v757 = vunpack.c.l.b16 %v722
      %v758 = vunpack.c.l.b16 %v723
      %v759 = vunpack.c.l.b16 %v724
      %v760 = vunpack.c.l.b16 %v725
      %v761 = vunpack.c.l.b16 %v726
      %v762 = vunpack.c.l.b16 %v727
      %v763 = vunpack.c.l.b16 %v728
      %v764 = vpack.c.b16 %v749, %v748
      %v765 = vpack.c.b16 %v751, %v750
      %v766 = vpack.c.b16 %v753, %v752
      %v767 = vpack.c.b16 %v755, %v754
      %v768 = vpack.c.b16 %v757, %v756
      %v769 = vpack.c.b16 %v759, %v758
      %v770 = vpack.c.b16 %v761, %v760
      %v771 = vpack.c.b16 %v763, %v762
      %780 = vmatprep.subr.bf16.mxu0 0
      %781 = vmatpush1.bf16.msra.mxu0 %v771
      %782 = vmatprep.subr.bf16.mxu0 0
      %783 = vmatpush1.bf16.msra.mxu0 %v770
      %784 = vmatprep.subr.bf16.mxu0 0
      %785 = vmatpush1.bf16.msra.mxu0 %v769
      %786 = vmatprep.subr.bf16.mxu0 0
      %787 = vmatpush1.bf16.msra.mxu0 %v768
      %788 = vmatprep.subr.bf16.mxu0 0
      %789 = vmatpush1.bf16.msra.mxu0 %v767
      %790 = vmatprep.subr.bf16.mxu0 0
      %791 = vmatpush1.bf16.msra.mxu0 %v766
      %792 = vmatprep.subr.bf16.mxu0 0
      %793 = vmatpush1.bf16.msra.mxu0 %v765
      %794 = vmatprep.subr.bf16.mxu0 0
      %795 = vmatpush1.bf16.msra.mxu0 %v764
      %796 = vmatprep.subr.bf16.mxu0 0
      %797 = vmatpush2.bf16.msra.mxu0 0
      %798 = vmatprep.subr.bf16.mxu0 0
      %799 = vmatpush2.bf16.msra.mxu0 0
      %800 = vmatprep.subr.bf16.mxu0 0
      %801 = vmatpush2.bf16.msra.mxu0 0
      %802 = vmatprep.subr.bf16.mxu0 0
      %803 = vmatpush2.bf16.msra.mxu0 0
      %804 = vmatprep.subr.bf16.mxu0 0
      %805 = vmatpush2.bf16.msra.mxu0 0
      %806 = vmatprep.subr.bf16.mxu0 0
      %807 = vmatpush2.bf16.msra.mxu0 0
      %808 = vmatprep.subr.bf16.mxu0 0
      %809 = vmatpush2.bf16.msra.mxu0 0
      %810 = vmatprep.subr.bf16.mxu0 0
      %811 = vmatpush2.bf16.msra.mxu0 0
      %812 = vmatprep.mubr.bf16.mxu0 0
      %813 = vmatmul.mubr.bf16.gmra.mxu0 %v730
      %v814 = vpop.f32.mrf.mxu0
      %v815 = vadd.f32 0.0, %v814
      %v816 = vpop.f32.mrf.mxu0
      %v817 = vpop.f32.mrf.mxu0
      %v818 = vpop.f32.mrf.mxu0
      %819 = vdwg.mxu0
      %v820 = vadd.f32 %v711, %v815
      %vm821 = vcmask 1043456
      %v822 = vsel %vm821, %v820, 0.0
      %v823 = vrot.slane %v822, 4
      %v824 = vadd.f32 %v822, %v823
      %v825 = vrot.slane %v824, 2
      %v826 = vadd.f32 %v824, %v825
      %v827 = vrot.slane %v826, 1
      %v828 = vadd.f32 %v826, %v827
      %v829 = vmul.f32 %v828, 0.25
      %v830 = vmul.f32 %v820, %v820
      %v831 = vsel %vm821, %v830, 0.0
      %v832 = vrot.slane %v831, 4
      %v833 = vadd.f32 %v831, %v832
      %v834 = vrot.slane %v833, 2
      %v835 = vadd.f32 %v833, %v834
      %v836 = vrot.slane %v835, 1
      %v837 = vadd.f32 %v835, %v836
      %v838 = vmul.f32 %v837, 0.25
      %v839 = vmul.f32 %v829, %v829
      %v840 = vsub.f32 %v838, %v839
      %v841 = vmax.f32 %v840, 0.0
      %v842 = vsub.f32 %v820, %v829
      %v843 = vadd.f32 %v841, 1e-05
      %v844 = vrsqrt.pop %v843
      %v845 = vmul.f32 %v842, %v844
      %v846 = vmax.f32 %v845, 0.0
      %847 = vst [vmem:[%s260] sm:$0xf] %v846
      %p848 = scmp.lt.s32.totalorder %s19, 1
      %s849 = scalar_select %p848, %s19, 1
      %p850 = scmp.lt.s32.totalorder %s20, 0
      %s851 = scalar_select %p850, %s20, 0
      %s852 = sadd.s32 %s851, %s849
      %s853 = smul.addr %s852, 4
      %s854 = scalar_lea.vmem %s4, %s853
      // Predicated region
      $region37: #{generator_forward.12} parent=35 // pred_check
        %p855 = pneg %p151
      $region38: #{generator_forward.12} parent=35 // pred_check_branch
        %857 = sbr.rel (%p855) target = $region40
      $region39: #{generator_forward.12} parent=35 // pred_region
        _
      $region40: #{generator_forward.12} parent=35 // pred_fallthru
        _
    $region36: #{generator_forward.12} parent=5 // pred_fallthru
      _
    %p858 = scmp.le.s32.totalorder 2, %s10
    // Predicated region
    $region41: #{generator_forward.12} parent=5 // pred_check
      %p859 = pneg %p858
    $region42: #{generator_forward.12} parent=5 // pred_check_branch
      %861 = sbr.rel (%p859) target = $region44
    $region43: #{generator_forward.12} parent=5 // pred_region
      %s862 = ssub.s32 %s10, 2
      // Predicated region
      $region45: #{generator_forward.12} parent=43 // pred_check
        %p863 = pneg %p157
      $region46: #{generator_forward.12} parent=43 // pred_check_branch
        %865 = sbr.rel (%p863) target = $region48
      $region47: #{generator_forward.12} parent=43 // pred_region
        %p866 = scmp.lt.s32.totalorder %s21, 1
        %s867 = scalar_select %p866, %s21, 1
        %p868 = scmp.lt.s32.totalorder %s22, 0
        %s869 = scalar_select %p868, %s22, 0
        %s870 = sadd.s32 %s869, %s867
        %s871 = smul.addr %s870, 4
        %s872 = scalar_lea.vmem %s4, %s871
      $region48: #{generator_forward.12} parent=43 // pred_fallthru
        _
    $region44: #{generator_forward.12} parent=5 // pred_fallthru
      _
  $region6: #{generator_forward.12} parent=0 // loop_footer
    %s14 = sadd.s32 1, %s10
  $region7: #{generator_forward.12} parent=0 // loop_footer_branch
    %9 = sbr.rel target = $region3
  $region8: #{generator_forward.12} parent=0 // loop_exit
    _

// kernel: generator_forward.13
$region0: #{generator_forward.13}
  #allocation0 [shape = 'u32[]', space=smem, size = 0x4, offset = 0x4, fixed_abs, tag = 'smem constant byte address 0x4 - core index']
  #allocation1 [shape = 'u32[144,128]{1,0:T(1,128)}', space=vmem, size = 0x12000, scoped, tag = 'internal scratch']
  %s0 = inlined_call_operand.vmem [shape: f32[2,6,128], index: 0, kind: input, shape index: {}]
  %s1 = inlined_call_operand.vmem [shape: bf16[3,128,128], index: 1, kind: input, shape index: {}]
  %s2 = inlined_call_operand.vmem [shape: f32[1,128], index: 2, kind: input, shape index: {}]
  %s3 = inlined_call_operand.vmem [shape: f32[2,4,128], index: 3, kind: output, shape index: {}]
  %s4 = sld [smem:[#allocation0]]
  $region45: #{generator_forward.13} parent=0
    _
  %s6 = ssub.s32 1, %s4
  %s7 = scalar_select 0, %s6, %s4
  loop: start=0, step=1, limit=4
  $region2: #{generator_forward.13} parent=0 // loop_pre_header
    _
  $region3: #{generator_forward.13} parent=0 // loop_header
    %s9 = sphi 0, %s13
    %p10 = scmp.ge.s32.totalorder %s9, 4
    %s16 = sphi 0, %s28
    %s17 = sphi 0, %s24
    %s18 = sphi 0, %s16
    %s19 = sphi 0, %s17
    %s20 = sphi 0, %s18
    %s21 = sphi 0, %s19
    %s31 = sphi 0, %s33
    %s34 = sphi 0, %s31
    %s35 = sphi 0, %s34
    %s51 = sphi 0, %s35
    %s57 = sphi 0, %s59
    %s60 = sphi 0, %s57
    %s61 = sphi 0, %s60
    %s77 = sphi 0, %s61
    %s83 = sphi 0, %s85
    %s86 = sphi 0, %s83
    %s87 = sphi 0, %s86
    %s103 = sphi 0, %s87
    %s111 = sphi 0, %s113
    %s114 = sphi 0, %s111
    %s115 = sphi 0, %s114
    %s131 = sphi 0, %s115
  $region4: #{generator_forward.13} parent=0 // loop_header_branch
    %12 = sbr.rel (%p10) target = $region8
  $region5: #{generator_forward.13} parent=0 // loop_body
    %s14 = ssub.s32 %s9, 1
    %s15 = ssub.s32 %s9, 2
    %s22 = sadd.s32 1, %s17
    %p23 = scmp.ge.s32.totalorder %s22, 1
    %s24 = scalar_select %p23, 0, %s22
    %s25 = sadd.s32 1, %s16
    %s26 = scalar_select %p23, %s25, %s16
    %p27 = scmp.ge.s32.totalorder %s26, 2
    %s28 = scalar_select %p27, 0, %s26
    %s29 = ssub.s32 %s16, %s28
    %p30 = scmp.eq.s32.totalorder %s29, 0
    %s32 = sadd.s32 %s31, 1
    %s33 = scalar_select %p30, %s31, %s32
    %p36 = pneg %p30
    %p37 = scmp.eq.s32.totalorder %s9, 1
    %p38 = por %p36, %p37
    %p39 = scmp.ne.s32.totalorder %s31, %s34
    %p40 = scmp.eq.s32.totalorder %s9, 0
    %p41 = por %p39, %p40
    %p42 = scmp.ne.s32.totalorder %s31, %s34
    %p43 = scmp.eq.s32.totalorder %s14, 1
    %p44 = por %p42, %p43
    %p45 = scmp.ne.s32.totalorder %s34, %s35
    %p46 = scmp.eq.s32.totalorder %s14, 0
    %p47 = por %p45, %p46
    %p48 = scmp.ne.s32.totalorder %s34, %s35
    %p49 = scmp.eq.s32.totalorder %s15, 1
    %p50 = por %p48, %p49
    %p52 = scmp.ne.s32.totalorder %s35, %s51
    %p53 = scmp.eq.s32.totalorder %s15, 0
    %p54 = por %p52, %p53
    %s55 = ssub.s32 %s17, %s24
    %p56 = scmp.eq.s32.totalorder %s55, 0
    %s58 = sadd.s32 %s57, 1
    %s59 = scalar_select %p56, %s57, %s58
    %p62 = pneg %p56
    %p63 = scmp.eq.s32.totalorder %s9, 1
    %p64 = por %p62, %p63
    %p65 = scmp.ne.s32.totalorder %s57, %s60
    %p66 = scmp.eq.s32.totalorder %s9, 0
    %p67 = por %p65, %p66
    %p68 = scmp.ne.s32.totalorder %s57, %s60
    %p69 = scmp.eq.s32.totalorder %s14, 1
    %p70 = por %p68, %p69
    %p71 = scmp.ne.s32.totalorder %s60, %s61
    %p72 = scmp.eq.s32.totalorder %s14, 0
    %p73 = por %p71, %p72
    %p74 = scmp.ne.s32.totalorder %s60, %s61
    %p75 = scmp.eq.s32.totalorder %s15, 1
    %p76 = por %p74, %p75
    %p78 = scmp.ne.s32.totalorder %s61, %s77
    %p79 = scmp.eq.s32.totalorder %s15, 0
    %p80 = por %p78, %p79
    %s81 = ssub.s32 %s17, %s24
    %p82 = scmp.eq.s32.totalorder %s81, 0
    %s84 = sadd.s32 %s83, 1
    %s85 = scalar_select %p82, %s83, %s84
    %p88 = pneg %p82
    %p89 = scmp.eq.s32.totalorder %s9, 1
    %p90 = por %p88, %p89
    %p91 = scmp.ne.s32.totalorder %s83, %s86
    %p92 = scmp.eq.s32.totalorder %s9, 0
    %p93 = por %p91, %p92
    %p94 = scmp.ne.s32.totalorder %s83, %s86
    %p95 = scmp.eq.s32.totalorder %s14, 1
    %p96 = por %p94, %p95
    %p97 = scmp.ne.s32.totalorder %s86, %s87
    %p98 = scmp.eq.s32.totalorder %s14, 0
    %p99 = por %p97, %p98
    %p100 = scmp.ne.s32.totalorder %s86, %s87
    %p101 = scmp.eq.s32.totalorder %s15, 1
    %p102 = por %p100, %p101
    %p104 = scmp.ne.s32.totalorder %s87, %s103
    %p105 = scmp.eq.s32.totalorder %s15, 0
    %p106 = por %p104, %p105
    %s107 = ssub.s32 %s16, %s28
    %s108 = ssub.s32 %s17, %s24
    %s109 = sor.u32 %s107, %s108
    %p110 = scmp.eq.s32.totalorder %s109, 0
    %s112 = sadd.s32 %s111, 1
    %s113 = scalar_select %p110, %s111, %s112
    %p116 = pneg %p110
    %p117 = scmp.eq.s32.totalorder %s9, 1
    %p118 = por %p116, %p117
    %p119 = scmp.ne.s32.totalorder %s111, %s114
    %p120 = scmp.eq.s32.totalorder %s9, 0
    %p121 = por %p119, %p120
    %p122 = scmp.ne.s32.totalorder %s111, %s114
    %p123 = scmp.eq.s32.totalorder %s14, 1
    %p124 = por %p122, %p123
    %p125 = scmp.ne.s32.totalorder %s114, %s115
    %p126 = scmp.eq.s32.totalorder %s14, 0
    %p127 = por %p125, %p126
    %p128 = scmp.ne.s32.totalorder %s114, %s115
    %p129 = scmp.eq.s32.totalorder %s15, 1
    %p130 = por %p128, %p129
    %p132 = scmp.ne.s32.totalorder %s115, %s131
    %p133 = scmp.eq.s32.totalorder %s15, 0
    %p134 = por %p132, %p133
    %p135 = scmp.le.s32.totalorder 1, %s9
    %p136 = scmp.lt.s32.totalorder %s9, 3
    %p137 = pnand %p135, %p136
    %p138 = pneg %p137
    // Predicated region
    $region9: #{generator_forward.13} parent=5 // pred_check
      _
    $region10: #{generator_forward.13} parent=5 // pred_check_branch
      %140 = sbr.rel (%p137) target = $region12
    $region11: #{generator_forward.13} parent=5 // pred_region
      %s141 = ssub.s32 %s9, 1
      // Predicated region
      $region13: #{generator_forward.13} parent=11 // pred_check
        %p142 = pneg %p73
      $region14: #{generator_forward.13} parent=11 // pred_check_branch
        %144 = sbr.rel (%p142) target = $region16
      $region15: #{generator_forward.13} parent=11 // pred_region
        %p145 = scmp.lt.s32.totalorder %s19, 0
        %s146 = scalar_select %p145, %s19, 0
        %s147 = smul.addr %s146, 4
        %s148 = scalar_lea.vmem %s1, %s147
      $region16: #{generator_forward.13} parent=11 // pred_fallthru
        _
      // Predicated region
      $region17: #{generator_forward.13} parent=11 // pred_check
        %p149 = pneg %p99
      $region18: #{generator_forward.13} parent=11 // pred_check_branch
        %151 = sbr.rel (%p149) target = $region20
      $region19: #{generator_forward.13} parent=11 // pred_region
        %p152 = scmp.lt.s32.totalorder %s19, 0
        %s153 = scalar_select %p152, %s19, 0
        %s154 = scalar_lea.vmem %s2, %s153
      $region20: #{generator_forward.13} parent=11 // pred_fallthru
        _
    $region12: #{generator_forward.13} parent=5 // pred_fallthru
      _
    %p155 = scmp.lt.s32.totalorder %s9, 2
    // Predicated region
    $region21: #{generator_forward.13} parent=5 // pred_check
      %p156 = pneg %p155
    $region22: #{generator_forward.13} parent=5 // pred_check_branch
      %158 = sbr.rel (%p156) target = $region24
    $region23: #{generator_forward.13} parent=5 // pred_region
      // Predicated region
      $region25: #{generator_forward.13} parent=23 // pred_check
        %p159 = pneg %p41
      $region26: #{generator_forward.13} parent=23 // pred_check_branch
        %161 = sbr.rel (%p159) target = $region28
      $region27: #{generator_forward.13} parent=23 // pred_region
        %p162 = scmp.lt.s32.totalorder %s16, 1
        %s163 = scalar_select %p162, %s16, 1
        %s164 = smul.addr %s163, 8
        %s165 = scalar_lea.vmem %s0, %s164
      $region28: #{generator_forward.13} parent=23 // pred_fallthru
        _
    $region24: #{generator_forward.13} parent=5 // pred_fallthru
      _
    %p166 = scmp.le.s32.totalorder 1, %s9
    %p167 = scmp.lt.s32.totalorder %s9, 3
    %p168 = pnand %p166, %p167
    %p169 = pneg %p168
    // Predicated region
    $region29: #{generator_forward.13} parent=5 // pred_check
      _
    $region30: #{generator_forward.13} parent=5 // pred_check_branch
      %171 = sbr.rel (%p168) target = $region32
    $region31: #{generator_forward.13} parent=5 // pred_region
      %s172 = ssub.s32 %s9, 1
      %p173 = scmp.lt.s32.totalorder %s18, 1
      %s174 = scalar_select %p173, %s18, 1
      %s175 = smul.addr %s174, 8
      %s176 = scalar_lea.vmem %s0, %s175
      %p177 = pneg %p47
      %p178 = pneg %p44
      %p179 = scmp.lt.s32.totalorder %s19, 0
      %s180 = scalar_select %p179, %s19, 0
      %s181 = smul.addr %s180, 4
      %s182 = scalar_lea.vmem %s1, %s181
      %p183 = pneg %p73
      %p184 = pneg %p70
      %p185 = scmp.lt.s32.totalorder %s19, 0
      %s186 = scalar_select %p185, %s19, 0
      %s187 = scalar_lea.vmem %s2, %s186
      %p188 = pneg %p99
      %p189 = pneg %p96
      %p190 = pneg %p127
      %p191 = pneg %p124
      %p192 = scmp.lt.s32.totalorder %s18, 1
      %s193 = scalar_select %p192, %s18, 1
      %p194 = scmp.lt.s32.totalorder %s19, 0
      %s195 = scalar_select %p194, %s19, 0
      %s196 = sadd.s32 %s195, %s193
      %s197 = smul.addr %s196, 4
      %s198 = scalar_lea.vmem %s3, %s197
      %p199 = scmp.lt.s32.totalorder %s18, 1
      %s200 = scalar_select %p199, %s18, 1
      %s201 = smul.addr %s200, 8
      %s202 = scalar_lea.vmem %s0, %s201
      %p203 = scmp.lt.s32.totalorder %s19, 0
      %s204 = scalar_select %p203, %s19, 0
      %s205 = smul.addr %s204, 4
      %s206 = scalar_lea.vmem %s1, %s205
      %p207 = scmp.lt.s32.totalorder %s19, 0
      %s208 = scalar_select %p207, %s19, 0
      %s209 = scalar_lea.vmem %s2, %s208
      %p210 = scmp.lt.s32.totalorder %s18, 1
      %s211 = scalar_select %p210, %s18, 1
      %p212 = scmp.lt.s32.totalorder %s19, 0
      %s213 = scalar_select %p212, %s19, 0
      %s214 = sadd.s32 %s213, %s211
      %s215 = smul.addr %s214, 4
      %s216 = scalar_lea.vmem %s3, %s215
      %v218 = vld [vmem:[%s202] sm:$0x3f]
      %v219 = vpack.c.bf16 %v218, %v218
      %v220 = vld [vmem:[%s209] sm:$0x1]
      %v222 = vlaneseq
      %v223 = vshrl.u32 %v222, 7
      %v224 = vsub.s32 0, %v223
      %v225 = vrot.slane %v220, %v224
      %v227 = vld [vmem:[%s206] sm:$0xf]
      %v228 = vld [vmem:[%s206 + $0x4] sm:$0xf]
      %v229 = vld [vmem:[%s206 + $0x8] sm:$0xf]
      %v230 = vld [vmem:[%s206 + $0xc] sm:$0xf]
      %v231 = vld [vmem:[%s206 + $0x10] sm:$0xf]
      %v232 = vld [vmem:[%s206 + $0x14] sm:$0xf]
      %v233 = vld [vmem:[%s206 + $0x18] sm:$0xf]
      %v234 = vld [vmem:[%s206 + $0x1c] sm:$0xf]
      %v235 = vld [vmem:[%s206 + $0x20] sm:$0xf]
      %v236 = vld [vmem:[%s206 + $0x24] sm:$0xf]
      %v237 = vld [vmem:[%s206 + $0x28] sm:$0xf]
      %v238 = vld [vmem:[%s206 + $0x2c] sm:$0xf]
      %v239 = vld [vmem:[%s206 + $0x30] sm:$0xf]
      %v240 = vld [vmem:[%s206 + $0x34] sm:$0xf]
      %v241 = vld [vmem:[%s206 + $0x38] sm:$0xf]
      %v242 = vld [vmem:[%s206 + $0x3c] sm:$0xf]
      %v259 = vunpack.c.l.b16 %v227
      %v260 = vunpack.c.l.b16 %v228
      %v261 = vunpack.c.l.b16 %v229
      %v262 = vunpack.c.l.b16 %v230
      %v263 = vunpack.c.l.b16 %v231
      %v264 = vunpack.c.l.b16 %v232
      %v265 = vunpack.c.l.b16 %v233
      %v266 = vunpack.c.l.b16 %v234
      %v267 = vunpack.c.l.b16 %v235
      %v268 = vunpack.c.l.b16 %v236
      %v269 = vunpack.c.l.b16 %v237
      %v270 = vunpack.c.l.b16 %v238
      %v271 = vunpack.c.l.b16 %v239
      %v272 = vunpack.c.l.b16 %v240
      %v273 = vunpack.c.l.b16 %v241
      %v274 = vunpack.c.l.b16 %v242
      %v275 = vpack.c.b16 %v260, %v259
      %v276 = vpack.c.b16 %v262, %v261
      %v277 = vpack.c.b16 %v264, %v263
      %v278 = vpack.c.b16 %v266, %v265
      %v279 = vpack.c.b16 %v268, %v267
      %v280 = vpack.c.b16 %v270, %v269
      %v281 = vpack.c.b16 %v272, %v271
      %v282 = vpack.c.b16 %v274, %v273
      %291 = vmatprep.subr.bf16.mxu0 0
      %292 = vmatpush1.bf16.msra.mxu0 %v282
      %293 = vmatprep.subr.bf16.mxu0 0
      %294 = vmatpush1.bf16.msra.mxu0 %v281
      %295 = vmatprep.subr.bf16.mxu0 0
      %296 = vmatpush1.bf16.msra.mxu0 %v280
      %297 = vmatprep.subr.bf16.mxu0 0
      %298 = vmatpush1.bf16.msra.mxu0 %v279
      %299 = vmatprep.subr.bf16.mxu0 0
      %300 = vmatpush1.bf16.msra.mxu0 %v278
      %301 = vmatprep.subr.bf16.mxu0 0
      %302 = vmatpush1.bf16.msra.mxu0 %v277
      %303 = vmatprep.subr.bf16.mxu0 0
      %304 = vmatpush1.bf16.msra.mxu0 %v276
      %305 = vmatprep.subr.bf16.mxu0 0
      %306 = vmatpush1.bf16.msra.mxu0 %v275
      %307 = vmatprep.subr.bf16.mxu0 0
      %308 = vmatpush2.bf16.msra.mxu0 0
      %309 = vmatprep.subr.bf16.mxu0 0
      %310 = vmatpush2.bf16.msra.mxu0 0
      %311 = vmatprep.subr.bf16.mxu0 0
      %312 = vmatpush2.bf16.msra.mxu0 0
      %313 = vmatprep.subr.bf16.mxu0 0
      %314 = vmatpush2.bf16.msra.mxu0 0
      %315 = vmatprep.subr.bf16.mxu0 0
      %316 = vmatpush2.bf16.msra.mxu0 0
      %317 = vmatprep.subr.bf16.mxu0 0
      %318 = vmatpush2.bf16.msra.mxu0 0
      %319 = vmatprep.subr.bf16.mxu0 0
      %320 = vmatpush2.bf16.msra.mxu0 0
      %321 = vmatprep.subr.bf16.mxu0 0
      %322 = vmatpush2.bf16.msra.mxu0 0
      %323 = vmatprep.mubr.bf16.mxu0 0
      %324 = vmatmul.mubr.bf16.gmra.mxu0 %v219
      %v325 = vpop.f32.mrf.mxu0
      %v326 = vadd.f32 0.0, %v325
      %v327 = vpop.f32.mrf.mxu0
      %v328 = vpop.f32.mrf.mxu0
      %v329 = vpop.f32.mrf.mxu0
      %330 = vdwg.mxu0
      %v331 = vadd.f32 %v225, %v326
      %s332 = scalar_lea.vmem %s206, 64
      %v333 = vld [vmem:[%s332] sm:$0xf]
      %v334 = vld [vmem:[%s332 + $0x4] sm:$0xf]
      %v335 = vld [vmem:[%s332 + $0x8] sm:$0xf]
      %v336 = vld [vmem:[%s332 + $0xc] sm:$0xf]
      %v337 = vld [vmem:[%s332 + $0x10] sm:$0xf]
      %v338 = vld [vmem:[%s332 + $0x14] sm:$0xf]
      %v339 = vld [vmem:[%s332 + $0x18] sm:$0xf]
      %v340 = vld [vmem:[%s332 + $0x1c] sm:$0xf]
      %v341 = vld [vmem:[%s332 + $0x20] sm:$0xf]
      %v342 = vld [vmem:[%s332 + $0x24] sm:$0xf]
      %v343 = vld [vmem:[%s332 + $0x28] sm:$0xf]
      %v344 = vld [vmem:[%s332 + $0x2c] sm:$0xf]
      %v345 = vld [vmem:[%s332 + $0x30] sm:$0xf]
      %v346 = vld [vmem:[%s332 + $0x34] sm:$0xf]
      %v347 = vld [vmem:[%s332 + $0x38] sm:$0xf]
      %v348 = vld [vmem:[%s332 + $0x3c] sm:$0xf]
      %v350 = vshrl.u32 %v219, 16
      %v352 = vshll.u32 %v219, 16
      %v354 = vrot.slane %v352, 1
      %v355 = vor.u32 %v350, %v354
      %v373 = vunpack.c.l.b16 %v333
      %v374 = vunpack.c.l.b16 %v334
      %v375 = vunpack.c.l.b16 %v335
      %v376 = vunpack.c.l.b16 %v336
      %v377 = vunpack.c.l.b16 %v337
      %v378 = vunpack.c.l.b16 %v338
      %v379 = vunpack.c.l.b16 %v339
      %v380 = vunpack.c.l.b16 %v340
      %v381 = vunpack.c.l.b16 %v341
      %v382 = vunpack.c.l.b16 %v342
      %v383 = vunpack.c.l.b16 %v343
      %v384 = vunpack.c.l.b16 %v344
      %v385 = vunpack.c.l.b16 %v345
      %v386 = vunpack.c.l.b16 %v346
      %v387 = vunpack.c.l.b16 %v347
      %v388 = vunpack.c.l.b16 %v348
      %v389 = vpack.c.b16 %v374, %v373
      %v390 = vpack.c.b16 %v376, %v375
      %v391 = vpack.c.b16 %v378, %v377
      %v392 = vpack.c.b16 %v380, %v379
      %v393 = vpack.c.b16 %v382, %v381
      %v394 = vpack.c.b16 %v384, %v383
      %v395 = vpack.c.b16 %v386, %v385
      %v396 = vpack.c.b16 %v388, %v387
      %405 = vmatprep.subr.bf16.mxu0 0
      %406 = vmatpush1.bf16.msra.mxu0 %v396
      %407 = vmatprep.subr.bf16.mxu0 0
      %408 = vmatpush1.bf16.msra.mxu0 %v395
      %409 = vmatprep.subr.bf16.mxu0 0
      %410 = vmatpush1.bf16.msra.mxu0 %v394
      %411 = vmatprep.subr.bf16.mxu0 0
      %412 = vmatpush1.bf16.msra.mxu0 %v393
      %413 = vmatprep.subr.bf16.mxu0 0
      %414 = vmatpush1.bf16.msra.mxu0 %v392
      %415 = vmatprep.subr.bf16.mxu0 0
      %416 = vmatpush1.bf16.msra.mxu0 %v391
      %417 = vmatprep.subr.bf16.mxu0 0
      %418 = vmatpush1.bf16.msra.mxu0 %v390
      %419 = vmatprep.subr.bf16.mxu0 0
      %420 = vmatpush1.bf16.msra.mxu0 %v389
      %421 = vmatprep.subr.bf16.mxu0 0
      %422 = vmatpush2.bf16.msra.mxu0 0
      %423 = vmatprep.subr.bf16.mxu0 0
      %424 = vmatpush2.bf16.msra.mxu0 0
      %425 = vmatprep.subr.bf16.mxu0 0
      %426 = vmatpush2.bf16.msra.mxu0 0
      %427 = vmatprep.subr.bf16.mxu0 0
      %428 = vmatpush2.bf16.msra.mxu0 0
      %429 = vmatprep.subr.bf16.mxu0 0
      %430 = vmatpush2.bf16.msra.mxu0 0
      %431 = vmatprep.subr.bf16.mxu0 0
      %432 = vmatpush2.bf16.msra.mxu0 0
      %433 = vmatprep.subr.bf16.mxu0 0
      %434 = vmatpush2.bf16.msra.mxu0 0
      %435 = vmatprep.subr.bf16.mxu0 0
      %436 = vmatpush2.bf16.msra.mxu0 0
      %437 = vmatprep.mubr.bf16.mxu0 0
      %438 = vmatmul.mubr.bf16.gmra.mxu0 %v355
      %v439 = vpop.f32.mrf.mxu0
      %v440 = vadd.f32 0.0, %v439
      %v441 = vpop.f32.mrf.mxu0
      %v442 = vpop.f32.mrf.mxu0
      %v443 = vpop.f32.mrf.mxu0
      %444 = vdwg.mxu0
      %v445 = vadd.f32 %v331, %v440
      %s446 = scalar_lea.vmem %s206, 128
      %v447 = vld [vmem:[%s446] sm:$0xf]
      %v448 = vld [vmem:[%s446 + $0x4] sm:$0xf]
      %v449 = vld [vmem:[%s446 + $0x8] sm:$0xf]
      %v450 = vld [vmem:[%s446 + $0xc] sm:$0xf]
      %v451 = vld [vmem:[%s446 + $0x10] sm:$0xf]
      %v452 = vld [vmem:[%s446 + $0x14] sm:$0xf]
      %v453 = vld [vmem:[%s446 + $0x18] sm:$0xf]
      %v454 = vld [vmem:[%s446 + $0x1c] sm:$0xf]
      %v455 = vld [vmem:[%s446 + $0x20] sm:$0xf]
      %v456 = vld [vmem:[%s446 + $0x24] sm:$0xf]
      %v457 = vld [vmem:[%s446 + $0x28] sm:$0xf]
      %v458 = vld [vmem:[%s446 + $0x2c] sm:$0xf]
      %v459 = vld [vmem:[%s446 + $0x30] sm:$0xf]
      %v460 = vld [vmem:[%s446 + $0x34] sm:$0xf]
      %v461 = vld [vmem:[%s446 + $0x38] sm:$0xf]
      %v462 = vld [vmem:[%s446 + $0x3c] sm:$0xf]
      %v464 = vrot.slane %v219, 1
      %v482 = vunpack.c.l.b16 %v447
      %v483 = vunpack.c.l.b16 %v448
      %v484 = vunpack.c.l.b16 %v449
      %v485 = vunpack.c.l.b16 %v450
      %v486 = vunpack.c.l.b16 %v451
      %v487 = vunpack.c.l.b16 %v452
      %v488 = vunpack.c.l.b16 %v453
      %v489 = vunpack.c.l.b16 %v454
      %v490 = vunpack.c.l.b16 %v455
      %v491 = vunpack.c.l.b16 %v456
      %v492 = vunpack.c.l.b16 %v457
      %v493 = vunpack.c.l.b16 %v458
      %v494 = vunpack.c.l.b16 %v459
      %v495 = vunpack.c.l.b16 %v460
      %v496 = vunpack.c.l.b16 %v461
      %v497 = vunpack.c.l.b16 %v462
      %v498 = vpack.c.b16 %v483, %v482
      %v499 = vpack.c.b16 %v485, %v484
      %v500 = vpack.c.b16 %v487, %v486
      %v501 = vpack.c.b16 %v489, %v488
      %v502 = vpack.c.b16 %v491, %v490
      %v503 = vpack.c.b16 %v493, %v492
      %v504 = vpack.c.b16 %v495, %v494
      %v505 = vpack.c.b16 %v497, %v496
      %514 = vmatprep.subr.bf16.mxu0 0
      %515 = vmatpush1.bf16.msra.mxu0 %v505
      %516 = vmatprep.subr.bf16.mxu0 0
      %517 = vmatpush1.bf16.msra.mxu0 %v504
      %518 = vmatprep.subr.bf16.mxu0 0
      %519 = vmatpush1.bf16.msra.mxu0 %v503
      %520 = vmatprep.subr.bf16.mxu0 0
      %521 = vmatpush1.bf16.msra.mxu0 %v502
      %522 = vmatprep.subr.bf16.mxu0 0
      %523 = vmatpush1.bf16.msra.mxu0 %v501
      %524 = vmatprep.subr.bf16.mxu0 0
      %525 = vmatpush1.bf16.msra.mxu0 %v500
      %526 = vmatprep.subr.bf16.mxu0 0
      %527 = vmatpush1.bf16.msra.mxu0 %v499
      %528 = vmatprep.subr.bf16.mxu0 0
      %529 = vmatpush1.bf16.msra.mxu0 %v498
      %530 = vmatprep.subr.bf16.mxu0 0
      %531 = vmatpush2.bf16.msra.mxu0 0
      %532 = vmatprep.subr.bf16.mxu0 0
      %533 = vmatpush2.bf16.msra.mxu0 0
      %534 = vmatprep.subr.bf16.mxu0 0
      %535 = vmatpush2.bf16.msra.mxu0 0
      %536 = vmatprep.subr.bf16.mxu0 0
      %537 = vmatpush2.bf16.msra.mxu0 0
      %538 = vmatprep.subr.bf16.mxu0 0
      %539 = vmatpush2.bf16.msra.mxu0 0
      %540 = vmatprep.subr.bf16.mxu0 0
      %541 = vmatpush2.bf16.msra.mxu0 0
      %542 = vmatprep.subr.bf16.mxu0 0
      %543 = vmatpush2.bf16.msra.mxu0 0
      %544 = vmatprep.subr.bf16.mxu0 0
      %545 = vmatpush2.bf16.msra.mxu0 0
      %546 = vmatprep.mubr.bf16.mxu0 0
      %547 = vmatmul.mubr.bf16.gmra.mxu0 %v464
      %v548 = vpop.f32.mrf.mxu0
      %v549 = vadd.f32 0.0, %v548
      %v550 = vpop.f32.mrf.mxu0
      %v551 = vpop.f32.mrf.mxu0
      %v552 = vpop.f32.mrf.mxu0
      %553 = vdwg.mxu0
      %v554 = vadd.f32 %v445, %v549
      %vm555 = vcmask 1043456
      %v556 = vsel %vm555, %v554, 0.0
      %v557 = vrot.slane %v556, 4
      %v558 = vadd.f32 %v556, %v557
      %v559 = vrot.slane %v558, 2
      %v560 = vadd.f32 %v558, %v559
      %v561 = vrot.slane %v560, 1
      %v562 = vadd.f32 %v560, %v561
      %v563 = vmul.f32 %v562, 0.25
      %v564 = vmul.f32 %v554, %v554
      %v565 = vsel %vm555, %v564, 0.0
      %v566 = vrot.slane %v565, 4
      %v567 = vadd.f32 %v565, %v566
      %v568 = vrot.slane %v567, 2
      %v569 = vadd.f32 %v567, %v568
      %v570 = vrot.slane %v569, 1
      %v571 = vadd.f32 %v569, %v570
      %v572 = vmul.f32 %v571, 0.25
      %v573 = vmul.f32 %v563, %v563
      %v574 = vsub.f32 %v572, %v573
      %v575 = vmax.f32 %v574, 0.0
      %v576 = vsub.f32 %v554, %v563
      %v577 = vadd.f32 %v575, 1e-05
      %v578 = vrsqrt.pop %v577
      %v579 = vmul.f32 %v576, %v578
      %v580 = vmax.f32 %v579, 0.0
      %581 = vst [vmem:[%s216] sm:$0xf] %v580
      %p582 = scmp.lt.s32.totalorder %s18, 1
      %s583 = scalar_select %p582, %s18, 1
      %p584 = scmp.lt.s32.totalorder %s19, 0
      %s585 = scalar_select %p584, %s19, 0
      %s586 = sadd.s32 %s585, %s583
      %s587 = smul.addr %s586, 4
      %s588 = scalar_lea.vmem %s3, %s587
      // Predicated region
      $region33: #{generator_forward.13} parent=31 // pred_check
        %p589 = pneg %p124
      $region34: #{generator_forward.13} parent=31 // pred_check_branch
        %591 = sbr.rel (%p589) target = $region36
      $region35: #{generator_forward.13} parent=31 // pred_region
        _
      $region36: #{generator_forward.13} parent=31 // pred_fallthru
        _
    $region32: #{generator_forward.13} parent=5 // pred_fallthru
      _
    %p592 = scmp.le.s32.totalorder 2, %s9
    // Predicated region
    $region37: #{generator_forward.13} parent=5 // pred_check
      %p593 = pneg %p592
    $region38: #{generator_forward.13} parent=5 // pred_check_branch
      %595 = sbr.rel (%p593) target = $region40
    $region39: #{generator_forward.13} parent=5 // pred_region
      %s596 = ssub.s32 %s9, 2
      // Predicated region
      $region41: #{generator_forward.13} parent=39 // pred_check
        %p597 = pneg %p130
      $region42: #{generator_forward.13} parent=39 // pred_check_branch
        %599 = sbr.rel (%p597) target = $region44
      $region43: #{generator_forward.13} parent=39 // pred_region
        %p600 = scmp.lt.s32.totalorder %s20, 1
        %s601 = scalar_select %p600, %s20, 1
        %p602 = scmp.lt.s32.totalorder %s21, 0
        %s603 = scalar_select %p602, %s21, 0
        %s604 = sadd.s32 %s603, %s601
        %s605 = smul.addr %s604, 4
        %s606 = scalar_lea.vmem %s3, %s605
      $region44: #{generator_forward.13} parent=39 // pred_fallthru
        _
    $region40: #{generator_forward.13} parent=5 // pred_fallthru
      _
  $region6: #{generator_forward.13} parent=0 // loop_footer
    %s13 = sadd.s32 1, %s9
  $region7: #{generator_forward.13} parent=0 // loop_footer_branch
    %8 = sbr.rel target = $region3
  $region8: #{generator_forward.13} parent=0 // loop_exit
    _

// kernel: generator_forward.14
$region0: #{generator_forward.14}
  #allocation0 [shape = 'u32[]', space=smem, size = 0x4, offset = 0x4, fixed_abs, tag = 'smem constant byte address 0x4 - core index']
  #allocation1 [shape = 'u32[144,128]{1,0:T(1,128)}', space=vmem, size = 0x12000, scoped, tag = 'internal scratch']
  %s0 = inlined_call_operand.vmem [shape: f32[2,6,128], index: 0, kind: input, shape index: {}]
  %s1 = inlined_call_operand.vmem [shape: bf16[3,128,128], index: 1, kind: input, shape index: {}]
  %s2 = inlined_call_operand.vmem [shape: f32[1,128], index: 2, kind: input, shape index: {}]
  %s3 = inlined_call_operand.vmem [shape: f32[2,4,128], index: 3, kind: input, shape index: {}]
  %s4 = inlined_call_operand.vmem [shape: f32[2,4,128], index: 4, kind: output, shape index: {}]
  %s5 = sld [smem:[#allocation0]]
  $region49: #{generator_forward.14} parent=0
    _
  %s7 = ssub.s32 1, %s5
  %s8 = scalar_select 0, %s7, %s5
  loop: start=0, step=1, limit=4
  $region2: #{generator_forward.14} parent=0 // loop_pre_header
    _
  $region3: #{generator_forward.14} parent=0 // loop_header
    %s10 = sphi 0, %s14
    %p11 = scmp.ge.s32.totalorder %s10, 4
    %s17 = sphi 0, %s29
    %s18 = sphi 0, %s25
    %s19 = sphi 0, %s17
    %s20 = sphi 0, %s18
    %s21 = sphi 0, %s19
    %s22 = sphi 0, %s20
    %s32 = sphi 0, %s34
    %s35 = sphi 0, %s32
    %s36 = sphi 0, %s35
    %s52 = sphi 0, %s36
    %s58 = sphi 0, %s60
    %s61 = sphi 0, %s58
    %s62 = sphi 0, %s61
    %s78 = sphi 0, %s62
    %s84 = sphi 0, %s86
    %s87 = sphi 0, %s84
    %s88 = sphi 0, %s87
    %s104 = sphi 0, %s88
    %s112 = sphi 0, %s114
    %s115 = sphi 0, %s112
    %s116 = sphi 0, %s115
    %s132 = sphi 0, %s116
    %s140 = sphi 0, %s142
    %s143 = sphi 0, %s140
    %s144 = sphi 0, %s143
    %s160 = sphi 0, %s144
  $region4: #{generator_forward.14} parent=0 // loop_header_branch
    %13 = sbr.rel (%p11) target = $region8
  $region5: #{generator_forward.14} parent=0 // loop_body
    %s15 = ssub.s32 %s10, 1
    %s16 = ssub.s32 %s10, 2
    %s23 = sadd.s32 1, %s18
    %p24 = scmp.ge.s32.totalorder %s23, 1
    %s25 = scalar_select %p24, 0, %s23
    %s26 = sadd.s32 1, %s17
    %s27 = scalar_select %p24, %s26, %s17
    %p28 = scmp.ge.s32.totalorder %s27, 2
    %s29 = scalar_select %p28, 0, %s27
    %s30 = ssub.s32 %s17, %s29
    %p31 = scmp.eq.s32.totalorder %s30, 0
    %s33 = sadd.s32 %s32, 1
    %s34 = scalar_select %p31, %s32, %s33
    %p37 = pneg %p31
    %p38 = scmp.eq.s32.totalorder %s10, 1
    %p39 = por %p37, %p38
    %p40 = scmp.ne.s32.totalorder %s32, %s35
    %p41 = scmp.eq.s32.totalorder %s10, 0
    %p42 = por %p40, %p41
    %p43 = scmp.ne.s32.totalorder %s32, %s35
    %p44 = scmp.eq.s32.totalorder %s15, 1
    %p45 = por %p43, %p44
    %p46 = scmp.ne.s32.totalorder %s35, %s36
    %p47 = scmp.eq.s32.totalorder %s15, 0
    %p48 = por %p46, %p47
    %p49 = scmp.ne.s32.totalorder %s35, %s36
    %p50 = scmp.eq.s32.totalorder %s16, 1
    %p51 = por %p49, %p50
    %p53 = scmp.ne.s32.totalorder %s36, %s52
    %p54 = scmp.eq.s32.totalorder %s16, 0
    %p55 = por %p53, %p54
    %s56 = ssub.s32 %s18, %s25
    %p57 = scmp.eq.s32.totalorder %s56, 0
    %s59 = sadd.s32 %s58, 1
    %s60 = scalar_select %p57, %s58, %s59
    %p63 = pneg %p57
    %p64 = scmp.eq.s32.totalorder %s10, 1
    %p65 = por %p63, %p64
    %p66 = scmp.ne.s32.totalorder %s58, %s61
    %p67 = scmp.eq.s32.totalorder %s10, 0
    %p68 = por %p66, %p67
    %p69 = scmp.ne.s32.totalorder %s58, %s61
    %p70 = scmp.eq.s32.totalorder %s15, 1
    %p71 = por %p69, %p70
    %p72 = scmp.ne.s32.totalorder %s61, %s62
    %p73 = scmp.eq.s32.totalorder %s15, 0
    %p74 = por %p72, %p73
    %p75 = scmp.ne.s32.totalorder %s61, %s62
    %p76 = scmp.eq.s32.totalorder %s16, 1
    %p77 = por %p75, %p76
    %p79 = scmp.ne.s32.totalorder %s62, %s78
    %p80 = scmp.eq.s32.totalorder %s16, 0
    %p81 = por %p79, %p80
    %s82 = ssub.s32 %s18, %s25
    %p83 = scmp.eq.s32.totalorder %s82, 0
    %s85 = sadd.s32 %s84, 1
    %s86 = scalar_select %p83, %s84, %s85
    %p89 = pneg %p83
    %p90 = scmp.eq.s32.totalorder %s10, 1
    %p91 = por %p89, %p90
    %p92 = scmp.ne.s32.totalorder %s84, %s87
    %p93 = scmp.eq.s32.totalorder %s10, 0
    %p94 = por %p92, %p93
    %p95 = scmp.ne.s32.totalorder %s84, %s87
    %p96 = scmp.eq.s32.totalorder %s15, 1
    %p97 = por %p95, %p96
    %p98 = scmp.ne.s32.totalorder %s87, %s88
    %p99 = scmp.eq.s32.totalorder %s15, 0
    %p100 = por %p98, %p99
    %p101 = scmp.ne.s32.totalorder %s87, %s88
    %p102 = scmp.eq.s32.totalorder %s16, 1
    %p103 = por %p101, %p102
    %p105 = scmp.ne.s32.totalorder %s88, %s104
    %p106 = scmp.eq.s32.totalorder %s16, 0
    %p107 = por %p105, %p106
    %s108 = ssub.s32 %s17, %s29
    %s109 = ssub.s32 %s18, %s25
    %s110 = sor.u32 %s108, %s109
    %p111 = scmp.eq.s32.totalorder %s110, 0
    %s113 = sadd.s32 %s112, 1
    %s114 = scalar_select %p111, %s112, %s113
    %p117 = pneg %p111
    %p118 = scmp.eq.s32.totalorder %s10, 1
    %p119 = por %p117, %p118
    %p120 = scmp.ne.s32.totalorder %s112, %s115
    %p121 = scmp.eq.s32.totalorder %s10, 0
    %p122 = por %p120, %p121
    %p123 = scmp.ne.s32.totalorder %s112, %s115
    %p124 = scmp.eq.s32.totalorder %s15, 1
    %p125 = por %p123, %p124
    %p126 = scmp.ne.s32.totalorder %s115, %s116
    %p127 = scmp.eq.s32.totalorder %s15, 0
    %p128 = por %p126, %p127
    %p129 = scmp.ne.s32.totalorder %s115, %s116
    %p130 = scmp.eq.s32.totalorder %s16, 1
    %p131 = por %p129, %p130
    %p133 = scmp.ne.s32.totalorder %s116, %s132
    %p134 = scmp.eq.s32.totalorder %s16, 0
    %p135 = por %p133, %p134
    %s136 = ssub.s32 %s17, %s29
    %s137 = ssub.s32 %s18, %s25
    %s138 = sor.u32 %s136, %s137
    %p139 = scmp.eq.s32.totalorder %s138, 0
    %s141 = sadd.s32 %s140, 1
    %s142 = scalar_select %p139, %s140, %s141
    %p145 = pneg %p139
    %p146 = scmp.eq.s32.totalorder %s10, 1
    %p147 = por %p145, %p146
    %p148 = scmp.ne.s32.totalorder %s140, %s143
    %p149 = scmp.eq.s32.totalorder %s10, 0
    %p150 = por %p148, %p149
    %p151 = scmp.ne.s32.totalorder %s140, %s143
    %p152 = scmp.eq.s32.totalorder %s15, 1
    %p153 = por %p151, %p152
    %p154 = scmp.ne.s32.totalorder %s143, %s144
    %p155 = scmp.eq.s32.totalorder %s15, 0
    %p156 = por %p154, %p155
    %p157 = scmp.ne.s32.totalorder %s143, %s144
    %p158 = scmp.eq.s32.totalorder %s16, 1
    %p159 = por %p157, %p158
    %p161 = scmp.ne.s32.totalorder %s144, %s160
    %p162 = scmp.eq.s32.totalorder %s16, 0
    %p163 = por %p161, %p162
    %p164 = scmp.le.s32.totalorder 1, %s10
    %p165 = scmp.lt.s32.totalorder %s10, 3
    %p166 = pnand %p164, %p165
    %p167 = pneg %p166
    // Predicated region
    $region9: #{generator_forward.14} parent=5 // pred_check
      _
    $region10: #{generator_forward.14} parent=5 // pred_check_branch
      %169 = sbr.rel (%p166) target = $region12
    $region11: #{generator_forward.14} parent=5 // pred_region
      %s170 = ssub.s32 %s10, 1
      // Predicated region
      $region13: #{generator_forward.14} parent=11 // pred_check
        %p171 = pneg %p74
      $region14: #{generator_forward.14} parent=11 // pred_check_branch
        %173 = sbr.rel (%p171) target = $region16
      $region15: #{generator_forward.14} parent=11 // pred_region
        %p174 = scmp.lt.s32.totalorder %s20, 0
        %s175 = scalar_select %p174, %s20, 0
        %s176 = smul.addr %s175, 4
        %s177 = scalar_lea.vmem %s1, %s176
      $region16: #{generator_forward.14} parent=11 // pred_fallthru
        _
      // Predicated region
      $region17: #{generator_forward.14} parent=11 // pred_check
        %p178 = pneg %p100
      $region18: #{generator_forward.14} parent=11 // pred_check_branch
        %180 = sbr.rel (%p178) target = $region20
      $region19: #{generator_forward.14} parent=11 // pred_region
        %p181 = scmp.lt.s32.totalorder %s20, 0
        %s182 = scalar_select %p181, %s20, 0
        %s183 = scalar_lea.vmem %s2, %s182
      $region20: #{generator_forward.14} parent=11 // pred_fallthru
        _
    $region12: #{generator_forward.14} parent=5 // pred_fallthru
      _
    %p184 = scmp.lt.s32.totalorder %s10, 2
    // Predicated region
    $region21: #{generator_forward.14} parent=5 // pred_check
      %p185 = pneg %p184
    $region22: #{generator_forward.14} parent=5 // pred_check_branch
      %187 = sbr.rel (%p185) target = $region24
    $region23: #{generator_forward.14} parent=5 // pred_region
      // Predicated region
      $region25: #{generator_forward.14} parent=23 // pred_check
        %p188 = pneg %p42
      $region26: #{generator_forward.14} parent=23 // pred_check_branch
        %190 = sbr.rel (%p188) target = $region28
      $region27: #{generator_forward.14} parent=23 // pred_region
        %p191 = scmp.lt.s32.totalorder %s17, 1
        %s192 = scalar_select %p191, %s17, 1
        %s193 = smul.addr %s192, 8
        %s194 = scalar_lea.vmem %s0, %s193
      $region28: #{generator_forward.14} parent=23 // pred_fallthru
        _
      // Predicated region
      $region29: #{generator_forward.14} parent=23 // pred_check
        %p195 = pneg %p122
      $region30: #{generator_forward.14} parent=23 // pred_check_branch
        %197 = sbr.rel (%p195) target = $region32
      $region31: #{generator_forward.14} parent=23 // pred_region
        %p198 = scmp.lt.s32.totalorder %s17, 1
        %s199 = scalar_select %p198, %s17, 1
        %p200 = scmp.lt.s32.totalorder %s18, 0
        %s201 = scalar_select %p200, %s18, 0
        %s202 = sadd.s32 %s201, %s199
        %s203 = smul.addr %s202, 4
        %s204 = scalar_lea.vmem %s3, %s203
      $region32: #{generator_forward.14} parent=23 // pred_fallthru
        _
    $region24: #{generator_forward.14} parent=5 // pred_fallthru
      _
    %p205 = scmp.le.s32.totalorder 1, %s10
    %p206 = scmp.lt.s32.totalorder %s10, 3
    %p207 = pnand %p205, %p206
    %p208 = pneg %p207
    // Predicated region
    $region33: #{generator_forward.14} parent=5 // pred_check
      _
    $region34: #{generator_forward.14} parent=5 // pred_check_branch
      %210 = sbr.rel (%p207) target = $region36
    $region35: #{generator_forward.14} parent=5 // pred_region
      %s211 = ssub.s32 %s10, 1
      %p212 = scmp.lt.s32.totalorder %s19, 1
      %s213 = scalar_select %p212, %s19, 1
      %s214 = smul.addr %s213, 8
      %s215 = scalar_lea.vmem %s0, %s214
      %p216 = pneg %p48
      %p217 = pneg %p45
      %p218 = scmp.lt.s32.totalorder %s20, 0
      %s219 = scalar_select %p218, %s20, 0
      %s220 = smul.addr %s219, 4
      %s221 = scalar_lea.vmem %s1, %s220
      %p222 = pneg %p74
      %p223 = pneg %p71
      %p224 = scmp.lt.s32.totalorder %s20, 0
      %s225 = scalar_select %p224, %s20, 0
      %s226 = scalar_lea.vmem %s2, %s225
      %p227 = pneg %p100
      %p228 = pneg %p97
      %p229 = scmp.lt.s32.totalorder %s19, 1
      %s230 = scalar_select %p229, %s19, 1
      %p231 = scmp.lt.s32.totalorder %s20, 0
      %s232 = scalar_select %p231, %s20, 0
      %s233 = sadd.s32 %s232, %s230
      %s234 = smul.addr %s233, 4
      %s235 = scalar_lea.vmem %s3, %s234
      %p236 = pneg %p128
      %p237 = pneg %p125
      %p238 = pneg %p156
      %p239 = pneg %p153
      %p240 = scmp.lt.s32.totalorder %s19, 1
      %s241 = scalar_select %p240, %s19, 1
      %p242 = scmp.lt.s32.totalorder %s20, 0
      %s243 = scalar_select %p242, %s20, 0
      %s244 = sadd.s32 %s243, %s241
      %s245 = smul.addr %s244, 4
      %s246 = scalar_lea.vmem %s4, %s245
      %p247 = scmp.lt.s32.totalorder %s19, 1
      %s248 = scalar_select %p247, %s19, 1
      %s249 = smul.addr %s248, 8
      %s250 = scalar_lea.vmem %s0, %s249
      %p251 = scmp.lt.s32.totalorder %s20, 0
      %s252 = scalar_select %p251, %s20, 0
      %s253 = smul.addr %s252, 4
      %s254 = scalar_lea.vmem %s1, %s253
      %p255 = scmp.lt.s32.totalorder %s20, 0
      %s256 = scalar_select %p255, %s20, 0
      %s257 = scalar_lea.vmem %s2, %s256
      %p258 = scmp.lt.s32.totalorder %s19, 1
      %s259 = scalar_select %p258, %s19, 1
      %p260 = scmp.lt.s32.totalorder %s20, 0
      %s261 = scalar_select %p260, %s20, 0
      %s262 = sadd.s32 %s261, %s259
      %s263 = smul.addr %s262, 4
      %s264 = scalar_lea.vmem %s3, %s263
      %p265 = scmp.lt.s32.totalorder %s19, 1
      %s266 = scalar_select %p265, %s19, 1
      %p267 = scmp.lt.s32.totalorder %s20, 0
      %s268 = scalar_select %p267, %s20, 0
      %s269 = sadd.s32 %s268, %s266
      %s270 = smul.addr %s269, 4
      %s271 = scalar_lea.vmem %s4, %s270
      %v273 = vld [vmem:[%s250] sm:$0x3f]
      %v274 = vpack.c.bf16 %v273, %v273
      %v275 = vld [vmem:[%s257] sm:$0x1]
      %v277 = vlaneseq
      %v278 = vshrl.u32 %v277, 7
      %v279 = vsub.s32 0, %v278
      %v280 = vrot.slane %v275, %v279
      %v282 = vld [vmem:[%s254] sm:$0xf]
      %v283 = vld [vmem:[%s254 + $0x4] sm:$0xf]
      %v284 = vld [vmem:[%s254 + $0x8] sm:$0xf]
      %v285 = vld [vmem:[%s254 + $0xc] sm:$0xf]
      %v286 = vld [vmem:[%s254 + $0x10] sm:$0xf]
      %v287 = vld [vmem:[%s254 + $0x14] sm:$0xf]
      %v288 = vld [vmem:[%s254 + $0x18] sm:$0xf]
      %v289 = vld [vmem:[%s254 + $0x1c] sm:$0xf]
      %v290 = vld [vmem:[%s254 + $0x20] sm:$0xf]
      %v291 = vld [vmem:[%s254 + $0x24] sm:$0xf]
      %v292 = vld [vmem:[%s254 + $0x28] sm:$0xf]
      %v293 = vld [vmem:[%s254 + $0x2c] sm:$0xf]
      %v294 = vld [vmem:[%s254 + $0x30] sm:$0xf]
      %v295 = vld [vmem:[%s254 + $0x34] sm:$0xf]
      %v296 = vld [vmem:[%s254 + $0x38] sm:$0xf]
      %v297 = vld [vmem:[%s254 + $0x3c] sm:$0xf]
      %v314 = vunpack.c.l.b16 %v282
      %v315 = vunpack.c.l.b16 %v283
      %v316 = vunpack.c.l.b16 %v284
      %v317 = vunpack.c.l.b16 %v285
      %v318 = vunpack.c.l.b16 %v286
      %v319 = vunpack.c.l.b16 %v287
      %v320 = vunpack.c.l.b16 %v288
      %v321 = vunpack.c.l.b16 %v289
      %v322 = vunpack.c.l.b16 %v290
      %v323 = vunpack.c.l.b16 %v291
      %v324 = vunpack.c.l.b16 %v292
      %v325 = vunpack.c.l.b16 %v293
      %v326 = vunpack.c.l.b16 %v294
      %v327 = vunpack.c.l.b16 %v295
      %v328 = vunpack.c.l.b16 %v296
      %v329 = vunpack.c.l.b16 %v297
      %v330 = vpack.c.b16 %v315, %v314
      %v331 = vpack.c.b16 %v317, %v316
      %v332 = vpack.c.b16 %v319, %v318
      %v333 = vpack.c.b16 %v321, %v320
      %v334 = vpack.c.b16 %v323, %v322
      %v335 = vpack.c.b16 %v325, %v324
      %v336 = vpack.c.b16 %v327, %v326
      %v337 = vpack.c.b16 %v329, %v328
      %346 = vmatprep.subr.bf16.mxu0 0
      %347 = vmatpush1.bf16.msra.mxu0 %v337
      %348 = vmatprep.subr.bf16.mxu0 0
      %349 = vmatpush1.bf16.msra.mxu0 %v336
      %350 = vmatprep.subr.bf16.mxu0 0
      %351 = vmatpush1.bf16.msra.mxu0 %v335
      %352 = vmatprep.subr.bf16.mxu0 0
      %353 = vmatpush1.bf16.msra.mxu0 %v334
      %354 = vmatprep.subr.bf16.mxu0 0
      %355 = vmatpush1.bf16.msra.mxu0 %v333
      %356 = vmatprep.subr.bf16.mxu0 0
      %357 = vmatpush1.bf16.msra.mxu0 %v332
      %358 = vmatprep.subr.bf16.mxu0 0
      %359 = vmatpush1.bf16.msra.mxu0 %v331
      %360 = vmatprep.subr.bf16.mxu0 0
      %361 = vmatpush1.bf16.msra.mxu0 %v330
      %362 = vmatprep.subr.bf16.mxu0 0
      %363 = vmatpush2.bf16.msra.mxu0 0
      %364 = vmatprep.subr.bf16.mxu0 0
      %365 = vmatpush2.bf16.msra.mxu0 0
      %366 = vmatprep.subr.bf16.mxu0 0
      %367 = vmatpush2.bf16.msra.mxu0 0
      %368 = vmatprep.subr.bf16.mxu0 0
      %369 = vmatpush2.bf16.msra.mxu0 0
      %370 = vmatprep.subr.bf16.mxu0 0
      %371 = vmatpush2.bf16.msra.mxu0 0
      %372 = vmatprep.subr.bf16.mxu0 0
      %373 = vmatpush2.bf16.msra.mxu0 0
      %374 = vmatprep.subr.bf16.mxu0 0
      %375 = vmatpush2.bf16.msra.mxu0 0
      %376 = vmatprep.subr.bf16.mxu0 0
      %377 = vmatpush2.bf16.msra.mxu0 0
      %378 = vmatprep.mubr.bf16.mxu0 0
      %379 = vmatmul.mubr.bf16.gmra.mxu0 %v274
      %v380 = vpop.f32.mrf.mxu0
      %v381 = vadd.f32 0.0, %v380
      %v382 = vpop.f32.mrf.mxu0
      %v383 = vpop.f32.mrf.mxu0
      %v384 = vpop.f32.mrf.mxu0
      %385 = vdwg.mxu0
      %v386 = vadd.f32 %v280, %v381
      %s387 = scalar_lea.vmem %s254, 64
      %v388 = vld [vmem:[%s387] sm:$0xf]
      %v389 = vld [vmem:[%s387 + $0x4] sm:$0xf]
      %v390 = vld [vmem:[%s387 + $0x8] sm:$0xf]
      %v391 = vld [vmem:[%s387 + $0xc] sm:$0xf]
      %v392 = vld [vmem:[%s387 + $0x10] sm:$0xf]
      %v393 = vld [vmem:[%s387 + $0x14] sm:$0xf]
      %v394 = vld [vmem:[%s387 + $0x18] sm:$0xf]
      %v395 = vld [vmem:[%s387 + $0x1c] sm:$0xf]
      %v396 = vld [vmem:[%s387 + $0x20] sm:$0xf]
      %v397 = vld [vmem:[%s387 + $0x24] sm:$0xf]
      %v398 = vld [vmem:[%s387 + $0x28] sm:$0xf]
      %v399 = vld [vmem:[%s387 + $0x2c] sm:$0xf]
      %v400 = vld [vmem:[%s387 + $0x30] sm:$0xf]
      %v401 = vld [vmem:[%s387 + $0x34] sm:$0xf]
      %v402 = vld [vmem:[%s387 + $0x38] sm:$0xf]
      %v403 = vld [vmem:[%s387 + $0x3c] sm:$0xf]
      %v405 = vshrl.u32 %v274, 16
      %v407 = vshll.u32 %v274, 16
      %v409 = vrot.slane %v407, 1
      %v410 = vor.u32 %v405, %v409
      %v428 = vunpack.c.l.b16 %v388
      %v429 = vunpack.c.l.b16 %v389
      %v430 = vunpack.c.l.b16 %v390
      %v431 = vunpack.c.l.b16 %v391
      %v432 = vunpack.c.l.b16 %v392
      %v433 = vunpack.c.l.b16 %v393
      %v434 = vunpack.c.l.b16 %v394
      %v435 = vunpack.c.l.b16 %v395
      %v436 = vunpack.c.l.b16 %v396
      %v437 = vunpack.c.l.b16 %v397
      %v438 = vunpack.c.l.b16 %v398
      %v439 = vunpack.c.l.b16 %v399
      %v440 = vunpack.c.l.b16 %v400
      %v441 = vunpack.c.l.b16 %v401
      %v442 = vunpack.c.l.b16 %v402
      %v443 = vunpack.c.l.b16 %v403
      %v444 = vpack.c.b16 %v429, %v428
      %v445 = vpack.c.b16 %v431, %v430
      %v446 = vpack.c.b16 %v433, %v432
      %v447 = vpack.c.b16 %v435, %v434
      %v448 = vpack.c.b16 %v437, %v436
      %v449 = vpack.c.b16 %v439, %v438
      %v450 = vpack.c.b16 %v441, %v440
      %v451 = vpack.c.b16 %v443, %v442
      %460 = vmatprep.subr.bf16.mxu0 0
      %461 = vmatpush1.bf16.msra.mxu0 %v451
      %462 = vmatprep.subr.bf16.mxu0 0
      %463 = vmatpush1.bf16.msra.mxu0 %v450
      %464 = vmatprep.subr.bf16.mxu0 0
      %465 = vmatpush1.bf16.msra.mxu0 %v449
      %466 = vmatprep.subr.bf16.mxu0 0
      %467 = vmatpush1.bf16.msra.mxu0 %v448
      %468 = vmatprep.subr.bf16.mxu0 0
      %469 = vmatpush1.bf16.msra.mxu0 %v447
      %470 = vmatprep.subr.bf16.mxu0 0
      %471 = vmatpush1.bf16.msra.mxu0 %v446
      %472 = vmatprep.subr.bf16.mxu0 0
      %473 = vmatpush1.bf16.msra.mxu0 %v445
      %474 = vmatprep.subr.bf16.mxu0 0
      %475 = vmatpush1.bf16.msra.mxu0 %v444
      %476 = vmatprep.subr.bf16.mxu0 0
      %477 = vmatpush2.bf16.msra.mxu0 0
      %478 = vmatprep.subr.bf16.mxu0 0
      %479 = vmatpush2.bf16.msra.mxu0 0
      %480 = vmatprep.subr.bf16.mxu0 0
      %481 = vmatpush2.bf16.msra.mxu0 0
      %482 = vmatprep.subr.bf16.mxu0 0
      %483 = vmatpush2.bf16.msra.mxu0 0
      %484 = vmatprep.subr.bf16.mxu0 0
      %485 = vmatpush2.bf16.msra.mxu0 0
      %486 = vmatprep.subr.bf16.mxu0 0
      %487 = vmatpush2.bf16.msra.mxu0 0
      %488 = vmatprep.subr.bf16.mxu0 0
      %489 = vmatpush2.bf16.msra.mxu0 0
      %490 = vmatprep.subr.bf16.mxu0 0
      %491 = vmatpush2.bf16.msra.mxu0 0
      %492 = vmatprep.mubr.bf16.mxu0 0
      %493 = vmatmul.mubr.bf16.gmra.mxu0 %v410
      %v494 = vpop.f32.mrf.mxu0
      %v495 = vadd.f32 0.0, %v494
      %v496 = vpop.f32.mrf.mxu0
      %v497 = vpop.f32.mrf.mxu0
      %v498 = vpop.f32.mrf.mxu0
      %499 = vdwg.mxu0
      %v500 = vadd.f32 %v386, %v495
      %s501 = scalar_lea.vmem %s254, 128
      %v502 = vld [vmem:[%s501] sm:$0xf]
      %v503 = vld [vmem:[%s501 + $0x4] sm:$0xf]
      %v504 = vld [vmem:[%s501 + $0x8] sm:$0xf]
      %v505 = vld [vmem:[%s501 + $0xc] sm:$0xf]
      %v506 = vld [vmem:[%s501 + $0x10] sm:$0xf]
      %v507 = vld [vmem:[%s501 + $0x14] sm:$0xf]
      %v508 = vld [vmem:[%s501 + $0x18] sm:$0xf]
      %v509 = vld [vmem:[%s501 + $0x1c] sm:$0xf]
      %v510 = vld [vmem:[%s501 + $0x20] sm:$0xf]
      %v511 = vld [vmem:[%s501 + $0x24] sm:$0xf]
      %v512 = vld [vmem:[%s501 + $0x28] sm:$0xf]
      %v513 = vld [vmem:[%s501 + $0x2c] sm:$0xf]
      %v514 = vld [vmem:[%s501 + $0x30] sm:$0xf]
      %v515 = vld [vmem:[%s501 + $0x34] sm:$0xf]
      %v516 = vld [vmem:[%s501 + $0x38] sm:$0xf]
      %v517 = vld [vmem:[%s501 + $0x3c] sm:$0xf]
      %v519 = vrot.slane %v274, 1
      %v537 = vunpack.c.l.b16 %v502
      %v538 = vunpack.c.l.b16 %v503
      %v539 = vunpack.c.l.b16 %v504
      %v540 = vunpack.c.l.b16 %v505
      %v541 = vunpack.c.l.b16 %v506
      %v542 = vunpack.c.l.b16 %v507
      %v543 = vunpack.c.l.b16 %v508
      %v544 = vunpack.c.l.b16 %v509
      %v545 = vunpack.c.l.b16 %v510
      %v546 = vunpack.c.l.b16 %v511
      %v547 = vunpack.c.l.b16 %v512
      %v548 = vunpack.c.l.b16 %v513
      %v549 = vunpack.c.l.b16 %v514
      %v550 = vunpack.c.l.b16 %v515
      %v551 = vunpack.c.l.b16 %v516
      %v552 = vunpack.c.l.b16 %v517
      %v553 = vpack.c.b16 %v538, %v537
      %v554 = vpack.c.b16 %v540, %v539
      %v555 = vpack.c.b16 %v542, %v541
      %v556 = vpack.c.b16 %v544, %v543
      %v557 = vpack.c.b16 %v546, %v545
      %v558 = vpack.c.b16 %v548, %v547
      %v559 = vpack.c.b16 %v550, %v549
      %v560 = vpack.c.b16 %v552, %v551
      %569 = vmatprep.subr.bf16.mxu0 0
      %570 = vmatpush1.bf16.msra.mxu0 %v560
      %571 = vmatprep.subr.bf16.mxu0 0
      %572 = vmatpush1.bf16.msra.mxu0 %v559
      %573 = vmatprep.subr.bf16.mxu0 0
      %574 = vmatpush1.bf16.msra.mxu0 %v558
      %575 = vmatprep.subr.bf16.mxu0 0
      %576 = vmatpush1.bf16.msra.mxu0 %v557
      %577 = vmatprep.subr.bf16.mxu0 0
      %578 = vmatpush1.bf16.msra.mxu0 %v556
      %579 = vmatprep.subr.bf16.mxu0 0
      %580 = vmatpush1.bf16.msra.mxu0 %v555
      %581 = vmatprep.subr.bf16.mxu0 0
      %582 = vmatpush1.bf16.msra.mxu0 %v554
      %583 = vmatprep.subr.bf16.mxu0 0
      %584 = vmatpush1.bf16.msra.mxu0 %v553
      %585 = vmatprep.subr.bf16.mxu0 0
      %586 = vmatpush2.bf16.msra.mxu0 0
      %587 = vmatprep.subr.bf16.mxu0 0
      %588 = vmatpush2.bf16.msra.mxu0 0
      %589 = vmatprep.subr.bf16.mxu0 0
      %590 = vmatpush2.bf16.msra.mxu0 0
      %591 = vmatprep.subr.bf16.mxu0 0
      %592 = vmatpush2.bf16.msra.mxu0 0
      %593 = vmatprep.subr.bf16.mxu0 0
      %594 = vmatpush2.bf16.msra.mxu0 0
      %595 = vmatprep.subr.bf16.mxu0 0
      %596 = vmatpush2.bf16.msra.mxu0 0
      %597 = vmatprep.subr.bf16.mxu0 0
      %598 = vmatpush2.bf16.msra.mxu0 0
      %599 = vmatprep.subr.bf16.mxu0 0
      %600 = vmatpush2.bf16.msra.mxu0 0
      %601 = vmatprep.mubr.bf16.mxu0 0
      %602 = vmatmul.mubr.bf16.gmra.mxu0 %v519
      %v603 = vpop.f32.mrf.mxu0
      %v604 = vadd.f32 0.0, %v603
      %v605 = vpop.f32.mrf.mxu0
      %v606 = vpop.f32.mrf.mxu0
      %v607 = vpop.f32.mrf.mxu0
      %608 = vdwg.mxu0
      %v609 = vadd.f32 %v500, %v604
      %vm610 = vcmask 1043456
      %v611 = vsel %vm610, %v609, 0.0
      %v612 = vrot.slane %v611, 4
      %v613 = vadd.f32 %v611, %v612
      %v614 = vrot.slane %v613, 2
      %v615 = vadd.f32 %v613, %v614
      %v616 = vrot.slane %v615, 1
      %v617 = vadd.f32 %v615, %v616
      %v618 = vmul.f32 %v617, 0.25
      %v619 = vmul.f32 %v609, %v609
      %v620 = vsel %vm610, %v619, 0.0
      %v621 = vrot.slane %v620, 4
      %v622 = vadd.f32 %v620, %v621
      %v623 = vrot.slane %v622, 2
      %v624 = vadd.f32 %v622, %v623
      %v625 = vrot.slane %v624, 1
      %v626 = vadd.f32 %v624, %v625
      %v627 = vmul.f32 %v626, 0.25
      %v628 = vmul.f32 %v618, %v618
      %v629 = vsub.f32 %v627, %v628
      %v630 = vmax.f32 %v629, 0.0
      %v631 = vsub.f32 %v609, %v618
      %v632 = vadd.f32 %v630, 1e-05
      %v633 = vrsqrt.pop %v632
      %v634 = vmul.f32 %v631, %v633
      %v635 = vld [vmem:[%s264] sm:$0xf]
      %v636 = vadd.f32 %v635, %v634
      %637 = vst [vmem:[%s271] sm:$0xf] %v636
      %p638 = scmp.lt.s32.totalorder %s19, 1
      %s639 = scalar_select %p638, %s19, 1
      %p640 = scmp.lt.s32.totalorder %s20, 0
      %s641 = scalar_select %p640, %s20, 0
      %s642 = sadd.s32 %s641, %s639
      %s643 = smul.addr %s642, 4
      %s644 = scalar_lea.vmem %s4, %s643
      // Predicated region
      $region37: #{generator_forward.14} parent=35 // pred_check
        %p645 = pneg %p153
      $region38: #{generator_forward.14} parent=35 // pred_check_branch
        %647 = sbr.rel (%p645) target = $region40
      $region39: #{generator_forward.14} parent=35 // pred_region
        _
      $region40: #{generator_forward.14} parent=35 // pred_fallthru
        _
    $region36: #{generator_forward.14} parent=5 // pred_fallthru
      _
    %p648 = scmp.le.s32.totalorder 2, %s10
    // Predicated region
    $region41: #{generator_forward.14} parent=5 // pred_check
      %p649 = pneg %p648
    $region42: #{generator_forward.14} parent=5 // pred_check_branch
      %651 = sbr.rel (%p649) target = $region44
    $region43: #{generator_forward.14} parent=5 // pred_region
      %s652 = ssub.s32 %s10, 2
      // Predicated region
      $region45: #{generator_forward.14} parent=43 // pred_check
        %p653 = pneg %p159
      $region46: #{generator_forward.14} parent=43 // pred_check_branch
        %655 = sbr.rel (%p653) target = $region48
      $region47: #{generator_forward.14} parent=43 // pred_region
        %p656 = scmp.lt.s32.totalorder %s21, 1
        %s657 = scalar_select %p656, %s21, 1
        %p658 = scmp.lt.s32.totalorder %s22, 0
        %s659 = scalar_select %p658, %s22, 0
        %s660 = sadd.s32 %s659, %s657
        %s661 = smul.addr %s660, 4
        %s662 = scalar_lea.vmem %s4, %s661
      $region48: #{generator_forward.14} parent=43 // pred_fallthru
        _
    $region44: #{generator_forward.14} parent=5 // pred_fallthru
      _
  $region6: #{generator_forward.14} parent=0 // loop_footer
    %s14 = sadd.s32 1, %s10
  $region7: #{generator_forward.14} parent=0 // loop_footer_branch
    %9 = sbr.rel target = $region3
  $region8: #{generator_forward.14} parent=0 // loop_exit
    _

// kernel: generator_forward.10
$region0: #{generator_forward.10}
  #allocation0 [shape = 'u32[]', space=smem, size = 0x4, offset = 0x4, fixed_abs, tag = 'smem constant byte address 0x4 - core index']
  #allocation1 [shape = 'u32[144,128]{1,0:T(1,128)}', space=vmem, size = 0x12000, scoped, tag = 'internal scratch']
  %s0 = inlined_call_operand.vmem [shape: f32[2,30,128], index: 0, kind: input, shape index: {}]
  %s1 = inlined_call_operand.hbm [shape: bf16[15,128,128], index: 1, kind: input, shape index: {}]
  %s2 = inlined_call_operand.vmem [shape: f32[1,128], index: 2, kind: input, shape index: {}]
  %s3 = inlined_call_operand.vmem [shape: f32[2,16,128], index: 3, kind: output, shape index: {}]
  %s4 = sld [smem:[#allocation0]]
  $region49: #{generator_forward.10} parent=0
    _
  %s6 = ssub.s32 1, %s4
  %s7 = scalar_select 0, %s6, %s4
  $region1: #{generator_forward.10} parent=0
    #allocation2 [shape = 'u8[491520]{0}', space=vmem, size = 0x78000, scoped, tag = 'input window, operand 1, single buffered']
    #allocation3 [shape = 's32[2]{0}', space=sflag, size = 0x8, scoped, tag = 'scoped memory for generator_forward.10']
    %8 = vsyncpa [#allocation3], 0
    loop: start=0, step=1, limit=4
    $region2: #{generator_forward.10} parent=1 // loop_pre_header
      _
    $region3: #{generator_forward.10} parent=1 // loop_header
      %s10 = sphi 0, %s14
      %p11 = scmp.ge.s32.totalorder %s10, 4
      %s17 = sphi 0, %s29
      %s18 = sphi 0, %s25
      %s19 = sphi 0, %s17
      %s20 = sphi 0, %s18
      %s21 = sphi 0, %s19
      %s22 = sphi 0, %s20
      %s32 = sphi 0, %s34
      %s35 = sphi 0, %s32
      %s36 = sphi 0, %s35
      %s52 = sphi 0, %s36
      %s58 = sphi 0, %s60
      %s61 = sphi 0, %s58
      %s62 = sphi 0, %s61
      %s78 = sphi 0, %s62
      %s84 = sphi 0, %s86
      %s87 = sphi 0, %s84
      %s88 = sphi 0, %s87
      %s104 = sphi 0, %s88
      %s112 = sphi 0, %s114
      %s115 = sphi 0, %s112
      %s116 = sphi 0, %s115
      %s132 = sphi 0, %s116
    $region4: #{generator_forward.10} parent=1 // loop_header_branch
      %13 = sbr.rel (%p11) target = $region8
    $region5: #{generator_forward.10} parent=1 // loop_body
      %s15 = ssub.s32 %s10, 1
      %s16 = ssub.s32 %s10, 2
      %s23 = sadd.s32 1, %s18
      %p24 = scmp.ge.s32.totalorder %s23, 1
      %s25 = scalar_select %p24, 0, %s23
      %s26 = sadd.s32 1, %s17
      %s27 = scalar_select %p24, %s26, %s17
      %p28 = scmp.ge.s32.totalorder %s27, 2
      %s29 = scalar_select %p28, 0, %s27
      %s30 = ssub.s32 %s17, %s29
      %p31 = scmp.eq.s32.totalorder %s30, 0
      %s33 = sadd.s32 %s32, 1
      %s34 = scalar_select %p31, %s32, %s33
      %p37 = pneg %p31
      %p38 = scmp.eq.s32.totalorder %s10, 1
      %p39 = por %p37, %p38
      %p40 = scmp.ne.s32.totalorder %s32, %s35
      %p41 = scmp.eq.s32.totalorder %s10, 0
      %p42 = por %p40, %p41
      %p43 = scmp.ne.s32.totalorder %s32, %s35
      %p44 = scmp.eq.s32.totalorder %s15, 1
      %p45 = por %p43, %p44
      %p46 = scmp.ne.s32.totalorder %s35, %s36
      %p47 = scmp.eq.s32.totalorder %s15, 0
      %p48 = por %p46, %p47
      %p49 = scmp.ne.s32.totalorder %s35, %s36
      %p50 = scmp.eq.s32.totalorder %s16, 1
      %p51 = por %p49, %p50
      %p53 = scmp.ne.s32.totalorder %s36, %s52
      %p54 = scmp.eq.s32.totalorder %s16, 0
      %p55 = por %p53, %p54
      %s56 = ssub.s32 %s18, %s25
      %p57 = scmp.eq.s32.totalorder %s56, 0
      %s59 = sadd.s32 %s58, 1
      %s60 = scalar_select %p57, %s58, %s59
      %p63 = pneg %p57
      %p64 = scmp.eq.s32.totalorder %s10, 1
      %p65 = por %p63, %p64
      %p66 = scmp.ne.s32.totalorder %s58, %s61
      %p67 = scmp.eq.s32.totalorder %s10, 0
      %p68 = por %p66, %p67
      %p69 = scmp.ne.s32.totalorder %s58, %s61
      %p70 = scmp.eq.s32.totalorder %s15, 1
      %p71 = por %p69, %p70
      %p72 = scmp.ne.s32.totalorder %s61, %s62
      %p73 = scmp.eq.s32.totalorder %s15, 0
      %p74 = por %p72, %p73
      %p75 = scmp.ne.s32.totalorder %s61, %s62
      %p76 = scmp.eq.s32.totalorder %s16, 1
      %p77 = por %p75, %p76
      %p79 = scmp.ne.s32.totalorder %s62, %s78
      %p80 = scmp.eq.s32.totalorder %s16, 0
      %p81 = por %p79, %p80
      %s82 = ssub.s32 %s18, %s25
      %p83 = scmp.eq.s32.totalorder %s82, 0
      %s85 = sadd.s32 %s84, 1
      %s86 = scalar_select %p83, %s84, %s85
      %p89 = pneg %p83
      %p90 = scmp.eq.s32.totalorder %s10, 1
      %p91 = por %p89, %p90
      %p92 = scmp.ne.s32.totalorder %s84, %s87
      %p93 = scmp.eq.s32.totalorder %s10, 0
      %p94 = por %p92, %p93
      %p95 = scmp.ne.s32.totalorder %s84, %s87
      %p96 = scmp.eq.s32.totalorder %s15, 1
      %p97 = por %p95, %p96
      %p98 = scmp.ne.s32.totalorder %s87, %s88
      %p99 = scmp.eq.s32.totalorder %s15, 0
      %p100 = por %p98, %p99
      %p101 = scmp.ne.s32.totalorder %s87, %s88
      %p102 = scmp.eq.s32.totalorder %s16, 1
      %p103 = por %p101, %p102
      %p105 = scmp.ne.s32.totalorder %s88, %s104
      %p106 = scmp.eq.s32.totalorder %s16, 0
      %p107 = por %p105, %p106
      %s108 = ssub.s32 %s17, %s29
      %s109 = ssub.s32 %s18, %s25
      %s110 = sor.u32 %s108, %s109
      %p111 = scmp.eq.s32.totalorder %s110, 0
      %s113 = sadd.s32 %s112, 1
      %s114 = scalar_select %p111, %s112, %s113
      %p117 = pneg %p111
      %p118 = scmp.eq.s32.totalorder %s10, 1
      %p119 = por %p117, %p118
      %p120 = scmp.ne.s32.totalorder %s112, %s115
      %p121 = scmp.eq.s32.totalorder %s10, 0
      %p122 = por %p120, %p121
      %p123 = scmp.ne.s32.totalorder %s112, %s115
      %p124 = scmp.eq.s32.totalorder %s15, 1
      %p125 = por %p123, %p124
      %p126 = scmp.ne.s32.totalorder %s115, %s116
      %p127 = scmp.eq.s32.totalorder %s15, 0
      %p128 = por %p126, %p127
      %p129 = scmp.ne.s32.totalorder %s115, %s116
      %p130 = scmp.eq.s32.totalorder %s16, 1
      %p131 = por %p129, %p130
      %p133 = scmp.ne.s32.totalorder %s116, %s132
      %p134 = scmp.eq.s32.totalorder %s16, 0
      %p135 = por %p133, %p134
      %p136 = scmp.le.s32.totalorder 1, %s10
      %p137 = scmp.lt.s32.totalorder %s10, 3
      %p138 = pnand %p136, %p137
      %p139 = pneg %p138
      // Predicated region
      $region9: #{generator_forward.10} parent=5 // pred_check
        _
      $region10: #{generator_forward.10} parent=5 // pred_check_branch
        %141 = sbr.rel (%p138) target = $region12
      $region11: #{generator_forward.10} parent=5 // pred_region
        %s142 = ssub.s32 %s10, 1
        // Predicated region
        $region13: #{generator_forward.10} parent=11 // pred_check
          %p143 = pneg %p74
        $region14: #{generator_forward.10} parent=11 // pred_check_branch
          %145 = sbr.rel (%p143) target = $region16
        $region15: #{generator_forward.10} parent=11 // pred_region
          %s147 = ssub.s32 15360, 15360
          %148 = vsyncadd [#allocation3], %s147
          %s149 = smul.addr %s20, 64
          %s150 = scalar_lea.hbm %s1, %s149
          %s151 = sshll.u32 [#allocation2], 4
          %s152 = int_to_ptr.vmem [resolvable:$true] %s151
          %157 = dma.hbm_to_vmem [thread:$0]  %s150, 15360, %s152, [#allocation3], 64, 64, 4
        $region16: #{generator_forward.10} parent=11 // pred_fallthru
          _
        // Predicated region
        $region17: #{generator_forward.10} parent=11 // pred_check
          %p158 = pneg %p100
        $region18: #{generator_forward.10} parent=11 // pred_check_branch
          %160 = sbr.rel (%p158) target = $region20
        $region19: #{generator_forward.10} parent=11 // pred_region
          %p161 = scmp.lt.s32.totalorder %s20, 0
          %s162 = scalar_select %p161, %s20, 0
          %s163 = scalar_lea.vmem %s2, %s162
        $region20: #{generator_forward.10} parent=11 // pred_fallthru
          _
      $region12: #{generator_forward.10} parent=5 // pred_fallthru
        _
      %p164 = scmp.lt.s32.totalorder %s10, 2
      // Predicated region
      $region21: #{generator_forward.10} parent=5 // pred_check
        %p165 = pneg %p164
      $region22: #{generator_forward.10} parent=5 // pred_check_branch
        %167 = sbr.rel (%p165) target = $region24
      $region23: #{generator_forward.10} parent=5 // pred_region
        // Predicated region
        $region25: #{generator_forward.10} parent=23 // pred_check
          %p168 = pneg %p42
        $region26: #{generator_forward.10} parent=23 // pred_check_branch
          %170 = sbr.rel (%p168) target = $region28
        $region27: #{generator_forward.10} parent=23 // pred_region
          %p171 = scmp.lt.s32.totalorder %s17, 1
          %s172 = scalar_select %p171, %s17, 1
          %s173 = smul.addr %s172, 4
          %s174 = smul.addr %s173, 8
          %s175 = scalar_lea.vmem %s0, %s174
        $region28: #{generator_forward.10} parent=23 // pred_fallthru
          _
      $region24: #{generator_forward.10} parent=5 // pred_fallthru
        _
      %p176 = scmp.le.s32.totalorder 1, %s10
      %p177 = scmp.lt.s32.totalorder %s10, 3
      %p178 = pnand %p176, %p177
      %p179 = pneg %p178
      // Predicated region
      $region29: #{generator_forward.10} parent=5 // pred_check
        _
      $region30: #{generator_forward.10} parent=5 // pred_check_branch
        %181 = sbr.rel (%p178) target = $region32
      $region31: #{generator_forward.10} parent=5 // pred_region
        %s182 = ssub.s32 %s10, 1
        // Predicated region
        $region33: #{generator_forward.10} parent=31 // pred_check
          %p183 = pneg %p74
        $region34: #{generator_forward.10} parent=31 // pred_check_branch
          %185 = sbr.rel (%p183) target = $region36
        $region35: #{generator_forward.10} parent=31 // pred_region
          %186 = dma.done [#allocation3], 15360
        $region36: #{generator_forward.10} parent=31 // pred_fallthru
          _
        %p187 = scmp.lt.s32.totalorder %s19, 1
        %s188 = scalar_select %p187, %s19, 1
        %s189 = smul.addr %s188, 4
        %s190 = smul.addr %s189, 8
        %s191 = scalar_lea.vmem %s0, %s190
        %p192 = pneg %p48
        %p193 = pneg %p45
        %p194 = pneg %p74
        %p195 = pneg %p71
        %p196 = scmp.lt.s32.totalorder %s20, 0
        %s197 = scalar_select %p196, %s20, 0
        %s198 = scalar_lea.vmem %s2, %s197
        %p199 = pneg %p100
        %p200 = pneg %p97
        %p201 = pneg %p128
        %p202 = pneg %p125
        %p203 = scmp.lt.s32.totalorder %s19, 1
        %s204 = scalar_select %p203, %s19, 1
        %p205 = scmp.lt.s32.totalorder %s20, 0
        %s206 = scalar_select %p205, %s20, 0
        %s207 = smul.addr %s204, 2
        %s208 = sadd.s32 %s206, %s207
        %s209 = smul.addr %s208, 8
        %s210 = scalar_lea.vmem %s3, %s209
        %p211 = scmp.lt.s32.totalorder %s19, 1
        %s212 = scalar_select %p211, %s19, 1
        %s213 = smul.addr %s212, 4
        %s214 = smul.addr %s213, 8
        %s215 = scalar_lea.vmem %s0, %s214
        %p216 = scmp.lt.s32.totalorder %s20, 0
        %s217 = scalar_select %p216, %s20, 0
        %s218 = scalar_lea.vmem %s2, %s217
        %p219 = scmp.lt.s32.totalorder %s19, 1
        %s220 = scalar_select %p219, %s19, 1
        %p221 = scmp.lt.s32.totalorder %s20, 0
        %s222 = scalar_select %p221, %s20, 0
        %s223 = smul.addr %s220, 2
        %s224 = sadd.s32 %s222, %s223
        %s225 = smul.addr %s224, 8
        %s226 = scalar_lea.vmem %s3, %s225
        %v228 = vld [vmem:[%s215] sm:$0xff]
        %v229 = vld [vmem:[%s215 + $0x8] sm:$0xff]
        %v230 = vld [vmem:[%s215 + $0x10] sm:$0xff]
        %v231 = vld [vmem:[%s215 + $0x18] sm:$0x3f]
        %v232 = vpack.c.bf16 %v229, %v228
        %v233 = vpack.c.bf16 %v231, %v230
        %v234 = vld [vmem:[%s218] sm:$0x1]
        %v236 = vlaneseq
        %v237 = vshrl.u32 %v236, 7
        %v238 = vsub.s32 0, %v237
        %v239 = vrot.slane %v234, %v238
        %v241 = vld [vmem:[#allocation2] sm:$0xf]
        %v242 = vld [vmem:[#allocation2 + $0x4] sm:$0xf]
        %v243 = vld [vmem:[#allocation2 + $0x8] sm:$0xf]
        %v244 = vld [vmem:[#allocation2 + $0xc] sm:$0xf]
        %v245 = vld [vmem:[#allocation2 + $0x10] sm:$0xf]
        %v246 = vld [vmem:[#allocation2 + $0x14] sm:$0xf]
        %v247 = vld [vmem:[#allocation2 + $0x18] sm:$0xf]
        %v248 = vld [vmem:[#allocation2 + $0x1c] sm:$0xf]
        %v249 = vld [vmem:[#allocation2 + $0x20] sm:$0xf]
        %v250 = vld [vmem:[#allocation2 + $0x24] sm:$0xf]
        %v251 = vld [vmem:[#allocation2 + $0x28] sm:$0xf]
        %v252 = vld [vmem:[#allocation2 + $0x2c] sm:$0xf]
        %v253 = vld [vmem:[#allocation2 + $0x30] sm:$0xf]
        %v254 = vld [vmem:[#allocation2 + $0x34] sm:$0xf]
        %v255 = vld [vmem:[#allocation2 + $0x38] sm:$0xf]
        %v256 = vld [vmem:[#allocation2 + $0x3c] sm:$0xf]
        %v273 = vunpack.c.l.b16 %v241
        %v274 = vunpack.c.l.b16 %v242
        %v275 = vunpack.c.l.b16 %v243
        %v276 = vunpack.c.l.b16 %v244
        %v277 = vunpack.c.l.b16 %v245
        %v278 = vunpack.c.l.b16 %v246
        %v279 = vunpack.c.l.b16 %v247
        %v280 = vunpack.c.l.b16 %v248
        %v281 = vunpack.c.l.b16 %v249
        %v282 = vunpack.c.l.b16 %v250
        %v283 = vunpack.c.l.b16 %v251
        %v284 = vunpack.c.l.b16 %v252
        %v285 = vunpack.c.l.b16 %v253
        %v286 = vunpack.c.l.b16 %v254
        %v287 = vunpack.c.l.b16 %v255
        %v288 = vunpack.c.l.b16 %v256
        %v289 = vpack.c.b16 %v274, %v273
        %v290 = vpack.c.b16 %v276, %v275
        %v291 = vpack.c.b16 %v278, %v277
        %v292 = vpack.c.b16 %v280, %v279
        %v293 = vpack.c.b16 %v282, %v281
        %v294 = vpack.c.b16 %v284, %v283
        %v295 = vpack.c.b16 %v286, %v285
        %v296 = vpack.c.b16 %v288, %v287
        %305 = vmatprep.subr.bf16.mxu0 0
        %306 = vmatpush1.bf16.msra.mxu0 %v296
        %307 = vmatprep.subr.bf16.mxu0 0
        %308 = vmatpush1.bf16.msra.mxu0 %v295
        %309 = vmatprep.subr.bf16.mxu0 0
        %310 = vmatpush1.bf16.msra.mxu0 %v294
        %311 = vmatprep.subr.bf16.mxu0 0
        %312 = vmatpush1.bf16.msra.mxu0 %v293
        %313 = vmatprep.subr.bf16.mxu0 0
        %314 = vmatpush1.bf16.msra.mxu0 %v292
        %315 = vmatprep.subr.bf16.mxu0 0
        %316 = vmatpush1.bf16.msra.mxu0 %v291
        %317 = vmatprep.subr.bf16.mxu0 0
        %318 = vmatpush1.bf16.msra.mxu0 %v290
        %319 = vmatprep.subr.bf16.mxu0 0
        %320 = vmatpush1.bf16.msra.mxu0 %v289
        %321 = vmatprep.subr.bf16.mxu0 0
        %322 = vmatpush2.bf16.msra.mxu0 0
        %323 = vmatprep.subr.bf16.mxu0 0
        %324 = vmatpush2.bf16.msra.mxu0 0
        %325 = vmatprep.subr.bf16.mxu0 0
        %326 = vmatpush2.bf16.msra.mxu0 0
        %327 = vmatprep.subr.bf16.mxu0 0
        %328 = vmatpush2.bf16.msra.mxu0 0
        %329 = vmatprep.subr.bf16.mxu0 0
        %330 = vmatpush2.bf16.msra.mxu0 0
        %331 = vmatprep.subr.bf16.mxu0 0
        %332 = vmatpush2.bf16.msra.mxu0 0
        %333 = vmatprep.subr.bf16.mxu0 0
        %334 = vmatpush2.bf16.msra.mxu0 0
        %335 = vmatprep.subr.bf16.mxu0 0
        %336 = vmatpush2.bf16.msra.mxu0 0
        %337 = vmatprep.mubr.bf16.mxu0 0
        %338 = vmatmul.mubr.bf16.gmra.mxu0 %v232
        %v339 = vpop.f32.mrf.mxu0
        %v340 = vadd.f32 0.0, %v339
        %v341 = vpop.f32.mrf.mxu0
        %v342 = vpop.f32.mrf.mxu0
        %v343 = vadd.f32 0.0, %v342
        %v344 = vpop.f32.mrf.mxu0
        %345 = vdwg.mxu0
        %v346 = vadd.f32 %v239, %v340
        %v347 = vadd.f32 %v239, %v343
        %s348 = scalar_lea.vmem [#allocation2], 64
        %v349 = vld [vmem:[%s348] sm:$0xf]
        %v350 = vld [vmem:[%s348 + $0x4] sm:$0xf]
        %v351 = vld [vmem:[%s348 + $0x8] sm:$0xf]
        %v352 = vld [vmem:[%s348 + $0xc] sm:$0xf]
        %v353 = vld [vmem:[%s348 + $0x10] sm:$0xf]
        %v354 = vld [vmem:[%s348 + $0x14] sm:$0xf]
        %v355 = vld [vmem:[%s348 + $0x18] sm:$0xf]
        %v356 = vld [vmem:[%s348 + $0x1c] sm:$0xf]
        %v357 = vld [vmem:[%s348 + $0x20] sm:$0xf]
        %v358 = vld [vmem:[%s348 + $0x24] sm:$0xf]
        %v359 = vld [vmem:[%s348 + $0x28] sm:$0xf]
        %v360 = vld [vmem:[%s348 + $0x2c] sm:$0xf]
        %v361 = vld [vmem:[%s348 + $0x30] sm:$0xf]
        %v362 = vld [vmem:[%s348 + $0x34] sm:$0xf]
        %v363 = vld [vmem:[%s348 + $0x38] sm:$0xf]
        %v364 = vld [vmem:[%s348 + $0x3c] sm:$0xf]
        %vm365 = vsmask.f32 7424
        %v367 = vshrl.u32 %v232, 16
        %v369 = vshll.u32 %v232, 16
        %v371 = vrot.slane %v369, 1
        %v372 = vor.u32 %v367, %v371
        %v374 = vshll.u32 %v233, 16
        %v376 = vrot.slane %v374, 1
        %v377 = vsel %vm365, %v372, %v376
        %v395 = vunpack.c.l.b16 %v349
        %v396 = vunpack.c.l.b16 %v350
        %v397 = vunpack.c.l.b16 %v351
        %v398 = vunpack.c.l.b16 %v352
        %v399 = vunpack.c.l.b16 %v353
        %v400 = vunpack.c.l.b16 %v354
        %v401 = vunpack.c.l.b16 %v355
        %v402 = vunpack.c.l.b16 %v356
        %v403 = vunpack.c.l.b16 %v357
        %v404 = vunpack.c.l.b16 %v358
        %v405 = vunpack.c.l.b16 %v359
        %v406 = vunpack.c.l.b16 %v360
        %v407 = vunpack.c.l.b16 %v361
        %v408 = vunpack.c.l.b16 %v362
        %v409 = vunpack.c.l.b16 %v363
        %v410 = vunpack.c.l.b16 %v364
        %v411 = vpack.c.b16 %v396, %v395
        %v412 = vpack.c.b16 %v398, %v397
        %v413 = vpack.c.b16 %v400, %v399
        %v414 = vpack.c.b16 %v402, %v401
        %v415 = vpack.c.b16 %v404, %v403
        %v416 = vpack.c.b16 %v406, %v405
        %v417 = vpack.c.b16 %v408, %v407
        %v418 = vpack.c.b16 %v410, %v409
        %427 = vmatprep.subr.bf16.mxu0 0
        %428 = vmatpush1.bf16.msra.mxu0 %v418
        %429 = vmatprep.subr.bf16.mxu0 0
        %430 = vmatpush1.bf16.msra.mxu0 %v417
        %431 = vmatprep.subr.bf16.mxu0 0
        %432 = vmatpush1.bf16.msra.mxu0 %v416
        %433 = vmatprep.subr.bf16.mxu0 0
        %434 = vmatpush1.bf16.msra.mxu0 %v415
        %435 = vmatprep.subr.bf16.mxu0 0
        %436 = vmatpush1.bf16.msra.mxu0 %v414
        %437 = vmatprep.subr.bf16.mxu0 0
        %438 = vmatpush1.bf16.msra.mxu0 %v413
        %439 = vmatprep.subr.bf16.mxu0 0
        %440 = vmatpush1.bf16.msra.mxu0 %v412
        %441 = vmatprep.subr.bf16.mxu0 0
        %442 = vmatpush1.bf16.msra.mxu0 %v411
        %443 = vmatprep.subr.bf16.mxu0 0
        %444 = vmatpush2.bf16.msra.mxu0 0
        %445 = vmatprep.subr.bf16.mxu0 0
        %446 = vmatpush2.bf16.msra.mxu0 0
        %447 = vmatprep.subr.bf16.mxu0 0
        %448 = vmatpush2.bf16.msra.mxu0 0
        %449 = vmatprep.subr.bf16.mxu0 0
        %450 = vmatpush2.bf16.msra.mxu0 0
        %451 = vmatprep.subr.bf16.mxu0 0
        %452 = vmatpush2.bf16.msra.mxu0 0
        %453 = vmatprep.subr.bf16.mxu0 0
        %454 = vmatpush2.bf16.msra.mxu0 0
        %455 = vmatprep.subr.bf16.mxu0 0
        %456 = vmatpush2.bf16.msra.mxu0 0
        %457 = vmatprep.subr.bf16.mxu0 0
        %458 = vmatpush2.bf16.msra.mxu0 0
        %459 = vmatprep.mubr.bf16.mxu0 0
        %460 = vmatmul.mubr.bf16.gmra.mxu0 %v377
        %v461 = vpop.f32.mrf.mxu0
        %v462 = vadd.f32 0.0, %v461
        %v463 = vpop.f32.mrf.mxu0
        %v464 = vpop.f32.mrf.mxu0
        %v465 = vadd.f32 0.0, %v464
        %v466 = vpop.f32.mrf.mxu0
        %467 = vdwg.mxu0
        %v468 = vadd.f32 %v346, %v462
        %v469 = vadd.f32 %v347, %v465
        %s470 = scalar_lea.vmem [#allocation2], 128
        %v471 = vld [vmem:[%s470] sm:$0xf]
        %v472 = vld [vmem:[%s470 + $0x4] sm:$0xf]
        %v473 = vld [vmem:[%s470 + $0x8] sm:$0xf]
        %v474 = vld [vmem:[%s470 + $0xc] sm:$0xf]
        %v475 = vld [vmem:[%s470 + $0x10] sm:$0xf]
        %v476 = vld [vmem:[%s470 + $0x14] sm:$0xf]
        %v477 = vld [vmem:[%s470 + $0x18] sm:$0xf]
        %v478 = vld [vmem:[%s470 + $0x1c] sm:$0xf]
        %v479 = vld [vmem:[%s470 + $0x20] sm:$0xf]
        %v480 = vld [vmem:[%s470 + $0x24] sm:$0xf]
        %v481 = vld [vmem:[%s470 + $0x28] sm:$0xf]
        %v482 = vld [vmem:[%s470 + $0x2c] sm:$0xf]
        %v483 = vld [vmem:[%s470 + $0x30] sm:$0xf]
        %v484 = vld [vmem:[%s470 + $0x34] sm:$0xf]
        %v485 = vld [vmem:[%s470 + $0x38] sm:$0xf]
        %v486 = vld [vmem:[%s470 + $0x3c] sm:$0xf]
        %vm489 = vcmask 1046528
        %v490 = vrot.slane %v232, 1
        %v491 = vrot.slane %v233, 1
        %v492 = vsel %vm489, %v490, %v491
        %v510 = vunpack.c.l.b16 %v471
        %v511 = vunpack.c.l.b16 %v472
        %v512 = vunpack.c.l.b16 %v473
        %v513 = vunpack.c.l.b16 %v474
        %v514 = vunpack.c.l.b16 %v475
        %v515 = vunpack.c.l.b16 %v476
        %v516 = vunpack.c.l.b16 %v477
        %v517 = vunpack.c.l.b16 %v478
        %v518 = vunpack.c.l.b16 %v479
        %v519 = vunpack.c.l.b16 %v480
        %v520 = vunpack.c.l.b16 %v481
        %v521 = vunpack.c.l.b16 %v482
        %v522 = vunpack.c.l.b16 %v483
        %v523 = vunpack.c.l.b16 %v484
        %v524 = vunpack.c.l.b16 %v485
        %v525 = vunpack.c.l.b16 %v486
        %v526 = vpack.c.b16 %v511, %v510
        %v527 = vpack.c.b16 %v513, %v512
        %v528 = vpack.c.b16 %v515, %v514
        %v529 = vpack.c.b16 %v517, %v516
        %v530 = vpack.c.b16 %v519, %v518
        %v531 = vpack.c.b16 %v521, %v520
        %v532 = vpack.c.b16 %v523, %v522
        %v533 = vpack.c.b16 %v525, %v524
        %542 = vmatprep.subr.bf16.mxu0 0
        %543 = vmatpush1.bf16.msra.mxu0 %v533
        %544 = vmatprep.subr.bf16.mxu0 0
        %545 = vmatpush1.bf16.msra.mxu0 %v532
        %546 = vmatprep.subr.bf16.mxu0 0
        %547 = vmatpush1.bf16.msra.mxu0 %v531
        %548 = vmatprep.subr.bf16.mxu0 0
        %549 = vmatpush1.bf16.msra.mxu0 %v530
        %550 = vmatprep.subr.bf16.mxu0 0
        %551 = vmatpush1.bf16.msra.mxu0 %v529
        %552 = vmatprep.subr.bf16.mxu0 0
        %553 = vmatpush1.bf16.msra.mxu0 %v528
        %554 = vmatprep.subr.bf16.mxu0 0
        %555 = vmatpush1.bf16.msra.mxu0 %v527
        %556 = vmatprep.subr.bf16.mxu0 0
        %557 = vmatpush1.bf16.msra.mxu0 %v526
        %558 = vmatprep.subr.bf16.mxu0 0
        %559 = vmatpush2.bf16.msra.mxu0 0
        %560 = vmatprep.subr.bf16.mxu0 0
        %561 = vmatpush2.bf16.msra.mxu0 0
        %562 = vmatprep.subr.bf16.mxu0 0
        %563 = vmatpush2.bf16.msra.mxu0 0
        %564 = vmatprep.subr.bf16.mxu0 0
        %565 = vmatpush2.bf16.msra.mxu0 0
        %566 = vmatprep.subr.bf16.mxu0 0
        %567 = vmatpush2.bf16.msra.mxu0 0
        %568 = vmatprep.subr.bf16.mxu0 0
        %569 = vmatpush2.bf16.msra.mxu0 0
        %570 = vmatprep.subr.bf16.mxu0 0
        %571 = vmatpush2.bf16.msra.mxu0 0
        %572 = vmatprep.subr.bf16.mxu0 0
        %573 = vmatpush2.bf16.msra.mxu0 0
        %574 = vmatprep.mubr.bf16.mxu0 0
        %575 = vmatmul.mubr.bf16.gmra.mxu0 %v492
        %v576 = vpop.f32.mrf.mxu0
        %v577 = vadd.f32 0.0, %v576
        %v578 = vpop.f32.mrf.mxu0
        %v579 = vpop.f32.mrf.mxu0
        %v580 = vadd.f32 0.0, %v579
        %v581 = vpop.f32.mrf.mxu0
        %582 = vdwg.mxu0
        %v583 = vadd.f32 %v468, %v577
        %v584 = vadd.f32 %v469, %v580
        %s585 = scalar_lea.vmem [#allocation2], 192
        %v586 = vld [vmem:[%s585] sm:$0xf]
        %v587 = vld [vmem:[%s585 + $0x4] sm:$0xf]
        %v588 = vld [vmem:[%s585 + $0x8] sm:$0xf]
        %v589 = vld [vmem:[%s585 + $0xc] sm:$0xf]
        %v590 = vld [vmem:[%s585 + $0x10] sm:$0xf]
        %v591 = vld [vmem:[%s585 + $0x14] sm:$0xf]
        %v592 = vld [vmem:[%s585 + $0x18] sm:$0xf]
        %v593 = vld [vmem:[%s585 + $0x1c] sm:$0xf]
        %v594 = vld [vmem:[%s585 + $0x20] sm:$0xf]
        %v595 = vld [vmem:[%s585 + $0x24] sm:$0xf]
        %v596 = vld [vmem:[%s585 + $0x28] sm:$0xf]
        %v597 = vld [vmem:[%s585 + $0x2c] sm:$0xf]
        %v598 = vld [vmem:[%s585 + $0x30] sm:$0xf]
        %v599 = vld [vmem:[%s585 + $0x34] sm:$0xf]
        %v600 = vld [vmem:[%s585 + $0x38] sm:$0xf]
        %v601 = vld [vmem:[%s585 + $0x3c] sm:$0xf]
        %vm602 = vsmask.f32 6400
        %v603 = vrot.slane %v367, 1
        %v604 = vrot.slane %v369, 2
        %v605 = vor.u32 %v603, %v604
        %v606 = vshrl.u32 %v233, 16
        %v608 = vrot.slane %v606, 1
        %v609 = vrot.slane %v374, 2
        %v610 = vor.u32 %v608, %v609
        %v611 = vsel %vm602, %v605, %v610
        %v629 = vunpack.c.l.b16 %v586
        %v630 = vunpack.c.l.b16 %v587
        %v631 = vunpack.c.l.b16 %v588
        %v632 = vunpack.c.l.b16 %v589
        %v633 = vunpack.c.l.b16 %v590
        %v634 = vunpack.c.l.b16 %v591
        %v635 = vunpack.c.l.b16 %v592
        %v636 = vunpack.c.l.b16 %v593
        %v637 = vunpack.c.l.b16 %v594
        %v638 = vunpack.c.l.b16 %v595
        %v639 = vunpack.c.l.b16 %v596
        %v640 = vunpack.c.l.b16 %v597
        %v641 = vunpack.c.l.b16 %v598
        %v642 = vunpack.c.l.b16 %v599
        %v643 = vunpack.c.l.b16 %v600
        %v644 = vunpack.c.l.b16 %v601
        %v645 = vpack.c.b16 %v630, %v629
        %v646 = vpack.c.b16 %v632, %v631
        %v647 = vpack.c.b16 %v634, %v633
        %v648 = vpack.c.b16 %v636, %v635
        %v649 = vpack.c.b16 %v638, %v637
        %v650 = vpack.c.b16 %v640, %v639
        %v651 = vpack.c.b16 %v642, %v641
        %v652 = vpack.c.b16 %v644, %v643
        %661 = vmatprep.subr.bf16.mxu0 0
        %662 = vmatpush1.bf16.msra.mxu0 %v652
        %663 = vmatprep.subr.bf16.mxu0 0
        %664 = vmatpush1.bf16.msra.mxu0 %v651
        %665 = vmatprep.subr.bf16.mxu0 0
        %666 = vmatpush1.bf16.msra.mxu0 %v650
        %667 = vmatprep.subr.bf16.mxu0 0
        %668 = vmatpush1.bf16.msra.mxu0 %v649
        %669 = vmatprep.subr.bf16.mxu0 0
        %670 = vmatpush1.bf16.msra.mxu0 %v648
        %671 = vmatprep.subr.bf16.mxu0 0
        %672 = vmatpush1.bf16.msra.mxu0 %v647
        %673 = vmatprep.subr.bf16.mxu0 0
        %674 = vmatpush1.bf16.msra.mxu0 %v646
        %675 = vmatprep.subr.bf16.mxu0 0
        %676 = vmatpush1.bf16.msra.mxu0 %v645
        %677 = vmatprep.subr.bf16.mxu0 0
        %678 = vmatpush2.bf16.msra.mxu0 0
        %679 = vmatprep.subr.bf16.mxu0 0
        %680 = vmatpush2.bf16.msra.mxu0 0
        %681 = vmatprep.subr.bf16.mxu0 0
        %682 = vmatpush2.bf16.msra.mxu0 0
        %683 = vmatprep.subr.bf16.mxu0 0
        %684 = vmatpush2.bf16.msra.mxu0 0
        %685 = vmatprep.subr.bf16.mxu0 0
        %686 = vmatpush2.bf16.msra.mxu0 0
        %687 = vmatprep.subr.bf16.mxu0 0
        %688 = vmatpush2.bf16.msra.mxu0 0
        %689 = vmatprep.subr.bf16.mxu0 0
        %690 = vmatpush2.bf16.msra.mxu0 0
        %691 = vmatprep.subr.bf16.mxu0 0
        %692 = vmatpush2.bf16.msra.mxu0 0
        %693 = vmatprep.mubr.bf16.mxu0 0
        %694 = vmatmul.mubr.bf16.gmra.mxu0 %v611
        %v695 = vpop.f32.mrf.mxu0
        %v696 = vadd.f32 0.0, %v695
        %v697 = vpop.f32.mrf.mxu0
        %v698 = vpop.f32.mrf.mxu0
        %v699 = vadd.f32 0.0, %v698
        %v700 = vpop.f32.mrf.mxu0
        %701 = vdwg.mxu0
        %v702 = vadd.f32 %v583, %v696
        %v703 = vadd.f32 %v584, %v699
        %s704 = scalar_lea.vmem [#allocation2], 256
        %v705 = vld [vmem:[%s704] sm:$0xf]
        %v706 = vld [vmem:[%s704 + $0x4] sm:$0xf]
        %v707 = vld [vmem:[%s704 + $0x8] sm:$0xf]
        %v708 = vld [vmem:[%s704 + $0xc] sm:$0xf]
        %v709 = vld [vmem:[%s704 + $0x10] sm:$0xf]
        %v710 = vld [vmem:[%s704 + $0x14] sm:$0xf]
        %v711 = vld [vmem:[%s704 + $0x18] sm:$0xf]
        %v712 = vld [vmem:[%s704 + $0x1c] sm:$0xf]
        %v713 = vld [vmem:[%s704 + $0x20] sm:$0xf]
        %v714 = vld [vmem:[%s704 + $0x24] sm:$0xf]
        %v715 = vld [vmem:[%s704 + $0x28] sm:$0xf]
        %v716 = vld [vmem:[%s704 + $0x2c] sm:$0xf]
        %v717 = vld [vmem:[%s704 + $0x30] sm:$0xf]
        %v718 = vld [vmem:[%s704 + $0x34] sm:$0xf]
        %v719 = vld [vmem:[%s704 + $0x38] sm:$0xf]
        %v720 = vld [vmem:[%s704 + $0x3c] sm:$0xf]
        %vm721 = vcmask 1045504
        %v722 = vrot.slane %v232, 2
        %v723 = vrot.slane %v233, 2
        %v724 = vsel %vm721, %v722, %v723
        %v742 = vunpack.c.l.b16 %v705
        %v743 = vunpack.c.l.b16 %v706
        %v744 = vunpack.c.l.b16 %v707
        %v745 = vunpack.c.l.b16 %v708
        %v746 = vunpack.c.l.b16 %v709
        %v747 = vunpack.c.l.b16 %v710
        %v748 = vunpack.c.l.b16 %v711
        %v749 = vunpack.c.l.b16 %v712
        %v750 = vunpack.c.l.b16 %v713
        %v751 = vunpack.c.l.b16 %v714
        %v752 = vunpack.c.l.b16 %v715
        %v753 = vunpack.c.l.b16 %v716
        %v754 = vunpack.c.l.b16 %v717
        %v755 = vunpack.c.l.b16 %v718
        %v756 = vunpack.c.l.b16 %v719
        %v757 = vunpack.c.l.b16 %v720
        %v758 = vpack.c.b16 %v743, %v742
        %v759 = vpack.c.b16 %v745, %v744
        %v760 = vpack.c.b16 %v747, %v746
        %v761 = vpack.c.b16 %v749, %v748
        %v762 = vpack.c.b16 %v751, %v750
        %v763 = vpack.c.b16 %v753, %v752
        %v764 = vpack.c.b16 %v755, %v754
        %v765 = vpack.c.b16 %v757, %v756
        %774 = vmatprep.subr.bf16.mxu0 0
        %775 = vmatpush1.bf16.msra.mxu0 %v765
        %776 = vmatprep.subr.bf16.mxu0 0
        %777 = vmatpush1.bf16.msra.mxu0 %v764
        %778 = vmatprep.subr.bf16.mxu0 0
        %779 = vmatpush1.bf16.msra.mxu0 %v763
        %780 = vmatprep.subr.bf16.mxu0 0
        %781 = vmatpush1.bf16.msra.mxu0 %v762
        %782 = vmatprep.subr.bf16.mxu0 0
        %783 = vmatpush1.bf16.msra.mxu0 %v761
        %784 = vmatprep.subr.bf16.mxu0 0
        %785 = vmatpush1.bf16.msra.mxu0 %v760
        %786 = vmatprep.subr.bf16.mxu0 0
        %787 = vmatpush1.bf16.msra.mxu0 %v759
        %788 = vmatprep.subr.bf16.mxu0 0
        %789 = vmatpush1.bf16.msra.mxu0 %v758
        %790 = vmatprep.subr.bf16.mxu0 0
        %791 = vmatpush2.bf16.msra.mxu0 0
        %792 = vmatprep.subr.bf16.mxu0 0
        %793 = vmatpush2.bf16.msra.mxu0 0
        %794 = vmatprep.subr.bf16.mxu0 0
        %795 = vmatpush2.bf16.msra.mxu0 0
        %796 = vmatprep.subr.bf16.mxu0 0
        %797 = vmatpush2.bf16.msra.mxu0 0
        %798 = vmatprep.subr.bf16.mxu0 0
        %799 = vmatpush2.bf16.msra.mxu0 0
        %800 = vmatprep.subr.bf16.mxu0 0
        %801 = vmatpush2.bf16.msra.mxu0 0
        %802 = vmatprep.subr.bf16.mxu0 0
        %803 = vmatpush2.bf16.msra.mxu0 0
        %804 = vmatprep.subr.bf16.mxu0 0
        %805 = vmatpush2.bf16.msra.mxu0 0
        %806 = vmatprep.mubr.bf16.mxu0 0
        %807 = vmatmul.mubr.bf16.gmra.mxu0 %v724
        %v808 = vpop.f32.mrf.mxu0
        %v809 = vadd.f32 0.0, %v808
        %v810 = vpop.f32.mrf.mxu0
        %v811 = vpop.f32.mrf.mxu0
        %v812 = vadd.f32 0.0, %v811
        %v813 = vpop.f32.mrf.mxu0
        %814 = vdwg.mxu0
        %v815 = vadd.f32 %v702, %v809
        %v816 = vadd.f32 %v703, %v812
        %s817 = scalar_lea.vmem [#allocation2], 320
        %v818 = vld [vmem:[%s817] sm:$0xf]
        %v819 = vld [vmem:[%s817 + $0x4] sm:$0xf]
        %v820 = vld [vmem:[%s817 + $0x8] sm:$0xf]
        %v821 = vld [vmem:[%s817 + $0xc] sm:$0xf]
        %v822 = vld [vmem:[%s817 + $0x10] sm:$0xf]
        %v823 = vld [vmem:[%s817 + $0x14] sm:$0xf]
        %v824 = vld [vmem:[%s817 + $0x18] sm:$0xf]
        %v825 = vld [vmem:[%s817 + $0x1c] sm:$0xf]
        %v826 = vld [vmem:[%s817 + $0x20] sm:$0xf]
        %v827 = vld [vmem:[%s817 + $0x24] sm:$0xf]
        %v828 = vld [vmem:[%s817 + $0x28] sm:$0xf]
        %v829 = vld [vmem:[%s817 + $0x2c] sm:$0xf]
        %v830 = vld [vmem:[%s817 + $0x30] sm:$0xf]
        %v831 = vld [vmem:[%s817 + $0x34] sm:$0xf]
        %v832 = vld [vmem:[%s817 + $0x38] sm:$0xf]
        %v833 = vld [vmem:[%s817 + $0x3c] sm:$0xf]
        %vm834 = vsmask.f32 5376
        %v835 = vrot.slane %v367, 2
        %v836 = vrot.slane %v369, 3
        %v837 = vor.u32 %v835, %v836
        %v838 = vrot.slane %v606, 2
        %v839 = vrot.slane %v374, 3
        %v840 = vor.u32 %v838, %v839
        %v841 = vsel %vm834, %v837, %v840
        %v859 = vunpack.c.l.b16 %v818
        %v860 = vunpack.c.l.b16 %v819
        %v861 = vunpack.c.l.b16 %v820
        %v862 = vunpack.c.l.b16 %v821
        %v863 = vunpack.c.l.b16 %v822
        %v864 = vunpack.c.l.b16 %v823
        %v865 = vunpack.c.l.b16 %v824
        %v866 = vunpack.c.l.b16 %v825
        %v867 = vunpack.c.l.b16 %v826
        %v868 = vunpack.c.l.b16 %v827
        %v869 = vunpack.c.l.b16 %v828
        %v870 = vunpack.c.l.b16 %v829
        %v871 = vunpack.c.l.b16 %v830
        %v872 = vunpack.c.l.b16 %v831
        %v873 = vunpack.c.l.b16 %v832
        %v874 = vunpack.c.l.b16 %v833
        %v875 = vpack.c.b16 %v860, %v859
        %v876 = vpack.c.b16 %v862, %v861
        %v877 = vpack.c.b16 %v864, %v863
        %v878 = vpack.c.b16 %v866, %v865
        %v879 = vpack.c.b16 %v868, %v867
        %v880 = vpack.c.b16 %v870, %v869
        %v881 = vpack.c.b16 %v872, %v871
        %v882 = vpack.c.b16 %v874, %v873
        %891 = vmatprep.subr.bf16.mxu0 0
        %892 = vmatpush1.bf16.msra.mxu0 %v882
        %893 = vmatprep.subr.bf16.mxu0 0
        %894 = vmatpush1.bf16.msra.mxu0 %v881
        %895 = vmatprep.subr.bf16.mxu0 0
        %896 = vmatpush1.bf16.msra.mxu0 %v880
        %897 = vmatprep.subr.bf16.mxu0 0
        %898 = vmatpush1.bf16.msra.mxu0 %v879
        %899 = vmatprep.subr.bf16.mxu0 0
        %900 = vmatpush1.bf16.msra.mxu0 %v878
        %901 = vmatprep.subr.bf16.mxu0 0
        %902 = vmatpush1.bf16.msra.mxu0 %v877
        %903 = vmatprep.subr.bf16.mxu0 0
        %904 = vmatpush1.bf16.msra.mxu0 %v876
        %905 = vmatprep.subr.bf16.mxu0 0
        %906 = vmatpush1.bf16.msra.mxu0 %v875
        %907 = vmatprep.subr.bf16.mxu0 0
        %908 = vmatpush2.bf16.msra.mxu0 0
        %909 = vmatprep.subr.bf16.mxu0 0
        %910 = vmatpush2.bf16.msra.mxu0 0
        %911 = vmatprep.subr.bf16.mxu0 0
        %912 = vmatpush2.bf16.msra.mxu0 0
        %913 = vmatprep.subr.bf16.mxu0 0
        %914 = vmatpush2.bf16.msra.mxu0 0
        %915 = vmatprep.subr.bf16.mxu0 0
        %916 = vmatpush2.bf16.msra.mxu0 0
        %917 = vmatprep.subr.bf16.mxu0 0
        %918 = vmatpush2.bf16.msra.mxu0 0
        %919 = vmatprep.subr.bf16.mxu0 0
        %920 = vmatpush2.bf16.msra.mxu0 0
        %921 = vmatprep.subr.bf16.mxu0 0
        %922 = vmatpush2.bf16.msra.mxu0 0
        %923 = vmatprep.mubr.bf16.mxu0 0
        %924 = vmatmul.mubr.bf16.gmra.mxu0 %v841
        %v925 = vpop.f32.mrf.mxu0
        %v926 = vadd.f32 0.0, %v925
        %v927 = vpop.f32.mrf.mxu0
        %v928 = vpop.f32.mrf.mxu0
        %v929 = vadd.f32 0.0, %v928
        %v930 = vpop.f32.mrf.mxu0
        %931 = vdwg.mxu0
        %v932 = vadd.f32 %v815, %v926
        %v933 = vadd.f32 %v816, %v929
        %s934 = scalar_lea.vmem [#allocation2], 384
        %v935 = vld [vmem:[%s934] sm:$0xf]
        %v936 = vld [vmem:[%s934 + $0x4] sm:$0xf]
        %v937 = vld [vmem:[%s934 + $0x8] sm:$0xf]
        %v938 = vld [vmem:[%s934 + $0xc] sm:$0xf]
        %v939 = vld [vmem:[%s934 + $0x10] sm:$0xf]
        %v940 = vld [vmem:[%s934 + $0x14] sm:$0xf]
        %v941 = vld [vmem:[%s934 + $0x18] sm:$0xf]
        %v942 = vld [vmem:[%s934 + $0x1c] sm:$0xf]
        %v943 = vld [vmem:[%s934 + $0x20] sm:$0xf]
        %v944 = vld [vmem:[%s934 + $0x24] sm:$0xf]
        %v945 = vld [vmem:[%s934 + $0x28] sm:$0xf]
        %v946 = vld [vmem:[%s934 + $0x2c] sm:$0xf]
        %v947 = vld [vmem:[%s934 + $0x30] sm:$0xf]
        %v948 = vld [vmem:[%s934 + $0x34] sm:$0xf]
        %v949 = vld [vmem:[%s934 + $0x38] sm:$0xf]
        %v950 = vld [vmem:[%s934 + $0x3c] sm:$0xf]
        %vm951 = vcmask 1044480
        %v952 = vrot.slane %v232, 3
        %v953 = vrot.slane %v233, 3
        %v954 = vsel %vm951, %v952, %v953
        %v972 = vunpack.c.l.b16 %v935
        %v973 = vunpack.c.l.b16 %v936
        %v974 = vunpack.c.l.b16 %v937
        %v975 = vunpack.c.l.b16 %v938
        %v976 = vunpack.c.l.b16 %v939
        %v977 = vunpack.c.l.b16 %v940
        %v978 = vunpack.c.l.b16 %v941
        %v979 = vunpack.c.l.b16 %v942
        %v980 = vunpack.c.l.b16 %v943
        %v981 = vunpack.c.l.b16 %v944
        %v982 = vunpack.c.l.b16 %v945
        %v983 = vunpack.c.l.b16 %v946
        %v984 = vunpack.c.l.b16 %v947
        %v985 = vunpack.c.l.b16 %v948
        %v986 = vunpack.c.l.b16 %v949
        %v987 = vunpack.c.l.b16 %v950
        %v988 = vpack.c.b16 %v973, %v972
        %v989 = vpack.c.b16 %v975, %v974
        %v990 = vpack.c.b16 %v977, %v976
        %v991 = vpack.c.b16 %v979, %v978
        %v992 = vpack.c.b16 %v981, %v980
        %v993 = vpack.c.b16 %v983, %v982
        %v994 = vpack.c.b16 %v985, %v984
        %v995 = vpack.c.b16 %v987, %v986
        %1004 = vmatprep.subr.bf16.mxu0 0
        %1005 = vmatpush1.bf16.msra.mxu0 %v995
        %1006 = vmatprep.subr.bf16.mxu0 0
        %1007 = vmatpush1.bf16.msra.mxu0 %v994
        %1008 = vmatprep.subr.bf16.mxu0 0
        %1009 = vmatpush1.bf16.msra.mxu0 %v993
        %1010 = vmatprep.subr.bf16.mxu0 0
        %1011 = vmatpush1.bf16.msra.mxu0 %v992
        %1012 = vmatprep.subr.bf16.mxu0 0
        %1013 = vmatpush1.bf16.msra.mxu0 %v991
        %1014 = vmatprep.subr.bf16.mxu0 0
        %1015 = vmatpush1.bf16.msra.mxu0 %v990
        %1016 = vmatprep.subr.bf16.mxu0 0
        %1017 = vmatpush1.bf16.msra.mxu0 %v989
        %1018 = vmatprep.subr.bf16.mxu0 0
        %1019 = vmatpush1.bf16.msra.mxu0 %v988
        %1020 = vmatprep.subr.bf16.mxu0 0
        %1021 = vmatpush2.bf16.msra.mxu0 0
        %1022 = vmatprep.subr.bf16.mxu0 0
        %1023 = vmatpush2.bf16.msra.mxu0 0
        %1024 = vmatprep.subr.bf16.mxu0 0
        %1025 = vmatpush2.bf16.msra.mxu0 0
        %1026 = vmatprep.subr.bf16.mxu0 0
        %1027 = vmatpush2.bf16.msra.mxu0 0
        %1028 = vmatprep.subr.bf16.mxu0 0
        %1029 = vmatpush2.bf16.msra.mxu0 0
        %1030 = vmatprep.subr.bf16.mxu0 0
        %1031 = vmatpush2.bf16.msra.mxu0 0
        %1032 = vmatprep.subr.bf16.mxu0 0
        %1033 = vmatpush2.bf16.msra.mxu0 0
        %1034 = vmatprep.subr.bf16.mxu0 0
        %1035 = vmatpush2.bf16.msra.mxu0 0
        %1036 = vmatprep.mubr.bf16.mxu0 0
        %1037 = vmatmul.mubr.bf16.gmra.mxu0 %v954
        %v1038 = vpop.f32.mrf.mxu0
        %v1039 = vadd.f32 0.0, %v1038
        %v1040 = vpop.f32.mrf.mxu0
        %v1041 = vpop.f32.mrf.mxu0
        %v1042 = vadd.f32 0.0, %v1041
        %v1043 = vpop.f32.mrf.mxu0
        %1044 = vdwg.mxu0
        %v1045 = vadd.f32 %v932, %v1039
        %v1046 = vadd.f32 %v933, %v1042
        %s1047 = scalar_lea.vmem [#allocation2], 448
        %v1048 = vld [vmem:[%s1047] sm:$0xf]
        %v1049 = vld [vmem:[%s1047 + $0x4] sm:$0xf]
        %v1050 = vld [vmem:[%s1047 + $0x8] sm:$0xf]
        %v1051 = vld [vmem:[%s1047 + $0xc] sm:$0xf]
        %v1052 = vld [vmem:[%s1047 + $0x10] sm:$0xf]
        %v1053 = vld [vmem:[%s1047 + $0x14] sm:$0xf]
        %v1054 = vld [vmem:[%s1047 + $0x18] sm:$0xf]
        %v1055 = vld [vmem:[%s1047 + $0x1c] sm:$0xf]
        %v1056 = vld [vmem:[%s1047 + $0x20] sm:$0xf]
        %v1057 = vld [vmem:[%s1047 + $0x24] sm:$0xf]
        %v1058 = vld [vmem:[%s1047 + $0x28] sm:$0xf]
        %v1059 = vld [vmem:[%s1047 + $0x2c] sm:$0xf]
        %v1060 = vld [vmem:[%s1047 + $0x30] sm:$0xf]
        %v1061 = vld [vmem:[%s1047 + $0x34] sm:$0xf]
        %v1062 = vld [vmem:[%s1047 + $0x38] sm:$0xf]
        %v1063 = vld [vmem:[%s1047 + $0x3c] sm:$0xf]
        %vm1064 = vsmask.f32 4352
        %v1065 = vrot.slane %v367, 3
        %v1066 = vrot.slane %v369, 4
        %v1067 = vor.u32 %v1065, %v1066
        %v1068 = vrot.slane %v606, 3
        %v1069 = vrot.slane %v374, 4
        %v1070 = vor.u32 %v1068, %v1069
        %v1071 = vsel %vm1064, %v1067, %v1070
        %v1089 = vunpack.c.l.b16 %v1048
        %v1090 = vunpack.c.l.b16 %v1049
        %v1091 = vunpack.c.l.b16 %v1050
        %v1092 = vunpack.c.l.b16 %v1051
        %v1093 = vunpack.c.l.b16 %v1052
        %v1094 = vunpack.c.l.b16 %v1053
        %v1095 = vunpack.c.l.b16 %v1054
        %v1096 = vunpack.c.l.b16 %v1055
        %v1097 = vunpack.c.l.b16 %v1056
        %v1098 = vunpack.c.l.b16 %v1057
        %v1099 = vunpack.c.l.b16 %v1058
        %v1100 = vunpack.c.l.b16 %v1059
        %v1101 = vunpack.c.l.b16 %v1060
        %v1102 = vunpack.c.l.b16 %v1061
        %v1103 = vunpack.c.l.b16 %v1062
        %v1104 = vunpack.c.l.b16 %v1063
        %v1105 = vpack.c.b16 %v1090, %v1089
        %v1106 = vpack.c.b16 %v1092, %v1091
        %v1107 = vpack.c.b16 %v1094, %v1093
        %v1108 = vpack.c.b16 %v1096, %v1095
        %v1109 = vpack.c.b16 %v1098, %v1097
        %v1110 = vpack.c.b16 %v1100, %v1099
        %v1111 = vpack.c.b16 %v1102, %v1101
        %v1112 = vpack.c.b16 %v1104, %v1103
        %1121 = vmatprep.subr.bf16.mxu0 0
        %1122 = vmatpush1.bf16.msra.mxu0 %v1112
        %1123 = vmatprep.subr.bf16.mxu0 0
        %1124 = vmatpush1.bf16.msra.mxu0 %v1111
        %1125 = vmatprep.subr.bf16.mxu0 0
        %1126 = vmatpush1.bf16.msra.mxu0 %v1110
        %1127 = vmatprep.subr.bf16.mxu0 0
        %1128 = vmatpush1.bf16.msra.mxu0 %v1109
        %1129 = vmatprep.subr.bf16.mxu0 0
        %1130 = vmatpush1.bf16.msra.mxu0 %v1108
        %1131 = vmatprep.subr.bf16.mxu0 0
        %1132 = vmatpush1.bf16.msra.mxu0 %v1107
        %1133 = vmatprep.subr.bf16.mxu0 0
        %1134 = vmatpush1.bf16.msra.mxu0 %v1106
        %1135 = vmatprep.subr.bf16.mxu0 0
        %1136 = vmatpush1.bf16.msra.mxu0 %v1105
        %1137 = vmatprep.subr.bf16.mxu0 0
        %1138 = vmatpush2.bf16.msra.mxu0 0
        %1139 = vmatprep.subr.bf16.mxu0 0
        %1140 = vmatpush2.bf16.msra.mxu0 0
        %1141 = vmatprep.subr.bf16.mxu0 0
        %1142 = vmatpush2.bf16.msra.mxu0 0
        %1143 = vmatprep.subr.bf16.mxu0 0
        %1144 = vmatpush2.bf16.msra.mxu0 0
        %1145 = vmatprep.subr.bf16.mxu0 0
        %1146 = vmatpush2.bf16.msra.mxu0 0
        %1147 = vmatprep.subr.bf16.mxu0 0
        %1148 = vmatpush2.bf16.msra.mxu0 0
        %1149 = vmatprep.subr.bf16.mxu0 0
        %1150 = vmatpush2.bf16.msra.mxu0 0
        %1151 = vmatprep.subr.bf16.mxu0 0
        %1152 = vmatpush2.bf16.msra.mxu0 0
        %1153 = vmatprep.mubr.bf16.mxu0 0
        %1154 = vmatmul.mubr.bf16.gmra.mxu0 %v1071
        %v1155 = vpop.f32.mrf.mxu0
        %v1156 = vadd.f32 0.0, %v1155
        %v1157 = vpop.f32.mrf.mxu0
        %v1158 = vpop.f32.mrf.mxu0
        %v1159 = vadd.f32 0.0, %v1158
        %v1160 = vpop.f32.mrf.mxu0
        %1161 = vdwg.mxu0
        %v1162 = vadd.f32 %v1045, %v1156
        %v1163 = vadd.f32 %v1046, %v1159
        %s1164 = scalar_lea.vmem [#allocation2], 512
        %v1165 = vld [vmem:[%s1164] sm:$0xf]
        %v1166 = vld [vmem:[%s1164 + $0x4] sm:$0xf]
        %v1167 = vld [vmem:[%s1164 + $0x8] sm:$0xf]
        %v1168 = vld [vmem:[%s1164 + $0xc] sm:$0xf]
        %v1169 = vld [vmem:[%s1164 + $0x10] sm:$0xf]
        %v1170 = vld [vmem:[%s1164 + $0x14] sm:$0xf]
        %v1171 = vld [vmem:[%s1164 + $0x18] sm:$0xf]
        %v1172 = vld [vmem:[%s1164 + $0x1c] sm:$0xf]
        %v1173 = vld [vmem:[%s1164 + $0x20] sm:$0xf]
        %v1174 = vld [vmem:[%s1164 + $0x24] sm:$0xf]
        %v1175 = vld [vmem:[%s1164 + $0x28] sm:$0xf]
        %v1176 = vld [vmem:[%s1164 + $0x2c] sm:$0xf]
        %v1177 = vld [vmem:[%s1164 + $0x30] sm:$0xf]
        %v1178 = vld [vmem:[%s1164 + $0x34] sm:$0xf]
        %v1179 = vld [vmem:[%s1164 + $0x38] sm:$0xf]
        %v1180 = vld [vmem:[%s1164 + $0x3c] sm:$0xf]
        %vm1181 = vcmask 1043456
        %v1182 = vrot.slane %v232, 4
        %v1183 = vrot.slane %v233, 4
        %v1184 = vsel %vm1181, %v1182, %v1183
        %v1202 = vunpack.c.l.b16 %v1165
        %v1203 = vunpack.c.l.b16 %v1166
        %v1204 = vunpack.c.l.b16 %v1167
        %v1205 = vunpack.c.l.b16 %v1168
        %v1206 = vunpack.c.l.b16 %v1169
        %v1207 = vunpack.c.l.b16 %v1170
        %v1208 = vunpack.c.l.b16 %v1171
        %v1209 = vunpack.c.l.b16 %v1172
        %v1210 = vunpack.c.l.b16 %v1173
        %v1211 = vunpack.c.l.b16 %v1174
        %v1212 = vunpack.c.l.b16 %v1175
        %v1213 = vunpack.c.l.b16 %v1176
        %v1214 = vunpack.c.l.b16 %v1177
        %v1215 = vunpack.c.l.b16 %v1178
        %v1216 = vunpack.c.l.b16 %v1179
        %v1217 = vunpack.c.l.b16 %v1180
        %v1218 = vpack.c.b16 %v1203, %v1202
        %v1219 = vpack.c.b16 %v1205, %v1204
        %v1220 = vpack.c.b16 %v1207, %v1206
        %v1221 = vpack.c.b16 %v1209, %v1208
        %v1222 = vpack.c.b16 %v1211, %v1210
        %v1223 = vpack.c.b16 %v1213, %v1212
        %v1224 = vpack.c.b16 %v1215, %v1214
        %v1225 = vpack.c.b16 %v1217, %v1216
        %1234 = vmatprep.subr.bf16.mxu0 0
        %1235 = vmatpush1.bf16.msra.mxu0 %v1225
        %1236 = vmatprep.subr.bf16.mxu0 0
        %1237 = vmatpush1.bf16.msra.mxu0 %v1224
        %1238 = vmatprep.subr.bf16.mxu0 0
        %1239 = vmatpush1.bf16.msra.mxu0 %v1223
        %1240 = vmatprep.subr.bf16.mxu0 0
        %1241 = vmatpush1.bf16.msra.mxu0 %v1222
        %1242 = vmatprep.subr.bf16.mxu0 0
        %1243 = vmatpush1.bf16.msra.mxu0 %v1221
        %1244 = vmatprep.subr.bf16.mxu0 0
        %1245 = vmatpush1.bf16.msra.mxu0 %v1220
        %1246 = vmatprep.subr.bf16.mxu0 0
        %1247 = vmatpush1.bf16.msra.mxu0 %v1219
        %1248 = vmatprep.subr.bf16.mxu0 0
        %1249 = vmatpush1.bf16.msra.mxu0 %v1218
        %1250 = vmatprep.subr.bf16.mxu0 0
        %1251 = vmatpush2.bf16.msra.mxu0 0
        %1252 = vmatprep.subr.bf16.mxu0 0
        %1253 = vmatpush2.bf16.msra.mxu0 0
        %1254 = vmatprep.subr.bf16.mxu0 0
        %1255 = vmatpush2.bf16.msra.mxu0 0
        %1256 = vmatprep.subr.bf16.mxu0 0
        %1257 = vmatpush2.bf16.msra.mxu0 0
        %1258 = vmatprep.subr.bf16.mxu0 0
        %1259 = vmatpush2.bf16.msra.mxu0 0
        %1260 = vmatprep.subr.bf16.mxu0 0
        %1261 = vmatpush2.bf16.msra.mxu0 0
        %1262 = vmatprep.subr.bf16.mxu0 0
        %1263 = vmatpush2.bf16.msra.mxu0 0
        %1264 = vmatprep.subr.bf16.mxu0 0
        %1265 = vmatpush2.bf16.msra.mxu0 0
        %1266 = vmatprep.mubr.bf16.mxu0 0
        %1267 = vmatmul.mubr.bf16.gmra.mxu0 %v1184
        %v1268 = vpop.f32.mrf.mxu0
        %v1269 = vadd.f32 0.0, %v1268
        %v1270 = vpop.f32.mrf.mxu0
        %v1271 = vpop.f32.mrf.mxu0
        %v1272 = vadd.f32 0.0, %v1271
        %v1273 = vpop.f32.mrf.mxu0
        %1274 = vdwg.mxu0
        %v1275 = vadd.f32 %v1162, %v1269
        %v1276 = vadd.f32 %v1163, %v1272
        %s1277 = scalar_lea.vmem [#allocation2], 576
        %v1278 = vld [vmem:[%s1277] sm:$0xf]
        %v1279 = vld [vmem:[%s1277 + $0x4] sm:$0xf]
        %v1280 = vld [vmem:[%s1277 + $0x8] sm:$0xf]
        %v1281 = vld [vmem:[%s1277 + $0xc] sm:$0xf]
        %v1282 = vld [vmem:[%s1277 + $0x10] sm:$0xf]
        %v1283 = vld [vmem:[%s1277 + $0x14] sm:$0xf]
        %v1284 = vld [vmem:[%s1277 + $0x18] sm:$0xf]
        %v1285 = vld [vmem:[%s1277 + $0x1c] sm:$0xf]
        %v1286 = vld [vmem:[%s1277 + $0x20] sm:$0xf]
        %v1287 = vld [vmem:[%s1277 + $0x24] sm:$0xf]
        %v1288 = vld [vmem:[%s1277 + $0x28] sm:$0xf]
        %v1289 = vld [vmem:[%s1277 + $0x2c] sm:$0xf]
        %v1290 = vld [vmem:[%s1277 + $0x30] sm:$0xf]
        %v1291 = vld [vmem:[%s1277 + $0x34] sm:$0xf]
        %v1292 = vld [vmem:[%s1277 + $0x38] sm:$0xf]
        %v1293 = vld [vmem:[%s1277 + $0x3c] sm:$0xf]
        %vm1294 = vsmask.f32 3328
        %v1295 = vrot.slane %v367, 4
        %v1296 = vrot.slane %v369, 5
        %v1297 = vor.u32 %v1295, %v1296
        %v1298 = vrot.slane %v606, 4
        %v1299 = vrot.slane %v374, 5
        %v1300 = vor.u32 %v1298, %v1299
        %v1301 = vsel %vm1294, %v1297, %v1300
        %v1319 = vunpack.c.l.b16 %v1278
        %v1320 = vunpack.c.l.b16 %v1279
        %v1321 = vunpack.c.l.b16 %v1280
        %v1322 = vunpack.c.l.b16 %v1281
        %v1323 = vunpack.c.l.b16 %v1282
        %v1324 = vunpack.c.l.b16 %v1283
        %v1325 = vunpack.c.l.b16 %v1284
        %v1326 = vunpack.c.l.b16 %v1285
        %v1327 = vunpack.c.l.b16 %v1286
        %v1328 = vunpack.c.l.b16 %v1287
        %v1329 = vunpack.c.l.b16 %v1288
        %v1330 = vunpack.c.l.b16 %v1289
        %v1331 = vunpack.c.l.b16 %v1290
        %v1332 = vunpack.c.l.b16 %v1291
        %v1333 = vunpack.c.l.b16 %v1292
        %v1334 = vunpack.c.l.b16 %v1293
        %v1335 = vpack.c.b16 %v1320, %v1319
        %v1336 = vpack.c.b16 %v1322, %v1321
        %v1337 = vpack.c.b16 %v1324, %v1323
        %v1338 = vpack.c.b16 %v1326, %v1325
        %v1339 = vpack.c.b16 %v1328, %v1327
        %v1340 = vpack.c.b16 %v1330, %v1329
        %v1341 = vpack.c.b16 %v1332, %v1331
        %v1342 = vpack.c.b16 %v1334, %v1333
        %1351 = vmatprep.subr.bf16.mxu0 0
        %1352 = vmatpush1.bf16.msra.mxu0 %v1342
        %1353 = vmatprep.subr.bf16.mxu0 0
        %1354 = vmatpush1.bf16.msra.mxu0 %v1341
        %1355 = vmatprep.subr.bf16.mxu0 0
        %1356 = vmatpush1.bf16.msra.mxu0 %v1340
        %1357 = vmatprep.subr.bf16.mxu0 0
        %1358 = vmatpush1.bf16.msra.mxu0 %v1339
        %1359 = vmatprep.subr.bf16.mxu0 0
        %1360 = vmatpush1.bf16.msra.mxu0 %v1338
        %1361 = vmatprep.subr.bf16.mxu0 0
        %1362 = vmatpush1.bf16.msra.mxu0 %v1337
        %1363 = vmatprep.subr.bf16.mxu0 0
        %1364 = vmatpush1.bf16.msra.mxu0 %v1336
        %1365 = vmatprep.subr.bf16.mxu0 0
        %1366 = vmatpush1.bf16.msra.mxu0 %v1335
        %1367 = vmatprep.subr.bf16.mxu0 0
        %1368 = vmatpush2.bf16.msra.mxu0 0
        %1369 = vmatprep.subr.bf16.mxu0 0
        %1370 = vmatpush2.bf16.msra.mxu0 0
        %1371 = vmatprep.subr.bf16.mxu0 0
        %1372 = vmatpush2.bf16.msra.mxu0 0
        %1373 = vmatprep.subr.bf16.mxu0 0
        %1374 = vmatpush2.bf16.msra.mxu0 0
        %1375 = vmatprep.subr.bf16.mxu0 0
        %1376 = vmatpush2.bf16.msra.mxu0 0
        %1377 = vmatprep.subr.bf16.mxu0 0
        %1378 = vmatpush2.bf16.msra.mxu0 0
        %1379 = vmatprep.subr.bf16.mxu0 0
        %1380 = vmatpush2.bf16.msra.mxu0 0
        %1381 = vmatprep.subr.bf16.mxu0 0
        %1382 = vmatpush2.bf16.msra.mxu0 0
        %1383 = vmatprep.mubr.bf16.mxu0 0
        %1384 = vmatmul.mubr.bf16.gmra.mxu0 %v1301
        %v1385 = vpop.f32.mrf.mxu0
        %v1386 = vadd.f32 0.0, %v1385
        %v1387 = vpop.f32.mrf.mxu0
        %v1388 = vpop.f32.mrf.mxu0
        %v1389 = vadd.f32 0.0, %v1388
        %v1390 = vpop.f32.mrf.mxu0
        %1391 = vdwg.mxu0
        %v1392 = vadd.f32 %v1275, %v1386
        %v1393 = vadd.f32 %v1276, %v1389
        %s1394 = scalar_lea.vmem [#allocation2], 640
        %v1395 = vld [vmem:[%s1394] sm:$0xf]
        %v1396 = vld [vmem:[%s1394 + $0x4] sm:$0xf]
        %v1397 = vld [vmem:[%s1394 + $0x8] sm:$0xf]
        %v1398 = vld [vmem:[%s1394 + $0xc] sm:$0xf]
        %v1399 = vld [vmem:[%s1394 + $0x10] sm:$0xf]
        %v1400 = vld [vmem:[%s1394 + $0x14] sm:$0xf]
        %v1401 = vld [vmem:[%s1394 + $0x18] sm:$0xf]
        %v1402 = vld [vmem:[%s1394 + $0x1c] sm:$0xf]
        %v1403 = vld [vmem:[%s1394 + $0x20] sm:$0xf]
        %v1404 = vld [vmem:[%s1394 + $0x24] sm:$0xf]
        %v1405 = vld [vmem:[%s1394 + $0x28] sm:$0xf]
        %v1406 = vld [vmem:[%s1394 + $0x2c] sm:$0xf]
        %v1407 = vld [vmem:[%s1394 + $0x30] sm:$0xf]
        %v1408 = vld [vmem:[%s1394 + $0x34] sm:$0xf]
        %v1409 = vld [vmem:[%s1394 + $0x38] sm:$0xf]
        %v1410 = vld [vmem:[%s1394 + $0x3c] sm:$0xf]
        %vm1411 = vcmask 1042432
        %v1412 = vrot.slane %v232, 5
        %v1413 = vrot.slane %v233, 5
        %v1414 = vsel %vm1411, %v1412, %v1413
        %v1432 = vunpack.c.l.b16 %v1395
        %v1433 = vunpack.c.l.b16 %v1396
        %v1434 = vunpack.c.l.b16 %v1397
        %v1435 = vunpack.c.l.b16 %v1398
        %v1436 = vunpack.c.l.b16 %v1399
        %v1437 = vunpack.c.l.b16 %v1400
        %v1438 = vunpack.c.l.b16 %v1401
        %v1439 = vunpack.c.l.b16 %v1402
        %v1440 = vunpack.c.l.b16 %v1403
        %v1441 = vunpack.c.l.b16 %v1404
        %v1442 = vunpack.c.l.b16 %v1405
        %v1443 = vunpack.c.l.b16 %v1406
        %v1444 = vunpack.c.l.b16 %v1407
        %v1445 = vunpack.c.l.b16 %v1408
        %v1446 = vunpack.c.l.b16 %v1409
        %v1447 = vunpack.c.l.b16 %v1410
        %v1448 = vpack.c.b16 %v1433, %v1432
        %v1449 = vpack.c.b16 %v1435, %v1434
        %v1450 = vpack.c.b16 %v1437, %v1436
        %v1451 = vpack.c.b16 %v1439, %v1438
        %v1452 = vpack.c.b16 %v1441, %v1440
        %v1453 = vpack.c.b16 %v1443, %v1442
        %v1454 = vpack.c.b16 %v1445, %v1444
        %v1455 = vpack.c.b16 %v1447, %v1446
        %1464 = vmatprep.subr.bf16.mxu0 0
        %1465 = vmatpush1.bf16.msra.mxu0 %v1455
        %1466 = vmatprep.subr.bf16.mxu0 0
        %1467 = vmatpush1.bf16.msra.mxu0 %v1454
        %1468 = vmatprep.subr.bf16.mxu0 0
        %1469 = vmatpush1.bf16.msra.mxu0 %v1453
        %1470 = vmatprep.subr.bf16.mxu0 0
        %1471 = vmatpush1.bf16.msra.mxu0 %v1452
        %1472 = vmatprep.subr.bf16.mxu0 0
        %1473 = vmatpush1.bf16.msra.mxu0 %v1451
        %1474 = vmatprep.subr.bf16.mxu0 0
        %1475 = vmatpush1.bf16.msra.mxu0 %v1450
        %1476 = vmatprep.subr.bf16.mxu0 0
        %1477 = vmatpush1.bf16.msra.mxu0 %v1449
        %1478 = vmatprep.subr.bf16.mxu0 0
        %1479 = vmatpush1.bf16.msra.mxu0 %v1448
        %1480 = vmatprep.subr.bf16.mxu0 0
        %1481 = vmatpush2.bf16.msra.mxu0 0
        %1482 = vmatprep.subr.bf16.mxu0 0
        %1483 = vmatpush2.bf16.msra.mxu0 0
        %1484 = vmatprep.subr.bf16.mxu0 0
        %1485 = vmatpush2.bf16.msra.mxu0 0
        %1486 = vmatprep.subr.bf16.mxu0 0
        %1487 = vmatpush2.bf16.msra.mxu0 0
        %1488 = vmatprep.subr.bf16.mxu0 0
        %1489 = vmatpush2.bf16.msra.mxu0 0
        %1490 = vmatprep.subr.bf16.mxu0 0
        %1491 = vmatpush2.bf16.msra.mxu0 0
        %1492 = vmatprep.subr.bf16.mxu0 0
        %1493 = vmatpush2.bf16.msra.mxu0 0
        %1494 = vmatprep.subr.bf16.mxu0 0
        %1495 = vmatpush2.bf16.msra.mxu0 0
        %1496 = vmatprep.mubr.bf16.mxu0 0
        %1497 = vmatmul.mubr.bf16.gmra.mxu0 %v1414
        %v1498 = vpop.f32.mrf.mxu0
        %v1499 = vadd.f32 0.0, %v1498
        %v1500 = vpop.f32.mrf.mxu0
        %v1501 = vpop.f32.mrf.mxu0
        %v1502 = vadd.f32 0.0, %v1501
        %v1503 = vpop.f32.mrf.mxu0
        %1504 = vdwg.mxu0
        %v1505 = vadd.f32 %v1392, %v1499
        %v1506 = vadd.f32 %v1393, %v1502
        %s1507 = scalar_lea.vmem [#allocation2], 704
        %v1508 = vld [vmem:[%s1507] sm:$0xf]
        %v1509 = vld [vmem:[%s1507 + $0x4] sm:$0xf]
        %v1510 = vld [vmem:[%s1507 + $0x8] sm:$0xf]
        %v1511 = vld [vmem:[%s1507 + $0xc] sm:$0xf]
        %v1512 = vld [vmem:[%s1507 + $0x10] sm:$0xf]
        %v1513 = vld [vmem:[%s1507 + $0x14] sm:$0xf]
        %v1514 = vld [vmem:[%s1507 + $0x18] sm:$0xf]
        %v1515 = vld [vmem:[%s1507 + $0x1c] sm:$0xf]
        %v1516 = vld [vmem:[%s1507 + $0x20] sm:$0xf]
        %v1517 = vld [vmem:[%s1507 + $0x24] sm:$0xf]
        %v1518 = vld [vmem:[%s1507 + $0x28] sm:$0xf]
        %v1519 = vld [vmem:[%s1507 + $0x2c] sm:$0xf]
        %v1520 = vld [vmem:[%s1507 + $0x30] sm:$0xf]
        %v1521 = vld [vmem:[%s1507 + $0x34] sm:$0xf]
        %v1522 = vld [vmem:[%s1507 + $0x38] sm:$0xf]
        %v1523 = vld [vmem:[%s1507 + $0x3c] sm:$0xf]
        %vm1524 = vsmask.f32 2304
        %v1525 = vrot.slane %v367, 5
        %v1526 = vrot.slane %v369, 6
        %v1527 = vor.u32 %v1525, %v1526
        %v1528 = vrot.slane %v606, 5
        %v1529 = vrot.slane %v374, 6
        %v1530 = vor.u32 %v1528, %v1529
        %v1531 = vsel %vm1524, %v1527, %v1530
        %v1549 = vunpack.c.l.b16 %v1508
        %v1550 = vunpack.c.l.b16 %v1509
        %v1551 = vunpack.c.l.b16 %v1510
        %v1552 = vunpack.c.l.b16 %v1511
        %v1553 = vunpack.c.l.b16 %v1512
        %v1554 = vunpack.c.l.b16 %v1513
        %v1555 = vunpack.c.l.b16 %v1514
        %v1556 = vunpack.c.l.b16 %v1515
        %v1557 = vunpack.c.l.b16 %v1516
        %v1558 = vunpack.c.l.b16 %v1517
        %v1559 = vunpack.c.l.b16 %v1518
        %v1560 = vunpack.c.l.b16 %v1519
        %v1561 = vunpack.c.l.b16 %v1520
        %v1562 = vunpack.c.l.b16 %v1521
        %v1563 = vunpack.c.l.b16 %v1522
        %v1564 = vunpack.c.l.b16 %v1523
        %v1565 = vpack.c.b16 %v1550, %v1549
        %v1566 = vpack.c.b16 %v1552, %v1551
        %v1567 = vpack.c.b16 %v1554, %v1553
        %v1568 = vpack.c.b16 %v1556, %v1555
        %v1569 = vpack.c.b16 %v1558, %v1557
        %v1570 = vpack.c.b16 %v1560, %v1559
        %v1571 = vpack.c.b16 %v1562, %v1561
        %v1572 = vpack.c.b16 %v1564, %v1563
        %1581 = vmatprep.subr.bf16.mxu0 0
        %1582 = vmatpush1.bf16.msra.mxu0 %v1572
        %1583 = vmatprep.subr.bf16.mxu0 0
        %1584 = vmatpush1.bf16.msra.mxu0 %v1571
        %1585 = vmatprep.subr.bf16.mxu0 0
        %1586 = vmatpush1.bf16.msra.mxu0 %v1570
        %1587 = vmatprep.subr.bf16.mxu0 0
        %1588 = vmatpush1.bf16.msra.mxu0 %v1569
        %1589 = vmatprep.subr.bf16.mxu0 0
        %1590 = vmatpush1.bf16.msra.mxu0 %v1568
        %1591 = vmatprep.subr.bf16.mxu0 0
        %1592 = vmatpush1.bf16.msra.mxu0 %v1567
        %1593 = vmatprep.subr.bf16.mxu0 0
        %1594 = vmatpush1.bf16.msra.mxu0 %v1566
        %1595 = vmatprep.subr.bf16.mxu0 0
        %1596 = vmatpush1.bf16.msra.mxu0 %v1565
        %1597 = vmatprep.subr.bf16.mxu0 0
        %1598 = vmatpush2.bf16.msra.mxu0 0
        %1599 = vmatprep.subr.bf16.mxu0 0
        %1600 = vmatpush2.bf16.msra.mxu0 0
        %1601 = vmatprep.subr.bf16.mxu0 0
        %1602 = vmatpush2.bf16.msra.mxu0 0
        %1603 = vmatprep.subr.bf16.mxu0 0
        %1604 = vmatpush2.bf16.msra.mxu0 0
        %1605 = vmatprep.subr.bf16.mxu0 0
        %1606 = vmatpush2.bf16.msra.mxu0 0
        %1607 = vmatprep.subr.bf16.mxu0 0
        %1608 = vmatpush2.bf16.msra.mxu0 0
        %1609 = vmatprep.subr.bf16.mxu0 0
        %1610 = vmatpush2.bf16.msra.mxu0 0
        %1611 = vmatprep.subr.bf16.mxu0 0
        %1612 = vmatpush2.bf16.msra.mxu0 0
        %1613 = vmatprep.mubr.bf16.mxu0 0
        %1614 = vmatmul.mubr.bf16.gmra.mxu0 %v1531
        %v1615 = vpop.f32.mrf.mxu0
        %v1616 = vadd.f32 0.0, %v1615
        %v1617 = vpop.f32.mrf.mxu0
        %v1618 = vpop.f32.mrf.mxu0
        %v1619 = vadd.f32 0.0, %v1618
        %v1620 = vpop.f32.mrf.mxu0
        %1621 = vdwg.mxu0
        %v1622 = vadd.f32 %v1505, %v1616
        %v1623 = vadd.f32 %v1506, %v1619
        %s1624 = scalar_lea.vmem [#allocation2], 768
        %v1625 = vld [vmem:[%s1624] sm:$0xf]
        %v1626 = vld [vmem:[%s1624 + $0x4] sm:$0xf]
        %v1627 = vld [vmem:[%s1624 + $0x8] sm:$0xf]
        %v1628 = vld [vmem:[%s1624 + $0xc] sm:$0xf]
        %v1629 = vld [vmem:[%s1624 + $0x10] sm:$0xf]
        %v1630 = vld [vmem:[%s1624 + $0x14] sm:$0xf]
        %v1631 = vld [vmem:[%s1624 + $0x18] sm:$0xf]
        %v1632 = vld [vmem:[%s1624 + $0x1c] sm:$0xf]
        %v1633 = vld [vmem:[%s1624 + $0x20] sm:$0xf]
        %v1634 = vld [vmem:[%s1624 + $0x24] sm:$0xf]
        %v1635 = vld [vmem:[%s1624 + $0x28] sm:$0xf]
        %v1636 = vld [vmem:[%s1624 + $0x2c] sm:$0xf]
        %v1637 = vld [vmem:[%s1624 + $0x30] sm:$0xf]
        %v1638 = vld [vmem:[%s1624 + $0x34] sm:$0xf]
        %v1639 = vld [vmem:[%s1624 + $0x38] sm:$0xf]
        %v1640 = vld [vmem:[%s1624 + $0x3c] sm:$0xf]
        %vm1641 = vcmask 1041408
        %v1642 = vrot.slane %v232, 6
        %v1643 = vrot.slane %v233, 6
        %v1644 = vsel %vm1641, %v1642, %v1643
        %v1662 = vunpack.c.l.b16 %v1625
        %v1663 = vunpack.c.l.b16 %v1626
        %v1664 = vunpack.c.l.b16 %v1627
        %v1665 = vunpack.c.l.b16 %v1628
        %v1666 = vunpack.c.l.b16 %v1629
        %v1667 = vunpack.c.l.b16 %v1630
        %v1668 = vunpack.c.l.b16 %v1631
        %v1669 = vunpack.c.l.b16 %v1632
        %v1670 = vunpack.c.l.b16 %v1633
        %v1671 = vunpack.c.l.b16 %v1634
        %v1672 = vunpack.c.l.b16 %v1635
        %v1673 = vunpack.c.l.b16 %v1636
        %v1674 = vunpack.c.l.b16 %v1637
        %v1675 = vunpack.c.l.b16 %v1638
        %v1676 = vunpack.c.l.b16 %v1639
        %v1677 = vunpack.c.l.b16 %v1640
        %v1678 = vpack.c.b16 %v1663, %v1662
        %v1679 = vpack.c.b16 %v1665, %v1664
        %v1680 = vpack.c.b16 %v1667, %v1666
        %v1681 = vpack.c.b16 %v1669, %v1668
        %v1682 = vpack.c.b16 %v1671, %v1670
        %v1683 = vpack.c.b16 %v1673, %v1672
        %v1684 = vpack.c.b16 %v1675, %v1674
        %v1685 = vpack.c.b16 %v1677, %v1676
        %1694 = vmatprep.subr.bf16.mxu0 0
        %1695 = vmatpush1.bf16.msra.mxu0 %v1685
        %1696 = vmatprep.subr.bf16.mxu0 0
        %1697 = vmatpush1.bf16.msra.mxu0 %v1684
        %1698 = vmatprep.subr.bf16.mxu0 0
        %1699 = vmatpush1.bf16.msra.mxu0 %v1683
        %1700 = vmatprep.subr.bf16.mxu0 0
        %1701 = vmatpush1.bf16.msra.mxu0 %v1682
        %1702 = vmatprep.subr.bf16.mxu0 0
        %1703 = vmatpush1.bf16.msra.mxu0 %v1681
        %1704 = vmatprep.subr.bf16.mxu0 0
        %1705 = vmatpush1.bf16.msra.mxu0 %v1680
        %1706 = vmatprep.subr.bf16.mxu0 0
        %1707 = vmatpush1.bf16.msra.mxu0 %v1679
        %1708 = vmatprep.subr.bf16.mxu0 0
        %1709 = vmatpush1.bf16.msra.mxu0 %v1678
        %1710 = vmatprep.subr.bf16.mxu0 0
        %1711 = vmatpush2.bf16.msra.mxu0 0
        %1712 = vmatprep.subr.bf16.mxu0 0
        %1713 = vmatpush2.bf16.msra.mxu0 0
        %1714 = vmatprep.subr.bf16.mxu0 0
        %1715 = vmatpush2.bf16.msra.mxu0 0
        %1716 = vmatprep.subr.bf16.mxu0 0
        %1717 = vmatpush2.bf16.msra.mxu0 0
        %1718 = vmatprep.subr.bf16.mxu0 0
        %1719 = vmatpush2.bf16.msra.mxu0 0
        %1720 = vmatprep.subr.bf16.mxu0 0
        %1721 = vmatpush2.bf16.msra.mxu0 0
        %1722 = vmatprep.subr.bf16.mxu0 0
        %1723 = vmatpush2.bf16.msra.mxu0 0
        %1724 = vmatprep.subr.bf16.mxu0 0
        %1725 = vmatpush2.bf16.msra.mxu0 0
        %1726 = vmatprep.mubr.bf16.mxu0 0
        %1727 = vmatmul.mubr.bf16.gmra.mxu0 %v1644
        %v1728 = vpop.f32.mrf.mxu0
        %v1729 = vadd.f32 0.0, %v1728
        %v1730 = vpop.f32.mrf.mxu0
        %v1731 = vpop.f32.mrf.mxu0
        %v1732 = vadd.f32 0.0, %v1731
        %v1733 = vpop.f32.mrf.mxu0
        %1734 = vdwg.mxu0
        %v1735 = vadd.f32 %v1622, %v1729
        %v1736 = vadd.f32 %v1623, %v1732
        %s1737 = scalar_lea.vmem [#allocation2], 832
        %v1738 = vld [vmem:[%s1737] sm:$0xf]
        %v1739 = vld [vmem:[%s1737 + $0x4] sm:$0xf]
        %v1740 = vld [vmem:[%s1737 + $0x8] sm:$0xf]
        %v1741 = vld [vmem:[%s1737 + $0xc] sm:$0xf]
        %v1742 = vld [vmem:[%s1737 + $0x10] sm:$0xf]
        %v1743 = vld [vmem:[%s1737 + $0x14] sm:$0xf]
        %v1744 = vld [vmem:[%s1737 + $0x18] sm:$0xf]
        %v1745 = vld [vmem:[%s1737 + $0x1c] sm:$0xf]
        %v1746 = vld [vmem:[%s1737 + $0x20] sm:$0xf]
        %v1747 = vld [vmem:[%s1737 + $0x24] sm:$0xf]
        %v1748 = vld [vmem:[%s1737 + $0x28] sm:$0xf]
        %v1749 = vld [vmem:[%s1737 + $0x2c] sm:$0xf]
        %v1750 = vld [vmem:[%s1737 + $0x30] sm:$0xf]
        %v1751 = vld [vmem:[%s1737 + $0x34] sm:$0xf]
        %v1752 = vld [vmem:[%s1737 + $0x38] sm:$0xf]
        %v1753 = vld [vmem:[%s1737 + $0x3c] sm:$0xf]
        %vm1754 = vsmask.f32 1280
        %v1755 = vrot.slane %v367, 6
        %v1756 = vrot.slane %v369, 7
        %v1757 = vor.u32 %v1755, %v1756
        %v1758 = vrot.slane %v606, 6
        %v1759 = vrot.slane %v374, 7
        %v1760 = vor.u32 %v1758, %v1759
        %v1761 = vsel %vm1754, %v1757, %v1760
        %v1779 = vunpack.c.l.b16 %v1738
        %v1780 = vunpack.c.l.b16 %v1739
        %v1781 = vunpack.c.l.b16 %v1740
        %v1782 = vunpack.c.l.b16 %v1741
        %v1783 = vunpack.c.l.b16 %v1742
        %v1784 = vunpack.c.l.b16 %v1743
        %v1785 = vunpack.c.l.b16 %v1744
        %v1786 = vunpack.c.l.b16 %v1745
        %v1787 = vunpack.c.l.b16 %v1746
        %v1788 = vunpack.c.l.b16 %v1747
        %v1789 = vunpack.c.l.b16 %v1748
        %v1790 = vunpack.c.l.b16 %v1749
        %v1791 = vunpack.c.l.b16 %v1750
        %v1792 = vunpack.c.l.b16 %v1751
        %v1793 = vunpack.c.l.b16 %v1752
        %v1794 = vunpack.c.l.b16 %v1753
        %v1795 = vpack.c.b16 %v1780, %v1779
        %v1796 = vpack.c.b16 %v1782, %v1781
        %v1797 = vpack.c.b16 %v1784, %v1783
        %v1798 = vpack.c.b16 %v1786, %v1785
        %v1799 = vpack.c.b16 %v1788, %v1787
        %v1800 = vpack.c.b16 %v1790, %v1789
        %v1801 = vpack.c.b16 %v1792, %v1791
        %v1802 = vpack.c.b16 %v1794, %v1793
        %1811 = vmatprep.subr.bf16.mxu0 0
        %1812 = vmatpush1.bf16.msra.mxu0 %v1802
        %1813 = vmatprep.subr.bf16.mxu0 0
        %1814 = vmatpush1.bf16.msra.mxu0 %v1801
        %1815 = vmatprep.subr.bf16.mxu0 0
        %1816 = vmatpush1.bf16.msra.mxu0 %v1800
        %1817 = vmatprep.subr.bf16.mxu0 0
        %1818 = vmatpush1.bf16.msra.mxu0 %v1799
        %1819 = vmatprep.subr.bf16.mxu0 0
        %1820 = vmatpush1.bf16.msra.mxu0 %v1798
        %1821 = vmatprep.subr.bf16.mxu0 0
        %1822 = vmatpush1.bf16.msra.mxu0 %v1797
        %1823 = vmatprep.subr.bf16.mxu0 0
        %1824 = vmatpush1.bf16.msra.mxu0 %v1796
        %1825 = vmatprep.subr.bf16.mxu0 0
        %1826 = vmatpush1.bf16.msra.mxu0 %v1795
        %1827 = vmatprep.subr.bf16.mxu0 0
        %1828 = vmatpush2.bf16.msra.mxu0 0
        %1829 = vmatprep.subr.bf16.mxu0 0
        %1830 = vmatpush2.bf16.msra.mxu0 0
        %1831 = vmatprep.subr.bf16.mxu0 0
        %1832 = vmatpush2.bf16.msra.mxu0 0
        %1833 = vmatprep.subr.bf16.mxu0 0
        %1834 = vmatpush2.bf16.msra.mxu0 0
        %1835 = vmatprep.subr.bf16.mxu0 0
        %1836 = vmatpush2.bf16.msra.mxu0 0
        %1837 = vmatprep.subr.bf16.mxu0 0
        %1838 = vmatpush2.bf16.msra.mxu0 0
        %1839 = vmatprep.subr.bf16.mxu0 0
        %1840 = vmatpush2.bf16.msra.mxu0 0
        %1841 = vmatprep.subr.bf16.mxu0 0
        %1842 = vmatpush2.bf16.msra.mxu0 0
        %1843 = vmatprep.mubr.bf16.mxu0 0
        %1844 = vmatmul.mubr.bf16.gmra.mxu0 %v1761
        %v1845 = vpop.f32.mrf.mxu0
        %v1846 = vadd.f32 0.0, %v1845
        %v1847 = vpop.f32.mrf.mxu0
        %v1848 = vpop.f32.mrf.mxu0
        %v1849 = vadd.f32 0.0, %v1848
        %v1850 = vpop.f32.mrf.mxu0
        %1851 = vdwg.mxu0
        %v1852 = vadd.f32 %v1735, %v1846
        %v1853 = vadd.f32 %v1736, %v1849
        %s1854 = scalar_lea.vmem [#allocation2], 896
        %v1855 = vld [vmem:[%s1854] sm:$0xf]
        %v1856 = vld [vmem:[%s1854 + $0x4] sm:$0xf]
        %v1857 = vld [vmem:[%s1854 + $0x8] sm:$0xf]
        %v1858 = vld [vmem:[%s1854 + $0xc] sm:$0xf]
        %v1859 = vld [vmem:[%s1854 + $0x10] sm:$0xf]
        %v1860 = vld [vmem:[%s1854 + $0x14] sm:$0xf]
        %v1861 = vld [vmem:[%s1854 + $0x18] sm:$0xf]
        %v1862 = vld [vmem:[%s1854 + $0x1c] sm:$0xf]
        %v1863 = vld [vmem:[%s1854 + $0x20] sm:$0xf]
        %v1864 = vld [vmem:[%s1854 + $0x24] sm:$0xf]
        %v1865 = vld [vmem:[%s1854 + $0x28] sm:$0xf]
        %v1866 = vld [vmem:[%s1854 + $0x2c] sm:$0xf]
        %v1867 = vld [vmem:[%s1854 + $0x30] sm:$0xf]
        %v1868 = vld [vmem:[%s1854 + $0x34] sm:$0xf]
        %v1869 = vld [vmem:[%s1854 + $0x38] sm:$0xf]
        %v1870 = vld [vmem:[%s1854 + $0x3c] sm:$0xf]
        %vm1871 = vcmask 1040384
        %v1872 = vrot.slane %v232, 7
        %v1873 = vrot.slane %v233, 7
        %v1874 = vsel %vm1871, %v1872, %v1873
        %v1892 = vunpack.c.l.b16 %v1855
        %v1893 = vunpack.c.l.b16 %v1856
        %v1894 = vunpack.c.l.b16 %v1857
        %v1895 = vunpack.c.l.b16 %v1858
        %v1896 = vunpack.c.l.b16 %v1859
        %v1897 = vunpack.c.l.b16 %v1860
        %v1898 = vunpack.c.l.b16 %v1861
        %v1899 = vunpack.c.l.b16 %v1862
        %v1900 = vunpack.c.l.b16 %v1863
        %v1901 = vunpack.c.l.b16 %v1864
        %v1902 = vunpack.c.l.b16 %v1865
        %v1903 = vunpack.c.l.b16 %v1866
        %v1904 = vunpack.c.l.b16 %v1867
        %v1905 = vunpack.c.l.b16 %v1868
        %v1906 = vunpack.c.l.b16 %v1869
        %v1907 = vunpack.c.l.b16 %v1870
        %v1908 = vpack.c.b16 %v1893, %v1892
        %v1909 = vpack.c.b16 %v1895, %v1894
        %v1910 = vpack.c.b16 %v1897, %v1896
        %v1911 = vpack.c.b16 %v1899, %v1898
        %v1912 = vpack.c.b16 %v1901, %v1900
        %v1913 = vpack.c.b16 %v1903, %v1902
        %v1914 = vpack.c.b16 %v1905, %v1904
        %v1915 = vpack.c.b16 %v1907, %v1906
        %1924 = vmatprep.subr.bf16.mxu0 0
        %1925 = vmatpush1.bf16.msra.mxu0 %v1915
        %1926 = vmatprep.subr.bf16.mxu0 0
        %1927 = vmatpush1.bf16.msra.mxu0 %v1914
        %1928 = vmatprep.subr.bf16.mxu0 0
        %1929 = vmatpush1.bf16.msra.mxu0 %v1913
        %1930 = vmatprep.subr.bf16.mxu0 0
        %1931 = vmatpush1.bf16.msra.mxu0 %v1912
        %1932 = vmatprep.subr.bf16.mxu0 0
        %1933 = vmatpush1.bf16.msra.mxu0 %v1911
        %1934 = vmatprep.subr.bf16.mxu0 0
        %1935 = vmatpush1.bf16.msra.mxu0 %v1910
        %1936 = vmatprep.subr.bf16.mxu0 0
        %1937 = vmatpush1.bf16.msra.mxu0 %v1909
        %1938 = vmatprep.subr.bf16.mxu0 0
        %1939 = vmatpush1.bf16.msra.mxu0 %v1908
        %1940 = vmatprep.subr.bf16.mxu0 0
        %1941 = vmatpush2.bf16.msra.mxu0 0
        %1942 = vmatprep.subr.bf16.mxu0 0
        %1943 = vmatpush2.bf16.msra.mxu0 0
        %1944 = vmatprep.subr.bf16.mxu0 0
        %1945 = vmatpush2.bf16.msra.mxu0 0
        %1946 = vmatprep.subr.bf16.mxu0 0
        %1947 = vmatpush2.bf16.msra.mxu0 0
        %1948 = vmatprep.subr.bf16.mxu0 0
        %1949 = vmatpush2.bf16.msra.mxu0 0
        %1950 = vmatprep.subr.bf16.mxu0 0
        %1951 = vmatpush2.bf16.msra.mxu0 0
        %1952 = vmatprep.subr.bf16.mxu0 0
        %1953 = vmatpush2.bf16.msra.mxu0 0
        %1954 = vmatprep.subr.bf16.mxu0 0
        %1955 = vmatpush2.bf16.msra.mxu0 0
        %1956 = vmatprep.mubr.bf16.mxu0 0
        %1957 = vmatmul.mubr.bf16.gmra.mxu0 %v1874
        %v1958 = vpop.f32.mrf.mxu0
        %v1959 = vadd.f32 0.0, %v1958
        %v1960 = vpop.f32.mrf.mxu0
        %v1961 = vpop.f32.mrf.mxu0
        %v1962 = vadd.f32 0.0, %v1961
        %v1963 = vpop.f32.mrf.mxu0
        %1964 = vdwg.mxu0
        %v1965 = vadd.f32 %v1852, %v1959
        %v1966 = vadd.f32 %v1853, %v1962
        %v1967 = vadd.f32 %v1965, %v1966
        %v1968 = vrot.slane %v1967, 4
        %v1969 = vadd.f32 %v1967, %v1968
        %v1970 = vrot.slane %v1969, 2
        %v1971 = vadd.f32 %v1969, %v1970
        %v1972 = vrot.slane %v1971, 1
        %v1973 = vadd.f32 %v1971, %v1972
        %v1974 = vmul.f32 %v1973, 0.0625
        %v1975 = vmul.f32 %v1965, %v1965
        %v1976 = vmul.f32 %v1966, %v1966
        %v1977 = vadd.f32 %v1975, %v1976
        %v1978 = vrot.slane %v1977, 4
        %v1979 = vadd.f32 %v1977, %v1978
        %v1980 = vrot.slane %v1979, 2
        %v1981 = vadd.f32 %v1979, %v1980
        %v1982 = vrot.slane %v1981, 1
        %v1983 = vadd.f32 %v1981, %v1982
        %v1984 = vmul.f32 %v1983, 0.0625
        %v1985 = vmul.f32 %v1974, %v1974
        %v1986 = vsub.f32 %v1984, %v1985
        %v1987 = vmax.f32 %v1986, 0.0
        %v1988 = vsub.f32 %v1965, %v1974
        %v1989 = vsub.f32 %v1966, %v1974
        %v1990 = vadd.f32 %v1987, 1e-05
        %v1991 = vrsqrt.pop %v1990
        %v1992 = vmul.f32 %v1988, %v1991
        %v1993 = vmul.f32 %v1989, %v1991
        %v1994 = vmax.f32 %v1992, 0.0
        %v1995 = vmax.f32 %v1993, 0.0
        %1996 = vst [vmem:[%s226] sm:$0xff] %v1994
        %1997 = vst [vmem:[%s226 + $0x8] sm:$0xff] %v1995
        %p1998 = scmp.lt.s32.totalorder %s19, 1
        %s1999 = scalar_select %p1998, %s19, 1
        %p2000 = scmp.lt.s32.totalorder %s20, 0
        %s2001 = scalar_select %p2000, %s20, 0
        %s2002 = smul.addr %s1999, 2
        %s2003 = sadd.s32 %s2001, %s2002
        %s2004 = smul.addr %s2003, 8
        %s2005 = scalar_lea.vmem %s3, %s2004
        // Predicated region
        $region37: #{generator_forward.10} parent=31 // pred_check
          %p2006 = pneg %p125
        $region38: #{generator_forward.10} parent=31 // pred_check_branch
          %2008 = sbr.rel (%p2006) target = $region40
        $region39: #{generator_forward.10} parent=31 // pred_region
          _
        $region40: #{generator_forward.10} parent=31 // pred_fallthru
          _
      $region32: #{generator_forward.10} parent=5 // pred_fallthru
        _
      %p2009 = scmp.le.s32.totalorder 2, %s10
      // Predicated region
      $region41: #{generator_forward.10} parent=5 // pred_check
        %p2010 = pneg %p2009
      $region42: #{generator_forward.10} parent=5 // pred_check_branch
        %2012 = sbr.rel (%p2010) target = $region44
      $region43: #{generator_forward.10} parent=5 // pred_region
        %s2013 = ssub.s32 %s10, 2
        // Predicated region
        $region45: #{generator_forward.10} parent=43 // pred_check
          %p2014 = pneg %p131
        $region46: #{generator_forward.10} parent=43 // pred_check_branch
          %2016 = sbr.rel (%p2014) target = $region48
        $region47: #{generator_forward.10} parent=43 // pred_region
          %p2017 = scmp.lt.s32.totalorder %s21, 1
          %s2018 = scalar_select %p2017, %s21, 1
          %p2019 = scmp.lt.s32.totalorder %s22, 0
          %s2020 = scalar_select %p2019, %s22, 0
          %s2021 = smul.addr %s2018, 2
          %s2022 = sadd.s32 %s2020, %s2021
          %s2023 = smul.addr %s2022, 8
          %s2024 = scalar_lea.vmem %s3, %s2023
        $region48: #{generator_forward.10} parent=43 // pred_fallthru
          _
      $region44: #{generator_forward.10} parent=5 // pred_fallthru
        _
    $region6: #{generator_forward.10} parent=1 // loop_footer
      %s14 = sadd.s32 1, %s10
    $region7: #{generator_forward.10} parent=1 // loop_footer_branch
      %9 = sbr.rel target = $region3
    $region8: #{generator_forward.10} parent=1 // loop_exit
      _
    %2025 = vsyncpa [#allocation3], 1
    %s2026 = scalar_lea.sflag [#allocation3], 1
    %2027 = vsyncpa %s2026, 1

// kernel: generator_forward.17
$region0: #{generator_forward.17}
  #allocation0 [shape = 'u32[]', space=smem, size = 0x4, offset = 0x4, fixed_abs, tag = 'smem constant byte address 0x4 - core index']
  #allocation1 [shape = 'u32[144,128]{1,0:T(1,128)}', space=vmem, size = 0x12000, scoped, tag = 'internal scratch']
  %s0 = inlined_call_operand.vmem [shape: f32[2,6,128], index: 0, kind: input, shape index: {}]
  %s1 = inlined_call_operand.vmem [shape: bf16[5,128,128], index: 1, kind: input, shape index: {}]
  %s2 = inlined_call_operand.vmem [shape: f32[1,128], index: 2, kind: input, shape index: {}]
  %s3 = inlined_call_operand.vmem [shape: f32[2,4,128], index: 3, kind: output, shape index: {0}]
  %s4 = inlined_call_operand.vmem [shape: f32[2,4,128], index: 4, kind: output, shape index: {1}]
  %5 = xla_tuple %s3, %s4
  %s6 = sld [smem:[#allocation0]]
  $region53: #{generator_forward.17} parent=0
    _
  %s8 = ssub.s32 1, %s6
  %s9 = scalar_select 0, %s8, %s6
  loop: start=0, step=1, limit=4
  $region2: #{generator_forward.17} parent=0 // loop_pre_header
    _
  $region3: #{generator_forward.17} parent=0 // loop_header
    %s11 = sphi 0, %s15
    %p12 = scmp.ge.s32.totalorder %s11, 4
    %s18 = sphi 0, %s30
    %s19 = sphi 0, %s26
    %s20 = sphi 0, %s18
    %s21 = sphi 0, %s19
    %s22 = sphi 0, %s20
    %s23 = sphi 0, %s21
    %s33 = sphi 0, %s35
    %s36 = sphi 0, %s33
    %s37 = sphi 0, %s36
    %s53 = sphi 0, %s37
    %s59 = sphi 0, %s61
    %s62 = sphi 0, %s59
    %s63 = sphi 0, %s62
    %s79 = sphi 0, %s63
    %s85 = sphi 0, %s87
    %s88 = sphi 0, %s85
    %s89 = sphi 0, %s88
    %s105 = sphi 0, %s89
    %s113 = sphi 0, %s115
    %s116 = sphi 0, %s113
    %s117 = sphi 0, %s116
    %s133 = sphi 0, %s117
    %s141 = sphi 0, %s143
    %s144 = sphi 0, %s141
    %s145 = sphi 0, %s144
    %s161 = sphi 0, %s145
  $region4: #{generator_forward.17} parent=0 // loop_header_branch
    %14 = sbr.rel (%p12) target = $region8
  $region5: #{generator_forward.17} parent=0 // loop_body
    %s16 = ssub.s32 %s11, 1
    %s17 = ssub.s32 %s11, 2
    %s24 = sadd.s32 1, %s19
    %p25 = scmp.ge.s32.totalorder %s24, 1
    %s26 = scalar_select %p25, 0, %s24
    %s27 = sadd.s32 1, %s18
    %s28 = scalar_select %p25, %s27, %s18
    %p29 = scmp.ge.s32.totalorder %s28, 2
    %s30 = scalar_select %p29, 0, %s28
    %s31 = ssub.s32 %s18, %s30
    %p32 = scmp.eq.s32.totalorder %s31, 0
    %s34 = sadd.s32 %s33, 1
    %s35 = scalar_select %p32, %s33, %s34
    %p38 = pneg %p32
    %p39 = scmp.eq.s32.totalorder %s11, 1
    %p40 = por %p38, %p39
    %p41 = scmp.ne.s32.totalorder %s33, %s36
    %p42 = scmp.eq.s32.totalorder %s11, 0
    %p43 = por %p41, %p42
    %p44 = scmp.ne.s32.totalorder %s33, %s36
    %p45 = scmp.eq.s32.totalorder %s16, 1
    %p46 = por %p44, %p45
    %p47 = scmp.ne.s32.totalorder %s36, %s37
    %p48 = scmp.eq.s32.totalorder %s16, 0
    %p49 = por %p47, %p48
    %p50 = scmp.ne.s32.totalorder %s36, %s37
    %p51 = scmp.eq.s32.totalorder %s17, 1
    %p52 = por %p50, %p51
    %p54 = scmp.ne.s32.totalorder %s37, %s53
    %p55 = scmp.eq.s32.totalorder %s17, 0
    %p56 = por %p54, %p55
    %s57 = ssub.s32 %s19, %s26
    %p58 = scmp.eq.s32.totalorder %s57, 0
    %s60 = sadd.s32 %s59, 1
    %s61 = scalar_select %p58, %s59, %s60
    %p64 = pneg %p58
    %p65 = scmp.eq.s32.totalorder %s11, 1
    %p66 = por %p64, %p65
    %p67 = scmp.ne.s32.totalorder %s59, %s62
    %p68 = scmp.eq.s32.totalorder %s11, 0
    %p69 = por %p67, %p68
    %p70 = scmp.ne.s32.totalorder %s59, %s62
    %p71 = scmp.eq.s32.totalorder %s16, 1
    %p72 = por %p70, %p71
    %p73 = scmp.ne.s32.totalorder %s62, %s63
    %p74 = scmp.eq.s32.totalorder %s16, 0
    %p75 = por %p73, %p74
    %p76 = scmp.ne.s32.totalorder %s62, %s63
    %p77 = scmp.eq.s32.totalorder %s17, 1
    %p78 = por %p76, %p77
    %p80 = scmp.ne.s32.totalorder %s63, %s79
    %p81 = scmp.eq.s32.totalorder %s17, 0
    %p82 = por %p80, %p81
    %s83 = ssub.s32 %s19, %s26
    %p84 = scmp.eq.s32.totalorder %s83, 0
    %s86 = sadd.s32 %s85, 1
    %s87 = scalar_select %p84, %s85, %s86
    %p90 = pneg %p84
    %p91 = scmp.eq.s32.totalorder %s11, 1
    %p92 = por %p90, %p91
    %p93 = scmp.ne.s32.totalorder %s85, %s88
    %p94 = scmp.eq.s32.totalorder %s11, 0
    %p95 = por %p93, %p94
    %p96 = scmp.ne.s32.totalorder %s85, %s88
    %p97 = scmp.eq.s32.totalorder %s16, 1
    %p98 = por %p96, %p97
    %p99 = scmp.ne.s32.totalorder %s88, %s89
    %p100 = scmp.eq.s32.totalorder %s16, 0
    %p101 = por %p99, %p100
    %p102 = scmp.ne.s32.totalorder %s88, %s89
    %p103 = scmp.eq.s32.totalorder %s17, 1
    %p104 = por %p102, %p103
    %p106 = scmp.ne.s32.totalorder %s89, %s105
    %p107 = scmp.eq.s32.totalorder %s17, 0
    %p108 = por %p106, %p107
    %s109 = ssub.s32 %s18, %s30
    %s110 = ssub.s32 %s19, %s26
    %s111 = sor.u32 %s109, %s110
    %p112 = scmp.eq.s32.totalorder %s111, 0
    %s114 = sadd.s32 %s113, 1
    %s115 = scalar_select %p112, %s113, %s114
    %p118 = pneg %p112
    %p119 = scmp.eq.s32.totalorder %s11, 1
    %p120 = por %p118, %p119
    %p121 = scmp.ne.s32.totalorder %s113, %s116
    %p122 = scmp.eq.s32.totalorder %s11, 0
    %p123 = por %p121, %p122
    %p124 = scmp.ne.s32.totalorder %s113, %s116
    %p125 = scmp.eq.s32.totalorder %s16, 1
    %p126 = por %p124, %p125
    %p127 = scmp.ne.s32.totalorder %s116, %s117
    %p128 = scmp.eq.s32.totalorder %s16, 0
    %p129 = por %p127, %p128
    %p130 = scmp.ne.s32.totalorder %s116, %s117
    %p131 = scmp.eq.s32.totalorder %s17, 1
    %p132 = por %p130, %p131
    %p134 = scmp.ne.s32.totalorder %s117, %s133
    %p135 = scmp.eq.s32.totalorder %s17, 0
    %p136 = por %p134, %p135
    %s137 = ssub.s32 %s18, %s30
    %s138 = ssub.s32 %s19, %s26
    %s139 = sor.u32 %s137, %s138
    %p140 = scmp.eq.s32.totalorder %s139, 0
    %s142 = sadd.s32 %s141, 1
    %s143 = scalar_select %p140, %s141, %s142
    %p146 = pneg %p140
    %p147 = scmp.eq.s32.totalorder %s11, 1
    %p148 = por %p146, %p147
    %p149 = scmp.ne.s32.totalorder %s141, %s144
    %p150 = scmp.eq.s32.totalorder %s11, 0
    %p151 = por %p149, %p150
    %p152 = scmp.ne.s32.totalorder %s141, %s144
    %p153 = scmp.eq.s32.totalorder %s16, 1
    %p154 = por %p152, %p153
    %p155 = scmp.ne.s32.totalorder %s144, %s145
    %p156 = scmp.eq.s32.totalorder %s16, 0
    %p157 = por %p155, %p156
    %p158 = scmp.ne.s32.totalorder %s144, %s145
    %p159 = scmp.eq.s32.totalorder %s17, 1
    %p160 = por %p158, %p159
    %p162 = scmp.ne.s32.totalorder %s145, %s161
    %p163 = scmp.eq.s32.totalorder %s17, 0
    %p164 = por %p162, %p163
    %p165 = scmp.le.s32.totalorder 1, %s11
    %p166 = scmp.lt.s32.totalorder %s11, 3
    %p167 = pnand %p165, %p166
    %p168 = pneg %p167
    // Predicated region
    $region9: #{generator_forward.17} parent=5 // pred_check
      _
    $region10: #{generator_forward.17} parent=5 // pred_check_branch
      %170 = sbr.rel (%p167) target = $region12
    $region11: #{generator_forward.17} parent=5 // pred_region
      %s171 = ssub.s32 %s11, 1
      // Predicated region
      $region13: #{generator_forward.17} parent=11 // pred_check
        %p172 = pneg %p75
      $region14: #{generator_forward.17} parent=11 // pred_check_branch
        %174 = sbr.rel (%p172) target = $region16
      $region15: #{generator_forward.17} parent=11 // pred_region
        %p175 = scmp.lt.s32.totalorder %s21, 0
        %s176 = scalar_select %p175, %s21, 0
        %s177 = smul.addr %s176, 4
        %s178 = scalar_lea.vmem %s1, %s177
      $region16: #{generator_forward.17} parent=11 // pred_fallthru
        _
      // Predicated region
      $region17: #{generator_forward.17} parent=11 // pred_check
        %p179 = pneg %p101
      $region18: #{generator_forward.17} parent=11 // pred_check_branch
        %181 = sbr.rel (%p179) target = $region20
      $region19: #{generator_forward.17} parent=11 // pred_region
        %p182 = scmp.lt.s32.totalorder %s21, 0
        %s183 = scalar_select %p182, %s21, 0
        %s184 = scalar_lea.vmem %s2, %s183
      $region20: #{generator_forward.17} parent=11 // pred_fallthru
        _
    $region12: #{generator_forward.17} parent=5 // pred_fallthru
      _
    %p185 = scmp.lt.s32.totalorder %s11, 2
    // Predicated region
    $region21: #{generator_forward.17} parent=5 // pred_check
      %p186 = pneg %p185
    $region22: #{generator_forward.17} parent=5 // pred_check_branch
      %188 = sbr.rel (%p186) target = $region24
    $region23: #{generator_forward.17} parent=5 // pred_region
      // Predicated region
      $region25: #{generator_forward.17} parent=23 // pred_check
        %p189 = pneg %p43
      $region26: #{generator_forward.17} parent=23 // pred_check_branch
        %191 = sbr.rel (%p189) target = $region28
      $region27: #{generator_forward.17} parent=23 // pred_region
        %p192 = scmp.lt.s32.totalorder %s18, 1
        %s193 = scalar_select %p192, %s18, 1
        %s194 = smul.addr %s193, 8
        %s195 = scalar_lea.vmem %s0, %s194
      $region28: #{generator_forward.17} parent=23 // pred_fallthru
        _
    $region24: #{generator_forward.17} parent=5 // pred_fallthru
      _
    %p196 = scmp.le.s32.totalorder 1, %s11
    %p197 = scmp.lt.s32.totalorder %s11, 3
    %p198 = pnand %p196, %p197
    %p199 = pneg %p198
    // Predicated region
    $region29: #{generator_forward.17} parent=5 // pred_check
      _
    $region30: #{generator_forward.17} parent=5 // pred_check_branch
      %201 = sbr.rel (%p198) target = $region32
    $region31: #{generator_forward.17} parent=5 // pred_region
      %s202 = ssub.s32 %s11, 1
      %p203 = scmp.lt.s32.totalorder %s20, 1
      %s204 = scalar_select %p203, %s20, 1
      %s205 = smul.addr %s204, 8
      %s206 = scalar_lea.vmem %s0, %s205
      %p207 = pneg %p49
      %p208 = pneg %p46
      %p209 = scmp.lt.s32.totalorder %s21, 0
      %s210 = scalar_select %p209, %s21, 0
      %s211 = smul.addr %s210, 4
      %s212 = scalar_lea.vmem %s1, %s211
      %p213 = pneg %p75
      %p214 = pneg %p72
      %p215 = scmp.lt.s32.totalorder %s21, 0
      %s216 = scalar_select %p215, %s21, 0
      %s217 = scalar_lea.vmem %s2, %s216
      %p218 = pneg %p101
      %p219 = pneg %p98
      %p220 = pneg %p129
      %p221 = pneg %p126
      %p222 = scmp.lt.s32.totalorder %s20, 1
      %s223 = scalar_select %p222, %s20, 1
      %p224 = scmp.lt.s32.totalorder %s21, 0
      %s225 = scalar_select %p224, %s21, 0
      %s226 = sadd.s32 %s225, %s223
      %s227 = smul.addr %s226, 4
      %s228 = scalar_lea.vmem %s3, %s227
      %p229 = pneg %p157
      %p230 = pneg %p154
      %p231 = scmp.lt.s32.totalorder %s20, 1
      %s232 = scalar_select %p231, %s20, 1
      %p233 = scmp.lt.s32.totalorder %s21, 0
      %s234 = scalar_select %p233, %s21, 0
      %s235 = sadd.s32 %s234, %s232
      %s236 = smul.addr %s235, 4
      %s237 = scalar_lea.vmem %s4, %s236
      %p238 = scmp.lt.s32.totalorder %s20, 1
      %s239 = scalar_select %p238, %s20, 1
      %s240 = smul.addr %s239, 8
      %s241 = scalar_lea.vmem %s0, %s240
      %p242 = scmp.lt.s32.totalorder %s21, 0
      %s243 = scalar_select %p242, %s21, 0
      %s244 = smul.addr %s243, 4
      %s245 = scalar_lea.vmem %s1, %s244
      %p246 = scmp.lt.s32.totalorder %s21, 0
      %s247 = scalar_select %p246, %s21, 0
      %s248 = scalar_lea.vmem %s2, %s247
      %p249 = scmp.lt.s32.totalorder %s20, 1
      %s250 = scalar_select %p249, %s20, 1
      %p251 = scmp.lt.s32.totalorder %s21, 0
      %s252 = scalar_select %p251, %s21, 0
      %s253 = sadd.s32 %s252, %s250
      %s254 = smul.addr %s253, 4
      %s255 = scalar_lea.vmem %s3, %s254
      %p256 = scmp.lt.s32.totalorder %s20, 1
      %s257 = scalar_select %p256, %s20, 1
      %p258 = scmp.lt.s32.totalorder %s21, 0
      %s259 = scalar_select %p258, %s21, 0
      %s260 = sadd.s32 %s259, %s257
      %s261 = smul.addr %s260, 4
      %s262 = scalar_lea.vmem %s4, %s261
      %v264 = vld [vmem:[%s241] sm:$0x3f]
      %v265 = vpack.c.bf16 %v264, %v264
      %v266 = vld [vmem:[%s248] sm:$0x1]
      %v268 = vlaneseq
      %v269 = vshrl.u32 %v268, 7
      %v270 = vsub.s32 0, %v269
      %v271 = vrot.slane %v266, %v270
      %v273 = vld [vmem:[%s245] sm:$0xf]
      %v274 = vld [vmem:[%s245 + $0x4] sm:$0xf]
      %v275 = vld [vmem:[%s245 + $0x8] sm:$0xf]
      %v276 = vld [vmem:[%s245 + $0xc] sm:$0xf]
      %v277 = vld [vmem:[%s245 + $0x10] sm:$0xf]
      %v278 = vld [vmem:[%s245 + $0x14] sm:$0xf]
      %v279 = vld [vmem:[%s245 + $0x18] sm:$0xf]
      %v280 = vld [vmem:[%s245 + $0x1c] sm:$0xf]
      %v281 = vld [vmem:[%s245 + $0x20] sm:$0xf]
      %v282 = vld [vmem:[%s245 + $0x24] sm:$0xf]
      %v283 = vld [vmem:[%s245 + $0x28] sm:$0xf]
      %v284 = vld [vmem:[%s245 + $0x2c] sm:$0xf]
      %v285 = vld [vmem:[%s245 + $0x30] sm:$0xf]
      %v286 = vld [vmem:[%s245 + $0x34] sm:$0xf]
      %v287 = vld [vmem:[%s245 + $0x38] sm:$0xf]
      %v288 = vld [vmem:[%s245 + $0x3c] sm:$0xf]
      %v290 = vrot.slane %v265, 1
      %v308 = vunpack.c.l.b16 %v273
      %v309 = vunpack.c.l.b16 %v274
      %v310 = vunpack.c.l.b16 %v275
      %v311 = vunpack.c.l.b16 %v276
      %v312 = vunpack.c.l.b16 %v277
      %v313 = vunpack.c.l.b16 %v278
      %v314 = vunpack.c.l.b16 %v279
      %v315 = vunpack.c.l.b16 %v280
      %v316 = vunpack.c.l.b16 %v281
      %v317 = vunpack.c.l.b16 %v282
      %v318 = vunpack.c.l.b16 %v283
      %v319 = vunpack.c.l.b16 %v284
      %v320 = vunpack.c.l.b16 %v285
      %v321 = vunpack.c.l.b16 %v286
      %v322 = vunpack.c.l.b16 %v287
      %v323 = vunpack.c.l.b16 %v288
      %v324 = vpack.c.b16 %v309, %v308
      %v325 = vpack.c.b16 %v311, %v310
      %v326 = vpack.c.b16 %v313, %v312
      %v327 = vpack.c.b16 %v315, %v314
      %v328 = vpack.c.b16 %v317, %v316
      %v329 = vpack.c.b16 %v319, %v318
      %v330 = vpack.c.b16 %v321, %v320
      %v331 = vpack.c.b16 %v323, %v322
      %340 = vmatprep.subr.bf16.mxu0 0
      %341 = vmatpush1.bf16.msra.mxu0 %v331
      %342 = vmatprep.subr.bf16.mxu0 0
      %343 = vmatpush1.bf16.msra.mxu0 %v330
      %344 = vmatprep.subr.bf16.mxu0 0
      %345 = vmatpush1.bf16.msra.mxu0 %v329
      %346 = vmatprep.subr.bf16.mxu0 0
      %347 = vmatpush1.bf16.msra.mxu0 %v328
      %348 = vmatprep.subr.bf16.mxu0 0
      %349 = vmatpush1.bf16.msra.mxu0 %v327
      %350 = vmatprep.subr.bf16.mxu0 0
      %351 = vmatpush1.bf16.msra.mxu0 %v326
      %352 = vmatprep.subr.bf16.mxu0 0
      %353 = vmatpush1.bf16.msra.mxu0 %v325
      %354 = vmatprep.subr.bf16.mxu0 0
      %355 = vmatpush1.bf16.msra.mxu0 %v324
      %356 = vmatprep.subr.bf16.mxu0 0
      %357 = vmatpush2.bf16.msra.mxu0 0
      %358 = vmatprep.subr.bf16.mxu0 0
      %359 = vmatpush2.bf16.msra.mxu0 0
      %360 = vmatprep.subr.bf16.mxu0 0
      %361 = vmatpush2.bf16.msra.mxu0 0
      %362 = vmatprep.subr.bf16.mxu0 0
      %363 = vmatpush2.bf16.msra.mxu0 0
      %364 = vmatprep.subr.bf16.mxu0 0
      %365 = vmatpush2.bf16.msra.mxu0 0
      %366 = vmatprep.subr.bf16.mxu0 0
      %367 = vmatpush2.bf16.msra.mxu0 0
      %368 = vmatprep.subr.bf16.mxu0 0
      %369 = vmatpush2.bf16.msra.mxu0 0
      %370 = vmatprep.subr.bf16.mxu0 0
      %371 = vmatpush2.bf16.msra.mxu0 0
      %372 = vmatprep.mubr.bf16.mxu0 0
      %373 = vmatmul.mubr.bf16.gmra.mxu0 %v290
      %v374 = vpop.f32.mrf.mxu0
      %v375 = vadd.f32 0.0, %v374
      %v376 = vpop.f32.mrf.mxu0
      %v377 = vpop.f32.mrf.mxu0
      %v378 = vpop.f32.mrf.mxu0
      %379 = vdwg.mxu0
      %v380 = vadd.f32 %v271, %v375
      %s381 = scalar_lea.vmem %s245, 128
      %v382 = vld [vmem:[%s381] sm:$0xf]
      %v383 = vld [vmem:[%s381 + $0x4] sm:$0xf]
      %v384 = vld [vmem:[%s381 + $0x8] sm:$0xf]
      %v385 = vld [vmem:[%s381 + $0xc] sm:$0xf]
      %v386 = vld [vmem:[%s381 + $0x10] sm:$0xf]
      %v387 = vld [vmem:[%s381 + $0x14] sm:$0xf]
      %v388 = vld [vmem:[%s381 + $0x18] sm:$0xf]
      %v389 = vld [vmem:[%s381 + $0x1c] sm:$0xf]
      %v390 = vld [vmem:[%s381 + $0x20] sm:$0xf]
      %v391 = vld [vmem:[%s381 + $0x24] sm:$0xf]
      %v392 = vld [vmem:[%s381 + $0x28] sm:$0xf]
      %v393 = vld [vmem:[%s381 + $0x2c] sm:$0xf]
      %v394 = vld [vmem:[%s381 + $0x30] sm:$0xf]
      %v395 = vld [vmem:[%s381 + $0x34] sm:$0xf]
      %v396 = vld [vmem:[%s381 + $0x38] sm:$0xf]
      %v397 = vld [vmem:[%s381 + $0x3c] sm:$0xf]
      %v399 = vshrl.u32 %v265, 16
      %v401 = vshll.u32 %v265, 16
      %v403 = vrot.slane %v401, 1
      %v404 = vor.u32 %v399, %v403
      %v422 = vunpack.c.l.b16 %v382
      %v423 = vunpack.c.l.b16 %v383
      %v424 = vunpack.c.l.b16 %v384
      %v425 = vunpack.c.l.b16 %v385
      %v426 = vunpack.c.l.b16 %v386
      %v427 = vunpack.c.l.b16 %v387
      %v428 = vunpack.c.l.b16 %v388
      %v429 = vunpack.c.l.b16 %v389
      %v430 = vunpack.c.l.b16 %v390
      %v431 = vunpack.c.l.b16 %v391
      %v432 = vunpack.c.l.b16 %v392
      %v433 = vunpack.c.l.b16 %v393
      %v434 = vunpack.c.l.b16 %v394
      %v435 = vunpack.c.l.b16 %v395
      %v436 = vunpack.c.l.b16 %v396
      %v437 = vunpack.c.l.b16 %v397
      %v438 = vpack.c.b16 %v423, %v422
      %v439 = vpack.c.b16 %v425, %v424
      %v440 = vpack.c.b16 %v427, %v426
      %v441 = vpack.c.b16 %v429, %v428
      %v442 = vpack.c.b16 %v431, %v430
      %v443 = vpack.c.b16 %v433, %v432
      %v444 = vpack.c.b16 %v435, %v434
      %v445 = vpack.c.b16 %v437, %v436
      %454 = vmatprep.subr.bf16.mxu0 0
      %455 = vmatpush1.bf16.msra.mxu0 %v445
      %456 = vmatprep.subr.bf16.mxu0 0
      %457 = vmatpush1.bf16.msra.mxu0 %v444
      %458 = vmatprep.subr.bf16.mxu0 0
      %459 = vmatpush1.bf16.msra.mxu0 %v443
      %460 = vmatprep.subr.bf16.mxu0 0
      %461 = vmatpush1.bf16.msra.mxu0 %v442
      %462 = vmatprep.subr.bf16.mxu0 0
      %463 = vmatpush1.bf16.msra.mxu0 %v441
      %464 = vmatprep.subr.bf16.mxu0 0
      %465 = vmatpush1.bf16.msra.mxu0 %v440
      %466 = vmatprep.subr.bf16.mxu0 0
      %467 = vmatpush1.bf16.msra.mxu0 %v439
      %468 = vmatprep.subr.bf16.mxu0 0
      %469 = vmatpush1.bf16.msra.mxu0 %v438
      %470 = vmatprep.subr.bf16.mxu0 0
      %471 = vmatpush2.bf16.msra.mxu0 0
      %472 = vmatprep.subr.bf16.mxu0 0
      %473 = vmatpush2.bf16.msra.mxu0 0
      %474 = vmatprep.subr.bf16.mxu0 0
      %475 = vmatpush2.bf16.msra.mxu0 0
      %476 = vmatprep.subr.bf16.mxu0 0
      %477 = vmatpush2.bf16.msra.mxu0 0
      %478 = vmatprep.subr.bf16.mxu0 0
      %479 = vmatpush2.bf16.msra.mxu0 0
      %480 = vmatprep.subr.bf16.mxu0 0
      %481 = vmatpush2.bf16.msra.mxu0 0
      %482 = vmatprep.subr.bf16.mxu0 0
      %483 = vmatpush2.bf16.msra.mxu0 0
      %484 = vmatprep.subr.bf16.mxu0 0
      %485 = vmatpush2.bf16.msra.mxu0 0
      %486 = vmatprep.mubr.bf16.mxu0 0
      %487 = vmatmul.mubr.bf16.gmra.mxu0 %v404
      %v488 = vpop.f32.mrf.mxu0
      %v489 = vadd.f32 0.0, %v488
      %v490 = vpop.f32.mrf.mxu0
      %v491 = vpop.f32.mrf.mxu0
      %v492 = vpop.f32.mrf.mxu0
      %493 = vdwg.mxu0
      %v494 = vadd.f32 %v380, %v489
      %s495 = scalar_lea.vmem %s245, 256
      %v496 = vld [vmem:[%s495] sm:$0xf]
      %v497 = vld [vmem:[%s495 + $0x4] sm:$0xf]
      %v498 = vld [vmem:[%s495 + $0x8] sm:$0xf]
      %v499 = vld [vmem:[%s495 + $0xc] sm:$0xf]
      %v500 = vld [vmem:[%s495 + $0x10] sm:$0xf]
      %v501 = vld [vmem:[%s495 + $0x14] sm:$0xf]
      %v502 = vld [vmem:[%s495 + $0x18] sm:$0xf]
      %v503 = vld [vmem:[%s495 + $0x1c] sm:$0xf]
      %v504 = vld [vmem:[%s495 + $0x20] sm:$0xf]
      %v505 = vld [vmem:[%s495 + $0x24] sm:$0xf]
      %v506 = vld [vmem:[%s495 + $0x28] sm:$0xf]
      %v507 = vld [vmem:[%s495 + $0x2c] sm:$0xf]
      %v508 = vld [vmem:[%s495 + $0x30] sm:$0xf]
      %v509 = vld [vmem:[%s495 + $0x34] sm:$0xf]
      %v510 = vld [vmem:[%s495 + $0x38] sm:$0xf]
      %v511 = vld [vmem:[%s495 + $0x3c] sm:$0xf]
      %v528 = vunpack.c.l.b16 %v496
      %v529 = vunpack.c.l.b16 %v497
      %v530 = vunpack.c.l.b16 %v498
      %v531 = vunpack.c.l.b16 %v499
      %v532 = vunpack.c.l.b16 %v500
      %v533 = vunpack.c.l.b16 %v501
      %v534 = vunpack.c.l.b16 %v502
      %v535 = vunpack.c.l.b16 %v503
      %v536 = vunpack.c.l.b16 %v504
      %v537 = vunpack.c.l.b16 %v505
      %v538 = vunpack.c.l.b16 %v506
      %v539 = vunpack.c.l.b16 %v507
      %v540 = vunpack.c.l.b16 %v508
      %v541 = vunpack.c.l.b16 %v509
      %v542 = vunpack.c.l.b16 %v510
      %v543 = vunpack.c.l.b16 %v511
      %v544 = vpack.c.b16 %v529, %v528
      %v545 = vpack.c.b16 %v531, %v530
      %v546 = vpack.c.b16 %v533, %v532
      %v547 = vpack.c.b16 %v535, %v534
      %v548 = vpack.c.b16 %v537, %v536
      %v549 = vpack.c.b16 %v539, %v538
      %v550 = vpack.c.b16 %v541, %v540
      %v551 = vpack.c.b16 %v543, %v542
      %560 = vmatprep.subr.bf16.mxu0 0
      %561 = vmatpush1.bf16.msra.mxu0 %v551
      %562 = vmatprep.subr.bf16.mxu0 0
      %563 = vmatpush1.bf16.msra.mxu0 %v550
      %564 = vmatprep.subr.bf16.mxu0 0
      %565 = vmatpush1.bf16.msra.mxu0 %v549
      %566 = vmatprep.subr.bf16.mxu0 0
      %567 = vmatpush1.bf16.msra.mxu0 %v548
      %568 = vmatprep.subr.bf16.mxu0 0
      %569 = vmatpush1.bf16.msra.mxu0 %v547
      %570 = vmatprep.subr.bf16.mxu0 0
      %571 = vmatpush1.bf16.msra.mxu0 %v546
      %572 = vmatprep.subr.bf16.mxu0 0
      %573 = vmatpush1.bf16.msra.mxu0 %v545
      %574 = vmatprep.subr.bf16.mxu0 0
      %575 = vmatpush1.bf16.msra.mxu0 %v544
      %576 = vmatprep.subr.bf16.mxu0 0
      %577 = vmatpush2.bf16.msra.mxu0 0
      %578 = vmatprep.subr.bf16.mxu0 0
      %579 = vmatpush2.bf16.msra.mxu0 0
      %580 = vmatprep.subr.bf16.mxu0 0
      %581 = vmatpush2.bf16.msra.mxu0 0
      %582 = vmatprep.subr.bf16.mxu0 0
      %583 = vmatpush2.bf16.msra.mxu0 0
      %584 = vmatprep.subr.bf16.mxu0 0
      %585 = vmatpush2.bf16.msra.mxu0 0
      %586 = vmatprep.subr.bf16.mxu0 0
      %587 = vmatpush2.bf16.msra.mxu0 0
      %588 = vmatprep.subr.bf16.mxu0 0
      %589 = vmatpush2.bf16.msra.mxu0 0
      %590 = vmatprep.subr.bf16.mxu0 0
      %591 = vmatpush2.bf16.msra.mxu0 0
      %592 = vmatprep.mubr.bf16.mxu0 0
      %593 = vmatmul.mubr.bf16.gmra.mxu0 %v265
      %v594 = vpop.f32.mrf.mxu0
      %v595 = vadd.f32 0.0, %v594
      %v596 = vpop.f32.mrf.mxu0
      %v597 = vpop.f32.mrf.mxu0
      %v598 = vpop.f32.mrf.mxu0
      %599 = vdwg.mxu0
      %v600 = vadd.f32 %v494, %v595
      %s601 = scalar_lea.vmem %s245, 64
      %v602 = vld [vmem:[%s601] sm:$0xf]
      %v603 = vld [vmem:[%s601 + $0x4] sm:$0xf]
      %v604 = vld [vmem:[%s601 + $0x8] sm:$0xf]
      %v605 = vld [vmem:[%s601 + $0xc] sm:$0xf]
      %v606 = vld [vmem:[%s601 + $0x10] sm:$0xf]
      %v607 = vld [vmem:[%s601 + $0x14] sm:$0xf]
      %v608 = vld [vmem:[%s601 + $0x18] sm:$0xf]
      %v609 = vld [vmem:[%s601 + $0x1c] sm:$0xf]
      %v610 = vld [vmem:[%s601 + $0x20] sm:$0xf]
      %v611 = vld [vmem:[%s601 + $0x24] sm:$0xf]
      %v612 = vld [vmem:[%s601 + $0x28] sm:$0xf]
      %v613 = vld [vmem:[%s601 + $0x2c] sm:$0xf]
      %v614 = vld [vmem:[%s601 + $0x30] sm:$0xf]
      %v615 = vld [vmem:[%s601 + $0x34] sm:$0xf]
      %v616 = vld [vmem:[%s601 + $0x38] sm:$0xf]
      %v617 = vld [vmem:[%s601 + $0x3c] sm:$0xf]
      %v634 = vunpack.c.l.b16 %v602
      %v635 = vunpack.c.l.b16 %v603
      %v636 = vunpack.c.l.b16 %v604
      %v637 = vunpack.c.l.b16 %v605
      %v638 = vunpack.c.l.b16 %v606
      %v639 = vunpack.c.l.b16 %v607
      %v640 = vunpack.c.l.b16 %v608
      %v641 = vunpack.c.l.b16 %v609
      %v642 = vunpack.c.l.b16 %v610
      %v643 = vunpack.c.l.b16 %v611
      %v644 = vunpack.c.l.b16 %v612
      %v645 = vunpack.c.l.b16 %v613
      %v646 = vunpack.c.l.b16 %v614
      %v647 = vunpack.c.l.b16 %v615
      %v648 = vunpack.c.l.b16 %v616
      %v649 = vunpack.c.l.b16 %v617
      %v650 = vpack.c.b16 %v635, %v634
      %v651 = vpack.c.b16 %v637, %v636
      %v652 = vpack.c.b16 %v639, %v638
      %v653 = vpack.c.b16 %v641, %v640
      %v654 = vpack.c.b16 %v643, %v642
      %v655 = vpack.c.b16 %v645, %v644
      %v656 = vpack.c.b16 %v647, %v646
      %v657 = vpack.c.b16 %v649, %v648
      %666 = vmatprep.subr.bf16.mxu0 0
      %667 = vmatpush1.bf16.msra.mxu0 %v657
      %668 = vmatprep.subr.bf16.mxu0 0
      %669 = vmatpush1.bf16.msra.mxu0 %v656
      %670 = vmatprep.subr.bf16.mxu0 0
      %671 = vmatpush1.bf16.msra.mxu0 %v655
      %672 = vmatprep.subr.bf16.mxu0 0
      %673 = vmatpush1.bf16.msra.mxu0 %v654
      %674 = vmatprep.subr.bf16.mxu0 0
      %675 = vmatpush1.bf16.msra.mxu0 %v653
      %676 = vmatprep.subr.bf16.mxu0 0
      %677 = vmatpush1.bf16.msra.mxu0 %v652
      %678 = vmatprep.subr.bf16.mxu0 0
      %679 = vmatpush1.bf16.msra.mxu0 %v651
      %680 = vmatprep.subr.bf16.mxu0 0
      %681 = vmatpush1.bf16.msra.mxu0 %v650
      %682 = vmatprep.subr.bf16.mxu0 0
      %683 = vmatpush2.bf16.msra.mxu0 0
      %684 = vmatprep.subr.bf16.mxu0 0
      %685 = vmatpush2.bf16.msra.mxu0 0
      %686 = vmatprep.subr.bf16.mxu0 0
      %687 = vmatpush2.bf16.msra.mxu0 0
      %688 = vmatprep.subr.bf16.mxu0 0
      %689 = vmatpush2.bf16.msra.mxu0 0
      %690 = vmatprep.subr.bf16.mxu0 0
      %691 = vmatpush2.bf16.msra.mxu0 0
      %692 = vmatprep.subr.bf16.mxu0 0
      %693 = vmatpush2.bf16.msra.mxu0 0
      %694 = vmatprep.subr.bf16.mxu0 0
      %695 = vmatpush2.bf16.msra.mxu0 0
      %696 = vmatprep.subr.bf16.mxu0 0
      %697 = vmatpush2.bf16.msra.mxu0 0
      %698 = vmatprep.mubr.bf16.mxu0 0
      %699 = vmatmul.mubr.bf16.gmra.mxu0 %v290
      %v700 = vpop.f32.mrf.mxu0
      %v701 = vadd.f32 0.0, %v700
      %v702 = vpop.f32.mrf.mxu0
      %v703 = vpop.f32.mrf.mxu0
      %v704 = vpop.f32.mrf.mxu0
      %705 = vdwg.mxu0
      %v706 = vadd.f32 %v271, %v701
      %s707 = scalar_lea.vmem %s245, 192
      %v708 = vld [vmem:[%s707] sm:$0xf]
      %v709 = vld [vmem:[%s707 + $0x4] sm:$0xf]
      %v710 = vld [vmem:[%s707 + $0x8] sm:$0xf]
      %v711 = vld [vmem:[%s707 + $0xc] sm:$0xf]
      %v712 = vld [vmem:[%s707 + $0x10] sm:$0xf]
      %v713 = vld [vmem:[%s707 + $0x14] sm:$0xf]
      %v714 = vld [vmem:[%s707 + $0x18] sm:$0xf]
      %v715 = vld [vmem:[%s707 + $0x1c] sm:$0xf]
      %v716 = vld [vmem:[%s707 + $0x20] sm:$0xf]
      %v717 = vld [vmem:[%s707 + $0x24] sm:$0xf]
      %v718 = vld [vmem:[%s707 + $0x28] sm:$0xf]
      %v719 = vld [vmem:[%s707 + $0x2c] sm:$0xf]
      %v720 = vld [vmem:[%s707 + $0x30] sm:$0xf]
      %v721 = vld [vmem:[%s707 + $0x34] sm:$0xf]
      %v722 = vld [vmem:[%s707 + $0x38] sm:$0xf]
      %v723 = vld [vmem:[%s707 + $0x3c] sm:$0xf]
      %v740 = vunpack.c.l.b16 %v708
      %v741 = vunpack.c.l.b16 %v709
      %v742 = vunpack.c.l.b16 %v710
      %v743 = vunpack.c.l.b16 %v711
      %v744 = vunpack.c.l.b16 %v712
      %v745 = vunpack.c.l.b16 %v713
      %v746 = vunpack.c.l.b16 %v714
      %v747 = vunpack.c.l.b16 %v715
      %v748 = vunpack.c.l.b16 %v716
      %v749 = vunpack.c.l.b16 %v717
      %v750 = vunpack.c.l.b16 %v718
      %v751 = vunpack.c.l.b16 %v719
      %v752 = vunpack.c.l.b16 %v720
      %v753 = vunpack.c.l.b16 %v721
      %v754 = vunpack.c.l.b16 %v722
      %v755 = vunpack.c.l.b16 %v723
      %v756 = vpack.c.b16 %v741, %v740
      %v757 = vpack.c.b16 %v743, %v742
      %v758 = vpack.c.b16 %v745, %v744
      %v759 = vpack.c.b16 %v747, %v746
      %v760 = vpack.c.b16 %v749, %v748
      %v761 = vpack.c.b16 %v751, %v750
      %v762 = vpack.c.b16 %v753, %v752
      %v763 = vpack.c.b16 %v755, %v754
      %772 = vmatprep.subr.bf16.mxu0 0
      %773 = vmatpush1.bf16.msra.mxu0 %v763
      %774 = vmatprep.subr.bf16.mxu0 0
      %775 = vmatpush1.bf16.msra.mxu0 %v762
      %776 = vmatprep.subr.bf16.mxu0 0
      %777 = vmatpush1.bf16.msra.mxu0 %v761
      %778 = vmatprep.subr.bf16.mxu0 0
      %779 = vmatpush1.bf16.msra.mxu0 %v760
      %780 = vmatprep.subr.bf16.mxu0 0
      %781 = vmatpush1.bf16.msra.mxu0 %v759
      %782 = vmatprep.subr.bf16.mxu0 0
      %783 = vmatpush1.bf16.msra.mxu0 %v758
      %784 = vmatprep.subr.bf16.mxu0 0
      %785 = vmatpush1.bf16.msra.mxu0 %v757
      %786 = vmatprep.subr.bf16.mxu0 0
      %787 = vmatpush1.bf16.msra.mxu0 %v756
      %788 = vmatprep.subr.bf16.mxu0 0
      %789 = vmatpush2.bf16.msra.mxu0 0
      %790 = vmatprep.subr.bf16.mxu0 0
      %791 = vmatpush2.bf16.msra.mxu0 0
      %792 = vmatprep.subr.bf16.mxu0 0
      %793 = vmatpush2.bf16.msra.mxu0 0
      %794 = vmatprep.subr.bf16.mxu0 0
      %795 = vmatpush2.bf16.msra.mxu0 0
      %796 = vmatprep.subr.bf16.mxu0 0
      %797 = vmatpush2.bf16.msra.mxu0 0
      %798 = vmatprep.subr.bf16.mxu0 0
      %799 = vmatpush2.bf16.msra.mxu0 0
      %800 = vmatprep.subr.bf16.mxu0 0
      %801 = vmatpush2.bf16.msra.mxu0 0
      %802 = vmatprep.subr.bf16.mxu0 0
      %803 = vmatpush2.bf16.msra.mxu0 0
      %804 = vmatprep.mubr.bf16.mxu0 0
      %805 = vmatmul.mubr.bf16.gmra.mxu0 %v404
      %v806 = vpop.f32.mrf.mxu0
      %v807 = vadd.f32 0.0, %v806
      %v808 = vpop.f32.mrf.mxu0
      %v809 = vpop.f32.mrf.mxu0
      %v810 = vpop.f32.mrf.mxu0
      %811 = vdwg.mxu0
      %v812 = vadd.f32 %v706, %v807
      %vm813 = vcmask 1043456
      %v814 = vsel %vm813, %v600, 0.0
      %v815 = vrot.slane %v814, 4
      %v816 = vadd.f32 %v814, %v815
      %v817 = vrot.slane %v816, 2
      %v818 = vadd.f32 %v816, %v817
      %v819 = vrot.slane %v818, 1
      %v820 = vadd.f32 %v818, %v819
      %v821 = vsel %vm813, %v812, 0.0
      %v822 = vrot.slane %v821, 4
      %v823 = vadd.f32 %v821, %v822
      %v824 = vrot.slane %v823, 2
      %v825 = vadd.f32 %v823, %v824
      %v826 = vrot.slane %v825, 1
      %v827 = vadd.f32 %v825, %v826
      %v828 = vadd.f32 %v820, %v827
      %v829 = vmul.f32 %v828, 0.125
      %v830 = vmul.f32 %v600, %v600
      %v831 = vsel %vm813, %v830, 0.0
      %v832 = vrot.slane %v831, 4
      %v833 = vadd.f32 %v831, %v832
      %v834 = vrot.slane %v833, 2
      %v835 = vadd.f32 %v833, %v834
      %v836 = vrot.slane %v835, 1
      %v837 = vadd.f32 %v835, %v836
      %v838 = vmul.f32 %v812, %v812
      %v839 = vsel %vm813, %v838, 0.0
      %v840 = vrot.slane %v839, 4
      %v841 = vadd.f32 %v839, %v840
      %v842 = vrot.slane %v841, 2
      %v843 = vadd.f32 %v841, %v842
      %v844 = vrot.slane %v843, 1
      %v845 = vadd.f32 %v843, %v844
      %v846 = vadd.f32 %v837, %v845
      %v847 = vmul.f32 %v846, 0.125
      %v848 = vmul.f32 %v829, %v829
      %v849 = vsub.f32 %v847, %v848
      %v850 = vmax.f32 %v849, 0.0
      %v851 = vadd.f32 %v850, 1e-05
      %v852 = vrsqrt.pop %v851
      %v853 = vsub.f32 %v600, %v829
      %v854 = vmul.f32 %v853, %v852
      %v855 = vmax.f32 %v854, 0.0
      %856 = vst [vmem:[%s255] sm:$0xf] %v855
      %v857 = vsub.f32 %v812, %v829
      %v858 = vmul.f32 %v857, %v852
      %v859 = vmax.f32 %v858, 0.0
      %860 = vst [vmem:[%s262] sm:$0xf] %v859
      %p861 = scmp.lt.s32.totalorder %s20, 1
      %s862 = scalar_select %p861, %s20, 1
      %p863 = scmp.lt.s32.totalorder %s21, 0
      %s864 = scalar_select %p863, %s21, 0
      %s865 = sadd.s32 %s864, %s862
      %s866 = smul.addr %s865, 4
      %s867 = scalar_lea.vmem %s3, %s866
      %p868 = scmp.lt.s32.totalorder %s20, 1
      %s869 = scalar_select %p868, %s20, 1
      %p870 = scmp.lt.s32.totalorder %s21, 0
      %s871 = scalar_select %p870, %s21, 0
      %s872 = sadd.s32 %s871, %s869
      %s873 = smul.addr %s872, 4
      %s874 = scalar_lea.vmem %s4, %s873
      // Predicated region
      $region33: #{generator_forward.17} parent=31 // pred_check
        %p875 = pneg %p126
      $region34: #{generator_forward.17} parent=31 // pred_check_branch
        %877 = sbr.rel (%p875) target = $region36
      $region35: #{generator_forward.17} parent=31 // pred_region
        _
      $region36: #{generator_forward.17} parent=31 // pred_fallthru
        _
      // Predicated region
      $region37: #{generator_forward.17} parent=31 // pred_check
        %p878 = pneg %p154
      $region38: #{generator_forward.17} parent=31 // pred_check_branch
        %880 = sbr.rel (%p878) target = $region40
      $region39: #{generator_forward.17} parent=31 // pred_region
        _
      $region40: #{generator_forward.17} parent=31 // pred_fallthru
        _
    $region32: #{generator_forward.17} parent=5 // pred_fallthru
      _
    %p881 = scmp.le.s32.totalorder 2, %s11
    // Predicated region
    $region41: #{generator_forward.17} parent=5 // pred_check
      %p882 = pneg %p881
    $region42: #{generator_forward.17} parent=5 // pred_check_branch
      %884 = sbr.rel (%p882) target = $region44
    $region43: #{generator_forward.17} parent=5 // pred_region
      %s885 = ssub.s32 %s11, 2
      // Predicated region
      $region45: #{generator_forward.17} parent=43 // pred_check
        %p886 = pneg %p132
      $region46: #{generator_forward.17} parent=43 // pred_check_branch
        %888 = sbr.rel (%p886) target = $region48
      $region47: #{generator_forward.17} parent=43 // pred_region
        %p889 = scmp.lt.s32.totalorder %s22, 1
        %s890 = scalar_select %p889, %s22, 1
        %p891 = scmp.lt.s32.totalorder %s23, 0
        %s892 = scalar_select %p891, %s23, 0
        %s893 = sadd.s32 %s892, %s890
        %s894 = smul.addr %s893, 4
        %s895 = scalar_lea.vmem %s3, %s894
      $region48: #{generator_forward.17} parent=43 // pred_fallthru
        _
      // Predicated region
      $region49: #{generator_forward.17} parent=43 // pred_check
        %p896 = pneg %p160
      $region50: #{generator_forward.17} parent=43 // pred_check_branch
        %898 = sbr.rel (%p896) target = $region52
      $region51: #{generator_forward.17} parent=43 // pred_region
        %p899 = scmp.lt.s32.totalorder %s22, 1
        %s900 = scalar_select %p899, %s22, 1
        %p901 = scmp.lt.s32.totalorder %s23, 0
        %s902 = scalar_select %p901, %s23, 0
        %s903 = sadd.s32 %s902, %s900
        %s904 = smul.addr %s903, 4
        %s905 = scalar_lea.vmem %s4, %s904
      $region52: #{generator_forward.17} parent=43 // pred_fallthru
        _
    $region44: #{generator_forward.17} parent=5 // pred_fallthru
      _
  $region6: #{generator_forward.17} parent=0 // loop_footer
    %s15 = sadd.s32 1, %s11
  $region7: #{generator_forward.17} parent=0 // loop_footer_branch
    %10 = sbr.rel target = $region3
  $region8: #{generator_forward.17} parent=0 // loop_exit
    _

// kernel: generator_forward.18
$region0: #{generator_forward.18}
  #allocation0 [shape = 'u32[]', space=smem, size = 0x4, offset = 0x4, fixed_abs, tag = 'smem constant byte address 0x4 - core index']
  #allocation1 [shape = 'u32[144,128]{1,0:T(1,128)}', space=vmem, size = 0x12000, scoped, tag = 'internal scratch']
  %s0 = inlined_call_operand.vmem [shape: f32[2,10,128], index: 0, kind: input, shape index: {}]
  %s1 = inlined_call_operand.vmem [shape: bf16[5,128,128], index: 1, kind: input, shape index: {}]
  %s2 = inlined_call_operand.vmem [shape: f32[1,128], index: 2, kind: input, shape index: {}]
  %s3 = inlined_call_operand.vmem [shape: f32[2,8,128], index: 3, kind: output, shape index: {0}]
  %s4 = inlined_call_operand.vmem [shape: f32[2,8,128], index: 4, kind: output, shape index: {1}]
  %5 = xla_tuple %s3, %s4
  %s6 = sld [smem:[#allocation0]]
  $region53: #{generator_forward.18} parent=0
    _
  %s8 = ssub.s32 1, %s6
  %s9 = scalar_select 0, %s8, %s6
  loop: start=0, step=1, limit=4
  $region2: #{generator_forward.18} parent=0 // loop_pre_header
    _
  $region3: #{generator_forward.18} parent=0 // loop_header
    %s11 = sphi 0, %s15
    %p12 = scmp.ge.s32.totalorder %s11, 4
    %s18 = sphi 0, %s30
    %s19 = sphi 0, %s26
    %s20 = sphi 0, %s18
    %s21 = sphi 0, %s19
    %s22 = sphi 0, %s20
    %s23 = sphi 0, %s21
    %s33 = sphi 0, %s35
    %s36 = sphi 0, %s33
    %s37 = sphi 0, %s36
    %s53 = sphi 0, %s37
    %s59 = sphi 0, %s61
    %s62 = sphi 0, %s59
    %s63 = sphi 0, %s62
    %s79 = sphi 0, %s63
    %s85 = sphi 0, %s87
    %s88 = sphi 0, %s85
    %s89 = sphi 0, %s88
    %s105 = sphi 0, %s89
    %s113 = sphi 0, %s115
    %s116 = sphi 0, %s113
    %s117 = sphi 0, %s116
    %s133 = sphi 0, %s117
    %s141 = sphi 0, %s143
    %s144 = sphi 0, %s141
    %s145 = sphi 0, %s144
    %s161 = sphi 0, %s145
  $region4: #{generator_forward.18} parent=0 // loop_header_branch
    %14 = sbr.rel (%p12) target = $region8
  $region5: #{generator_forward.18} parent=0 // loop_body
    %s16 = ssub.s32 %s11, 1
    %s17 = ssub.s32 %s11, 2
    %s24 = sadd.s32 1, %s19
    %p25 = scmp.ge.s32.totalorder %s24, 1
    %s26 = scalar_select %p25, 0, %s24
    %s27 = sadd.s32 1, %s18
    %s28 = scalar_select %p25, %s27, %s18
    %p29 = scmp.ge.s32.totalorder %s28, 2
    %s30 = scalar_select %p29, 0, %s28
    %s31 = ssub.s32 %s18, %s30
    %p32 = scmp.eq.s32.totalorder %s31, 0
    %s34 = sadd.s32 %s33, 1
    %s35 = scalar_select %p32, %s33, %s34
    %p38 = pneg %p32
    %p39 = scmp.eq.s32.totalorder %s11, 1
    %p40 = por %p38, %p39
    %p41 = scmp.ne.s32.totalorder %s33, %s36
    %p42 = scmp.eq.s32.totalorder %s11, 0
    %p43 = por %p41, %p42
    %p44 = scmp.ne.s32.totalorder %s33, %s36
    %p45 = scmp.eq.s32.totalorder %s16, 1
    %p46 = por %p44, %p45
    %p47 = scmp.ne.s32.totalorder %s36, %s37
    %p48 = scmp.eq.s32.totalorder %s16, 0
    %p49 = por %p47, %p48
    %p50 = scmp.ne.s32.totalorder %s36, %s37
    %p51 = scmp.eq.s32.totalorder %s17, 1
    %p52 = por %p50, %p51
    %p54 = scmp.ne.s32.totalorder %s37, %s53
    %p55 = scmp.eq.s32.totalorder %s17, 0
    %p56 = por %p54, %p55
    %s57 = ssub.s32 %s19, %s26
    %p58 = scmp.eq.s32.totalorder %s57, 0
    %s60 = sadd.s32 %s59, 1
    %s61 = scalar_select %p58, %s59, %s60
    %p64 = pneg %p58
    %p65 = scmp.eq.s32.totalorder %s11, 1
    %p66 = por %p64, %p65
    %p67 = scmp.ne.s32.totalorder %s59, %s62
    %p68 = scmp.eq.s32.totalorder %s11, 0
    %p69 = por %p67, %p68
    %p70 = scmp.ne.s32.totalorder %s59, %s62
    %p71 = scmp.eq.s32.totalorder %s16, 1
    %p72 = por %p70, %p71
    %p73 = scmp.ne.s32.totalorder %s62, %s63
    %p74 = scmp.eq.s32.totalorder %s16, 0
    %p75 = por %p73, %p74
    %p76 = scmp.ne.s32.totalorder %s62, %s63
    %p77 = scmp.eq.s32.totalorder %s17, 1
    %p78 = por %p76, %p77
    %p80 = scmp.ne.s32.totalorder %s63, %s79
    %p81 = scmp.eq.s32.totalorder %s17, 0
    %p82 = por %p80, %p81
    %s83 = ssub.s32 %s19, %s26
    %p84 = scmp.eq.s32.totalorder %s83, 0
    %s86 = sadd.s32 %s85, 1
    %s87 = scalar_select %p84, %s85, %s86
    %p90 = pneg %p84
    %p91 = scmp.eq.s32.totalorder %s11, 1
    %p92 = por %p90, %p91
    %p93 = scmp.ne.s32.totalorder %s85, %s88
    %p94 = scmp.eq.s32.totalorder %s11, 0
    %p95 = por %p93, %p94
    %p96 = scmp.ne.s32.totalorder %s85, %s88
    %p97 = scmp.eq.s32.totalorder %s16, 1
    %p98 = por %p96, %p97
    %p99 = scmp.ne.s32.totalorder %s88, %s89
    %p100 = scmp.eq.s32.totalorder %s16, 0
    %p101 = por %p99, %p100
    %p102 = scmp.ne.s32.totalorder %s88, %s89
    %p103 = scmp.eq.s32.totalorder %s17, 1
    %p104 = por %p102, %p103
    %p106 = scmp.ne.s32.totalorder %s89, %s105
    %p107 = scmp.eq.s32.totalorder %s17, 0
    %p108 = por %p106, %p107
    %s109 = ssub.s32 %s18, %s30
    %s110 = ssub.s32 %s19, %s26
    %s111 = sor.u32 %s109, %s110
    %p112 = scmp.eq.s32.totalorder %s111, 0
    %s114 = sadd.s32 %s113, 1
    %s115 = scalar_select %p112, %s113, %s114
    %p118 = pneg %p112
    %p119 = scmp.eq.s32.totalorder %s11, 1
    %p120 = por %p118, %p119
    %p121 = scmp.ne.s32.totalorder %s113, %s116
    %p122 = scmp.eq.s32.totalorder %s11, 0
    %p123 = por %p121, %p122
    %p124 = scmp.ne.s32.totalorder %s113, %s116
    %p125 = scmp.eq.s32.totalorder %s16, 1
    %p126 = por %p124, %p125
    %p127 = scmp.ne.s32.totalorder %s116, %s117
    %p128 = scmp.eq.s32.totalorder %s16, 0
    %p129 = por %p127, %p128
    %p130 = scmp.ne.s32.totalorder %s116, %s117
    %p131 = scmp.eq.s32.totalorder %s17, 1
    %p132 = por %p130, %p131
    %p134 = scmp.ne.s32.totalorder %s117, %s133
    %p135 = scmp.eq.s32.totalorder %s17, 0
    %p136 = por %p134, %p135
    %s137 = ssub.s32 %s18, %s30
    %s138 = ssub.s32 %s19, %s26
    %s139 = sor.u32 %s137, %s138
    %p140 = scmp.eq.s32.totalorder %s139, 0
    %s142 = sadd.s32 %s141, 1
    %s143 = scalar_select %p140, %s141, %s142
    %p146 = pneg %p140
    %p147 = scmp.eq.s32.totalorder %s11, 1
    %p148 = por %p146, %p147
    %p149 = scmp.ne.s32.totalorder %s141, %s144
    %p150 = scmp.eq.s32.totalorder %s11, 0
    %p151 = por %p149, %p150
    %p152 = scmp.ne.s32.totalorder %s141, %s144
    %p153 = scmp.eq.s32.totalorder %s16, 1
    %p154 = por %p152, %p153
    %p155 = scmp.ne.s32.totalorder %s144, %s145
    %p156 = scmp.eq.s32.totalorder %s16, 0
    %p157 = por %p155, %p156
    %p158 = scmp.ne.s32.totalorder %s144, %s145
    %p159 = scmp.eq.s32.totalorder %s17, 1
    %p160 = por %p158, %p159
    %p162 = scmp.ne.s32.totalorder %s145, %s161
    %p163 = scmp.eq.s32.totalorder %s17, 0
    %p164 = por %p162, %p163
    %p165 = scmp.le.s32.totalorder 1, %s11
    %p166 = scmp.lt.s32.totalorder %s11, 3
    %p167 = pnand %p165, %p166
    %p168 = pneg %p167
    // Predicated region
    $region9: #{generator_forward.18} parent=5 // pred_check
      _
    $region10: #{generator_forward.18} parent=5 // pred_check_branch
      %170 = sbr.rel (%p167) target = $region12
    $region11: #{generator_forward.18} parent=5 // pred_region
      %s171 = ssub.s32 %s11, 1
      // Predicated region
      $region13: #{generator_forward.18} parent=11 // pred_check
        %p172 = pneg %p75
      $region14: #{generator_forward.18} parent=11 // pred_check_branch
        %174 = sbr.rel (%p172) target = $region16
      $region15: #{generator_forward.18} parent=11 // pred_region
        %p175 = scmp.lt.s32.totalorder %s21, 0
        %s176 = scalar_select %p175, %s21, 0
        %s177 = smul.addr %s176, 4
        %s178 = scalar_lea.vmem %s1, %s177
      $region16: #{generator_forward.18} parent=11 // pred_fallthru
        _
      // Predicated region
      $region17: #{generator_forward.18} parent=11 // pred_check
        %p179 = pneg %p101
      $region18: #{generator_forward.18} parent=11 // pred_check_branch
        %181 = sbr.rel (%p179) target = $region20
      $region19: #{generator_forward.18} parent=11 // pred_region
        %p182 = scmp.lt.s32.totalorder %s21, 0
        %s183 = scalar_select %p182, %s21, 0
        %s184 = scalar_lea.vmem %s2, %s183
      $region20: #{generator_forward.18} parent=11 // pred_fallthru
        _
    $region12: #{generator_forward.18} parent=5 // pred_fallthru
      _
    %p185 = scmp.lt.s32.totalorder %s11, 2
    // Predicated region
    $region21: #{generator_forward.18} parent=5 // pred_check
      %p186 = pneg %p185
    $region22: #{generator_forward.18} parent=5 // pred_check_branch
      %188 = sbr.rel (%p186) target = $region24
    $region23: #{generator_forward.18} parent=5 // pred_region
      // Predicated region
      $region25: #{generator_forward.18} parent=23 // pred_check
        %p189 = pneg %p43
      $region26: #{generator_forward.18} parent=23 // pred_check_branch
        %191 = sbr.rel (%p189) target = $region28
      $region27: #{generator_forward.18} parent=23 // pred_region
        %p192 = scmp.lt.s32.totalorder %s18, 1
        %s193 = scalar_select %p192, %s18, 1
        %s194 = smul.addr %s193, 2
        %s195 = smul.addr %s194, 8
        %s196 = scalar_lea.vmem %s0, %s195
      $region28: #{generator_forward.18} parent=23 // pred_fallthru
        _
    $region24: #{generator_forward.18} parent=5 // pred_fallthru
      _
    %p197 = scmp.le.s32.totalorder 1, %s11
    %p198 = scmp.lt.s32.totalorder %s11, 3
    %p199 = pnand %p197, %p198
    %p200 = pneg %p199
    // Predicated region
    $region29: #{generator_forward.18} parent=5 // pred_check
      _
    $region30: #{generator_forward.18} parent=5 // pred_check_branch
      %202 = sbr.rel (%p199) target = $region32
    $region31: #{generator_forward.18} parent=5 // pred_region
      %s203 = ssub.s32 %s11, 1
      %p204 = scmp.lt.s32.totalorder %s20, 1
      %s205 = scalar_select %p204, %s20, 1
      %s206 = smul.addr %s205, 2
      %s207 = smul.addr %s206, 8
      %s208 = scalar_lea.vmem %s0, %s207
      %p209 = pneg %p49
      %p210 = pneg %p46
      %p211 = scmp.lt.s32.totalorder %s21, 0
      %s212 = scalar_select %p211, %s21, 0
      %s213 = smul.addr %s212, 4
      %s214 = scalar_lea.vmem %s1, %s213
      %p215 = pneg %p75
      %p216 = pneg %p72
      %p217 = scmp.lt.s32.totalorder %s21, 0
      %s218 = scalar_select %p217, %s21, 0
      %s219 = scalar_lea.vmem %s2, %s218
      %p220 = pneg %p101
      %p221 = pneg %p98
      %p222 = pneg %p129
      %p223 = pneg %p126
      %p224 = scmp.lt.s32.totalorder %s20, 1
      %s225 = scalar_select %p224, %s20, 1
      %p226 = scmp.lt.s32.totalorder %s21, 0
      %s227 = scalar_select %p226, %s21, 0
      %s228 = sadd.s32 %s227, %s225
      %s229 = smul.addr %s228, 8
      %s230 = scalar_lea.vmem %s3, %s229
      %p231 = pneg %p157
      %p232 = pneg %p154
      %p233 = scmp.lt.s32.totalorder %s20, 1
      %s234 = scalar_select %p233, %s20, 1
      %p235 = scmp.lt.s32.totalorder %s21, 0
      %s236 = scalar_select %p235, %s21, 0
      %s237 = sadd.s32 %s236, %s234
      %s238 = smul.addr %s237, 8
      %s239 = scalar_lea.vmem %s4, %s238
      %p240 = scmp.lt.s32.totalorder %s20, 1
      %s241 = scalar_select %p240, %s20, 1
      %s242 = smul.addr %s241, 2
      %s243 = smul.addr %s242, 8
      %s244 = scalar_lea.vmem %s0, %s243
      %p245 = scmp.lt.s32.totalorder %s21, 0
      %s246 = scalar_select %p245, %s21, 0
      %s247 = smul.addr %s246, 4
      %s248 = scalar_lea.vmem %s1, %s247
      %p249 = scmp.lt.s32.totalorder %s21, 0
      %s250 = scalar_select %p249, %s21, 0
      %s251 = scalar_lea.vmem %s2, %s250
      %p252 = scmp.lt.s32.totalorder %s20, 1
      %s253 = scalar_select %p252, %s20, 1
      %p254 = scmp.lt.s32.totalorder %s21, 0
      %s255 = scalar_select %p254, %s21, 0
      %s256 = sadd.s32 %s255, %s253
      %s257 = smul.addr %s256, 8
      %s258 = scalar_lea.vmem %s3, %s257
      %p259 = scmp.lt.s32.totalorder %s20, 1
      %s260 = scalar_select %p259, %s20, 1
      %p261 = scmp.lt.s32.totalorder %s21, 0
      %s262 = scalar_select %p261, %s21, 0
      %s263 = sadd.s32 %s262, %s260
      %s264 = smul.addr %s263, 8
      %s265 = scalar_lea.vmem %s4, %s264
      %v267 = vld [vmem:[%s244] sm:$0xff]
      %v268 = vld [vmem:[%s244 + $0x8] sm:$0x3]
      %v269 = vpack.c.bf16 %v268, %v267
      %v270 = vld [vmem:[%s251] sm:$0x1]
      %v272 = vlaneseq
      %v273 = vshrl.u32 %v272, 7
      %v274 = vsub.s32 0, %v273
      %v275 = vrot.slane %v270, %v274
      %v277 = vld [vmem:[%s248] sm:$0xf]
      %v278 = vld [vmem:[%s248 + $0x4] sm:$0xf]
      %v279 = vld [vmem:[%s248 + $0x8] sm:$0xf]
      %v280 = vld [vmem:[%s248 + $0xc] sm:$0xf]
      %v281 = vld [vmem:[%s248 + $0x10] sm:$0xf]
      %v282 = vld [vmem:[%s248 + $0x14] sm:$0xf]
      %v283 = vld [vmem:[%s248 + $0x18] sm:$0xf]
      %v284 = vld [vmem:[%s248 + $0x1c] sm:$0xf]
      %v285 = vld [vmem:[%s248 + $0x20] sm:$0xf]
      %v286 = vld [vmem:[%s248 + $0x24] sm:$0xf]
      %v287 = vld [vmem:[%s248 + $0x28] sm:$0xf]
      %v288 = vld [vmem:[%s248 + $0x2c] sm:$0xf]
      %v289 = vld [vmem:[%s248 + $0x30] sm:$0xf]
      %v290 = vld [vmem:[%s248 + $0x34] sm:$0xf]
      %v291 = vld [vmem:[%s248 + $0x38] sm:$0xf]
      %v292 = vld [vmem:[%s248 + $0x3c] sm:$0xf]
      %v294 = vrot.slane %v269, 1
      %v312 = vunpack.c.l.b16 %v277
      %v313 = vunpack.c.l.b16 %v278
      %v314 = vunpack.c.l.b16 %v279
      %v315 = vunpack.c.l.b16 %v280
      %v316 = vunpack.c.l.b16 %v281
      %v317 = vunpack.c.l.b16 %v282
      %v318 = vunpack.c.l.b16 %v283
      %v319 = vunpack.c.l.b16 %v284
      %v320 = vunpack.c.l.b16 %v285
      %v321 = vunpack.c.l.b16 %v286
      %v322 = vunpack.c.l.b16 %v287
      %v323 = vunpack.c.l.b16 %v288
      %v324 = vunpack.c.l.b16 %v289
      %v325 = vunpack.c.l.b16 %v290
      %v326 = vunpack.c.l.b16 %v291
      %v327 = vunpack.c.l.b16 %v292
      %v328 = vpack.c.b16 %v313, %v312
      %v329 = vpack.c.b16 %v315, %v314
      %v330 = vpack.c.b16 %v317, %v316
      %v331 = vpack.c.b16 %v319, %v318
      %v332 = vpack.c.b16 %v321, %v320
      %v333 = vpack.c.b16 %v323, %v322
      %v334 = vpack.c.b16 %v325, %v324
      %v335 = vpack.c.b16 %v327, %v326
      %344 = vmatprep.subr.bf16.mxu0 0
      %345 = vmatpush1.bf16.msra.mxu0 %v335
      %346 = vmatprep.subr.bf16.mxu0 0
      %347 = vmatpush1.bf16.msra.mxu0 %v334
      %348 = vmatprep.subr.bf16.mxu0 0
      %349 = vmatpush1.bf16.msra.mxu0 %v333
      %350 = vmatprep.subr.bf16.mxu0 0
      %351 = vmatpush1.bf16.msra.mxu0 %v332
      %352 = vmatprep.subr.bf16.mxu0 0
      %353 = vmatpush1.bf16.msra.mxu0 %v331
      %354 = vmatprep.subr.bf16.mxu0 0
      %355 = vmatpush1.bf16.msra.mxu0 %v330
      %356 = vmatprep.subr.bf16.mxu0 0
      %357 = vmatpush1.bf16.msra.mxu0 %v329
      %358 = vmatprep.subr.bf16.mxu0 0
      %359 = vmatpush1.bf16.msra.mxu0 %v328
      %360 = vmatprep.subr.bf16.mxu0 0
      %361 = vmatpush2.bf16.msra.mxu0 0
      %362 = vmatprep.subr.bf16.mxu0 0
      %363 = vmatpush2.bf16.msra.mxu0 0
      %364 = vmatprep.subr.bf16.mxu0 0
      %365 = vmatpush2.bf16.msra.mxu0 0
      %366 = vmatprep.subr.bf16.mxu0 0
      %367 = vmatpush2.bf16.msra.mxu0 0
      %368 = vmatprep.subr.bf16.mxu0 0
      %369 = vmatpush2.bf16.msra.mxu0 0
      %370 = vmatprep.subr.bf16.mxu0 0
      %371 = vmatpush2.bf16.msra.mxu0 0
      %372 = vmatprep.subr.bf16.mxu0 0
      %373 = vmatpush2.bf16.msra.mxu0 0
      %374 = vmatprep.subr.bf16.mxu0 0
      %375 = vmatpush2.bf16.msra.mxu0 0
      %376 = vmatprep.mubr.bf16.mxu0 0
      %377 = vmatmul.mubr.bf16.gmra.mxu0 %v294
      %v378 = vpop.f32.mrf.mxu0
      %v379 = vadd.f32 0.0, %v378
      %v380 = vpop.f32.mrf.mxu0
      %v381 = vpop.f32.mrf.mxu0
      %v382 = vpop.f32.mrf.mxu0
      %383 = vdwg.mxu0
      %v384 = vadd.f32 %v275, %v379
      %s385 = scalar_lea.vmem %s248, 128
      %v386 = vld [vmem:[%s385] sm:$0xf]
      %v387 = vld [vmem:[%s385 + $0x4] sm:$0xf]
      %v388 = vld [vmem:[%s385 + $0x8] sm:$0xf]
      %v389 = vld [vmem:[%s385 + $0xc] sm:$0xf]
      %v390 = vld [vmem:[%s385 + $0x10] sm:$0xf]
      %v391 = vld [vmem:[%s385 + $0x14] sm:$0xf]
      %v392 = vld [vmem:[%s385 + $0x18] sm:$0xf]
      %v393 = vld [vmem:[%s385 + $0x1c] sm:$0xf]
      %v394 = vld [vmem:[%s385 + $0x20] sm:$0xf]
      %v395 = vld [vmem:[%s385 + $0x24] sm:$0xf]
      %v396 = vld [vmem:[%s385 + $0x28] sm:$0xf]
      %v397 = vld [vmem:[%s385 + $0x2c] sm:$0xf]
      %v398 = vld [vmem:[%s385 + $0x30] sm:$0xf]
      %v399 = vld [vmem:[%s385 + $0x34] sm:$0xf]
      %v400 = vld [vmem:[%s385 + $0x38] sm:$0xf]
      %v401 = vld [vmem:[%s385 + $0x3c] sm:$0xf]
      %v403 = vshrl.u32 %v269, 16
      %v405 = vshll.u32 %v269, 16
      %v407 = vrot.slane %v405, 1
      %v408 = vor.u32 %v403, %v407
      %v426 = vunpack.c.l.b16 %v386
      %v427 = vunpack.c.l.b16 %v387
      %v428 = vunpack.c.l.b16 %v388
      %v429 = vunpack.c.l.b16 %v389
      %v430 = vunpack.c.l.b16 %v390
      %v431 = vunpack.c.l.b16 %v391
      %v432 = vunpack.c.l.b16 %v392
      %v433 = vunpack.c.l.b16 %v393
      %v434 = vunpack.c.l.b16 %v394
      %v435 = vunpack.c.l.b16 %v395
      %v436 = vunpack.c.l.b16 %v396
      %v437 = vunpack.c.l.b16 %v397
      %v438 = vunpack.c.l.b16 %v398
      %v439 = vunpack.c.l.b16 %v399
      %v440 = vunpack.c.l.b16 %v400
      %v441 = vunpack.c.l.b16 %v401
      %v442 = vpack.c.b16 %v427, %v426
      %v443 = vpack.c.b16 %v429, %v428
      %v444 = vpack.c.b16 %v431, %v430
      %v445 = vpack.c.b16 %v433, %v432
      %v446 = vpack.c.b16 %v435, %v434
      %v447 = vpack.c.b16 %v437, %v436
      %v448 = vpack.c.b16 %v439, %v438
      %v449 = vpack.c.b16 %v441, %v440
      %458 = vmatprep.subr.bf16.mxu0 0
      %459 = vmatpush1.bf16.msra.mxu0 %v449
      %460 = vmatprep.subr.bf16.mxu0 0
      %461 = vmatpush1.bf16.msra.mxu0 %v448
      %462 = vmatprep.subr.bf16.mxu0 0
      %463 = vmatpush1.bf16.msra.mxu0 %v447
      %464 = vmatprep.subr.bf16.mxu0 0
      %465 = vmatpush1.bf16.msra.mxu0 %v446
      %466 = vmatprep.subr.bf16.mxu0 0
      %467 = vmatpush1.bf16.msra.mxu0 %v445
      %468 = vmatprep.subr.bf16.mxu0 0
      %469 = vmatpush1.bf16.msra.mxu0 %v444
      %470 = vmatprep.subr.bf16.mxu0 0
      %471 = vmatpush1.bf16.msra.mxu0 %v443
      %472 = vmatprep.subr.bf16.mxu0 0
      %473 = vmatpush1.bf16.msra.mxu0 %v442
      %474 = vmatprep.subr.bf16.mxu0 0
      %475 = vmatpush2.bf16.msra.mxu0 0
      %476 = vmatprep.subr.bf16.mxu0 0
      %477 = vmatpush2.bf16.msra.mxu0 0
      %478 = vmatprep.subr.bf16.mxu0 0
      %479 = vmatpush2.bf16.msra.mxu0 0
      %480 = vmatprep.subr.bf16.mxu0 0
      %481 = vmatpush2.bf16.msra.mxu0 0
      %482 = vmatprep.subr.bf16.mxu0 0
      %483 = vmatpush2.bf16.msra.mxu0 0
      %484 = vmatprep.subr.bf16.mxu0 0
      %485 = vmatpush2.bf16.msra.mxu0 0
      %486 = vmatprep.subr.bf16.mxu0 0
      %487 = vmatpush2.bf16.msra.mxu0 0
      %488 = vmatprep.subr.bf16.mxu0 0
      %489 = vmatpush2.bf16.msra.mxu0 0
      %490 = vmatprep.mubr.bf16.mxu0 0
      %491 = vmatmul.mubr.bf16.gmra.mxu0 %v408
      %v492 = vpop.f32.mrf.mxu0
      %v493 = vadd.f32 0.0, %v492
      %v494 = vpop.f32.mrf.mxu0
      %v495 = vpop.f32.mrf.mxu0
      %v496 = vpop.f32.mrf.mxu0
      %497 = vdwg.mxu0
      %v498 = vadd.f32 %v384, %v493
      %s499 = scalar_lea.vmem %s248, 256
      %v500 = vld [vmem:[%s499] sm:$0xf]
      %v501 = vld [vmem:[%s499 + $0x4] sm:$0xf]
      %v502 = vld [vmem:[%s499 + $0x8] sm:$0xf]
      %v503 = vld [vmem:[%s499 + $0xc] sm:$0xf]
      %v504 = vld [vmem:[%s499 + $0x10] sm:$0xf]
      %v505 = vld [vmem:[%s499 + $0x14] sm:$0xf]
      %v506 = vld [vmem:[%s499 + $0x18] sm:$0xf]
      %v507 = vld [vmem:[%s499 + $0x1c] sm:$0xf]
      %v508 = vld [vmem:[%s499 + $0x20] sm:$0xf]
      %v509 = vld [vmem:[%s499 + $0x24] sm:$0xf]
      %v510 = vld [vmem:[%s499 + $0x28] sm:$0xf]
      %v511 = vld [vmem:[%s499 + $0x2c] sm:$0xf]
      %v512 = vld [vmem:[%s499 + $0x30] sm:$0xf]
      %v513 = vld [vmem:[%s499 + $0x34] sm:$0xf]
      %v514 = vld [vmem:[%s499 + $0x38] sm:$0xf]
      %v515 = vld [vmem:[%s499 + $0x3c] sm:$0xf]
      %v532 = vunpack.c.l.b16 %v500
      %v533 = vunpack.c.l.b16 %v501
      %v534 = vunpack.c.l.b16 %v502
      %v535 = vunpack.c.l.b16 %v503
      %v536 = vunpack.c.l.b16 %v504
      %v537 = vunpack.c.l.b16 %v505
      %v538 = vunpack.c.l.b16 %v506
      %v539 = vunpack.c.l.b16 %v507
      %v540 = vunpack.c.l.b16 %v508
      %v541 = vunpack.c.l.b16 %v509
      %v542 = vunpack.c.l.b16 %v510
      %v543 = vunpack.c.l.b16 %v511
      %v544 = vunpack.c.l.b16 %v512
      %v545 = vunpack.c.l.b16 %v513
      %v546 = vunpack.c.l.b16 %v514
      %v547 = vunpack.c.l.b16 %v515
      %v548 = vpack.c.b16 %v533, %v532
      %v549 = vpack.c.b16 %v535, %v534
      %v550 = vpack.c.b16 %v537, %v536
      %v551 = vpack.c.b16 %v539, %v538
      %v552 = vpack.c.b16 %v541, %v540
      %v553 = vpack.c.b16 %v543, %v542
      %v554 = vpack.c.b16 %v545, %v544
      %v555 = vpack.c.b16 %v547, %v546
      %564 = vmatprep.subr.bf16.mxu0 0
      %565 = vmatpush1.bf16.msra.mxu0 %v555
      %566 = vmatprep.subr.bf16.mxu0 0
      %567 = vmatpush1.bf16.msra.mxu0 %v554
      %568 = vmatprep.subr.bf16.mxu0 0
      %569 = vmatpush1.bf16.msra.mxu0 %v553
      %570 = vmatprep.subr.bf16.mxu0 0
      %571 = vmatpush1.bf16.msra.mxu0 %v552
      %572 = vmatprep.subr.bf16.mxu0 0
      %573 = vmatpush1.bf16.msra.mxu0 %v551
      %574 = vmatprep.subr.bf16.mxu0 0
      %575 = vmatpush1.bf16.msra.mxu0 %v550
      %576 = vmatprep.subr.bf16.mxu0 0
      %577 = vmatpush1.bf16.msra.mxu0 %v549
      %578 = vmatprep.subr.bf16.mxu0 0
      %579 = vmatpush1.bf16.msra.mxu0 %v548
      %580 = vmatprep.subr.bf16.mxu0 0
      %581 = vmatpush2.bf16.msra.mxu0 0
      %582 = vmatprep.subr.bf16.mxu0 0
      %583 = vmatpush2.bf16.msra.mxu0 0
      %584 = vmatprep.subr.bf16.mxu0 0
      %585 = vmatpush2.bf16.msra.mxu0 0
      %586 = vmatprep.subr.bf16.mxu0 0
      %587 = vmatpush2.bf16.msra.mxu0 0
      %588 = vmatprep.subr.bf16.mxu0 0
      %589 = vmatpush2.bf16.msra.mxu0 0
      %590 = vmatprep.subr.bf16.mxu0 0
      %591 = vmatpush2.bf16.msra.mxu0 0
      %592 = vmatprep.subr.bf16.mxu0 0
      %593 = vmatpush2.bf16.msra.mxu0 0
      %594 = vmatprep.subr.bf16.mxu0 0
      %595 = vmatpush2.bf16.msra.mxu0 0
      %596 = vmatprep.mubr.bf16.mxu0 0
      %597 = vmatmul.mubr.bf16.gmra.mxu0 %v269
      %v598 = vpop.f32.mrf.mxu0
      %v599 = vadd.f32 0.0, %v598
      %v600 = vpop.f32.mrf.mxu0
      %v601 = vpop.f32.mrf.mxu0
      %v602 = vpop.f32.mrf.mxu0
      %603 = vdwg.mxu0
      %v604 = vadd.f32 %v498, %v599
      %s605 = scalar_lea.vmem %s248, 64
      %v606 = vld [vmem:[%s605] sm:$0xf]
      %v607 = vld [vmem:[%s605 + $0x4] sm:$0xf]
      %v608 = vld [vmem:[%s605 + $0x8] sm:$0xf]
      %v609 = vld [vmem:[%s605 + $0xc] sm:$0xf]
      %v610 = vld [vmem:[%s605 + $0x10] sm:$0xf]
      %v611 = vld [vmem:[%s605 + $0x14] sm:$0xf]
      %v612 = vld [vmem:[%s605 + $0x18] sm:$0xf]
      %v613 = vld [vmem:[%s605 + $0x1c] sm:$0xf]
      %v614 = vld [vmem:[%s605 + $0x20] sm:$0xf]
      %v615 = vld [vmem:[%s605 + $0x24] sm:$0xf]
      %v616 = vld [vmem:[%s605 + $0x28] sm:$0xf]
      %v617 = vld [vmem:[%s605 + $0x2c] sm:$0xf]
      %v618 = vld [vmem:[%s605 + $0x30] sm:$0xf]
      %v619 = vld [vmem:[%s605 + $0x34] sm:$0xf]
      %v620 = vld [vmem:[%s605 + $0x38] sm:$0xf]
      %v621 = vld [vmem:[%s605 + $0x3c] sm:$0xf]
      %v638 = vunpack.c.l.b16 %v606
      %v639 = vunpack.c.l.b16 %v607
      %v640 = vunpack.c.l.b16 %v608
      %v641 = vunpack.c.l.b16 %v609
      %v642 = vunpack.c.l.b16 %v610
      %v643 = vunpack.c.l.b16 %v611
      %v644 = vunpack.c.l.b16 %v612
      %v645 = vunpack.c.l.b16 %v613
      %v646 = vunpack.c.l.b16 %v614
      %v647 = vunpack.c.l.b16 %v615
      %v648 = vunpack.c.l.b16 %v616
      %v649 = vunpack.c.l.b16 %v617
      %v650 = vunpack.c.l.b16 %v618
      %v651 = vunpack.c.l.b16 %v619
      %v652 = vunpack.c.l.b16 %v620
      %v653 = vunpack.c.l.b16 %v621
      %v654 = vpack.c.b16 %v639, %v638
      %v655 = vpack.c.b16 %v641, %v640
      %v656 = vpack.c.b16 %v643, %v642
      %v657 = vpack.c.b16 %v645, %v644
      %v658 = vpack.c.b16 %v647, %v646
      %v659 = vpack.c.b16 %v649, %v648
      %v660 = vpack.c.b16 %v651, %v650
      %v661 = vpack.c.b16 %v653, %v652
      %670 = vmatprep.subr.bf16.mxu0 0
      %671 = vmatpush1.bf16.msra.mxu0 %v661
      %672 = vmatprep.subr.bf16.mxu0 0
      %673 = vmatpush1.bf16.msra.mxu0 %v660
      %674 = vmatprep.subr.bf16.mxu0 0
      %675 = vmatpush1.bf16.msra.mxu0 %v659
      %676 = vmatprep.subr.bf16.mxu0 0
      %677 = vmatpush1.bf16.msra.mxu0 %v658
      %678 = vmatprep.subr.bf16.mxu0 0
      %679 = vmatpush1.bf16.msra.mxu0 %v657
      %680 = vmatprep.subr.bf16.mxu0 0
      %681 = vmatpush1.bf16.msra.mxu0 %v656
      %682 = vmatprep.subr.bf16.mxu0 0
      %683 = vmatpush1.bf16.msra.mxu0 %v655
      %684 = vmatprep.subr.bf16.mxu0 0
      %685 = vmatpush1.bf16.msra.mxu0 %v654
      %686 = vmatprep.subr.bf16.mxu0 0
      %687 = vmatpush2.bf16.msra.mxu0 0
      %688 = vmatprep.subr.bf16.mxu0 0
      %689 = vmatpush2.bf16.msra.mxu0 0
      %690 = vmatprep.subr.bf16.mxu0 0
      %691 = vmatpush2.bf16.msra.mxu0 0
      %692 = vmatprep.subr.bf16.mxu0 0
      %693 = vmatpush2.bf16.msra.mxu0 0
      %694 = vmatprep.subr.bf16.mxu0 0
      %695 = vmatpush2.bf16.msra.mxu0 0
      %696 = vmatprep.subr.bf16.mxu0 0
      %697 = vmatpush2.bf16.msra.mxu0 0
      %698 = vmatprep.subr.bf16.mxu0 0
      %699 = vmatpush2.bf16.msra.mxu0 0
      %700 = vmatprep.subr.bf16.mxu0 0
      %701 = vmatpush2.bf16.msra.mxu0 0
      %702 = vmatprep.mubr.bf16.mxu0 0
      %703 = vmatmul.mubr.bf16.gmra.mxu0 %v294
      %v704 = vpop.f32.mrf.mxu0
      %v705 = vadd.f32 0.0, %v704
      %v706 = vpop.f32.mrf.mxu0
      %v707 = vpop.f32.mrf.mxu0
      %v708 = vpop.f32.mrf.mxu0
      %709 = vdwg.mxu0
      %v710 = vadd.f32 %v275, %v705
      %s711 = scalar_lea.vmem %s248, 192
      %v712 = vld [vmem:[%s711] sm:$0xf]
      %v713 = vld [vmem:[%s711 + $0x4] sm:$0xf]
      %v714 = vld [vmem:[%s711 + $0x8] sm:$0xf]
      %v715 = vld [vmem:[%s711 + $0xc] sm:$0xf]
      %v716 = vld [vmem:[%s711 + $0x10] sm:$0xf]
      %v717 = vld [vmem:[%s711 + $0x14] sm:$0xf]
      %v718 = vld [vmem:[%s711 + $0x18] sm:$0xf]
      %v719 = vld [vmem:[%s711 + $0x1c] sm:$0xf]
      %v720 = vld [vmem:[%s711 + $0x20] sm:$0xf]
      %v721 = vld [vmem:[%s711 + $0x24] sm:$0xf]
      %v722 = vld [vmem:[%s711 + $0x28] sm:$0xf]
      %v723 = vld [vmem:[%s711 + $0x2c] sm:$0xf]
      %v724 = vld [vmem:[%s711 + $0x30] sm:$0xf]
      %v725 = vld [vmem:[%s711 + $0x34] sm:$0xf]
      %v726 = vld [vmem:[%s711 + $0x38] sm:$0xf]
      %v727 = vld [vmem:[%s711 + $0x3c] sm:$0xf]
      %v744 = vunpack.c.l.b16 %v712
      %v745 = vunpack.c.l.b16 %v713
      %v746 = vunpack.c.l.b16 %v714
      %v747 = vunpack.c.l.b16 %v715
      %v748 = vunpack.c.l.b16 %v716
      %v749 = vunpack.c.l.b16 %v717
      %v750 = vunpack.c.l.b16 %v718
      %v751 = vunpack.c.l.b16 %v719
      %v752 = vunpack.c.l.b16 %v720
      %v753 = vunpack.c.l.b16 %v721
      %v754 = vunpack.c.l.b16 %v722
      %v755 = vunpack.c.l.b16 %v723
      %v756 = vunpack.c.l.b16 %v724
      %v757 = vunpack.c.l.b16 %v725
      %v758 = vunpack.c.l.b16 %v726
      %v759 = vunpack.c.l.b16 %v727
      %v760 = vpack.c.b16 %v745, %v744
      %v761 = vpack.c.b16 %v747, %v746
      %v762 = vpack.c.b16 %v749, %v748
      %v763 = vpack.c.b16 %v751, %v750
      %v764 = vpack.c.b16 %v753, %v752
      %v765 = vpack.c.b16 %v755, %v754
      %v766 = vpack.c.b16 %v757, %v756
      %v767 = vpack.c.b16 %v759, %v758
      %776 = vmatprep.subr.bf16.mxu0 0
      %777 = vmatpush1.bf16.msra.mxu0 %v767
      %778 = vmatprep.subr.bf16.mxu0 0
      %779 = vmatpush1.bf16.msra.mxu0 %v766
      %780 = vmatprep.subr.bf16.mxu0 0
      %781 = vmatpush1.bf16.msra.mxu0 %v765
      %782 = vmatprep.subr.bf16.mxu0 0
      %783 = vmatpush1.bf16.msra.mxu0 %v764
      %784 = vmatprep.subr.bf16.mxu0 0
      %785 = vmatpush1.bf16.msra.mxu0 %v763
      %786 = vmatprep.subr.bf16.mxu0 0
      %787 = vmatpush1.bf16.msra.mxu0 %v762
      %788 = vmatprep.subr.bf16.mxu0 0
      %789 = vmatpush1.bf16.msra.mxu0 %v761
      %790 = vmatprep.subr.bf16.mxu0 0
      %791 = vmatpush1.bf16.msra.mxu0 %v760
      %792 = vmatprep.subr.bf16.mxu0 0
      %793 = vmatpush2.bf16.msra.mxu0 0
      %794 = vmatprep.subr.bf16.mxu0 0
      %795 = vmatpush2.bf16.msra.mxu0 0
      %796 = vmatprep.subr.bf16.mxu0 0
      %797 = vmatpush2.bf16.msra.mxu0 0
      %798 = vmatprep.subr.bf16.mxu0 0
      %799 = vmatpush2.bf16.msra.mxu0 0
      %800 = vmatprep.subr.bf16.mxu0 0
      %801 = vmatpush2.bf16.msra.mxu0 0
      %802 = vmatprep.subr.bf16.mxu0 0
      %803 = vmatpush2.bf16.msra.mxu0 0
      %804 = vmatprep.subr.bf16.mxu0 0
      %805 = vmatpush2.bf16.msra.mxu0 0
      %806 = vmatprep.subr.bf16.mxu0 0
      %807 = vmatpush2.bf16.msra.mxu0 0
      %808 = vmatprep.mubr.bf16.mxu0 0
      %809 = vmatmul.mubr.bf16.gmra.mxu0 %v408
      %v810 = vpop.f32.mrf.mxu0
      %v811 = vadd.f32 0.0, %v810
      %v812 = vpop.f32.mrf.mxu0
      %v813 = vpop.f32.mrf.mxu0
      %v814 = vpop.f32.mrf.mxu0
      %815 = vdwg.mxu0
      %v816 = vadd.f32 %v710, %v811
      %v817 = vrot.slane %v604, 4
      %v818 = vadd.f32 %v604, %v817
      %v819 = vrot.slane %v818, 2
      %v820 = vadd.f32 %v818, %v819
      %v821 = vrot.slane %v820, 1
      %v822 = vadd.f32 %v820, %v821
      %v823 = vrot.slane %v816, 4
      %v824 = vadd.f32 %v816, %v823
      %v825 = vrot.slane %v824, 2
      %v826 = vadd.f32 %v824, %v825
      %v827 = vrot.slane %v826, 1
      %v828 = vadd.f32 %v826, %v827
      %v829 = vadd.f32 %v822, %v828
      %v830 = vmul.f32 %v829, 0.0625
      %v831 = vmul.f32 %v604, %v604
      %v832 = vrot.slane %v831, 4
      %v833 = vadd.f32 %v831, %v832
      %v834 = vrot.slane %v833, 2
      %v835 = vadd.f32 %v833, %v834
      %v836 = vrot.slane %v835, 1
      %v837 = vadd.f32 %v835, %v836
      %v838 = vmul.f32 %v816, %v816
      %v839 = vrot.slane %v838, 4
      %v840 = vadd.f32 %v838, %v839
      %v841 = vrot.slane %v840, 2
      %v842 = vadd.f32 %v840, %v841
      %v843 = vrot.slane %v842, 1
      %v844 = vadd.f32 %v842, %v843
      %v845 = vadd.f32 %v837, %v844
      %v846 = vmul.f32 %v845, 0.0625
      %v847 = vmul.f32 %v830, %v830
      %v848 = vsub.f32 %v846, %v847
      %v849 = vmax.f32 %v848, 0.0
      %v850 = vadd.f32 %v849, 1e-05
      %v851 = vrsqrt.pop %v850
      %v852 = vsub.f32 %v604, %v830
      %v853 = vmul.f32 %v852, %v851
      %v854 = vmax.f32 %v853, 0.0
      %855 = vst [vmem:[%s258] sm:$0xff] %v854
      %v856 = vsub.f32 %v816, %v830
      %v857 = vmul.f32 %v856, %v851
      %v858 = vmax.f32 %v857, 0.0
      %859 = vst [vmem:[%s265] sm:$0xff] %v858
      %p860 = scmp.lt.s32.totalorder %s20, 1
      %s861 = scalar_select %p860, %s20, 1
      %p862 = scmp.lt.s32.totalorder %s21, 0
      %s863 = scalar_select %p862, %s21, 0
      %s864 = sadd.s32 %s863, %s861
      %s865 = smul.addr %s864, 8
      %s866 = scalar_lea.vmem %s3, %s865
      %p867 = scmp.lt.s32.totalorder %s20, 1
      %s868 = scalar_select %p867, %s20, 1
      %p869 = scmp.lt.s32.totalorder %s21, 0
      %s870 = scalar_select %p869, %s21, 0
      %s871 = sadd.s32 %s870, %s868
      %s872 = smul.addr %s871, 8
      %s873 = scalar_lea.vmem %s4, %s872
      // Predicated region
      $region33: #{generator_forward.18} parent=31 // pred_check
        %p874 = pneg %p126
      $region34: #{generator_forward.18} parent=31 // pred_check_branch
        %876 = sbr.rel (%p874) target = $region36
      $region35: #{generator_forward.18} parent=31 // pred_region
        _
      $region36: #{generator_forward.18} parent=31 // pred_fallthru
        _
      // Predicated region
      $region37: #{generator_forward.18} parent=31 // pred_check
        %p877 = pneg %p154
      $region38: #{generator_forward.18} parent=31 // pred_check_branch
        %879 = sbr.rel (%p877) target = $region40
      $region39: #{generator_forward.18} parent=31 // pred_region
        _
      $region40: #{generator_forward.18} parent=31 // pred_fallthru
        _
    $region32: #{generator_forward.18} parent=5 // pred_fallthru
      _
    %p880 = scmp.le.s32.totalorder 2, %s11
    // Predicated region
    $region41: #{generator_forward.18} parent=5 // pred_check
      %p881 = pneg %p880
    $region42: #{generator_forward.18} parent=5 // pred_check_branch
      %883 = sbr.rel (%p881) target = $region44
    $region43: #{generator_forward.18} parent=5 // pred_region
      %s884 = ssub.s32 %s11, 2
      // Predicated region
      $region45: #{generator_forward.18} parent=43 // pred_check
        %p885 = pneg %p132
      $region46: #{generator_forward.18} parent=43 // pred_check_branch
        %887 = sbr.rel (%p885) target = $region48
      $region47: #{generator_forward.18} parent=43 // pred_region
        %p888 = scmp.lt.s32.totalorder %s22, 1
        %s889 = scalar_select %p888, %s22, 1
        %p890 = scmp.lt.s32.totalorder %s23, 0
        %s891 = scalar_select %p890, %s23, 0
        %s892 = sadd.s32 %s891, %s889
        %s893 = smul.addr %s892, 8
        %s894 = scalar_lea.vmem %s3, %s893
      $region48: #{generator_forward.18} parent=43 // pred_fallthru
        _
      // Predicated region
      $region49: #{generator_forward.18} parent=43 // pred_check
        %p895 = pneg %p160
      $region50: #{generator_forward.18} parent=43 // pred_check_branch
        %897 = sbr.rel (%p895) target = $region52
      $region51: #{generator_forward.18} parent=43 // pred_region
        %p898 = scmp.lt.s32.totalorder %s22, 1
        %s899 = scalar_select %p898, %s22, 1
        %p900 = scmp.lt.s32.totalorder %s23, 0
        %s901 = scalar_select %p900, %s23, 0
        %s902 = sadd.s32 %s901, %s899
        %s903 = smul.addr %s902, 8
        %s904 = scalar_lea.vmem %s4, %s903
      $region52: #{generator_forward.18} parent=43 // pred_fallthru
        _
    $region44: #{generator_forward.18} parent=5 // pred_fallthru
      _
  $region6: #{generator_forward.18} parent=0 // loop_footer
    %s15 = sadd.s32 1, %s11
  $region7: #{generator_forward.18} parent=0 // loop_footer_branch
    %10 = sbr.rel target = $region3
  $region8: #{generator_forward.18} parent=0 // loop_exit
    _

// kernel: generator_forward.19
$region0: #{generator_forward.19}
  #allocation0 [shape = 'u32[]', space=smem, size = 0x4, offset = 0x4, fixed_abs, tag = 'smem constant byte address 0x4 - core index']
  #allocation1 [shape = 'u32[144,128]{1,0:T(1,128)}', space=vmem, size = 0x12000, scoped, tag = 'internal scratch']
  %s0 = inlined_call_operand.vmem [shape: f32[2,30,128], index: 0, kind: input, shape index: {}]
  %s1 = inlined_call_operand.vmem [shape: bf16[15,128,128], index: 1, kind: input, shape index: {}]
  %s2 = inlined_call_operand.vmem [shape: f32[1,128], index: 2, kind: input, shape index: {}]
  %s3 = inlined_call_operand.vmem [shape: f32[2,16,128], index: 3, kind: output, shape index: {}]
  %s4 = sld [smem:[#allocation0]]
  $region45: #{generator_forward.19} parent=0
    _
  %s6 = ssub.s32 1, %s4
  %s7 = scalar_select 0, %s6, %s4
  loop: start=0, step=1, limit=4
  $region2: #{generator_forward.19} parent=0 // loop_pre_header
    _
  $region3: #{generator_forward.19} parent=0 // loop_header
    %s9 = sphi 0, %s13
    %p10 = scmp.ge.s32.totalorder %s9, 4
    %s16 = sphi 0, %s28
    %s17 = sphi 0, %s24
    %s18 = sphi 0, %s16
    %s19 = sphi 0, %s17
    %s20 = sphi 0, %s18
    %s21 = sphi 0, %s19
    %s31 = sphi 0, %s33
    %s34 = sphi 0, %s31
    %s35 = sphi 0, %s34
    %s51 = sphi 0, %s35
    %s57 = sphi 0, %s59
    %s60 = sphi 0, %s57
    %s61 = sphi 0, %s60
    %s77 = sphi 0, %s61
    %s83 = sphi 0, %s85
    %s86 = sphi 0, %s83
    %s87 = sphi 0, %s86
    %s103 = sphi 0, %s87
    %s111 = sphi 0, %s113
    %s114 = sphi 0, %s111
    %s115 = sphi 0, %s114
    %s131 = sphi 0, %s115
  $region4: #{generator_forward.19} parent=0 // loop_header_branch
    %12 = sbr.rel (%p10) target = $region8
  $region5: #{generator_forward.19} parent=0 // loop_body
    %s14 = ssub.s32 %s9, 1
    %s15 = ssub.s32 %s9, 2
    %s22 = sadd.s32 1, %s17
    %p23 = scmp.ge.s32.totalorder %s22, 1
    %s24 = scalar_select %p23, 0, %s22
    %s25 = sadd.s32 1, %s16
    %s26 = scalar_select %p23, %s25, %s16
    %p27 = scmp.ge.s32.totalorder %s26, 2
    %s28 = scalar_select %p27, 0, %s26
    %s29 = ssub.s32 %s16, %s28
    %p30 = scmp.eq.s32.totalorder %s29, 0
    %s32 = sadd.s32 %s31, 1
    %s33 = scalar_select %p30, %s31, %s32
    %p36 = pneg %p30
    %p37 = scmp.eq.s32.totalorder %s9, 1
    %p38 = por %p36, %p37
    %p39 = scmp.ne.s32.totalorder %s31, %s34
    %p40 = scmp.eq.s32.totalorder %s9, 0
    %p41 = por %p39, %p40
    %p42 = scmp.ne.s32.totalorder %s31, %s34
    %p43 = scmp.eq.s32.totalorder %s14, 1
    %p44 = por %p42, %p43
    %p45 = scmp.ne.s32.totalorder %s34, %s35
    %p46 = scmp.eq.s32.totalorder %s14, 0
    %p47 = por %p45, %p46
    %p48 = scmp.ne.s32.totalorder %s34, %s35
    %p49 = scmp.eq.s32.totalorder %s15, 1
    %p50 = por %p48, %p49
    %p52 = scmp.ne.s32.totalorder %s35, %s51
    %p53 = scmp.eq.s32.totalorder %s15, 0
    %p54 = por %p52, %p53
    %s55 = ssub.s32 %s17, %s24
    %p56 = scmp.eq.s32.totalorder %s55, 0
    %s58 = sadd.s32 %s57, 1
    %s59 = scalar_select %p56, %s57, %s58
    %p62 = pneg %p56
    %p63 = scmp.eq.s32.totalorder %s9, 1
    %p64 = por %p62, %p63
    %p65 = scmp.ne.s32.totalorder %s57, %s60
    %p66 = scmp.eq.s32.totalorder %s9, 0
    %p67 = por %p65, %p66
    %p68 = scmp.ne.s32.totalorder %s57, %s60
    %p69 = scmp.eq.s32.totalorder %s14, 1
    %p70 = por %p68, %p69
    %p71 = scmp.ne.s32.totalorder %s60, %s61
    %p72 = scmp.eq.s32.totalorder %s14, 0
    %p73 = por %p71, %p72
    %p74 = scmp.ne.s32.totalorder %s60, %s61
    %p75 = scmp.eq.s32.totalorder %s15, 1
    %p76 = por %p74, %p75
    %p78 = scmp.ne.s32.totalorder %s61, %s77
    %p79 = scmp.eq.s32.totalorder %s15, 0
    %p80 = por %p78, %p79
    %s81 = ssub.s32 %s17, %s24
    %p82 = scmp.eq.s32.totalorder %s81, 0
    %s84 = sadd.s32 %s83, 1
    %s85 = scalar_select %p82, %s83, %s84
    %p88 = pneg %p82
    %p89 = scmp.eq.s32.totalorder %s9, 1
    %p90 = por %p88, %p89
    %p91 = scmp.ne.s32.totalorder %s83, %s86
    %p92 = scmp.eq.s32.totalorder %s9, 0
    %p93 = por %p91, %p92
    %p94 = scmp.ne.s32.totalorder %s83, %s86
    %p95 = scmp.eq.s32.totalorder %s14, 1
    %p96 = por %p94, %p95
    %p97 = scmp.ne.s32.totalorder %s86, %s87
    %p98 = scmp.eq.s32.totalorder %s14, 0
    %p99 = por %p97, %p98
    %p100 = scmp.ne.s32.totalorder %s86, %s87
    %p101 = scmp.eq.s32.totalorder %s15, 1
    %p102 = por %p100, %p101
    %p104 = scmp.ne.s32.totalorder %s87, %s103
    %p105 = scmp.eq.s32.totalorder %s15, 0
    %p106 = por %p104, %p105
    %s107 = ssub.s32 %s16, %s28
    %s108 = ssub.s32 %s17, %s24
    %s109 = sor.u32 %s107, %s108
    %p110 = scmp.eq.s32.totalorder %s109, 0
    %s112 = sadd.s32 %s111, 1
    %s113 = scalar_select %p110, %s111, %s112
    %p116 = pneg %p110
    %p117 = scmp.eq.s32.totalorder %s9, 1
    %p118 = por %p116, %p117
    %p119 = scmp.ne.s32.totalorder %s111, %s114
    %p120 = scmp.eq.s32.totalorder %s9, 0
    %p121 = por %p119, %p120
    %p122 = scmp.ne.s32.totalorder %s111, %s114
    %p123 = scmp.eq.s32.totalorder %s14, 1
    %p124 = por %p122, %p123
    %p125 = scmp.ne.s32.totalorder %s114, %s115
    %p126 = scmp.eq.s32.totalorder %s14, 0
    %p127 = por %p125, %p126
    %p128 = scmp.ne.s32.totalorder %s114, %s115
    %p129 = scmp.eq.s32.totalorder %s15, 1
    %p130 = por %p128, %p129
    %p132 = scmp.ne.s32.totalorder %s115, %s131
    %p133 = scmp.eq.s32.totalorder %s15, 0
    %p134 = por %p132, %p133
    %p135 = scmp.le.s32.totalorder 1, %s9
    %p136 = scmp.lt.s32.totalorder %s9, 3
    %p137 = pnand %p135, %p136
    %p138 = pneg %p137
    // Predicated region
    $region9: #{generator_forward.19} parent=5 // pred_check
      _
    $region10: #{generator_forward.19} parent=5 // pred_check_branch
      %140 = sbr.rel (%p137) target = $region12
    $region11: #{generator_forward.19} parent=5 // pred_region
      %s141 = ssub.s32 %s9, 1
      // Predicated region
      $region13: #{generator_forward.19} parent=11 // pred_check
        %p142 = pneg %p73
      $region14: #{generator_forward.19} parent=11 // pred_check_branch
        %144 = sbr.rel (%p142) target = $region16
      $region15: #{generator_forward.19} parent=11 // pred_region
        %p145 = scmp.lt.s32.totalorder %s19, 0
        %s146 = scalar_select %p145, %s19, 0
        %s147 = smul.addr %s146, 4
        %s148 = scalar_lea.vmem %s1, %s147
      $region16: #{generator_forward.19} parent=11 // pred_fallthru
        _
      // Predicated region
      $region17: #{generator_forward.19} parent=11 // pred_check
        %p149 = pneg %p99
      $region18: #{generator_forward.19} parent=11 // pred_check_branch
        %151 = sbr.rel (%p149) target = $region20
      $region19: #{generator_forward.19} parent=11 // pred_region
        %p152 = scmp.lt.s32.totalorder %s19, 0
        %s153 = scalar_select %p152, %s19, 0
        %s154 = scalar_lea.vmem %s2, %s153
      $region20: #{generator_forward.19} parent=11 // pred_fallthru
        _
    $region12: #{generator_forward.19} parent=5 // pred_fallthru
      _
    %p155 = scmp.lt.s32.totalorder %s9, 2
    // Predicated region
    $region21: #{generator_forward.19} parent=5 // pred_check
      %p156 = pneg %p155
    $region22: #{generator_forward.19} parent=5 // pred_check_branch
      %158 = sbr.rel (%p156) target = $region24
    $region23: #{generator_forward.19} parent=5 // pred_region
      // Predicated region
      $region25: #{generator_forward.19} parent=23 // pred_check
        %p159 = pneg %p41
      $region26: #{generator_forward.19} parent=23 // pred_check_branch
        %161 = sbr.rel (%p159) target = $region28
      $region27: #{generator_forward.19} parent=23 // pred_region
        %p162 = scmp.lt.s32.totalorder %s16, 1
        %s163 = scalar_select %p162, %s16, 1
        %s164 = smul.addr %s163, 4
        %s165 = smul.addr %s164, 8
        %s166 = scalar_lea.vmem %s0, %s165
      $region28: #{generator_forward.19} parent=23 // pred_fallthru
        _
    $region24: #{generator_forward.19} parent=5 // pred_fallthru
      _
    %p167 = scmp.le.s32.totalorder 1, %s9
    %p168 = scmp.lt.s32.totalorder %s9, 3
    %p169 = pnand %p167, %p168
    %p170 = pneg %p169
    // Predicated region
    $region29: #{generator_forward.19} parent=5 // pred_check
      _
    $region30: #{generator_forward.19} parent=5 // pred_check_branch
      %172 = sbr.rel (%p169) target = $region32
    $region31: #{generator_forward.19} parent=5 // pred_region
      %s173 = ssub.s32 %s9, 1
      %p174 = scmp.lt.s32.totalorder %s18, 1
      %s175 = scalar_select %p174, %s18, 1
      %s176 = smul.addr %s175, 4
      %s177 = smul.addr %s176, 8
      %s178 = scalar_lea.vmem %s0, %s177
      %p179 = pneg %p47
      %p180 = pneg %p44
      %p181 = scmp.lt.s32.totalorder %s19, 0
      %s182 = scalar_select %p181, %s19, 0
      %s183 = smul.addr %s182, 4
      %s184 = scalar_lea.vmem %s1, %s183
      %p185 = pneg %p73
      %p186 = pneg %p70
      %p187 = scmp.lt.s32.totalorder %s19, 0
      %s188 = scalar_select %p187, %s19, 0
      %s189 = scalar_lea.vmem %s2, %s188
      %p190 = pneg %p99
      %p191 = pneg %p96
      %p192 = pneg %p127
      %p193 = pneg %p124
      %p194 = scmp.lt.s32.totalorder %s18, 1
      %s195 = scalar_select %p194, %s18, 1
      %p196 = scmp.lt.s32.totalorder %s19, 0
      %s197 = scalar_select %p196, %s19, 0
      %s198 = smul.addr %s195, 2
      %s199 = sadd.s32 %s197, %s198
      %s200 = smul.addr %s199, 8
      %s201 = scalar_lea.vmem %s3, %s200
      %p202 = scmp.lt.s32.totalorder %s18, 1
      %s203 = scalar_select %p202, %s18, 1
      %s204 = smul.addr %s203, 4
      %s205 = smul.addr %s204, 8
      %s206 = scalar_lea.vmem %s0, %s205
      %p207 = scmp.lt.s32.totalorder %s19, 0
      %s208 = scalar_select %p207, %s19, 0
      %s209 = smul.addr %s208, 4
      %s210 = scalar_lea.vmem %s1, %s209
      %p211 = scmp.lt.s32.totalorder %s19, 0
      %s212 = scalar_select %p211, %s19, 0
      %s213 = scalar_lea.vmem %s2, %s212
      %p214 = scmp.lt.s32.totalorder %s18, 1
      %s215 = scalar_select %p214, %s18, 1
      %p216 = scmp.lt.s32.totalorder %s19, 0
      %s217 = scalar_select %p216, %s19, 0
      %s218 = smul.addr %s215, 2
      %s219 = sadd.s32 %s217, %s218
      %s220 = smul.addr %s219, 8
      %s221 = scalar_lea.vmem %s3, %s220
      %v223 = vld [vmem:[%s206] sm:$0xff]
      %v224 = vld [vmem:[%s206 + $0x8] sm:$0xff]
      %v225 = vld [vmem:[%s206 + $0x10] sm:$0xff]
      %v226 = vld [vmem:[%s206 + $0x18] sm:$0x3f]
      %v227 = vpack.c.bf16 %v224, %v223
      %v228 = vpack.c.bf16 %v226, %v225
      %v229 = vld [vmem:[%s213] sm:$0x1]
      %v231 = vlaneseq
      %v232 = vshrl.u32 %v231, 7
      %v233 = vsub.s32 0, %v232
      %v234 = vrot.slane %v229, %v233
      %v236 = vld [vmem:[%s210] sm:$0xf]
      %v237 = vld [vmem:[%s210 + $0x4] sm:$0xf]
      %v238 = vld [vmem:[%s210 + $0x8] sm:$0xf]
      %v239 = vld [vmem:[%s210 + $0xc] sm:$0xf]
      %v240 = vld [vmem:[%s210 + $0x10] sm:$0xf]
      %v241 = vld [vmem:[%s210 + $0x14] sm:$0xf]
      %v242 = vld [vmem:[%s210 + $0x18] sm:$0xf]
      %v243 = vld [vmem:[%s210 + $0x1c] sm:$0xf]
      %v244 = vld [vmem:[%s210 + $0x20] sm:$0xf]
      %v245 = vld [vmem:[%s210 + $0x24] sm:$0xf]
      %v246 = vld [vmem:[%s210 + $0x28] sm:$0xf]
      %v247 = vld [vmem:[%s210 + $0x2c] sm:$0xf]
      %v248 = vld [vmem:[%s210 + $0x30] sm:$0xf]
      %v249 = vld [vmem:[%s210 + $0x34] sm:$0xf]
      %v250 = vld [vmem:[%s210 + $0x38] sm:$0xf]
      %v251 = vld [vmem:[%s210 + $0x3c] sm:$0xf]
      %v268 = vunpack.c.l.b16 %v236
      %v269 = vunpack.c.l.b16 %v237
      %v270 = vunpack.c.l.b16 %v238
      %v271 = vunpack.c.l.b16 %v239
      %v272 = vunpack.c.l.b16 %v240
      %v273 = vunpack.c.l.b16 %v241
      %v274 = vunpack.c.l.b16 %v242
      %v275 = vunpack.c.l.b16 %v243
      %v276 = vunpack.c.l.b16 %v244
      %v277 = vunpack.c.l.b16 %v245
      %v278 = vunpack.c.l.b16 %v246
      %v279 = vunpack.c.l.b16 %v247
      %v280 = vunpack.c.l.b16 %v248
      %v281 = vunpack.c.l.b16 %v249
      %v282 = vunpack.c.l.b16 %v250
      %v283 = vunpack.c.l.b16 %v251
      %v284 = vpack.c.b16 %v269, %v268
      %v285 = vpack.c.b16 %v271, %v270
      %v286 = vpack.c.b16 %v273, %v272
      %v287 = vpack.c.b16 %v275, %v274
      %v288 = vpack.c.b16 %v277, %v276
      %v289 = vpack.c.b16 %v279, %v278
      %v290 = vpack.c.b16 %v281, %v280
      %v291 = vpack.c.b16 %v283, %v282
      %300 = vmatprep.subr.bf16.mxu0 0
      %301 = vmatpush1.bf16.msra.mxu0 %v291
      %302 = vmatprep.subr.bf16.mxu0 0
      %303 = vmatpush1.bf16.msra.mxu0 %v290
      %304 = vmatprep.subr.bf16.mxu0 0
      %305 = vmatpush1.bf16.msra.mxu0 %v289
      %306 = vmatprep.subr.bf16.mxu0 0
      %307 = vmatpush1.bf16.msra.mxu0 %v288
      %308 = vmatprep.subr.bf16.mxu0 0
      %309 = vmatpush1.bf16.msra.mxu0 %v287
      %310 = vmatprep.subr.bf16.mxu0 0
      %311 = vmatpush1.bf16.msra.mxu0 %v286
      %312 = vmatprep.subr.bf16.mxu0 0
      %313 = vmatpush1.bf16.msra.mxu0 %v285
      %314 = vmatprep.subr.bf16.mxu0 0
      %315 = vmatpush1.bf16.msra.mxu0 %v284
      %316 = vmatprep.subr.bf16.mxu0 0
      %317 = vmatpush2.bf16.msra.mxu0 0
      %318 = vmatprep.subr.bf16.mxu0 0
      %319 = vmatpush2.bf16.msra.mxu0 0
      %320 = vmatprep.subr.bf16.mxu0 0
      %321 = vmatpush2.bf16.msra.mxu0 0
      %322 = vmatprep.subr.bf16.mxu0 0
      %323 = vmatpush2.bf16.msra.mxu0 0
      %324 = vmatprep.subr.bf16.mxu0 0
      %325 = vmatpush2.bf16.msra.mxu0 0
      %326 = vmatprep.subr.bf16.mxu0 0
      %327 = vmatpush2.bf16.msra.mxu0 0
      %328 = vmatprep.subr.bf16.mxu0 0
      %329 = vmatpush2.bf16.msra.mxu0 0
      %330 = vmatprep.subr.bf16.mxu0 0
      %331 = vmatpush2.bf16.msra.mxu0 0
      %332 = vmatprep.mubr.bf16.mxu0 0
      %333 = vmatmul.mubr.bf16.gmra.mxu0 %v227
      %v334 = vpop.f32.mrf.mxu0
      %v335 = vadd.f32 0.0, %v334
      %v336 = vpop.f32.mrf.mxu0
      %v337 = vpop.f32.mrf.mxu0
      %v338 = vadd.f32 0.0, %v337
      %v339 = vpop.f32.mrf.mxu0
      %340 = vdwg.mxu0
      %v341 = vadd.f32 %v234, %v335
      %v342 = vadd.f32 %v234, %v338
      %s343 = scalar_lea.vmem %s210, 64
      %v344 = vld [vmem:[%s343] sm:$0xf]
      %v345 = vld [vmem:[%s343 + $0x4] sm:$0xf]
      %v346 = vld [vmem:[%s343 + $0x8] sm:$0xf]
      %v347 = vld [vmem:[%s343 + $0xc] sm:$0xf]
      %v348 = vld [vmem:[%s343 + $0x10] sm:$0xf]
      %v349 = vld [vmem:[%s343 + $0x14] sm:$0xf]
      %v350 = vld [vmem:[%s343 + $0x18] sm:$0xf]
      %v351 = vld [vmem:[%s343 + $0x1c] sm:$0xf]
      %v352 = vld [vmem:[%s343 + $0x20] sm:$0xf]
      %v353 = vld [vmem:[%s343 + $0x24] sm:$0xf]
      %v354 = vld [vmem:[%s343 + $0x28] sm:$0xf]
      %v355 = vld [vmem:[%s343 + $0x2c] sm:$0xf]
      %v356 = vld [vmem:[%s343 + $0x30] sm:$0xf]
      %v357 = vld [vmem:[%s343 + $0x34] sm:$0xf]
      %v358 = vld [vmem:[%s343 + $0x38] sm:$0xf]
      %v359 = vld [vmem:[%s343 + $0x3c] sm:$0xf]
      %vm360 = vsmask.f32 7424
      %v362 = vshrl.u32 %v227, 16
      %v364 = vshll.u32 %v227, 16
      %v366 = vrot.slane %v364, 1
      %v367 = vor.u32 %v362, %v366
      %v369 = vshll.u32 %v228, 16
      %v371 = vrot.slane %v369, 1
      %v372 = vsel %vm360, %v367, %v371
      %v390 = vunpack.c.l.b16 %v344
      %v391 = vunpack.c.l.b16 %v345
      %v392 = vunpack.c.l.b16 %v346
      %v393 = vunpack.c.l.b16 %v347
      %v394 = vunpack.c.l.b16 %v348
      %v395 = vunpack.c.l.b16 %v349
      %v396 = vunpack.c.l.b16 %v350
      %v397 = vunpack.c.l.b16 %v351
      %v398 = vunpack.c.l.b16 %v352
      %v399 = vunpack.c.l.b16 %v353
      %v400 = vunpack.c.l.b16 %v354
      %v401 = vunpack.c.l.b16 %v355
      %v402 = vunpack.c.l.b16 %v356
      %v403 = vunpack.c.l.b16 %v357
      %v404 = vunpack.c.l.b16 %v358
      %v405 = vunpack.c.l.b16 %v359
      %v406 = vpack.c.b16 %v391, %v390
      %v407 = vpack.c.b16 %v393, %v392
      %v408 = vpack.c.b16 %v395, %v394
      %v409 = vpack.c.b16 %v397, %v396
      %v410 = vpack.c.b16 %v399, %v398
      %v411 = vpack.c.b16 %v401, %v400
      %v412 = vpack.c.b16 %v403, %v402
      %v413 = vpack.c.b16 %v405, %v404
      %422 = vmatprep.subr.bf16.mxu0 0
      %423 = vmatpush1.bf16.msra.mxu0 %v413
      %424 = vmatprep.subr.bf16.mxu0 0
      %425 = vmatpush1.bf16.msra.mxu0 %v412
      %426 = vmatprep.subr.bf16.mxu0 0
      %427 = vmatpush1.bf16.msra.mxu0 %v411
      %428 = vmatprep.subr.bf16.mxu0 0
      %429 = vmatpush1.bf16.msra.mxu0 %v410
      %430 = vmatprep.subr.bf16.mxu0 0
      %431 = vmatpush1.bf16.msra.mxu0 %v409
      %432 = vmatprep.subr.bf16.mxu0 0
      %433 = vmatpush1.bf16.msra.mxu0 %v408
      %434 = vmatprep.subr.bf16.mxu0 0
      %435 = vmatpush1.bf16.msra.mxu0 %v407
      %436 = vmatprep.subr.bf16.mxu0 0
      %437 = vmatpush1.bf16.msra.mxu0 %v406
      %438 = vmatprep.subr.bf16.mxu0 0
      %439 = vmatpush2.bf16.msra.mxu0 0
      %440 = vmatprep.subr.bf16.mxu0 0
      %441 = vmatpush2.bf16.msra.mxu0 0
      %442 = vmatprep.subr.bf16.mxu0 0
      %443 = vmatpush2.bf16.msra.mxu0 0
      %444 = vmatprep.subr.bf16.mxu0 0
      %445 = vmatpush2.bf16.msra.mxu0 0
      %446 = vmatprep.subr.bf16.mxu0 0
      %447 = vmatpush2.bf16.msra.mxu0 0
      %448 = vmatprep.subr.bf16.mxu0 0
      %449 = vmatpush2.bf16.msra.mxu0 0
      %450 = vmatprep.subr.bf16.mxu0 0
      %451 = vmatpush2.bf16.msra.mxu0 0
      %452 = vmatprep.subr.bf16.mxu0 0
      %453 = vmatpush2.bf16.msra.mxu0 0
      %454 = vmatprep.mubr.bf16.mxu0 0
      %455 = vmatmul.mubr.bf16.gmra.mxu0 %v372
      %v456 = vpop.f32.mrf.mxu0
      %v457 = vadd.f32 0.0, %v456
      %v458 = vpop.f32.mrf.mxu0
      %v459 = vpop.f32.mrf.mxu0
      %v460 = vadd.f32 0.0, %v459
      %v461 = vpop.f32.mrf.mxu0
      %462 = vdwg.mxu0
      %v463 = vadd.f32 %v341, %v457
      %v464 = vadd.f32 %v342, %v460
      %s465 = scalar_lea.vmem %s210, 128
      %v466 = vld [vmem:[%s465] sm:$0xf]
      %v467 = vld [vmem:[%s465 + $0x4] sm:$0xf]
      %v468 = vld [vmem:[%s465 + $0x8] sm:$0xf]
      %v469 = vld [vmem:[%s465 + $0xc] sm:$0xf]
      %v470 = vld [vmem:[%s465 + $0x10] sm:$0xf]
      %v471 = vld [vmem:[%s465 + $0x14] sm:$0xf]
      %v472 = vld [vmem:[%s465 + $0x18] sm:$0xf]
      %v473 = vld [vmem:[%s465 + $0x1c] sm:$0xf]
      %v474 = vld [vmem:[%s465 + $0x20] sm:$0xf]
      %v475 = vld [vmem:[%s465 + $0x24] sm:$0xf]
      %v476 = vld [vmem:[%s465 + $0x28] sm:$0xf]
      %v477 = vld [vmem:[%s465 + $0x2c] sm:$0xf]
      %v478 = vld [vmem:[%s465 + $0x30] sm:$0xf]
      %v479 = vld [vmem:[%s465 + $0x34] sm:$0xf]
      %v480 = vld [vmem:[%s465 + $0x38] sm:$0xf]
      %v481 = vld [vmem:[%s465 + $0x3c] sm:$0xf]
      %vm484 = vcmask 1046528
      %v485 = vrot.slane %v227, 1
      %v486 = vrot.slane %v228, 1
      %v487 = vsel %vm484, %v485, %v486
      %v505 = vunpack.c.l.b16 %v466
      %v506 = vunpack.c.l.b16 %v467
      %v507 = vunpack.c.l.b16 %v468
      %v508 = vunpack.c.l.b16 %v469
      %v509 = vunpack.c.l.b16 %v470
      %v510 = vunpack.c.l.b16 %v471
      %v511 = vunpack.c.l.b16 %v472
      %v512 = vunpack.c.l.b16 %v473
      %v513 = vunpack.c.l.b16 %v474
      %v514 = vunpack.c.l.b16 %v475
      %v515 = vunpack.c.l.b16 %v476
      %v516 = vunpack.c.l.b16 %v477
      %v517 = vunpack.c.l.b16 %v478
      %v518 = vunpack.c.l.b16 %v479
      %v519 = vunpack.c.l.b16 %v480
      %v520 = vunpack.c.l.b16 %v481
      %v521 = vpack.c.b16 %v506, %v505
      %v522 = vpack.c.b16 %v508, %v507
      %v523 = vpack.c.b16 %v510, %v509
      %v524 = vpack.c.b16 %v512, %v511
      %v525 = vpack.c.b16 %v514, %v513
      %v526 = vpack.c.b16 %v516, %v515
      %v527 = vpack.c.b16 %v518, %v517
      %v528 = vpack.c.b16 %v520, %v519
      %537 = vmatprep.subr.bf16.mxu0 0
      %538 = vmatpush1.bf16.msra.mxu0 %v528
      %539 = vmatprep.subr.bf16.mxu0 0
      %540 = vmatpush1.bf16.msra.mxu0 %v527
      %541 = vmatprep.subr.bf16.mxu0 0
      %542 = vmatpush1.bf16.msra.mxu0 %v526
      %543 = vmatprep.subr.bf16.mxu0 0
      %544 = vmatpush1.bf16.msra.mxu0 %v525
      %545 = vmatprep.subr.bf16.mxu0 0
      %546 = vmatpush1.bf16.msra.mxu0 %v524
      %547 = vmatprep.subr.bf16.mxu0 0
      %548 = vmatpush1.bf16.msra.mxu0 %v523
      %549 = vmatprep.subr.bf16.mxu0 0
      %550 = vmatpush1.bf16.msra.mxu0 %v522
      %551 = vmatprep.subr.bf16.mxu0 0
      %552 = vmatpush1.bf16.msra.mxu0 %v521
      %553 = vmatprep.subr.bf16.mxu0 0
      %554 = vmatpush2.bf16.msra.mxu0 0
      %555 = vmatprep.subr.bf16.mxu0 0
      %556 = vmatpush2.bf16.msra.mxu0 0
      %557 = vmatprep.subr.bf16.mxu0 0
      %558 = vmatpush2.bf16.msra.mxu0 0
      %559 = vmatprep.subr.bf16.mxu0 0
      %560 = vmatpush2.bf16.msra.mxu0 0
      %561 = vmatprep.subr.bf16.mxu0 0
      %562 = vmatpush2.bf16.msra.mxu0 0
      %563 = vmatprep.subr.bf16.mxu0 0
      %564 = vmatpush2.bf16.msra.mxu0 0
      %565 = vmatprep.subr.bf16.mxu0 0
      %566 = vmatpush2.bf16.msra.mxu0 0
      %567 = vmatprep.subr.bf16.mxu0 0
      %568 = vmatpush2.bf16.msra.mxu0 0
      %569 = vmatprep.mubr.bf16.mxu0 0
      %570 = vmatmul.mubr.bf16.gmra.mxu0 %v487
      %v571 = vpop.f32.mrf.mxu0
      %v572 = vadd.f32 0.0, %v571
      %v573 = vpop.f32.mrf.mxu0
      %v574 = vpop.f32.mrf.mxu0
      %v575 = vadd.f32 0.0, %v574
      %v576 = vpop.f32.mrf.mxu0
      %577 = vdwg.mxu0
      %v578 = vadd.f32 %v463, %v572
      %v579 = vadd.f32 %v464, %v575
      %s580 = scalar_lea.vmem %s210, 192
      %v581 = vld [vmem:[%s580] sm:$0xf]
      %v582 = vld [vmem:[%s580 + $0x4] sm:$0xf]
      %v583 = vld [vmem:[%s580 + $0x8] sm:$0xf]
      %v584 = vld [vmem:[%s580 + $0xc] sm:$0xf]
      %v585 = vld [vmem:[%s580 + $0x10] sm:$0xf]
      %v586 = vld [vmem:[%s580 + $0x14] sm:$0xf]
      %v587 = vld [vmem:[%s580 + $0x18] sm:$0xf]
      %v588 = vld [vmem:[%s580 + $0x1c] sm:$0xf]
      %v589 = vld [vmem:[%s580 + $0x20] sm:$0xf]
      %v590 = vld [vmem:[%s580 + $0x24] sm:$0xf]
      %v591 = vld [vmem:[%s580 + $0x28] sm:$0xf]
      %v592 = vld [vmem:[%s580 + $0x2c] sm:$0xf]
      %v593 = vld [vmem:[%s580 + $0x30] sm:$0xf]
      %v594 = vld [vmem:[%s580 + $0x34] sm:$0xf]
      %v595 = vld [vmem:[%s580 + $0x38] sm:$0xf]
      %v596 = vld [vmem:[%s580 + $0x3c] sm:$0xf]
      %vm597 = vsmask.f32 6400
      %v598 = vrot.slane %v362, 1
      %v599 = vrot.slane %v364, 2
      %v600 = vor.u32 %v598, %v599
      %v601 = vshrl.u32 %v228, 16
      %v603 = vrot.slane %v601, 1
      %v604 = vrot.slane %v369, 2
      %v605 = vor.u32 %v603, %v604
      %v606 = vsel %vm597, %v600, %v605
      %v624 = vunpack.c.l.b16 %v581
      %v625 = vunpack.c.l.b16 %v582
      %v626 = vunpack.c.l.b16 %v583
      %v627 = vunpack.c.l.b16 %v584
      %v628 = vunpack.c.l.b16 %v585
      %v629 = vunpack.c.l.b16 %v586
      %v630 = vunpack.c.l.b16 %v587
      %v631 = vunpack.c.l.b16 %v588
      %v632 = vunpack.c.l.b16 %v589
      %v633 = vunpack.c.l.b16 %v590
      %v634 = vunpack.c.l.b16 %v591
      %v635 = vunpack.c.l.b16 %v592
      %v636 = vunpack.c.l.b16 %v593
      %v637 = vunpack.c.l.b16 %v594
      %v638 = vunpack.c.l.b16 %v595
      %v639 = vunpack.c.l.b16 %v596
      %v640 = vpack.c.b16 %v625, %v624
      %v641 = vpack.c.b16 %v627, %v626
      %v642 = vpack.c.b16 %v629, %v628
      %v643 = vpack.c.b16 %v631, %v630
      %v644 = vpack.c.b16 %v633, %v632
      %v645 = vpack.c.b16 %v635, %v634
      %v646 = vpack.c.b16 %v637, %v636
      %v647 = vpack.c.b16 %v639, %v638
      %656 = vmatprep.subr.bf16.mxu0 0
      %657 = vmatpush1.bf16.msra.mxu0 %v647
      %658 = vmatprep.subr.bf16.mxu0 0
      %659 = vmatpush1.bf16.msra.mxu0 %v646
      %660 = vmatprep.subr.bf16.mxu0 0
      %661 = vmatpush1.bf16.msra.mxu0 %v645
      %662 = vmatprep.subr.bf16.mxu0 0
      %663 = vmatpush1.bf16.msra.mxu0 %v644
      %664 = vmatprep.subr.bf16.mxu0 0
      %665 = vmatpush1.bf16.msra.mxu0 %v643
      %666 = vmatprep.subr.bf16.mxu0 0
      %667 = vmatpush1.bf16.msra.mxu0 %v642
      %668 = vmatprep.subr.bf16.mxu0 0
      %669 = vmatpush1.bf16.msra.mxu0 %v641
      %670 = vmatprep.subr.bf16.mxu0 0
      %671 = vmatpush1.bf16.msra.mxu0 %v640
      %672 = vmatprep.subr.bf16.mxu0 0
      %673 = vmatpush2.bf16.msra.mxu0 0
      %674 = vmatprep.subr.bf16.mxu0 0
      %675 = vmatpush2.bf16.msra.mxu0 0
      %676 = vmatprep.subr.bf16.mxu0 0
      %677 = vmatpush2.bf16.msra.mxu0 0
      %678 = vmatprep.subr.bf16.mxu0 0
      %679 = vmatpush2.bf16.msra.mxu0 0
      %680 = vmatprep.subr.bf16.mxu0 0
      %681 = vmatpush2.bf16.msra.mxu0 0
      %682 = vmatprep.subr.bf16.mxu0 0
      %683 = vmatpush2.bf16.msra.mxu0 0
      %684 = vmatprep.subr.bf16.mxu0 0
      %685 = vmatpush2.bf16.msra.mxu0 0
      %686 = vmatprep.subr.bf16.mxu0 0
      %687 = vmatpush2.bf16.msra.mxu0 0
      %688 = vmatprep.mubr.bf16.mxu0 0
      %689 = vmatmul.mubr.bf16.gmra.mxu0 %v606
      %v690 = vpop.f32.mrf.mxu0
      %v691 = vadd.f32 0.0, %v690
      %v692 = vpop.f32.mrf.mxu0
      %v693 = vpop.f32.mrf.mxu0
      %v694 = vadd.f32 0.0, %v693
      %v695 = vpop.f32.mrf.mxu0
      %696 = vdwg.mxu0
      %v697 = vadd.f32 %v578, %v691
      %v698 = vadd.f32 %v579, %v694
      %s699 = scalar_lea.vmem %s210, 256
      %v700 = vld [vmem:[%s699] sm:$0xf]
      %v701 = vld [vmem:[%s699 + $0x4] sm:$0xf]
      %v702 = vld [vmem:[%s699 + $0x8] sm:$0xf]
      %v703 = vld [vmem:[%s699 + $0xc] sm:$0xf]
      %v704 = vld [vmem:[%s699 + $0x10] sm:$0xf]
      %v705 = vld [vmem:[%s699 + $0x14] sm:$0xf]
      %v706 = vld [vmem:[%s699 + $0x18] sm:$0xf]
      %v707 = vld [vmem:[%s699 + $0x1c] sm:$0xf]
      %v708 = vld [vmem:[%s699 + $0x20] sm:$0xf]
      %v709 = vld [vmem:[%s699 + $0x24] sm:$0xf]
      %v710 = vld [vmem:[%s699 + $0x28] sm:$0xf]
      %v711 = vld [vmem:[%s699 + $0x2c] sm:$0xf]
      %v712 = vld [vmem:[%s699 + $0x30] sm:$0xf]
      %v713 = vld [vmem:[%s699 + $0x34] sm:$0xf]
      %v714 = vld [vmem:[%s699 + $0x38] sm:$0xf]
      %v715 = vld [vmem:[%s699 + $0x3c] sm:$0xf]
      %vm716 = vcmask 1045504
      %v717 = vrot.slane %v227, 2
      %v718 = vrot.slane %v228, 2
      %v719 = vsel %vm716, %v717, %v718
      %v737 = vunpack.c.l.b16 %v700
      %v738 = vunpack.c.l.b16 %v701
      %v739 = vunpack.c.l.b16 %v702
      %v740 = vunpack.c.l.b16 %v703
      %v741 = vunpack.c.l.b16 %v704
      %v742 = vunpack.c.l.b16 %v705
      %v743 = vunpack.c.l.b16 %v706
      %v744 = vunpack.c.l.b16 %v707
      %v745 = vunpack.c.l.b16 %v708
      %v746 = vunpack.c.l.b16 %v709
      %v747 = vunpack.c.l.b16 %v710
      %v748 = vunpack.c.l.b16 %v711
      %v749 = vunpack.c.l.b16 %v712
      %v750 = vunpack.c.l.b16 %v713
      %v751 = vunpack.c.l.b16 %v714
      %v752 = vunpack.c.l.b16 %v715
      %v753 = vpack.c.b16 %v738, %v737
      %v754 = vpack.c.b16 %v740, %v739
      %v755 = vpack.c.b16 %v742, %v741
      %v756 = vpack.c.b16 %v744, %v743
      %v757 = vpack.c.b16 %v746, %v745
      %v758 = vpack.c.b16 %v748, %v747
      %v759 = vpack.c.b16 %v750, %v749
      %v760 = vpack.c.b16 %v752, %v751
      %769 = vmatprep.subr.bf16.mxu0 0
      %770 = vmatpush1.bf16.msra.mxu0 %v760
      %771 = vmatprep.subr.bf16.mxu0 0
      %772 = vmatpush1.bf16.msra.mxu0 %v759
      %773 = vmatprep.subr.bf16.mxu0 0
      %774 = vmatpush1.bf16.msra.mxu0 %v758
      %775 = vmatprep.subr.bf16.mxu0 0
      %776 = vmatpush1.bf16.msra.mxu0 %v757
      %777 = vmatprep.subr.bf16.mxu0 0
      %778 = vmatpush1.bf16.msra.mxu0 %v756
      %779 = vmatprep.subr.bf16.mxu0 0
      %780 = vmatpush1.bf16.msra.mxu0 %v755
      %781 = vmatprep.subr.bf16.mxu0 0
      %782 = vmatpush1.bf16.msra.mxu0 %v754
      %783 = vmatprep.subr.bf16.mxu0 0
      %784 = vmatpush1.bf16.msra.mxu0 %v753
      %785 = vmatprep.subr.bf16.mxu0 0
      %786 = vmatpush2.bf16.msra.mxu0 0
      %787 = vmatprep.subr.bf16.mxu0 0
      %788 = vmatpush2.bf16.msra.mxu0 0
      %789 = vmatprep.subr.bf16.mxu0 0
      %790 = vmatpush2.bf16.msra.mxu0 0
      %791 = vmatprep.subr.bf16.mxu0 0
      %792 = vmatpush2.bf16.msra.mxu0 0
      %793 = vmatprep.subr.bf16.mxu0 0
      %794 = vmatpush2.bf16.msra.mxu0 0
      %795 = vmatprep.subr.bf16.mxu0 0
      %796 = vmatpush2.bf16.msra.mxu0 0
      %797 = vmatprep.subr.bf16.mxu0 0
      %798 = vmatpush2.bf16.msra.mxu0 0
      %799 = vmatprep.subr.bf16.mxu0 0
      %800 = vmatpush2.bf16.msra.mxu0 0
      %801 = vmatprep.mubr.bf16.mxu0 0
      %802 = vmatmul.mubr.bf16.gmra.mxu0 %v719
      %v803 = vpop.f32.mrf.mxu0
      %v804 = vadd.f32 0.0, %v803
      %v805 = vpop.f32.mrf.mxu0
      %v806 = vpop.f32.mrf.mxu0
      %v807 = vadd.f32 0.0, %v806
      %v808 = vpop.f32.mrf.mxu0
      %809 = vdwg.mxu0
      %v810 = vadd.f32 %v697, %v804
      %v811 = vadd.f32 %v698, %v807
      %s812 = scalar_lea.vmem %s210, 320
      %v813 = vld [vmem:[%s812] sm:$0xf]
      %v814 = vld [vmem:[%s812 + $0x4] sm:$0xf]
      %v815 = vld [vmem:[%s812 + $0x8] sm:$0xf]
      %v816 = vld [vmem:[%s812 + $0xc] sm:$0xf]
      %v817 = vld [vmem:[%s812 + $0x10] sm:$0xf]
      %v818 = vld [vmem:[%s812 + $0x14] sm:$0xf]
      %v819 = vld [vmem:[%s812 + $0x18] sm:$0xf]
      %v820 = vld [vmem:[%s812 + $0x1c] sm:$0xf]
      %v821 = vld [vmem:[%s812 + $0x20] sm:$0xf]
      %v822 = vld [vmem:[%s812 + $0x24] sm:$0xf]
      %v823 = vld [vmem:[%s812 + $0x28] sm:$0xf]
      %v824 = vld [vmem:[%s812 + $0x2c] sm:$0xf]
      %v825 = vld [vmem:[%s812 + $0x30] sm:$0xf]
      %v826 = vld [vmem:[%s812 + $0x34] sm:$0xf]
      %v827 = vld [vmem:[%s812 + $0x38] sm:$0xf]
      %v828 = vld [vmem:[%s812 + $0x3c] sm:$0xf]
      %vm829 = vsmask.f32 5376
      %v830 = vrot.slane %v362, 2
      %v831 = vrot.slane %v364, 3
      %v832 = vor.u32 %v830, %v831
      %v833 = vrot.slane %v601, 2
      %v834 = vrot.slane %v369, 3
      %v835 = vor.u32 %v833, %v834
      %v836 = vsel %vm829, %v832, %v835
      %v854 = vunpack.c.l.b16 %v813
      %v855 = vunpack.c.l.b16 %v814
      %v856 = vunpack.c.l.b16 %v815
      %v857 = vunpack.c.l.b16 %v816
      %v858 = vunpack.c.l.b16 %v817
      %v859 = vunpack.c.l.b16 %v818
      %v860 = vunpack.c.l.b16 %v819
      %v861 = vunpack.c.l.b16 %v820
      %v862 = vunpack.c.l.b16 %v821
      %v863 = vunpack.c.l.b16 %v822
      %v864 = vunpack.c.l.b16 %v823
      %v865 = vunpack.c.l.b16 %v824
      %v866 = vunpack.c.l.b16 %v825
      %v867 = vunpack.c.l.b16 %v826
      %v868 = vunpack.c.l.b16 %v827
      %v869 = vunpack.c.l.b16 %v828
      %v870 = vpack.c.b16 %v855, %v854
      %v871 = vpack.c.b16 %v857, %v856
      %v872 = vpack.c.b16 %v859, %v858
      %v873 = vpack.c.b16 %v861, %v860
      %v874 = vpack.c.b16 %v863, %v862
      %v875 = vpack.c.b16 %v865, %v864
      %v876 = vpack.c.b16 %v867, %v866
      %v877 = vpack.c.b16 %v869, %v868
      %886 = vmatprep.subr.bf16.mxu0 0
      %887 = vmatpush1.bf16.msra.mxu0 %v877
      %888 = vmatprep.subr.bf16.mxu0 0
      %889 = vmatpush1.bf16.msra.mxu0 %v876
      %890 = vmatprep.subr.bf16.mxu0 0
      %891 = vmatpush1.bf16.msra.mxu0 %v875
      %892 = vmatprep.subr.bf16.mxu0 0
      %893 = vmatpush1.bf16.msra.mxu0 %v874
      %894 = vmatprep.subr.bf16.mxu0 0
      %895 = vmatpush1.bf16.msra.mxu0 %v873
      %896 = vmatprep.subr.bf16.mxu0 0
      %897 = vmatpush1.bf16.msra.mxu0 %v872
      %898 = vmatprep.subr.bf16.mxu0 0
      %899 = vmatpush1.bf16.msra.mxu0 %v871
      %900 = vmatprep.subr.bf16.mxu0 0
      %901 = vmatpush1.bf16.msra.mxu0 %v870
      %902 = vmatprep.subr.bf16.mxu0 0
      %903 = vmatpush2.bf16.msra.mxu0 0
      %904 = vmatprep.subr.bf16.mxu0 0
      %905 = vmatpush2.bf16.msra.mxu0 0
      %906 = vmatprep.subr.bf16.mxu0 0
      %907 = vmatpush2.bf16.msra.mxu0 0
      %908 = vmatprep.subr.bf16.mxu0 0
      %909 = vmatpush2.bf16.msra.mxu0 0
      %910 = vmatprep.subr.bf16.mxu0 0
      %911 = vmatpush2.bf16.msra.mxu0 0
      %912 = vmatprep.subr.bf16.mxu0 0
      %913 = vmatpush2.bf16.msra.mxu0 0
      %914 = vmatprep.subr.bf16.mxu0 0
      %915 = vmatpush2.bf16.msra.mxu0 0
      %916 = vmatprep.subr.bf16.mxu0 0
      %917 = vmatpush2.bf16.msra.mxu0 0
      %918 = vmatprep.mubr.bf16.mxu0 0
      %919 = vmatmul.mubr.bf16.gmra.mxu0 %v836
      %v920 = vpop.f32.mrf.mxu0
      %v921 = vadd.f32 0.0, %v920
      %v922 = vpop.f32.mrf.mxu0
      %v923 = vpop.f32.mrf.mxu0
      %v924 = vadd.f32 0.0, %v923
      %v925 = vpop.f32.mrf.mxu0
      %926 = vdwg.mxu0
      %v927 = vadd.f32 %v810, %v921
      %v928 = vadd.f32 %v811, %v924
      %s929 = scalar_lea.vmem %s210, 384
      %v930 = vld [vmem:[%s929] sm:$0xf]
      %v931 = vld [vmem:[%s929 + $0x4] sm:$0xf]
      %v932 = vld [vmem:[%s929 + $0x8] sm:$0xf]
      %v933 = vld [vmem:[%s929 + $0xc] sm:$0xf]
      %v934 = vld [vmem:[%s929 + $0x10] sm:$0xf]
      %v935 = vld [vmem:[%s929 + $0x14] sm:$0xf]
      %v936 = vld [vmem:[%s929 + $0x18] sm:$0xf]
      %v937 = vld [vmem:[%s929 + $0x1c] sm:$0xf]
      %v938 = vld [vmem:[%s929 + $0x20] sm:$0xf]
      %v939 = vld [vmem:[%s929 + $0x24] sm:$0xf]
      %v940 = vld [vmem:[%s929 + $0x28] sm:$0xf]
      %v941 = vld [vmem:[%s929 + $0x2c] sm:$0xf]
      %v942 = vld [vmem:[%s929 + $0x30] sm:$0xf]
      %v943 = vld [vmem:[%s929 + $0x34] sm:$0xf]
      %v944 = vld [vmem:[%s929 + $0x38] sm:$0xf]
      %v945 = vld [vmem:[%s929 + $0x3c] sm:$0xf]
      %vm946 = vcmask 1044480
      %v947 = vrot.slane %v227, 3
      %v948 = vrot.slane %v228, 3
      %v949 = vsel %vm946, %v947, %v948
      %v967 = vunpack.c.l.b16 %v930
      %v968 = vunpack.c.l.b16 %v931
      %v969 = vunpack.c.l.b16 %v932
      %v970 = vunpack.c.l.b16 %v933
      %v971 = vunpack.c.l.b16 %v934
      %v972 = vunpack.c.l.b16 %v935
      %v973 = vunpack.c.l.b16 %v936
      %v974 = vunpack.c.l.b16 %v937
      %v975 = vunpack.c.l.b16 %v938
      %v976 = vunpack.c.l.b16 %v939
      %v977 = vunpack.c.l.b16 %v940
      %v978 = vunpack.c.l.b16 %v941
      %v979 = vunpack.c.l.b16 %v942
      %v980 = vunpack.c.l.b16 %v943
      %v981 = vunpack.c.l.b16 %v944
      %v982 = vunpack.c.l.b16 %v945
      %v983 = vpack.c.b16 %v968, %v967
      %v984 = vpack.c.b16 %v970, %v969
      %v985 = vpack.c.b16 %v972, %v971
      %v986 = vpack.c.b16 %v974, %v973
      %v987 = vpack.c.b16 %v976, %v975
      %v988 = vpack.c.b16 %v978, %v977
      %v989 = vpack.c.b16 %v980, %v979
      %v990 = vpack.c.b16 %v982, %v981
      %999 = vmatprep.subr.bf16.mxu0 0
      %1000 = vmatpush1.bf16.msra.mxu0 %v990
      %1001 = vmatprep.subr.bf16.mxu0 0
      %1002 = vmatpush1.bf16.msra.mxu0 %v989
      %1003 = vmatprep.subr.bf16.mxu0 0
      %1004 = vmatpush1.bf16.msra.mxu0 %v988
      %1005 = vmatprep.subr.bf16.mxu0 0
      %1006 = vmatpush1.bf16.msra.mxu0 %v987
      %1007 = vmatprep.subr.bf16.mxu0 0
      %1008 = vmatpush1.bf16.msra.mxu0 %v986
      %1009 = vmatprep.subr.bf16.mxu0 0
      %1010 = vmatpush1.bf16.msra.mxu0 %v985
      %1011 = vmatprep.subr.bf16.mxu0 0
      %1012 = vmatpush1.bf16.msra.mxu0 %v984
      %1013 = vmatprep.subr.bf16.mxu0 0
      %1014 = vmatpush1.bf16.msra.mxu0 %v983
      %1015 = vmatprep.subr.bf16.mxu0 0
      %1016 = vmatpush2.bf16.msra.mxu0 0
      %1017 = vmatprep.subr.bf16.mxu0 0
      %1018 = vmatpush2.bf16.msra.mxu0 0
      %1019 = vmatprep.subr.bf16.mxu0 0
      %1020 = vmatpush2.bf16.msra.mxu0 0
      %1021 = vmatprep.subr.bf16.mxu0 0
      %1022 = vmatpush2.bf16.msra.mxu0 0
      %1023 = vmatprep.subr.bf16.mxu0 0
      %1024 = vmatpush2.bf16.msra.mxu0 0
      %1025 = vmatprep.subr.bf16.mxu0 0
      %1026 = vmatpush2.bf16.msra.mxu0 0
      %1027 = vmatprep.subr.bf16.mxu0 0
      %1028 = vmatpush2.bf16.msra.mxu0 0
      %1029 = vmatprep.subr.bf16.mxu0 0
      %1030 = vmatpush2.bf16.msra.mxu0 0
      %1031 = vmatprep.mubr.bf16.mxu0 0
      %1032 = vmatmul.mubr.bf16.gmra.mxu0 %v949
      %v1033 = vpop.f32.mrf.mxu0
      %v1034 = vadd.f32 0.0, %v1033
      %v1035 = vpop.f32.mrf.mxu0
      %v1036 = vpop.f32.mrf.mxu0
      %v1037 = vadd.f32 0.0, %v1036
      %v1038 = vpop.f32.mrf.mxu0
      %1039 = vdwg.mxu0
      %v1040 = vadd.f32 %v927, %v1034
      %v1041 = vadd.f32 %v928, %v1037
      %s1042 = scalar_lea.vmem %s210, 448
      %v1043 = vld [vmem:[%s1042] sm:$0xf]
      %v1044 = vld [vmem:[%s1042 + $0x4] sm:$0xf]
      %v1045 = vld [vmem:[%s1042 + $0x8] sm:$0xf]
      %v1046 = vld [vmem:[%s1042 + $0xc] sm:$0xf]
      %v1047 = vld [vmem:[%s1042 + $0x10] sm:$0xf]
      %v1048 = vld [vmem:[%s1042 + $0x14] sm:$0xf]
      %v1049 = vld [vmem:[%s1042 + $0x18] sm:$0xf]
      %v1050 = vld [vmem:[%s1042 + $0x1c] sm:$0xf]
      %v1051 = vld [vmem:[%s1042 + $0x20] sm:$0xf]
      %v1052 = vld [vmem:[%s1042 + $0x24] sm:$0xf]
      %v1053 = vld [vmem:[%s1042 + $0x28] sm:$0xf]
      %v1054 = vld [vmem:[%s1042 + $0x2c] sm:$0xf]
      %v1055 = vld [vmem:[%s1042 + $0x30] sm:$0xf]
      %v1056 = vld [vmem:[%s1042 + $0x34] sm:$0xf]
      %v1057 = vld [vmem:[%s1042 + $0x38] sm:$0xf]
      %v1058 = vld [vmem:[%s1042 + $0x3c] sm:$0xf]
      %vm1059 = vsmask.f32 4352
      %v1060 = vrot.slane %v362, 3
      %v1061 = vrot.slane %v364, 4
      %v1062 = vor.u32 %v1060, %v1061
      %v1063 = vrot.slane %v601, 3
      %v1064 = vrot.slane %v369, 4
      %v1065 = vor.u32 %v1063, %v1064
      %v1066 = vsel %vm1059, %v1062, %v1065
      %v1084 = vunpack.c.l.b16 %v1043
      %v1085 = vunpack.c.l.b16 %v1044
      %v1086 = vunpack.c.l.b16 %v1045
      %v1087 = vunpack.c.l.b16 %v1046
      %v1088 = vunpack.c.l.b16 %v1047
      %v1089 = vunpack.c.l.b16 %v1048
      %v1090 = vunpack.c.l.b16 %v1049
      %v1091 = vunpack.c.l.b16 %v1050
      %v1092 = vunpack.c.l.b16 %v1051
      %v1093 = vunpack.c.l.b16 %v1052
      %v1094 = vunpack.c.l.b16 %v1053
      %v1095 = vunpack.c.l.b16 %v1054
      %v1096 = vunpack.c.l.b16 %v1055
      %v1097 = vunpack.c.l.b16 %v1056
      %v1098 = vunpack.c.l.b16 %v1057
      %v1099 = vunpack.c.l.b16 %v1058
      %v1100 = vpack.c.b16 %v1085, %v1084
      %v1101 = vpack.c.b16 %v1087, %v1086
      %v1102 = vpack.c.b16 %v1089, %v1088
      %v1103 = vpack.c.b16 %v1091, %v1090
      %v1104 = vpack.c.b16 %v1093, %v1092
      %v1105 = vpack.c.b16 %v1095, %v1094
      %v1106 = vpack.c.b16 %v1097, %v1096
      %v1107 = vpack.c.b16 %v1099, %v1098
      %1116 = vmatprep.subr.bf16.mxu0 0
      %1117 = vmatpush1.bf16.msra.mxu0 %v1107
      %1118 = vmatprep.subr.bf16.mxu0 0
      %1119 = vmatpush1.bf16.msra.mxu0 %v1106
      %1120 = vmatprep.subr.bf16.mxu0 0
      %1121 = vmatpush1.bf16.msra.mxu0 %v1105
      %1122 = vmatprep.subr.bf16.mxu0 0
      %1123 = vmatpush1.bf16.msra.mxu0 %v1104
      %1124 = vmatprep.subr.bf16.mxu0 0
      %1125 = vmatpush1.bf16.msra.mxu0 %v1103
      %1126 = vmatprep.subr.bf16.mxu0 0
      %1127 = vmatpush1.bf16.msra.mxu0 %v1102
      %1128 = vmatprep.subr.bf16.mxu0 0
      %1129 = vmatpush1.bf16.msra.mxu0 %v1101
      %1130 = vmatprep.subr.bf16.mxu0 0
      %1131 = vmatpush1.bf16.msra.mxu0 %v1100
      %1132 = vmatprep.subr.bf16.mxu0 0
      %1133 = vmatpush2.bf16.msra.mxu0 0
      %1134 = vmatprep.subr.bf16.mxu0 0
      %1135 = vmatpush2.bf16.msra.mxu0 0
      %1136 = vmatprep.subr.bf16.mxu0 0
      %1137 = vmatpush2.bf16.msra.mxu0 0
      %1138 = vmatprep.subr.bf16.mxu0 0
      %1139 = vmatpush2.bf16.msra.mxu0 0
      %1140 = vmatprep.subr.bf16.mxu0 0
      %1141 = vmatpush2.bf16.msra.mxu0 0
      %1142 = vmatprep.subr.bf16.mxu0 0
      %1143 = vmatpush2.bf16.msra.mxu0 0
      %1144 = vmatprep.subr.bf16.mxu0 0
      %1145 = vmatpush2.bf16.msra.mxu0 0
      %1146 = vmatprep.subr.bf16.mxu0 0
      %1147 = vmatpush2.bf16.msra.mxu0 0
      %1148 = vmatprep.mubr.bf16.mxu0 0
      %1149 = vmatmul.mubr.bf16.gmra.mxu0 %v1066
      %v1150 = vpop.f32.mrf.mxu0
      %v1151 = vadd.f32 0.0, %v1150
      %v1152 = vpop.f32.mrf.mxu0
      %v1153 = vpop.f32.mrf.mxu0
      %v1154 = vadd.f32 0.0, %v1153
      %v1155 = vpop.f32.mrf.mxu0
      %1156 = vdwg.mxu0
      %v1157 = vadd.f32 %v1040, %v1151
      %v1158 = vadd.f32 %v1041, %v1154
      %s1159 = scalar_lea.vmem %s210, 512
      %v1160 = vld [vmem:[%s1159] sm:$0xf]
      %v1161 = vld [vmem:[%s1159 + $0x4] sm:$0xf]
      %v1162 = vld [vmem:[%s1159 + $0x8] sm:$0xf]
      %v1163 = vld [vmem:[%s1159 + $0xc] sm:$0xf]
      %v1164 = vld [vmem:[%s1159 + $0x10] sm:$0xf]
      %v1165 = vld [vmem:[%s1159 + $0x14] sm:$0xf]
      %v1166 = vld [vmem:[%s1159 + $0x18] sm:$0xf]
      %v1167 = vld [vmem:[%s1159 + $0x1c] sm:$0xf]
      %v1168 = vld [vmem:[%s1159 + $0x20] sm:$0xf]
      %v1169 = vld [vmem:[%s1159 + $0x24] sm:$0xf]
      %v1170 = vld [vmem:[%s1159 + $0x28] sm:$0xf]
      %v1171 = vld [vmem:[%s1159 + $0x2c] sm:$0xf]
      %v1172 = vld [vmem:[%s1159 + $0x30] sm:$0xf]
      %v1173 = vld [vmem:[%s1159 + $0x34] sm:$0xf]
      %v1174 = vld [vmem:[%s1159 + $0x38] sm:$0xf]
      %v1175 = vld [vmem:[%s1159 + $0x3c] sm:$0xf]
      %vm1176 = vcmask 1043456
      %v1177 = vrot.slane %v227, 4
      %v1178 = vrot.slane %v228, 4
      %v1179 = vsel %vm1176, %v1177, %v1178
      %v1197 = vunpack.c.l.b16 %v1160
      %v1198 = vunpack.c.l.b16 %v1161
      %v1199 = vunpack.c.l.b16 %v1162
      %v1200 = vunpack.c.l.b16 %v1163
      %v1201 = vunpack.c.l.b16 %v1164
      %v1202 = vunpack.c.l.b16 %v1165
      %v1203 = vunpack.c.l.b16 %v1166
      %v1204 = vunpack.c.l.b16 %v1167
      %v1205 = vunpack.c.l.b16 %v1168
      %v1206 = vunpack.c.l.b16 %v1169
      %v1207 = vunpack.c.l.b16 %v1170
      %v1208 = vunpack.c.l.b16 %v1171
      %v1209 = vunpack.c.l.b16 %v1172
      %v1210 = vunpack.c.l.b16 %v1173
      %v1211 = vunpack.c.l.b16 %v1174
      %v1212 = vunpack.c.l.b16 %v1175
      %v1213 = vpack.c.b16 %v1198, %v1197
      %v1214 = vpack.c.b16 %v1200, %v1199
      %v1215 = vpack.c.b16 %v1202, %v1201
      %v1216 = vpack.c.b16 %v1204, %v1203
      %v1217 = vpack.c.b16 %v1206, %v1205
      %v1218 = vpack.c.b16 %v1208, %v1207
      %v1219 = vpack.c.b16 %v1210, %v1209
      %v1220 = vpack.c.b16 %v1212, %v1211
      %1229 = vmatprep.subr.bf16.mxu0 0
      %1230 = vmatpush1.bf16.msra.mxu0 %v1220
      %1231 = vmatprep.subr.bf16.mxu0 0
      %1232 = vmatpush1.bf16.msra.mxu0 %v1219
      %1233 = vmatprep.subr.bf16.mxu0 0
      %1234 = vmatpush1.bf16.msra.mxu0 %v1218
      %1235 = vmatprep.subr.bf16.mxu0 0
      %1236 = vmatpush1.bf16.msra.mxu0 %v1217
      %1237 = vmatprep.subr.bf16.mxu0 0
      %1238 = vmatpush1.bf16.msra.mxu0 %v1216
      %1239 = vmatprep.subr.bf16.mxu0 0
      %1240 = vmatpush1.bf16.msra.mxu0 %v1215
      %1241 = vmatprep.subr.bf16.mxu0 0
      %1242 = vmatpush1.bf16.msra.mxu0 %v1214
      %1243 = vmatprep.subr.bf16.mxu0 0
      %1244 = vmatpush1.bf16.msra.mxu0 %v1213
      %1245 = vmatprep.subr.bf16.mxu0 0
      %1246 = vmatpush2.bf16.msra.mxu0 0
      %1247 = vmatprep.subr.bf16.mxu0 0
      %1248 = vmatpush2.bf16.msra.mxu0 0
      %1249 = vmatprep.subr.bf16.mxu0 0
      %1250 = vmatpush2.bf16.msra.mxu0 0
      %1251 = vmatprep.subr.bf16.mxu0 0
      %1252 = vmatpush2.bf16.msra.mxu0 0
      %1253 = vmatprep.subr.bf16.mxu0 0
      %1254 = vmatpush2.bf16.msra.mxu0 0
      %1255 = vmatprep.subr.bf16.mxu0 0
      %1256 = vmatpush2.bf16.msra.mxu0 0
      %1257 = vmatprep.subr.bf16.mxu0 0
      %1258 = vmatpush2.bf16.msra.mxu0 0
      %1259 = vmatprep.subr.bf16.mxu0 0
      %1260 = vmatpush2.bf16.msra.mxu0 0
      %1261 = vmatprep.mubr.bf16.mxu0 0
      %1262 = vmatmul.mubr.bf16.gmra.mxu0 %v1179
      %v1263 = vpop.f32.mrf.mxu0
      %v1264 = vadd.f32 0.0, %v1263
      %v1265 = vpop.f32.mrf.mxu0
      %v1266 = vpop.f32.mrf.mxu0
      %v1267 = vadd.f32 0.0, %v1266
      %v1268 = vpop.f32.mrf.mxu0
      %1269 = vdwg.mxu0
      %v1270 = vadd.f32 %v1157, %v1264
      %v1271 = vadd.f32 %v1158, %v1267
      %s1272 = scalar_lea.vmem %s210, 576
      %v1273 = vld [vmem:[%s1272] sm:$0xf]
      %v1274 = vld [vmem:[%s1272 + $0x4] sm:$0xf]
      %v1275 = vld [vmem:[%s1272 + $0x8] sm:$0xf]
      %v1276 = vld [vmem:[%s1272 + $0xc] sm:$0xf]
      %v1277 = vld [vmem:[%s1272 + $0x10] sm:$0xf]
      %v1278 = vld [vmem:[%s1272 + $0x14] sm:$0xf]
      %v1279 = vld [vmem:[%s1272 + $0x18] sm:$0xf]
      %v1280 = vld [vmem:[%s1272 + $0x1c] sm:$0xf]
      %v1281 = vld [vmem:[%s1272 + $0x20] sm:$0xf]
      %v1282 = vld [vmem:[%s1272 + $0x24] sm:$0xf]
      %v1283 = vld [vmem:[%s1272 + $0x28] sm:$0xf]
      %v1284 = vld [vmem:[%s1272 + $0x2c] sm:$0xf]
      %v1285 = vld [vmem:[%s1272 + $0x30] sm:$0xf]
      %v1286 = vld [vmem:[%s1272 + $0x34] sm:$0xf]
      %v1287 = vld [vmem:[%s1272 + $0x38] sm:$0xf]
      %v1288 = vld [vmem:[%s1272 + $0x3c] sm:$0xf]
      %vm1289 = vsmask.f32 3328
      %v1290 = vrot.slane %v362, 4
      %v1291 = vrot.slane %v364, 5
      %v1292 = vor.u32 %v1290, %v1291
      %v1293 = vrot.slane %v601, 4
      %v1294 = vrot.slane %v369, 5
      %v1295 = vor.u32 %v1293, %v1294
      %v1296 = vsel %vm1289, %v1292, %v1295
      %v1314 = vunpack.c.l.b16 %v1273
      %v1315 = vunpack.c.l.b16 %v1274
      %v1316 = vunpack.c.l.b16 %v1275
      %v1317 = vunpack.c.l.b16 %v1276
      %v1318 = vunpack.c.l.b16 %v1277
      %v1319 = vunpack.c.l.b16 %v1278
      %v1320 = vunpack.c.l.b16 %v1279
      %v1321 = vunpack.c.l.b16 %v1280
      %v1322 = vunpack.c.l.b16 %v1281
      %v1323 = vunpack.c.l.b16 %v1282
      %v1324 = vunpack.c.l.b16 %v1283
      %v1325 = vunpack.c.l.b16 %v1284
      %v1326 = vunpack.c.l.b16 %v1285
      %v1327 = vunpack.c.l.b16 %v1286
      %v1328 = vunpack.c.l.b16 %v1287
      %v1329 = vunpack.c.l.b16 %v1288
      %v1330 = vpack.c.b16 %v1315, %v1314
      %v1331 = vpack.c.b16 %v1317, %v1316
      %v1332 = vpack.c.b16 %v1319, %v1318
      %v1333 = vpack.c.b16 %v1321, %v1320
      %v1334 = vpack.c.b16 %v1323, %v1322
      %v1335 = vpack.c.b16 %v1325, %v1324
      %v1336 = vpack.c.b16 %v1327, %v1326
      %v1337 = vpack.c.b16 %v1329, %v1328
      %1346 = vmatprep.subr.bf16.mxu0 0
      %1347 = vmatpush1.bf16.msra.mxu0 %v1337
      %1348 = vmatprep.subr.bf16.mxu0 0
      %1349 = vmatpush1.bf16.msra.mxu0 %v1336
      %1350 = vmatprep.subr.bf16.mxu0 0
      %1351 = vmatpush1.bf16.msra.mxu0 %v1335
      %1352 = vmatprep.subr.bf16.mxu0 0
      %1353 = vmatpush1.bf16.msra.mxu0 %v1334
      %1354 = vmatprep.subr.bf16.mxu0 0
      %1355 = vmatpush1.bf16.msra.mxu0 %v1333
      %1356 = vmatprep.subr.bf16.mxu0 0
      %1357 = vmatpush1.bf16.msra.mxu0 %v1332
      %1358 = vmatprep.subr.bf16.mxu0 0
      %1359 = vmatpush1.bf16.msra.mxu0 %v1331
      %1360 = vmatprep.subr.bf16.mxu0 0
      %1361 = vmatpush1.bf16.msra.mxu0 %v1330
      %1362 = vmatprep.subr.bf16.mxu0 0
      %1363 = vmatpush2.bf16.msra.mxu0 0
      %1364 = vmatprep.subr.bf16.mxu0 0
      %1365 = vmatpush2.bf16.msra.mxu0 0
      %1366 = vmatprep.subr.bf16.mxu0 0
      %1367 = vmatpush2.bf16.msra.mxu0 0
      %1368 = vmatprep.subr.bf16.mxu0 0
      %1369 = vmatpush2.bf16.msra.mxu0 0
      %1370 = vmatprep.subr.bf16.mxu0 0
      %1371 = vmatpush2.bf16.msra.mxu0 0
      %1372 = vmatprep.subr.bf16.mxu0 0
      %1373 = vmatpush2.bf16.msra.mxu0 0
      %1374 = vmatprep.subr.bf16.mxu0 0
      %1375 = vmatpush2.bf16.msra.mxu0 0
      %1376 = vmatprep.subr.bf16.mxu0 0
      %1377 = vmatpush2.bf16.msra.mxu0 0
      %1378 = vmatprep.mubr.bf16.mxu0 0
      %1379 = vmatmul.mubr.bf16.gmra.mxu0 %v1296
      %v1380 = vpop.f32.mrf.mxu0
      %v1381 = vadd.f32 0.0, %v1380
      %v1382 = vpop.f32.mrf.mxu0
      %v1383 = vpop.f32.mrf.mxu0
      %v1384 = vadd.f32 0.0, %v1383
      %v1385 = vpop.f32.mrf.mxu0
      %1386 = vdwg.mxu0
      %v1387 = vadd.f32 %v1270, %v1381
      %v1388 = vadd.f32 %v1271, %v1384
      %s1389 = scalar_lea.vmem %s210, 640
      %v1390 = vld [vmem:[%s1389] sm:$0xf]
      %v1391 = vld [vmem:[%s1389 + $0x4] sm:$0xf]
      %v1392 = vld [vmem:[%s1389 + $0x8] sm:$0xf]
      %v1393 = vld [vmem:[%s1389 + $0xc] sm:$0xf]
      %v1394 = vld [vmem:[%s1389 + $0x10] sm:$0xf]
      %v1395 = vld [vmem:[%s1389 + $0x14] sm:$0xf]
      %v1396 = vld [vmem:[%s1389 + $0x18] sm:$0xf]
      %v1397 = vld [vmem:[%s1389 + $0x1c] sm:$0xf]
      %v1398 = vld [vmem:[%s1389 + $0x20] sm:$0xf]
      %v1399 = vld [vmem:[%s1389 + $0x24] sm:$0xf]
      %v1400 = vld [vmem:[%s1389 + $0x28] sm:$0xf]
      %v1401 = vld [vmem:[%s1389 + $0x2c] sm:$0xf]
      %v1402 = vld [vmem:[%s1389 + $0x30] sm:$0xf]
      %v1403 = vld [vmem:[%s1389 + $0x34] sm:$0xf]
      %v1404 = vld [vmem:[%s1389 + $0x38] sm:$0xf]
      %v1405 = vld [vmem:[%s1389 + $0x3c] sm:$0xf]
      %vm1406 = vcmask 1042432
      %v1407 = vrot.slane %v227, 5
      %v1408 = vrot.slane %v228, 5
      %v1409 = vsel %vm1406, %v1407, %v1408
      %v1427 = vunpack.c.l.b16 %v1390
      %v1428 = vunpack.c.l.b16 %v1391
      %v1429 = vunpack.c.l.b16 %v1392
      %v1430 = vunpack.c.l.b16 %v1393
      %v1431 = vunpack.c.l.b16 %v1394
      %v1432 = vunpack.c.l.b16 %v1395
      %v1433 = vunpack.c.l.b16 %v1396
      %v1434 = vunpack.c.l.b16 %v1397
      %v1435 = vunpack.c.l.b16 %v1398
      %v1436 = vunpack.c.l.b16 %v1399
      %v1437 = vunpack.c.l.b16 %v1400
      %v1438 = vunpack.c.l.b16 %v1401
      %v1439 = vunpack.c.l.b16 %v1402
      %v1440 = vunpack.c.l.b16 %v1403
      %v1441 = vunpack.c.l.b16 %v1404
      %v1442 = vunpack.c.l.b16 %v1405
      %v1443 = vpack.c.b16 %v1428, %v1427
      %v1444 = vpack.c.b16 %v1430, %v1429
      %v1445 = vpack.c.b16 %v1432, %v1431
      %v1446 = vpack.c.b16 %v1434, %v1433
      %v1447 = vpack.c.b16 %v1436, %v1435
      %v1448 = vpack.c.b16 %v1438, %v1437
      %v1449 = vpack.c.b16 %v1440, %v1439
      %v1450 = vpack.c.b16 %v1442, %v1441
      %1459 = vmatprep.subr.bf16.mxu0 0
      %1460 = vmatpush1.bf16.msra.mxu0 %v1450
      %1461 = vmatprep.subr.bf16.mxu0 0
      %1462 = vmatpush1.bf16.msra.mxu0 %v1449
      %1463 = vmatprep.subr.bf16.mxu0 0
      %1464 = vmatpush1.bf16.msra.mxu0 %v1448
      %1465 = vmatprep.subr.bf16.mxu0 0
      %1466 = vmatpush1.bf16.msra.mxu0 %v1447
      %1467 = vmatprep.subr.bf16.mxu0 0
      %1468 = vmatpush1.bf16.msra.mxu0 %v1446
      %1469 = vmatprep.subr.bf16.mxu0 0
      %1470 = vmatpush1.bf16.msra.mxu0 %v1445
      %1471 = vmatprep.subr.bf16.mxu0 0
      %1472 = vmatpush1.bf16.msra.mxu0 %v1444
      %1473 = vmatprep.subr.bf16.mxu0 0
      %1474 = vmatpush1.bf16.msra.mxu0 %v1443
      %1475 = vmatprep.subr.bf16.mxu0 0
      %1476 = vmatpush2.bf16.msra.mxu0 0
      %1477 = vmatprep.subr.bf16.mxu0 0
      %1478 = vmatpush2.bf16.msra.mxu0 0
      %1479 = vmatprep.subr.bf16.mxu0 0
      %1480 = vmatpush2.bf16.msra.mxu0 0
      %1481 = vmatprep.subr.bf16.mxu0 0
      %1482 = vmatpush2.bf16.msra.mxu0 0
      %1483 = vmatprep.subr.bf16.mxu0 0
      %1484 = vmatpush2.bf16.msra.mxu0 0
      %1485 = vmatprep.subr.bf16.mxu0 0
      %1486 = vmatpush2.bf16.msra.mxu0 0
      %1487 = vmatprep.subr.bf16.mxu0 0
      %1488 = vmatpush2.bf16.msra.mxu0 0
      %1489 = vmatprep.subr.bf16.mxu0 0
      %1490 = vmatpush2.bf16.msra.mxu0 0
      %1491 = vmatprep.mubr.bf16.mxu0 0
      %1492 = vmatmul.mubr.bf16.gmra.mxu0 %v1409
      %v1493 = vpop.f32.mrf.mxu0
      %v1494 = vadd.f32 0.0, %v1493
      %v1495 = vpop.f32.mrf.mxu0
      %v1496 = vpop.f32.mrf.mxu0
      %v1497 = vadd.f32 0.0, %v1496
      %v1498 = vpop.f32.mrf.mxu0
      %1499 = vdwg.mxu0
      %v1500 = vadd.f32 %v1387, %v1494
      %v1501 = vadd.f32 %v1388, %v1497
      %s1502 = scalar_lea.vmem %s210, 704
      %v1503 = vld [vmem:[%s1502] sm:$0xf]
      %v1504 = vld [vmem:[%s1502 + $0x4] sm:$0xf]
      %v1505 = vld [vmem:[%s1502 + $0x8] sm:$0xf]
      %v1506 = vld [vmem:[%s1502 + $0xc] sm:$0xf]
      %v1507 = vld [vmem:[%s1502 + $0x10] sm:$0xf]
      %v1508 = vld [vmem:[%s1502 + $0x14] sm:$0xf]
      %v1509 = vld [vmem:[%s1502 + $0x18] sm:$0xf]
      %v1510 = vld [vmem:[%s1502 + $0x1c] sm:$0xf]
      %v1511 = vld [vmem:[%s1502 + $0x20] sm:$0xf]
      %v1512 = vld [vmem:[%s1502 + $0x24] sm:$0xf]
      %v1513 = vld [vmem:[%s1502 + $0x28] sm:$0xf]
      %v1514 = vld [vmem:[%s1502 + $0x2c] sm:$0xf]
      %v1515 = vld [vmem:[%s1502 + $0x30] sm:$0xf]
      %v1516 = vld [vmem:[%s1502 + $0x34] sm:$0xf]
      %v1517 = vld [vmem:[%s1502 + $0x38] sm:$0xf]
      %v1518 = vld [vmem:[%s1502 + $0x3c] sm:$0xf]
      %vm1519 = vsmask.f32 2304
      %v1520 = vrot.slane %v362, 5
      %v1521 = vrot.slane %v364, 6
      %v1522 = vor.u32 %v1520, %v1521
      %v1523 = vrot.slane %v601, 5
      %v1524 = vrot.slane %v369, 6
      %v1525 = vor.u32 %v1523, %v1524
      %v1526 = vsel %vm1519, %v1522, %v1525
      %v1544 = vunpack.c.l.b16 %v1503
      %v1545 = vunpack.c.l.b16 %v1504
      %v1546 = vunpack.c.l.b16 %v1505
      %v1547 = vunpack.c.l.b16 %v1506
      %v1548 = vunpack.c.l.b16 %v1507
      %v1549 = vunpack.c.l.b16 %v1508
      %v1550 = vunpack.c.l.b16 %v1509
      %v1551 = vunpack.c.l.b16 %v1510
      %v1552 = vunpack.c.l.b16 %v1511
      %v1553 = vunpack.c.l.b16 %v1512
      %v1554 = vunpack.c.l.b16 %v1513
      %v1555 = vunpack.c.l.b16 %v1514
      %v1556 = vunpack.c.l.b16 %v1515
      %v1557 = vunpack.c.l.b16 %v1516
      %v1558 = vunpack.c.l.b16 %v1517
      %v1559 = vunpack.c.l.b16 %v1518
      %v1560 = vpack.c.b16 %v1545, %v1544
      %v1561 = vpack.c.b16 %v1547, %v1546
      %v1562 = vpack.c.b16 %v1549, %v1548
      %v1563 = vpack.c.b16 %v1551, %v1550
      %v1564 = vpack.c.b16 %v1553, %v1552
      %v1565 = vpack.c.b16 %v1555, %v1554
      %v1566 = vpack.c.b16 %v1557, %v1556
      %v1567 = vpack.c.b16 %v1559, %v1558
      %1576 = vmatprep.subr.bf16.mxu0 0
      %1577 = vmatpush1.bf16.msra.mxu0 %v1567
      %1578 = vmatprep.subr.bf16.mxu0 0
      %1579 = vmatpush1.bf16.msra.mxu0 %v1566
      %1580 = vmatprep.subr.bf16.mxu0 0
      %1581 = vmatpush1.bf16.msra.mxu0 %v1565
      %1582 = vmatprep.subr.bf16.mxu0 0
      %1583 = vmatpush1.bf16.msra.mxu0 %v1564
      %1584 = vmatprep.subr.bf16.mxu0 0
      %1585 = vmatpush1.bf16.msra.mxu0 %v1563
      %1586 = vmatprep.subr.bf16.mxu0 0
      %1587 = vmatpush1.bf16.msra.mxu0 %v1562
      %1588 = vmatprep.subr.bf16.mxu0 0
      %1589 = vmatpush1.bf16.msra.mxu0 %v1561
      %1590 = vmatprep.subr.bf16.mxu0 0
      %1591 = vmatpush1.bf16.msra.mxu0 %v1560
      %1592 = vmatprep.subr.bf16.mxu0 0
      %1593 = vmatpush2.bf16.msra.mxu0 0
      %1594 = vmatprep.subr.bf16.mxu0 0
      %1595 = vmatpush2.bf16.msra.mxu0 0
      %1596 = vmatprep.subr.bf16.mxu0 0
      %1597 = vmatpush2.bf16.msra.mxu0 0
      %1598 = vmatprep.subr.bf16.mxu0 0
      %1599 = vmatpush2.bf16.msra.mxu0 0
      %1600 = vmatprep.subr.bf16.mxu0 0
      %1601 = vmatpush2.bf16.msra.mxu0 0
      %1602 = vmatprep.subr.bf16.mxu0 0
      %1603 = vmatpush2.bf16.msra.mxu0 0
      %1604 = vmatprep.subr.bf16.mxu0 0
      %1605 = vmatpush2.bf16.msra.mxu0 0
      %1606 = vmatprep.subr.bf16.mxu0 0
      %1607 = vmatpush2.bf16.msra.mxu0 0
      %1608 = vmatprep.mubr.bf16.mxu0 0
      %1609 = vmatmul.mubr.bf16.gmra.mxu0 %v1526
      %v1610 = vpop.f32.mrf.mxu0
      %v1611 = vadd.f32 0.0, %v1610
      %v1612 = vpop.f32.mrf.mxu0
      %v1613 = vpop.f32.mrf.mxu0
      %v1614 = vadd.f32 0.0, %v1613
      %v1615 = vpop.f32.mrf.mxu0
      %1616 = vdwg.mxu0
      %v1617 = vadd.f32 %v1500, %v1611
      %v1618 = vadd.f32 %v1501, %v1614
      %s1619 = scalar_lea.vmem %s210, 768
      %v1620 = vld [vmem:[%s1619] sm:$0xf]
      %v1621 = vld [vmem:[%s1619 + $0x4] sm:$0xf]
      %v1622 = vld [vmem:[%s1619 + $0x8] sm:$0xf]
      %v1623 = vld [vmem:[%s1619 + $0xc] sm:$0xf]
      %v1624 = vld [vmem:[%s1619 + $0x10] sm:$0xf]
      %v1625 = vld [vmem:[%s1619 + $0x14] sm:$0xf]
      %v1626 = vld [vmem:[%s1619 + $0x18] sm:$0xf]
      %v1627 = vld [vmem:[%s1619 + $0x1c] sm:$0xf]
      %v1628 = vld [vmem:[%s1619 + $0x20] sm:$0xf]
      %v1629 = vld [vmem:[%s1619 + $0x24] sm:$0xf]
      %v1630 = vld [vmem:[%s1619 + $0x28] sm:$0xf]
      %v1631 = vld [vmem:[%s1619 + $0x2c] sm:$0xf]
      %v1632 = vld [vmem:[%s1619 + $0x30] sm:$0xf]
      %v1633 = vld [vmem:[%s1619 + $0x34] sm:$0xf]
      %v1634 = vld [vmem:[%s1619 + $0x38] sm:$0xf]
      %v1635 = vld [vmem:[%s1619 + $0x3c] sm:$0xf]
      %vm1636 = vcmask 1041408
      %v1637 = vrot.slane %v227, 6
      %v1638 = vrot.slane %v228, 6
      %v1639 = vsel %vm1636, %v1637, %v1638
      %v1657 = vunpack.c.l.b16 %v1620
      %v1658 = vunpack.c.l.b16 %v1621
      %v1659 = vunpack.c.l.b16 %v1622
      %v1660 = vunpack.c.l.b16 %v1623
      %v1661 = vunpack.c.l.b16 %v1624
      %v1662 = vunpack.c.l.b16 %v1625
      %v1663 = vunpack.c.l.b16 %v1626
      %v1664 = vunpack.c.l.b16 %v1627
      %v1665 = vunpack.c.l.b16 %v1628
      %v1666 = vunpack.c.l.b16 %v1629
      %v1667 = vunpack.c.l.b16 %v1630
      %v1668 = vunpack.c.l.b16 %v1631
      %v1669 = vunpack.c.l.b16 %v1632
      %v1670 = vunpack.c.l.b16 %v1633
      %v1671 = vunpack.c.l.b16 %v1634
      %v1672 = vunpack.c.l.b16 %v1635
      %v1673 = vpack.c.b16 %v1658, %v1657
      %v1674 = vpack.c.b16 %v1660, %v1659
      %v1675 = vpack.c.b16 %v1662, %v1661
      %v1676 = vpack.c.b16 %v1664, %v1663
      %v1677 = vpack.c.b16 %v1666, %v1665
      %v1678 = vpack.c.b16 %v1668, %v1667
      %v1679 = vpack.c.b16 %v1670, %v1669
      %v1680 = vpack.c.b16 %v1672, %v1671
      %1689 = vmatprep.subr.bf16.mxu0 0
      %1690 = vmatpush1.bf16.msra.mxu0 %v1680
      %1691 = vmatprep.subr.bf16.mxu0 0
      %1692 = vmatpush1.bf16.msra.mxu0 %v1679
      %1693 = vmatprep.subr.bf16.mxu0 0
      %1694 = vmatpush1.bf16.msra.mxu0 %v1678
      %1695 = vmatprep.subr.bf16.mxu0 0
      %1696 = vmatpush1.bf16.msra.mxu0 %v1677
      %1697 = vmatprep.subr.bf16.mxu0 0
      %1698 = vmatpush1.bf16.msra.mxu0 %v1676
      %1699 = vmatprep.subr.bf16.mxu0 0
      %1700 = vmatpush1.bf16.msra.mxu0 %v1675
      %1701 = vmatprep.subr.bf16.mxu0 0
      %1702 = vmatpush1.bf16.msra.mxu0 %v1674
      %1703 = vmatprep.subr.bf16.mxu0 0
      %1704 = vmatpush1.bf16.msra.mxu0 %v1673
      %1705 = vmatprep.subr.bf16.mxu0 0
      %1706 = vmatpush2.bf16.msra.mxu0 0
      %1707 = vmatprep.subr.bf16.mxu0 0
      %1708 = vmatpush2.bf16.msra.mxu0 0
      %1709 = vmatprep.subr.bf16.mxu0 0
      %1710 = vmatpush2.bf16.msra.mxu0 0
      %1711 = vmatprep.subr.bf16.mxu0 0
      %1712 = vmatpush2.bf16.msra.mxu0 0
      %1713 = vmatprep.subr.bf16.mxu0 0
      %1714 = vmatpush2.bf16.msra.mxu0 0
      %1715 = vmatprep.subr.bf16.mxu0 0
      %1716 = vmatpush2.bf16.msra.mxu0 0
      %1717 = vmatprep.subr.bf16.mxu0 0
      %1718 = vmatpush2.bf16.msra.mxu0 0
      %1719 = vmatprep.subr.bf16.mxu0 0
      %1720 = vmatpush2.bf16.msra.mxu0 0
      %1721 = vmatprep.mubr.bf16.mxu0 0
      %1722 = vmatmul.mubr.bf16.gmra.mxu0 %v1639
      %v1723 = vpop.f32.mrf.mxu0
      %v1724 = vadd.f32 0.0, %v1723
      %v1725 = vpop.f32.mrf.mxu0
      %v1726 = vpop.f32.mrf.mxu0
      %v1727 = vadd.f32 0.0, %v1726
      %v1728 = vpop.f32.mrf.mxu0
      %1729 = vdwg.mxu0
      %v1730 = vadd.f32 %v1617, %v1724
      %v1731 = vadd.f32 %v1618, %v1727
      %s1732 = scalar_lea.vmem %s210, 832
      %v1733 = vld [vmem:[%s1732] sm:$0xf]
      %v1734 = vld [vmem:[%s1732 + $0x4] sm:$0xf]
      %v1735 = vld [vmem:[%s1732 + $0x8] sm:$0xf]
      %v1736 = vld [vmem:[%s1732 + $0xc] sm:$0xf]
      %v1737 = vld [vmem:[%s1732 + $0x10] sm:$0xf]
      %v1738 = vld [vmem:[%s1732 + $0x14] sm:$0xf]
      %v1739 = vld [vmem:[%s1732 + $0x18] sm:$0xf]
      %v1740 = vld [vmem:[%s1732 + $0x1c] sm:$0xf]
      %v1741 = vld [vmem:[%s1732 + $0x20] sm:$0xf]
      %v1742 = vld [vmem:[%s1732 + $0x24] sm:$0xf]
      %v1743 = vld [vmem:[%s1732 + $0x28] sm:$0xf]
      %v1744 = vld [vmem:[%s1732 + $0x2c] sm:$0xf]
      %v1745 = vld [vmem:[%s1732 + $0x30] sm:$0xf]
      %v1746 = vld [vmem:[%s1732 + $0x34] sm:$0xf]
      %v1747 = vld [vmem:[%s1732 + $0x38] sm:$0xf]
      %v1748 = vld [vmem:[%s1732 + $0x3c] sm:$0xf]
      %vm1749 = vsmask.f32 1280
      %v1750 = vrot.slane %v362, 6
      %v1751 = vrot.slane %v364, 7
      %v1752 = vor.u32 %v1750, %v1751
      %v1753 = vrot.slane %v601, 6
      %v1754 = vrot.slane %v369, 7
      %v1755 = vor.u32 %v1753, %v1754
      %v1756 = vsel %vm1749, %v1752, %v1755
      %v1774 = vunpack.c.l.b16 %v1733
      %v1775 = vunpack.c.l.b16 %v1734
      %v1776 = vunpack.c.l.b16 %v1735
      %v1777 = vunpack.c.l.b16 %v1736
      %v1778 = vunpack.c.l.b16 %v1737
      %v1779 = vunpack.c.l.b16 %v1738
      %v1780 = vunpack.c.l.b16 %v1739
      %v1781 = vunpack.c.l.b16 %v1740
      %v1782 = vunpack.c.l.b16 %v1741
      %v1783 = vunpack.c.l.b16 %v1742
      %v1784 = vunpack.c.l.b16 %v1743
      %v1785 = vunpack.c.l.b16 %v1744
      %v1786 = vunpack.c.l.b16 %v1745
      %v1787 = vunpack.c.l.b16 %v1746
      %v1788 = vunpack.c.l.b16 %v1747
      %v1789 = vunpack.c.l.b16 %v1748
      %v1790 = vpack.c.b16 %v1775, %v1774
      %v1791 = vpack.c.b16 %v1777, %v1776
      %v1792 = vpack.c.b16 %v1779, %v1778
      %v1793 = vpack.c.b16 %v1781, %v1780
      %v1794 = vpack.c.b16 %v1783, %v1782
      %v1795 = vpack.c.b16 %v1785, %v1784
      %v1796 = vpack.c.b16 %v1787, %v1786
      %v1797 = vpack.c.b16 %v1789, %v1788
      %1806 = vmatprep.subr.bf16.mxu0 0
      %1807 = vmatpush1.bf16.msra.mxu0 %v1797
      %1808 = vmatprep.subr.bf16.mxu0 0
      %1809 = vmatpush1.bf16.msra.mxu0 %v1796
      %1810 = vmatprep.subr.bf16.mxu0 0
      %1811 = vmatpush1.bf16.msra.mxu0 %v1795
      %1812 = vmatprep.subr.bf16.mxu0 0
      %1813 = vmatpush1.bf16.msra.mxu0 %v1794
      %1814 = vmatprep.subr.bf16.mxu0 0
      %1815 = vmatpush1.bf16.msra.mxu0 %v1793
      %1816 = vmatprep.subr.bf16.mxu0 0
      %1817 = vmatpush1.bf16.msra.mxu0 %v1792
      %1818 = vmatprep.subr.bf16.mxu0 0
      %1819 = vmatpush1.bf16.msra.mxu0 %v1791
      %1820 = vmatprep.subr.bf16.mxu0 0
      %1821 = vmatpush1.bf16.msra.mxu0 %v1790
      %1822 = vmatprep.subr.bf16.mxu0 0
      %1823 = vmatpush2.bf16.msra.mxu0 0
      %1824 = vmatprep.subr.bf16.mxu0 0
      %1825 = vmatpush2.bf16.msra.mxu0 0
      %1826 = vmatprep.subr.bf16.mxu0 0
      %1827 = vmatpush2.bf16.msra.mxu0 0
      %1828 = vmatprep.subr.bf16.mxu0 0
      %1829 = vmatpush2.bf16.msra.mxu0 0
      %1830 = vmatprep.subr.bf16.mxu0 0
      %1831 = vmatpush2.bf16.msra.mxu0 0
      %1832 = vmatprep.subr.bf16.mxu0 0
      %1833 = vmatpush2.bf16.msra.mxu0 0
      %1834 = vmatprep.subr.bf16.mxu0 0
      %1835 = vmatpush2.bf16.msra.mxu0 0
      %1836 = vmatprep.subr.bf16.mxu0 0
      %1837 = vmatpush2.bf16.msra.mxu0 0
      %1838 = vmatprep.mubr.bf16.mxu0 0
      %1839 = vmatmul.mubr.bf16.gmra.mxu0 %v1756
      %v1840 = vpop.f32.mrf.mxu0
      %v1841 = vadd.f32 0.0, %v1840
      %v1842 = vpop.f32.mrf.mxu0
      %v1843 = vpop.f32.mrf.mxu0
      %v1844 = vadd.f32 0.0, %v1843
      %v1845 = vpop.f32.mrf.mxu0
      %1846 = vdwg.mxu0
      %v1847 = vadd.f32 %v1730, %v1841
      %v1848 = vadd.f32 %v1731, %v1844
      %s1849 = scalar_lea.vmem %s210, 896
      %v1850 = vld [vmem:[%s1849] sm:$0xf]
      %v1851 = vld [vmem:[%s1849 + $0x4] sm:$0xf]
      %v1852 = vld [vmem:[%s1849 + $0x8] sm:$0xf]
      %v1853 = vld [vmem:[%s1849 + $0xc] sm:$0xf]
      %v1854 = vld [vmem:[%s1849 + $0x10] sm:$0xf]
      %v1855 = vld [vmem:[%s1849 + $0x14] sm:$0xf]
      %v1856 = vld [vmem:[%s1849 + $0x18] sm:$0xf]
      %v1857 = vld [vmem:[%s1849 + $0x1c] sm:$0xf]
      %v1858 = vld [vmem:[%s1849 + $0x20] sm:$0xf]
      %v1859 = vld [vmem:[%s1849 + $0x24] sm:$0xf]
      %v1860 = vld [vmem:[%s1849 + $0x28] sm:$0xf]
      %v1861 = vld [vmem:[%s1849 + $0x2c] sm:$0xf]
      %v1862 = vld [vmem:[%s1849 + $0x30] sm:$0xf]
      %v1863 = vld [vmem:[%s1849 + $0x34] sm:$0xf]
      %v1864 = vld [vmem:[%s1849 + $0x38] sm:$0xf]
      %v1865 = vld [vmem:[%s1849 + $0x3c] sm:$0xf]
      %vm1866 = vcmask 1040384
      %v1867 = vrot.slane %v227, 7
      %v1868 = vrot.slane %v228, 7
      %v1869 = vsel %vm1866, %v1867, %v1868
      %v1887 = vunpack.c.l.b16 %v1850
      %v1888 = vunpack.c.l.b16 %v1851
      %v1889 = vunpack.c.l.b16 %v1852
      %v1890 = vunpack.c.l.b16 %v1853
      %v1891 = vunpack.c.l.b16 %v1854
      %v1892 = vunpack.c.l.b16 %v1855
      %v1893 = vunpack.c.l.b16 %v1856
      %v1894 = vunpack.c.l.b16 %v1857
      %v1895 = vunpack.c.l.b16 %v1858
      %v1896 = vunpack.c.l.b16 %v1859
      %v1897 = vunpack.c.l.b16 %v1860
      %v1898 = vunpack.c.l.b16 %v1861
      %v1899 = vunpack.c.l.b16 %v1862
      %v1900 = vunpack.c.l.b16 %v1863
      %v1901 = vunpack.c.l.b16 %v1864
      %v1902 = vunpack.c.l.b16 %v1865
      %v1903 = vpack.c.b16 %v1888, %v1887
      %v1904 = vpack.c.b16 %v1890, %v1889
      %v1905 = vpack.c.b16 %v1892, %v1891
      %v1906 = vpack.c.b16 %v1894, %v1893
      %v1907 = vpack.c.b16 %v1896, %v1895
      %v1908 = vpack.c.b16 %v1898, %v1897
      %v1909 = vpack.c.b16 %v1900, %v1899
      %v1910 = vpack.c.b16 %v1902, %v1901
      %1919 = vmatprep.subr.bf16.mxu0 0
      %1920 = vmatpush1.bf16.msra.mxu0 %v1910
      %1921 = vmatprep.subr.bf16.mxu0 0
      %1922 = vmatpush1.bf16.msra.mxu0 %v1909
      %1923 = vmatprep.subr.bf16.mxu0 0
      %1924 = vmatpush1.bf16.msra.mxu0 %v1908
      %1925 = vmatprep.subr.bf16.mxu0 0
      %1926 = vmatpush1.bf16.msra.mxu0 %v1907
      %1927 = vmatprep.subr.bf16.mxu0 0
      %1928 = vmatpush1.bf16.msra.mxu0 %v1906
      %1929 = vmatprep.subr.bf16.mxu0 0
      %1930 = vmatpush1.bf16.msra.mxu0 %v1905
      %1931 = vmatprep.subr.bf16.mxu0 0
      %1932 = vmatpush1.bf16.msra.mxu0 %v1904
      %1933 = vmatprep.subr.bf16.mxu0 0
      %1934 = vmatpush1.bf16.msra.mxu0 %v1903
      %1935 = vmatprep.subr.bf16.mxu0 0
      %1936 = vmatpush2.bf16.msra.mxu0 0
      %1937 = vmatprep.subr.bf16.mxu0 0
      %1938 = vmatpush2.bf16.msra.mxu0 0
      %1939 = vmatprep.subr.bf16.mxu0 0
      %1940 = vmatpush2.bf16.msra.mxu0 0
      %1941 = vmatprep.subr.bf16.mxu0 0
      %1942 = vmatpush2.bf16.msra.mxu0 0
      %1943 = vmatprep.subr.bf16.mxu0 0
      %1944 = vmatpush2.bf16.msra.mxu0 0
      %1945 = vmatprep.subr.bf16.mxu0 0
      %1946 = vmatpush2.bf16.msra.mxu0 0
      %1947 = vmatprep.subr.bf16.mxu0 0
      %1948 = vmatpush2.bf16.msra.mxu0 0
      %1949 = vmatprep.subr.bf16.mxu0 0
      %1950 = vmatpush2.bf16.msra.mxu0 0
      %1951 = vmatprep.mubr.bf16.mxu0 0
      %1952 = vmatmul.mubr.bf16.gmra.mxu0 %v1869
      %v1953 = vpop.f32.mrf.mxu0
      %v1954 = vadd.f32 0.0, %v1953
      %v1955 = vpop.f32.mrf.mxu0
      %v1956 = vpop.f32.mrf.mxu0
      %v1957 = vadd.f32 0.0, %v1956
      %v1958 = vpop.f32.mrf.mxu0
      %1959 = vdwg.mxu0
      %v1960 = vadd.f32 %v1847, %v1954
      %v1961 = vadd.f32 %v1848, %v1957
      %1962 = vst [vmem:[%s221] sm:$0xff] %v1960
      %1963 = vst [vmem:[%s221 + $0x8] sm:$0xff] %v1961
      %p1964 = scmp.lt.s32.totalorder %s18, 1
      %s1965 = scalar_select %p1964, %s18, 1
      %p1966 = scmp.lt.s32.totalorder %s19, 0
      %s1967 = scalar_select %p1966, %s19, 0
      %s1968 = smul.addr %s1965, 2
      %s1969 = sadd.s32 %s1967, %s1968
      %s1970 = smul.addr %s1969, 8
      %s1971 = scalar_lea.vmem %s3, %s1970
      // Predicated region
      $region33: #{generator_forward.19} parent=31 // pred_check
        %p1972 = pneg %p124
      $region34: #{generator_forward.19} parent=31 // pred_check_branch
        %1974 = sbr.rel (%p1972) target = $region36
      $region35: #{generator_forward.19} parent=31 // pred_region
        _
      $region36: #{generator_forward.19} parent=31 // pred_fallthru
        _
    $region32: #{generator_forward.19} parent=5 // pred_fallthru
      _
    %p1975 = scmp.le.s32.totalorder 2, %s9
    // Predicated region
    $region37: #{generator_forward.19} parent=5 // pred_check
      %p1976 = pneg %p1975
    $region38: #{generator_forward.19} parent=5 // pred_check_branch
      %1978 = sbr.rel (%p1976) target = $region40
    $region39: #{generator_forward.19} parent=5 // pred_region
      %s1979 = ssub.s32 %s9, 2
      // Predicated region
      $region41: #{generator_forward.19} parent=39 // pred_check
        %p1980 = pneg %p130
      $region42: #{generator_forward.19} parent=39 // pred_check_branch
        %1982 = sbr.rel (%p1980) target = $region44
      $region43: #{generator_forward.19} parent=39 // pred_region
        %p1983 = scmp.lt.s32.totalorder %s20, 1
        %s1984 = scalar_select %p1983, %s20, 1
        %p1985 = scmp.lt.s32.totalorder %s21, 0
        %s1986 = scalar_select %p1985, %s21, 0
        %s1987 = smul.addr %s1984, 2
        %s1988 = sadd.s32 %s1986, %s1987
        %s1989 = smul.addr %s1988, 8
        %s1990 = scalar_lea.vmem %s3, %s1989
      $region44: #{generator_forward.19} parent=39 // pred_fallthru
        _
    $region40: #{generator_forward.19} parent=5 // pred_fallthru
      _
  $region6: #{generator_forward.19} parent=0 // loop_footer
    %s13 = sadd.s32 1, %s9
  $region7: #{generator_forward.19} parent=0 // loop_footer_branch
    %8 = sbr.rel target = $region3
  $region8: #{generator_forward.19} parent=0 // loop_exit
    _

</llo_original>
